<compile_context>
chip_gen: v7x
topology: tpu7x:2x2x1
jax: 0.10.0
libtpu: 0.0.40
codegen_flags: <defaults>
</compile_context>

<pallas_src>
import functools

import jax
import jax.numpy as jnp
from jax.experimental import pallas as pl
from jax.experimental.pallas import tpu as pltpu


def _diffeq_kernel(substeps, n_ilp, bf16_proj,
                   dt_ref,                  # scalar-prefetch: (max(T-1,1),) f32 SMEM
                   fp_ref,                  # (tbn, Dp) first_point tile
                   w1_ref, b1_ref,          # ode_func layer 1: (Dp, Hp), (1, Hp)
                   w2_ref, b2_ref,          # ode_func layer 2: (Hp, Dp), (1, Dp)
                   wl_ref, bl_ref,          # linear_layer:     (Dp, Pp), (1, Pp)
                   out_ref):                # (T*tbn, Pp) lane-dense output block
    tbn, Dp = fp_ref.shape
    Pp = out_ref.shape[1]
    T = out_ref.shape[0] // tbn
    rows = tbn // n_ilp

    # Loop-invariant weight loads hoisted once (ode_f runs 4*substeps*(T-1)
    # times per chain).  Biases stay (1, H)-shaped: the add sublane-broadcasts,
    # so they pin ~1 vreg each instead of tbn/8 vregs for the whole kernel.
    w1 = w1_ref[...]
    b1 = b1_ref[...]
    w2 = w2_ref[...]
    b2 = b2_ref[...]
    bl = bl_ref[...]
    if bf16_proj:
        wl = wl_ref[...].astype(jnp.bfloat16)
        cast_p = lambda y: y.astype(jnp.bfloat16)
    else:
        wl = wl_ref[...]
        cast_p = lambda y: y

    def ode_f(y):
        h = jnp.tanh(jnp.dot(y, w1, preferred_element_type=jnp.float32) + b1)
        return jnp.dot(h, w2, preferred_element_type=jnp.float32) + b2

    def rk4(y, dt, half_dt, dt6):
        # Incremental accumulation keeps the live set at ~4 (rows, 128) arrays
        # (y, acc, current k, current stage input) instead of y + k1..k4.
        k1 = ode_f(y)
        acc = k1
        k2 = ode_f(y + half_dt * k1)
        acc = acc + 2.0 * k2
        k3 = ode_f(y + half_dt * k2)
        acc = acc + 2.0 * k3
        k4 = ode_f(y + dt * k3)
        return y + dt6 * (acc + k4)

    def project(y):
        return (jnp.dot(cast_p(y), wl, preferred_element_type=jnp.float32)
                + bl).astype(out_ref.dtype)

    # t = 0: odeint returns first_point itself at time_steps[0].
    chunks0 = []
    for i in range(n_ilp):
        y_i = fp_ref[pl.ds(i * rows, rows), :].astype(jnp.float32)
        out_ref[pl.ds(i * rows, rows), :] = project(y_i)
        chunks0.append(y_i)
    chunks0 = tuple(chunks0)

    def step(t, chunks):
        dt = dt_ref[t - 1]            # already divided by substeps in wrapper
        half_dt = 0.5 * dt
        dt6 = dt / 6.0
        new_chunks = []
        for y in chunks:              # independent chains -> cross-row ILP
            for _ in range(substeps):   # static unroll (substeps is a Python int)
                y = rk4(y, dt, half_dt, dt6)
            new_chunks.append(y)
        for i, y in enumerate(new_chunks):
            row = pl.multiple_of(t * tbn + i * rows, rows)
            out_ref[pl.ds(row, rows), :] = project(y)
        return tuple(new_chunks)

    trip = T - 1
    if trip > 0:
        # Partial unroll: full when small, else 4 (an opaque sequential loop
        # costs ~35%; a full unroll at large T*substeps blows up vregs/compile).
        unroll = trip if trip * substeps <= 16 else min(4, trip)
        jax.lax.fori_loop(1, T, step, chunks0, unroll=unroll)


def _round_up(x, m):
    return ((x + m - 1) // m) * m


def _pad2(x, rows, cols):
    return jnp.pad(x, ((0, rows - x.shape[0]), (0, cols - x.shape[1])))


def _num_tensorcores():
    """Best-effort TensorCore count (2 on v7x, 1 on v5e/v6e); conservative 1."""
    try:
        info = pltpu.get_tpu_info()
        for attr in ("num_cores", "core_count", "num_tensorcores",
                     "tensorcore_count"):
            v = getattr(info, attr, None)
            if isinstance(v, int) and v > 0:
                return v
    except Exception:
        pass
    try:
        v = getattr(jax.devices()[0], "num_cores", None)
        if isinstance(v, int) and v > 0:
            return v
    except Exception:
        pass
    return 1


def _vmem_capacity_bytes():
    try:
        return int(pltpu.get_tpu_info().vmem_capacity_bytes)
    except Exception:
        return 64 << 20          # v7x floor; v5e/v6e have 128 MiB physical


def diffeq_solver_pallas(first_point, time_steps, params, *, substeps=1,
                         bf16_projection=False):
    """first_point: (BN, D) f32; time_steps: (T,) f32; returns (T, BN, num_point)."""
    BN, D = first_point.shape
    T = int(time_steps.shape[0])
    w1, b1, w2, b2, wl, bl = params
    H = w1.shape[1]
    P = wl.shape[1]

    LANE, SUB = 128, 8
    Dp = _round_up(max(D, LANE), LANE)
    Hp = _round_up(max(H, LANE), LANE)
    Pp = _round_up(max(P, LANE), LANE)
    BNp = _round_up(BN, SUB)

    # Generation-aware BN tiling: split across TensorCores only when the chip
    # actually has more than one TC and each per-core tile keeps M >= 128.
    n_cores = _num_tensorcores()
    if n_cores > 1 and BNp >= 128 * n_cores:
        BNp = _round_up(BNp, SUB * n_cores)
        n_bn = n_cores
    else:
        n_bn = 1
    tbn = BNp // n_bn

    # In-kernel ILP for small tiles: two independent RK4 chains fill the
    # MXU->tanh(EUP)->MXU latency bubbles that a single small-M chain leaves.
    n_ilp = 2 if (16 <= tbn <= 64 and tbn % 16 == 0) else 1

    # Zero-pad lane dims to 128.  Exact because tanh(0) == 0 and biases are
    # zero-padded, so padded state columns stay identically zero through RK4.
    # NOTE: this guarantee breaks if the activation changes to one with
    # f(0) != 0 (e.g. sigmoid) -- revisit the padding argument then.
    fp_p = _pad2(first_point.astype(jnp.float32), BNp, Dp)
    w1p = _pad2(w1, Dp, Hp)
    b1p = _pad2(b1, 1, Hp)
    w2p = _pad2(w2, Hp, Dp)
    b2p = _pad2(b2, 1, Dp)
    wlp = _pad2(wl, Dp, Pp)
    blp = _pad2(bl, 1, Pp)

    # dt per interval, pre-divided by substeps, scalar-prefetched into SMEM
    # (removes a scalar sub/div + extra SMEM read from the sequential loop).
    ts = time_steps.astype(jnp.float32)
    if T > 1:
        dts = (ts[1:] - ts[:-1]) / float(substeps)
    else:
        dts = jnp.zeros((1,), jnp.float32)

    # Weights/biases: constant block index -> resident across grid steps.
    full = lambda shape: pl.BlockSpec(shape, lambda j, *_: (0, 0))

    # Only raise the scoped-VMEM limit above the conservative per-chip default
    # (16 MiB on v5e) when the footprint actually needs it.
    block_bytes = 4 * (2 * tbn * Dp + 2 * T * tbn * Pp
                       + Dp * Hp + Hp * Dp + Dp * Pp + Hp + Dp + Pp)
    vmem_limit = None
    if block_bytes + (4 << 20) > (16 << 20):
        vmem_limit = min(block_bytes + (8 << 20),
                         _vmem_capacity_bytes() - (4 << 20))

    out_p = pl.pallas_call(
        functools.partial(_diffeq_kernel, substeps, n_ilp, bf16_projection),
        out_shape=jax.ShapeDtypeStruct((n_bn * T * tbn, Pp), jnp.float32),
        grid_spec=pltpu.PrefetchScalarGridSpec(
            num_scalar_prefetch=1,
            grid=(n_bn,),
            in_specs=[
                pl.BlockSpec((tbn, Dp), lambda j, *_: (j, 0)),  # first_point tile
                full((Dp, Hp)),                                 # W1
                full((1, Hp)),                                  # b1
                full((Hp, Dp)),                                 # W2
                full((1, Dp)),                                  # b2
                full((Dp, Pp)),                                 # W_linear (in x out)
                full((1, Pp)),                                  # b_linear
            ],
            out_specs=pl.BlockSpec((T * tbn, Pp), lambda j, *_: (j, 0)),
        ),
        compiler_params=pltpu.CompilerParams(
            dimension_semantics=("parallel",) if n_bn > 1 else ("arbitrary",),
            vmem_limit_bytes=vmem_limit,
        ),
    )(dts, fp_p, w1p, b1p, w2p, b2p, wlp, blp)

    # (n_bn*T*tbn, Pp) -> (T, BN, P); the reshape/transpose runs in HBM/XLA.
    out = out_p.reshape(n_bn, T, tbn, Pp).transpose(1, 0, 2, 3).reshape(T, BNp, Pp)
    return out[:, :BN, :P]


def _reference(first_point, time_steps, params):
    """Plain-JAX reference of the same fixed-step RK4 + Linear forward."""
    w1, b1, w2, b2, wl, bl = params
    f = lambda y: jnp.tanh(y @ w1 + b1) @ w2 + b2

    def step(y, dt):
        k1 = f(y)
        k2 = f(y + 0.5 * dt * k1)
        k3 = f(y + 0.5 * dt * k2)
        k4 = f(y + dt * k3)
        y_new = y + (dt / 6.0) * (k1 + 2 * k2 + 2 * k3 + k4)
        return y_new, y_new

    dts = time_steps[1:] - time_steps[:-1]
    _, ys = jax.lax.scan(step, first_point, dts)
    traj = jnp.concatenate([first_point[None], ys], axis=0)   # (T, BN, D)
    return traj @ wl + bl


if __name__ == "__main__":
    # Small shapes consistent with the module:
    #   first_point: (batch * n_samples, num_point + asc_dim_trans)
    batch, n_samples = 2, 8
    num_point, asc_dim_trans = 16, 16
    D = num_point + asc_dim_trans           # ODE state dim = 32
    H = 32                                  # ode_func hidden dim
    BN = batch * n_samples                  # 16 (exercises the 2-chain ILP path)
    T = 8                                   # number of time steps to predict

    key = jax.random.PRNGKey(0)
    k_fp, k_w1, k_b1, k_w2, k_b2, k_wl, k_bl = jax.random.split(key, 7)

    first_point = jax.random.normal(k_fp, (BN, D), dtype=jnp.float32)
    time_steps = jnp.linspace(0.0, 1.0, T, dtype=jnp.float32)

    scale = 0.1
    w1 = scale * jax.random.normal(k_w1, (D, H), dtype=jnp.float32)
    b1 = scale * jax.random.normal(k_b1, (1, H), dtype=jnp.float32)
    w2 = scale * jax.random.normal(k_w2, (H, D), dtype=jnp.float32)
    b2 = scale * jax.random.normal(k_b2, (1, D), dtype=jnp.float32)
    # nn.Linear(num_point + asc_dim_trans, num_point): stored as (in, out)
    wl = scale * jax.random.normal(k_wl, (D, num_point), dtype=jnp.float32)
    bl = scale * jax.random.normal(k_bl, (1, num_point), dtype=jnp.float32)
    params = (w1, b1, w2, b2, wl, bl)

    out = diffeq_solver_pallas(first_point, time_steps, params)
    out = jax.block_until_ready(out)

    ref = jax.block_until_ready(_reference(first_point, time_steps, params))
    assert out.shape == (T, BN, num_point), out.shape
    assert jnp.allclose(out, ref, atol=1e-4, rtol=1e-4), \
        float(jnp.max(jnp.abs(out - ref)))

    print("KERNEL_OK")
</pallas_src>

<mosaic_0001>
module attributes {stable_mosaic.version = 11 : i64} {
  func.func @_diffeq_kernel(%arg0: i32, %arg1: memref<7xf32, #tpu.memory_space<smem>>, %arg2: memref<16x128xf32, #tpu.memory_space<vmem>>, %arg3: memref<128x128xf32, #tpu.memory_space<vmem>>, %arg4: memref<1x128xf32, #tpu.memory_space<vmem>>, %arg5: memref<128x128xf32, #tpu.memory_space<vmem>>, %arg6: memref<1x128xf32, #tpu.memory_space<vmem>>, %arg7: memref<128x128xf32, #tpu.memory_space<vmem>>, %arg8: memref<1x128xf32, #tpu.memory_space<vmem>>, %arg9: memref<128x128xf32, #tpu.memory_space<vmem>>) attributes {dimension_semantics = [#tpu.dimension_semantics<arbitrary>], iteration_bounds = array<i64: 1>, scalar_prefetch = 1 : i64, scratch_operands = 0 : i64, tpu.core_type = #tpu.core_type<tc>, window_params = [{transform_indices = @transform_0, window_bounds = array<i64: 16, 128>}, {pipeline_mode = #tpu.pipeline_mode<synchronous>, transform_indices = @transform_1, window_bounds = array<i64: 128, 128>}, {pipeline_mode = #tpu.pipeline_mode<synchronous>, transform_indices = @transform_2, window_bounds = array<i64: 1, 128>}, {pipeline_mode = #tpu.pipeline_mode<synchronous>, transform_indices = @transform_3, window_bounds = array<i64: 128, 128>}, {pipeline_mode = #tpu.pipeline_mode<synchronous>, transform_indices = @transform_4, window_bounds = array<i64: 1, 128>}, {pipeline_mode = #tpu.pipeline_mode<synchronous>, transform_indices = @transform_5, window_bounds = array<i64: 128, 128>}, {pipeline_mode = #tpu.pipeline_mode<synchronous>, transform_indices = @transform_6, window_bounds = array<i64: 1, 128>}, {transform_indices = @transform_7, window_bounds = array<i64: 128, 128>}]} {
    %c0 = arith.constant 0 : index
    %c0_0 = arith.constant 0 : index
    %0 = vector.load %arg3[%c0, %c0_0] : memref<128x128xf32, #tpu.memory_space<vmem>>, vector<128x128xf32>
    %c0_1 = arith.constant 0 : index
    %c0_2 = arith.constant 0 : index
    %1 = vector.load %arg4[%c0_1, %c0_2] : memref<1x128xf32, #tpu.memory_space<vmem>>, vector<1x128xf32>
    %c0_3 = arith.constant 0 : index
    %c0_4 = arith.constant 0 : index
    %2 = vector.load %arg5[%c0_3, %c0_4] : memref<128x128xf32, #tpu.memory_space<vmem>>, vector<128x128xf32>
    %c0_5 = arith.constant 0 : index
    %c0_6 = arith.constant 0 : index
    %3 = vector.load %arg6[%c0_5, %c0_6] : memref<1x128xf32, #tpu.memory_space<vmem>>, vector<1x128xf32>
    %c0_7 = arith.constant 0 : index
    %c0_8 = arith.constant 0 : index
    %4 = vector.load %arg8[%c0_7, %c0_8] : memref<1x128xf32, #tpu.memory_space<vmem>>, vector<1x128xf32>
    %c0_9 = arith.constant 0 : index
    %c0_10 = arith.constant 0 : index
    %5 = vector.load %arg7[%c0_9, %c0_10] : memref<128x128xf32, #tpu.memory_space<vmem>>, vector<128x128xf32>
    %c0_11 = arith.constant 0 : index
    %c0_12 = arith.constant 0 : index
    %6 = vector.load %arg2[%c0_11, %c0_12] : memref<16x128xf32, #tpu.memory_space<vmem>>, vector<8x128xf32>
    %cst = arith.constant dense<0.000000e+00> : vector<8x128xf32>
    %7 = tpu.matmul %6, %5, %cst {dimension_numbers = #tpu.dot_dimension_numbers<[1], [0], [0], [1], [0, 0, 1, 1], [], []>} : vector<8x128xf32>, vector<128x128xf32>, vector<8x128xf32> -> vector<8x128xf32>
    %8 = vector.broadcast %4 : vector<1x128xf32> to vector<8x128xf32>
    %9 = arith.addf %7, %8 : vector<8x128xf32>
    %c0_13 = arith.constant 0 : index
    %c0_14 = arith.constant 0 : index
    %10 = vector.load %arg9[%c0_13, %c0_14] : memref<128x128xf32, #tpu.memory_space<vmem>>, vector<8x128xf32>
    tpu.vector_store %arg9[%c0_13, %c0_14], %9 {strides = array<i32>} : memref<128x128xf32, #tpu.memory_space<vmem>>, vector<8x128xf32>,
    %c8 = arith.constant 8 : index
    %c0_15 = arith.constant 0 : index
    %11 = vector.load %arg2[%c8, %c0_15] : memref<16x128xf32, #tpu.memory_space<vmem>>, vector<8x128xf32>
    %cst_16 = arith.constant dense<0.000000e+00> : vector<8x128xf32>
    %12 = tpu.matmul %11, %5, %cst_16 {dimension_numbers = #tpu.dot_dimension_numbers<[1], [0], [0], [1], [0, 0, 1, 1], [], []>} : vector<8x128xf32>, vector<128x128xf32>, vector<8x128xf32> -> vector<8x128xf32>
    %13 = vector.broadcast %4 : vector<1x128xf32> to vector<8x128xf32>
    %14 = arith.addf %12, %13 : vector<8x128xf32>
    %c8_17 = arith.constant 8 : index
    %c0_18 = arith.constant 0 : index
    %15 = vector.load %arg9[%c8_17, %c0_18] : memref<128x128xf32, #tpu.memory_space<vmem>>, vector<8x128xf32>
    tpu.vector_store %arg9[%c8_17, %c0_18], %14 {strides = array<i32>} : memref<128x128xf32, #tpu.memory_space<vmem>>, vector<8x128xf32>,
    %c1_i32 = arith.constant 1 : i32
    %c1_i32_19 = arith.constant 1 : i32
    %16 = arith.subi %c1_i32, %c1_i32_19 : i32
    %17 = arith.index_cast %16 : i32 to index
    %18 = memref.load %arg1[%17] : memref<7xf32, #tpu.memory_space<smem>>
    %cst_20 = arith.constant 5.000000e-01 : f32
    %19 = arith.mulf %cst_20, %18 : f32
    %cst_21 = arith.constant 6.000000e+00 : f32
    %20 = arith.divf %18, %cst_21 : f32
    %cst_22 = arith.constant dense<0.000000e+00> : vector<8x128xf32>
    %21 = tpu.matmul %6, %0, %cst_22 {dimension_numbers = #tpu.dot_dimension_numbers<[1], [0], [0], [1], [0, 0, 1, 1], [], []>} : vector<8x128xf32>, vector<128x128xf32>, vector<8x128xf32> -> vector<8x128xf32>
    %22 = vector.broadcast %1 : vector<1x128xf32> to vector<8x128xf32>
    %23 = arith.addf %21, %22 : vector<8x128xf32>
    %24 = math.tanh %23 : vector<8x128xf32>
    %cst_23 = arith.constant dense<0.000000e+00> : vector<8x128xf32>
    %25 = tpu.matmul %24, %2, %cst_23 {dimension_numbers = #tpu.dot_dimension_numbers<[1], [0], [0], [1], [0, 0, 1, 1], [], []>} : vector<8x128xf32>, vector<128x128xf32>, vector<8x128xf32> -> vector<8x128xf32>
    %26 = vector.broadcast %3 : vector<1x128xf32> to vector<8x128xf32>
    %27 = arith.addf %25, %26 : vector<8x128xf32>
    %28 = vector.broadcast %19 : f32 to vector<8x128xf32>
    %29 = arith.mulf %28, %27 : vector<8x128xf32>
    %30 = arith.addf %6, %29 : vector<8x128xf32>
    %cst_24 = arith.constant dense<0.000000e+00> : vector<8x128xf32>
    %31 = tpu.matmul %30, %0, %cst_24 {dimension_numbers = #tpu.dot_dimension_numbers<[1], [0], [0], [1], [0, 0, 1, 1], [], []>} : vector<8x128xf32>, vector<128x128xf32>, vector<8x128xf32> -> vector<8x128xf32>
    %32 = vector.broadcast %1 : vector<1x128xf32> to vector<8x128xf32>
    %33 = arith.addf %31, %32 : vector<8x128xf32>
    %34 = math.tanh %33 : vector<8x128xf32>
    %cst_25 = arith.constant dense<0.000000e+00> : vector<8x128xf32>
    %35 = tpu.matmul %34, %2, %cst_25 {dimension_numbers = #tpu.dot_dimension_numbers<[1], [0], [0], [1], [0, 0, 1, 1], [], []>} : vector<8x128xf32>, vector<128x128xf32>, vector<8x128xf32> -> vector<8x128xf32>
    %36 = vector.broadcast %3 : vector<1x128xf32> to vector<8x128xf32>
    %37 = arith.addf %35, %36 : vector<8x128xf32>
    %cst_26 = arith.constant 2.000000e+00 : f32
    %38 = vector.broadcast %cst_26 : f32 to vector<8x128xf32>
    %39 = arith.mulf %38, %37 : vector<8x128xf32>
    %40 = arith.addf %27, %39 : vector<8x128xf32>
    %41 = vector.broadcast %19 : f32 to vector<8x128xf32>
    %42 = arith.mulf %41, %37 : vector<8x128xf32>
    %43 = arith.addf %6, %42 : vector<8x128xf32>
    %cst_27 = arith.constant dense<0.000000e+00> : vector<8x128xf32>
    %44 = tpu.matmul %43, %0, %cst_27 {dimension_numbers = #tpu.dot_dimension_numbers<[1], [0], [0], [1], [0, 0, 1, 1], [], []>} : vector<8x128xf32>, vector<128x128xf32>, vector<8x128xf32> -> vector<8x128xf32>
    %45 = vector.broadcast %1 : vector<1x128xf32> to vector<8x128xf32>
    %46 = arith.addf %44, %45 : vector<8x128xf32>
    %47 = math.tanh %46 : vector<8x128xf32>
    %cst_28 = arith.constant dense<0.000000e+00> : vector<8x128xf32>
    %48 = tpu.matmul %47, %2, %cst_28 {dimension_numbers = #tpu.dot_dimension_numbers<[1], [0], [0], [1], [0, 0, 1, 1], [], []>} : vector<8x128xf32>, vector<128x128xf32>, vector<8x128xf32> -> vector<8x128xf32>
    %49 = vector.broadcast %3 : vector<1x128xf32> to vector<8x128xf32>
    %50 = arith.addf %48, %49 : vector<8x128xf32>
    %cst_29 = arith.constant 2.000000e+00 : f32
    %51 = vector.broadcast %cst_29 : f32 to vector<8x128xf32>
    %52 = arith.mulf %51, %50 : vector<8x128xf32>
    %53 = arith.addf %40, %52 : vector<8x128xf32>
    %54 = vector.broadcast %18 : f32 to vector<8x128xf32>
    %55 = arith.mulf %54, %50 : vector<8x128xf32>
    %56 = arith.addf %6, %55 : vector<8x128xf32>
    %cst_30 = arith.constant dense<0.000000e+00> : vector<8x128xf32>
    %57 = tpu.matmul %56, %0, %cst_30 {dimension_numbers = #tpu.dot_dimension_numbers<[1], [0], [0], [1], [0, 0, 1, 1], [], []>} : vector<8x128xf32>, vector<128x128xf32>, vector<8x128xf32> -> vector<8x128xf32>
    %58 = vector.broadcast %1 : vector<1x128xf32> to vector<8x128xf32>
    %59 = arith.addf %57, %58 : vector<8x128xf32>
    %60 = math.tanh %59 : vector<8x128xf32>
    %cst_31 = arith.constant dense<0.000000e+00> : vector<8x128xf32>
    %61 = tpu.matmul %60, %2, %cst_31 {dimension_numbers = #tpu.dot_dimension_numbers<[1], [0], [0], [1], [0, 0, 1, 1], [], []>} : vector<8x128xf32>, vector<128x128xf32>, vector<8x128xf32> -> vector<8x128xf32>
    %62 = vector.broadcast %3 : vector<1x128xf32> to vector<8x128xf32>
    %63 = arith.addf %61, %62 : vector<8x128xf32>
    %64 = arith.addf %53, %63 : vector<8x128xf32>
    %65 = vector.broadcast %20 : f32 to vector<8x128xf32>
    %66 = arith.mulf %65, %64 : vector<8x128xf32>
    %67 = arith.addf %6, %66 : vector<8x128xf32>
    %cst_32 = arith.constant dense<0.000000e+00> : vector<8x128xf32>
    %68 = tpu.matmul %11, %0, %cst_32 {dimension_numbers = #tpu.dot_dimension_numbers<[1], [0], [0], [1], [0, 0, 1, 1], [], []>} : vector<8x128xf32>, vector<128x128xf32>, vector<8x128xf32> -> vector<8x128xf32>
    %69 = vector.broadcast %1 : vector<1x128xf32> to vector<8x128xf32>
    %70 = arith.addf %68, %69 : vector<8x128xf32>
    %71 = math.tanh %70 : vector<8x128xf32>
    %cst_33 = arith.constant dense<0.000000e+00> : vector<8x128xf32>
    %72 = tpu.matmul %71, %2, %cst_33 {dimension_numbers = #tpu.dot_dimension_numbers<[1], [0], [0], [1], [0, 0, 1, 1], [], []>} : vector<8x128xf32>, vector<128x128xf32>, vector<8x128xf32> -> vector<8x128xf32>
    %73 = vector.broadcast %3 : vector<1x128xf32> to vector<8x128xf32>
    %74 = arith.addf %72, %73 : vector<8x128xf32>
    %75 = vector.broadcast %19 : f32 to vector<8x128xf32>
    %76 = arith.mulf %75, %74 : vector<8x128xf32>
    %77 = arith.addf %11, %76 : vector<8x128xf32>
    %cst_34 = arith.constant dense<0.000000e+00> : vector<8x128xf32>
    %78 = tpu.matmul %77, %0, %cst_34 {dimension_numbers = #tpu.dot_dimension_numbers<[1], [0], [0], [1], [0, 0, 1, 1], [], []>} : vector<8x128xf32>, vector<128x128xf32>, vector<8x128xf32> -> vector<8x128xf32>
    %79 = vector.broadcast %1 : vector<1x128xf32> to vector<8x128xf32>
    %80 = arith.addf %78, %79 : vector<8x128xf32>
    %81 = math.tanh %80 : vector<8x128xf32>
    %cst_35 = arith.constant dense<0.000000e+00> : vector<8x128xf32>
    %82 = tpu.matmul %81, %2, %cst_35 {dimension_numbers = #tpu.dot_dimension_numbers<[1], [0], [0], [1], [0, 0, 1, 1], [], []>} : vector<8x128xf32>, vector<128x128xf32>, vector<8x128xf32> -> vector<8x128xf32>
    %83 = vector.broadcast %3 : vector<1x128xf32> to vector<8x128xf32>
    %84 = arith.addf %82, %83 : vector<8x128xf32>
    %cst_36 = arith.constant 2.000000e+00 : f32
    %85 = vector.broadcast %cst_36 : f32 to vector<8x128xf32>
    %86 = arith.mulf %85, %84 : vector<8x128xf32>
    %87 = arith.addf %74, %86 : vector<8x128xf32>
    %88 = vector.broadcast %19 : f32 to vector<8x128xf32>
    %89 = arith.mulf %88, %84 : vector<8x128xf32>
    %90 = arith.addf %11, %89 : vector<8x128xf32>
    %cst_37 = arith.constant dense<0.000000e+00> : vector<8x128xf32>
    %91 = tpu.matmul %90, %0, %cst_37 {dimension_numbers = #tpu.dot_dimension_numbers<[1], [0], [0], [1], [0, 0, 1, 1], [], []>} : vector<8x128xf32>, vector<128x128xf32>, vector<8x128xf32> -> vector<8x128xf32>
    %92 = vector.broadcast %1 : vector<1x128xf32> to vector<8x128xf32>
    %93 = arith.addf %91, %92 : vector<8x128xf32>
    %94 = math.tanh %93 : vector<8x128xf32>
    %cst_38 = arith.constant dense<0.000000e+00> : vector<8x128xf32>
    %95 = tpu.matmul %94, %2, %cst_38 {dimension_numbers = #tpu.dot_dimension_numbers<[1], [0], [0], [1], [0, 0, 1, 1], [], []>} : vector<8x128xf32>, vector<128x128xf32>, vector<8x128xf32> -> vector<8x128xf32>
    %96 = vector.broadcast %3 : vector<1x128xf32> to vector<8x128xf32>
    %97 = arith.addf %95, %96 : vector<8x128xf32>
    %cst_39 = arith.constant 2.000000e+00 : f32
    %98 = vector.broadcast %cst_39 : f32 to vector<8x128xf32>
    %99 = arith.mulf %98, %97 : vector<8x128xf32>
    %100 = arith.addf %87, %99 : vector<8x128xf32>
    %101 = vector.broadcast %18 : f32 to vector<8x128xf32>
    %102 = arith.mulf %101, %97 : vector<8x128xf32>
    %103 = arith.addf %11, %102 : vector<8x128xf32>
    %cst_40 = arith.constant dense<0.000000e+00> : vector<8x128xf32>
    %104 = tpu.matmul %103, %0, %cst_40 {dimension_numbers = #tpu.dot_dimension_numbers<[1], [0], [0], [1], [0, 0, 1, 1], [], []>} : vector<8x128xf32>, vector<128x128xf32>, vector<8x128xf32> -> vector<8x128xf32>
    %105 = vector.broadcast %1 : vector<1x128xf32> to vector<8x128xf32>
    %106 = arith.addf %104, %105 : vector<8x128xf32>
    %107 = math.tanh %106 : vector<8x128xf32>
    %cst_41 = arith.constant dense<0.000000e+00> : vector<8x128xf32>
    %108 = tpu.matmul %107, %2, %cst_41 {dimension_numbers = #tpu.dot_dimension_numbers<[1], [0], [0], [1], [0, 0, 1, 1], [], []>} : vector<8x128xf32>, vector<128x128xf32>, vector<8x128xf32> -> vector<8x128xf32>
    %109 = vector.broadcast %3 : vector<1x128xf32> to vector<8x128xf32>
    %110 = arith.addf %108, %109 : vector<8x128xf32>
    %111 = arith.addf %100, %110 : vector<8x128xf32>
    %112 = vector.broadcast %20 : f32 to vector<8x128xf32>
    %113 = arith.mulf %112, %111 : vector<8x128xf32>
    %114 = arith.addf %11, %113 : vector<8x128xf32>
    %c16_i32 = arith.constant 16 : i32
    %115 = arith.muli %c1_i32, %c16_i32 : i32
    %c0_i32 = arith.constant 0 : i32
    %116 = arith.addi %115, %c0_i32 : i32
    %117 = tpu.assume_multiple %116, 8 : i32
    %cst_42 = arith.constant dense<0.000000e+00> : vector<8x128xf32>
    %118 = tpu.matmul %67, %5, %cst_42 {dimension_numbers = #tpu.dot_dimension_numbers<[1], [0], [0], [1], [0, 0, 1, 1], [], []>} : vector<8x128xf32>, vector<128x128xf32>, vector<8x128xf32> -> vector<8x128xf32>
    %119 = vector.broadcast %4 : vector<1x128xf32> to vector<8x128xf32>
    %120 = arith.addf %118, %119 : vector<8x128xf32>
    %121 = arith.index_cast %117 : i32 to index
    %c0_43 = arith.constant 0 : index
    %122 = vector.load %arg9[%121, %c0_43] : memref<128x128xf32, #tpu.memory_space<vmem>>, vector<8x128xf32>
    tpu.vector_store %arg9[%121, %c0_43], %120 {strides = array<i32>} : memref<128x128xf32, #tpu.memory_space<vmem>>, vector<8x128xf32>,
    %c16_i32_44 = arith.constant 16 : i32
    %123 = arith.muli %c1_i32, %c16_i32_44 : i32
    %c8_i32 = arith.constant 8 : i32
    %124 = arith.addi %123, %c8_i32 : i32
    %125 = tpu.assume_multiple %124, 8 : i32
    %cst_45 = arith.constant dense<0.000000e+00> : vector<8x128xf32>
    %126 = tpu.matmul %114, %5, %cst_45 {dimension_numbers = #tpu.dot_dimension_numbers<[1], [0], [0], [1], [0, 0, 1, 1], [], []>} : vector<8x128xf32>, vector<128x128xf32>, vector<8x128xf32> -> vector<8x128xf32>
    %127 = vector.broadcast %4 : vector<1x128xf32> to vector<8x128xf32>
    %128 = arith.addf %126, %127 : vector<8x128xf32>
    %129 = arith.index_cast %125 : i32 to index
    %c0_46 = arith.constant 0 : index
    %130 = vector.load %arg9[%129, %c0_46] : memref<128x128xf32, #tpu.memory_space<vmem>>, vector<8x128xf32>
    tpu.vector_store %arg9[%129, %c0_46], %128 {strides = array<i32>} : memref<128x128xf32, #tpu.memory_space<vmem>>, vector<8x128xf32>,
    %c2_i32 = arith.constant 2 : i32
    %c1_i32_47 = arith.constant 1 : i32
    %131 = arith.subi %c2_i32, %c1_i32_47 : i32
    %132 = arith.index_cast %131 : i32 to index
    %133 = memref.load %arg1[%132] : memref<7xf32, #tpu.memory_space<smem>>
    %cst_48 = arith.constant 5.000000e-01 : f32
    %134 = arith.mulf %cst_48, %133 : f32
    %cst_49 = arith.constant 6.000000e+00 : f32
    %135 = arith.divf %133, %cst_49 : f32
    %cst_50 = arith.constant dense<0.000000e+00> : vector<8x128xf32>
    %136 = tpu.matmul %67, %0, %cst_50 {dimension_numbers = #tpu.dot_dimension_numbers<[1], [0], [0], [1], [0, 0, 1, 1], [], []>} : vector<8x128xf32>, vector<128x128xf32>, vector<8x128xf32> -> vector<8x128xf32>
    %137 = vector.broadcast %1 : vector<1x128xf32> to vector<8x128xf32>
    %138 = arith.addf %136, %137 : vector<8x128xf32>
    %139 = math.tanh %138 : vector<8x128xf32>
    %cst_51 = arith.constant dense<0.000000e+00> : vector<8x128xf32>
    %140 = tpu.matmul %139, %2, %cst_51 {dimension_numbers = #tpu.dot_dimension_numbers<[1], [0], [0], [1], [0, 0, 1, 1], [], []>} : vector<8x128xf32>, vector<128x128xf32>, vector<8x128xf32> -> vector<8x128xf32>
    %141 = vector.broadcast %3 : vector<1x128xf32> to vector<8x128xf32>
    %142 = arith.addf %140, %141 : vector<8x128xf32>
    %143 = vector.broadcast %134 : f32 to vector<8x128xf32>
    %144 = arith.mulf %143, %142 : vector<8x128xf32>
    %145 = arith.addf %67, %144 : vector<8x128xf32>
    %cst_52 = arith.constant dense<0.000000e+00> : vector<8x128xf32>
    %146 = tpu.matmul %145, %0, %cst_52 {dimension_numbers = #tpu.dot_dimension_numbers<[1], [0], [0], [1], [0, 0, 1, 1], [], []>} : vector<8x128xf32>, vector<128x128xf32>, vector<8x128xf32> -> vector<8x128xf32>
    %147 = vector.broadcast %1 : vector<1x128xf32> to vector<8x128xf32>
    %148 = arith.addf %146, %147 : vector<8x128xf32>
    %149 = math.tanh %148 : vector<8x128xf32>
    %cst_53 = arith.constant dense<0.000000e+00> : vector<8x128xf32>
    %150 = tpu.matmul %149, %2, %cst_53 {dimension_numbers = #tpu.dot_dimension_numbers<[1], [0], [0], [1], [0, 0, 1, 1], [], []>} : vector<8x128xf32>, vector<128x128xf32>, vector<8x128xf32> -> vector<8x128xf32>
    %151 = vector.broadcast %3 : vector<1x128xf32> to vector<8x128xf32>
    %152 = arith.addf %150, %151 : vector<8x128xf32>
    %cst_54 = arith.constant 2.000000e+00 : f32
    %153 = vector.broadcast %cst_54 : f32 to vector<8x128xf32>
    %154 = arith.mulf %153, %152 : vector<8x128xf32>
    %155 = arith.addf %142, %154 : vector<8x128xf32>
    %156 = vector.broadcast %134 : f32 to vector<8x128xf32>
    %157 = arith.mulf %156, %152 : vector<8x128xf32>
    %158 = arith.addf %67, %157 : vector<8x128xf32>
    %cst_55 = arith.constant dense<0.000000e+00> : vector<8x128xf32>
    %159 = tpu.matmul %158, %0, %cst_55 {dimension_numbers = #tpu.dot_dimension_numbers<[1], [0], [0], [1], [0, 0, 1, 1], [], []>} : vector<8x128xf32>, vector<128x128xf32>, vector<8x128xf32> -> vector<8x128xf32>
    %160 = vector.broadcast %1 : vector<1x128xf32> to vector<8x128xf32>
    %161 = arith.addf %159, %160 : vector<8x128xf32>
    %162 = math.tanh %161 : vector<8x128xf32>
    %cst_56 = arith.constant dense<0.000000e+00> : vector<8x128xf32>
    %163 = tpu.matmul %162, %2, %cst_56 {dimension_numbers = #tpu.dot_dimension_numbers<[1], [0], [0], [1], [0, 0, 1, 1], [], []>} : vector<8x128xf32>, vector<128x128xf32>, vector<8x128xf32> -> vector<8x128xf32>
    %164 = vector.broadcast %3 : vector<1x128xf32> to vector<8x128xf32>
    %165 = arith.addf %163, %164 : vector<8x128xf32>
    %cst_57 = arith.constant 2.000000e+00 : f32
    %166 = vector.broadcast %cst_57 : f32 to vector<8x128xf32>
    %167 = arith.mulf %166, %165 : vector<8x128xf32>
    %168 = arith.addf %155, %167 : vector<8x128xf32>
    %169 = vector.broadcast %133 : f32 to vector<8x128xf32>
    %170 = arith.mulf %169, %165 : vector<8x128xf32>
    %171 = arith.addf %67, %170 : vector<8x128xf32>
    %cst_58 = arith.constant dense<0.000000e+00> : vector<8x128xf32>
    %172 = tpu.matmul %171, %0, %cst_58 {dimension_numbers = #tpu.dot_dimension_numbers<[1], [0], [0], [1], [0, 0, 1, 1], [], []>} : vector<8x128xf32>, vector<128x128xf32>, vector<8x128xf32> -> vector<8x128xf32>
    %173 = vector.broadcast %1 : vector<1x128xf32> to vector<8x128xf32>
    %174 = arith.addf %172, %173 : vector<8x128xf32>
    %175 = math.tanh %174 : vector<8x128xf32>
    %cst_59 = arith.constant dense<0.000000e+00> : vector<8x128xf32>
    %176 = tpu.matmul %175, %2, %cst_59 {dimension_numbers = #tpu.dot_dimension_numbers<[1], [0], [0], [1], [0, 0, 1, 1], [], []>} : vector<8x128xf32>, vector<128x128xf32>, vector<8x128xf32> -> vector<8x128xf32>
    %177 = vector.broadcast %3 : vector<1x128xf32> to vector<8x128xf32>
    %178 = arith.addf %176, %177 : vector<8x128xf32>
    %179 = arith.addf %168, %178 : vector<8x128xf32>
    %180 = vector.broadcast %135 : f32 to vector<8x128xf32>
    %181 = arith.mulf %180, %179 : vector<8x128xf32>
    %182 = arith.addf %67, %181 : vector<8x128xf32>
    %cst_60 = arith.constant dense<0.000000e+00> : vector<8x128xf32>
    %183 = tpu.matmul %114, %0, %cst_60 {dimension_numbers = #tpu.dot_dimension_numbers<[1], [0], [0], [1], [0, 0, 1, 1], [], []>} : vector<8x128xf32>, vector<128x128xf32>, vector<8x128xf32> -> vector<8x128xf32>
    %184 = vector.broadcast %1 : vector<1x128xf32> to vector<8x128xf32>
    %185 = arith.addf %183, %184 : vector<8x128xf32>
    %186 = math.tanh %185 : vector<8x128xf32>
    %cst_61 = arith.constant dense<0.000000e+00> : vector<8x128xf32>
    %187 = tpu.matmul %186, %2, %cst_61 {dimension_numbers = #tpu.dot_dimension_numbers<[1], [0], [0], [1], [0, 0, 1, 1], [], []>} : vector<8x128xf32>, vector<128x128xf32>, vector<8x128xf32> -> vector<8x128xf32>
    %188 = vector.broadcast %3 : vector<1x128xf32> to vector<8x128xf32>
    %189 = arith.addf %187, %188 : vector<8x128xf32>
    %190 = vector.broadcast %134 : f32 to vector<8x128xf32>
    %191 = arith.mulf %190, %189 : vector<8x128xf32>
    %192 = arith.addf %114, %191 : vector<8x128xf32>
    %cst_62 = arith.constant dense<0.000000e+00> : vector<8x128xf32>
    %193 = tpu.matmul %192, %0, %cst_62 {dimension_numbers = #tpu.dot_dimension_numbers<[1], [0], [0], [1], [0, 0, 1, 1], [], []>} : vector<8x128xf32>, vector<128x128xf32>, vector<8x128xf32> -> vector<8x128xf32>
    %194 = vector.broadcast %1 : vector<1x128xf32> to vector<8x128xf32>
    %195 = arith.addf %193, %194 : vector<8x128xf32>
    %196 = math.tanh %195 : vector<8x128xf32>
    %cst_63 = arith.constant dense<0.000000e+00> : vector<8x128xf32>
    %197 = tpu.matmul %196, %2, %cst_63 {dimension_numbers = #tpu.dot_dimension_numbers<[1], [0], [0], [1], [0, 0, 1, 1], [], []>} : vector<8x128xf32>, vector<128x128xf32>, vector<8x128xf32> -> vector<8x128xf32>
    %198 = vector.broadcast %3 : vector<1x128xf32> to vector<8x128xf32>
    %199 = arith.addf %197, %198 : vector<8x128xf32>
    %cst_64 = arith.constant 2.000000e+00 : f32
    %200 = vector.broadcast %cst_64 : f32 to vector<8x128xf32>
    %201 = arith.mulf %200, %199 : vector<8x128xf32>
    %202 = arith.addf %189, %201 : vector<8x128xf32>
    %203 = vector.broadcast %134 : f32 to vector<8x128xf32>
    %204 = arith.mulf %203, %199 : vector<8x128xf32>
    %205 = arith.addf %114, %204 : vector<8x128xf32>
    %cst_65 = arith.constant dense<0.000000e+00> : vector<8x128xf32>
    %206 = tpu.matmul %205, %0, %cst_65 {dimension_numbers = #tpu.dot_dimension_numbers<[1], [0], [0], [1], [0, 0, 1, 1], [], []>} : vector<8x128xf32>, vector<128x128xf32>, vector<8x128xf32> -> vector<8x128xf32>
    %207 = vector.broadcast %1 : vector<1x128xf32> to vector<8x128xf32>
    %208 = arith.addf %206, %207 : vector<8x128xf32>
    %209 = math.tanh %208 : vector<8x128xf32>
    %cst_66 = arith.constant dense<0.000000e+00> : vector<8x128xf32>
    %210 = tpu.matmul %209, %2, %cst_66 {dimension_numbers = #tpu.dot_dimension_numbers<[1], [0], [0], [1], [0, 0, 1, 1], [], []>} : vector<8x128xf32>, vector<128x128xf32>, vector<8x128xf32> -> vector<8x128xf32>
    %211 = vector.broadcast %3 : vector<1x128xf32> to vector<8x128xf32>
    %212 = arith.addf %210, %211 : vector<8x128xf32>
    %cst_67 = arith.constant 2.000000e+00 : f32
    %213 = vector.broadcast %cst_67 : f32 to vector<8x128xf32>
    %214 = arith.mulf %213, %212 : vector<8x128xf32>
    %215 = arith.addf %202, %214 : vector<8x128xf32>
    %216 = vector.broadcast %133 : f32 to vector<8x128xf32>
    %217 = arith.mulf %216, %212 : vector<8x128xf32>
    %218 = arith.addf %114, %217 : vector<8x128xf32>
    %cst_68 = arith.constant dense<0.000000e+00> : vector<8x128xf32>
    %219 = tpu.matmul %218, %0, %cst_68 {dimension_numbers = #tpu.dot_dimension_numbers<[1], [0], [0], [1], [0, 0, 1, 1], [], []>} : vector<8x128xf32>, vector<128x128xf32>, vector<8x128xf32> -> vector<8x128xf32>
    %220 = vector.broadcast %1 : vector<1x128xf32> to vector<8x128xf32>
    %221 = arith.addf %219, %220 : vector<8x128xf32>
    %222 = math.tanh %221 : vector<8x128xf32>
    %cst_69 = arith.constant dense<0.000000e+00> : vector<8x128xf32>
    %223 = tpu.matmul %222, %2, %cst_69 {dimension_numbers = #tpu.dot_dimension_numbers<[1], [0], [0], [1], [0, 0, 1, 1], [], []>} : vector<8x128xf32>, vector<128x128xf32>, vector<8x128xf32> -> vector<8x128xf32>
    %224 = vector.broadcast %3 : vector<1x128xf32> to vector<8x128xf32>
    %225 = arith.addf %223, %224 : vector<8x128xf32>
    %226 = arith.addf %215, %225 : vector<8x128xf32>
    %227 = vector.broadcast %135 : f32 to vector<8x128xf32>
    %228 = arith.mulf %227, %226 : vector<8x128xf32>
    %229 = arith.addf %114, %228 : vector<8x128xf32>
    %c16_i32_70 = arith.constant 16 : i32
    %230 = arith.muli %c2_i32, %c16_i32_70 : i32
    %c0_i32_71 = arith.constant 0 : i32
    %231 = arith.addi %230, %c0_i32_71 : i32
    %232 = tpu.assume_multiple %231, 8 : i32
    %cst_72 = arith.constant dense<0.000000e+00> : vector<8x128xf32>
    %233 = tpu.matmul %182, %5, %cst_72 {dimension_numbers = #tpu.dot_dimension_numbers<[1], [0], [0], [1], [0, 0, 1, 1], [], []>} : vector<8x128xf32>, vector<128x128xf32>, vector<8x128xf32> -> vector<8x128xf32>
    %234 = vector.broadcast %4 : vector<1x128xf32> to vector<8x128xf32>
    %235 = arith.addf %233, %234 : vector<8x128xf32>
    %236 = arith.index_cast %232 : i32 to index
    %c0_73 = arith.constant 0 : index
    %237 = vector.load %arg9[%236, %c0_73] : memref<128x128xf32, #tpu.memory_space<vmem>>, vector<8x128xf32>
    tpu.vector_store %arg9[%236, %c0_73], %235 {strides = array<i32>} : memref<128x128xf32, #tpu.memory_space<vmem>>, vector<8x128xf32>,
    %c16_i32_74 = arith.constant 16 : i32
    %238 = arith.muli %c2_i32, %c16_i32_74 : i32
    %c8_i32_75 = arith.constant 8 : i32
    %239 = arith.addi %238, %c8_i32_75 : i32
    %240 = tpu.assume_multiple %239, 8 : i32
    %cst_76 = arith.constant dense<0.000000e+00> : vector<8x128xf32>
    %241 = tpu.matmul %229, %5, %cst_76 {dimension_numbers = #tpu.dot_dimension_numbers<[1], [0], [0], [1], [0, 0, 1, 1], [], []>} : vector<8x128xf32>, vector<128x128xf32>, vector<8x128xf32> -> vector<8x128xf32>
    %242 = vector.broadcast %4 : vector<1x128xf32> to vector<8x128xf32>
    %243 = arith.addf %241, %242 : vector<8x128xf32>
    %244 = arith.index_cast %240 : i32 to index
    %c0_77 = arith.constant 0 : index
    %245 = vector.load %arg9[%244, %c0_77] : memref<128x128xf32, #tpu.memory_space<vmem>>, vector<8x128xf32>
    tpu.vector_store %arg9[%244, %c0_77], %243 {strides = array<i32>} : memref<128x128xf32, #tpu.memory_space<vmem>>, vector<8x128xf32>,
    %c3_i32 = arith.constant 3 : i32
    %c1_i32_78 = arith.constant 1 : i32
    %246 = arith.subi %c3_i32, %c1_i32_78 : i32
    %247 = arith.index_cast %246 : i32 to index
    %248 = memref.load %arg1[%247] : memref<7xf32, #tpu.memory_space<smem>>
    %cst_79 = arith.constant 5.000000e-01 : f32
    %249 = arith.mulf %cst_79, %248 : f32
    %cst_80 = arith.constant 6.000000e+00 : f32
    %250 = arith.divf %248, %cst_80 : f32
    %cst_81 = arith.constant dense<0.000000e+00> : vector<8x128xf32>
    %251 = tpu.matmul %182, %0, %cst_81 {dimension_numbers = #tpu.dot_dimension_numbers<[1], [0], [0], [1], [0, 0, 1, 1], [], []>} : vector<8x128xf32>, vector<128x128xf32>, vector<8x128xf32> -> vector<8x128xf32>
    %252 = vector.broadcast %1 : vector<1x128xf32> to vector<8x128xf32>
    %253 = arith.addf %251, %252 : vector<8x128xf32>
    %254 = math.tanh %253 : vector<8x128xf32>
    %cst_82 = arith.constant dense<0.000000e+00> : vector<8x128xf32>
    %255 = tpu.matmul %254, %2, %cst_82 {dimension_numbers = #tpu.dot_dimension_numbers<[1], [0], [0], [1], [0, 0, 1, 1], [], []>} : vector<8x128xf32>, vector<128x128xf32>, vector<8x128xf32> -> vector<8x128xf32>
    %256 = vector.broadcast %3 : vector<1x128xf32> to vector<8x128xf32>
    %257 = arith.addf %255, %256 : vector<8x128xf32>
    %258 = vector.broadcast %249 : f32 to vector<8x128xf32>
    %259 = arith.mulf %258, %257 : vector<8x128xf32>
    %260 = arith.addf %182, %259 : vector<8x128xf32>
    %cst_83 = arith.constant dense<0.000000e+00> : vector<8x128xf32>
    %261 = tpu.matmul %260, %0, %cst_83 {dimension_numbers = #tpu.dot_dimension_numbers<[1], [0], [0], [1], [0, 0, 1, 1], [], []>} : vector<8x128xf32>, vector<128x128xf32>, vector<8x128xf32> -> vector<8x128xf32>
    %262 = vector.broadcast %1 : vector<1x128xf32> to vector<8x128xf32>
    %263 = arith.addf %261, %262 : vector<8x128xf32>
    %264 = math.tanh %263 : vector<8x128xf32>
    %cst_84 = arith.constant dense<0.000000e+00> : vector<8x128xf32>
    %265 = tpu.matmul %264, %2, %cst_84 {dimension_numbers = #tpu.dot_dimension_numbers<[1], [0], [0], [1], [0, 0, 1, 1], [], []>} : vector<8x128xf32>, vector<128x128xf32>, vector<8x128xf32> -> vector<8x128xf32>
    %266 = vector.broadcast %3 : vector<1x128xf32> to vector<8x128xf32>
    %267 = arith.addf %265, %266 : vector<8x128xf32>
    %cst_85 = arith.constant 2.000000e+00 : f32
    %268 = vector.broadcast %cst_85 : f32 to vector<8x128xf32>
    %269 = arith.mulf %268, %267 : vector<8x128xf32>
    %270 = arith.addf %257, %269 : vector<8x128xf32>
    %271 = vector.broadcast %249 : f32 to vector<8x128xf32>
    %272 = arith.mulf %271, %267 : vector<8x128xf32>
    %273 = arith.addf %182, %272 : vector<8x128xf32>
    %cst_86 = arith.constant dense<0.000000e+00> : vector<8x128xf32>
    %274 = tpu.matmul %273, %0, %cst_86 {dimension_numbers = #tpu.dot_dimension_numbers<[1], [0], [0], [1], [0, 0, 1, 1], [], []>} : vector<8x128xf32>, vector<128x128xf32>, vector<8x128xf32> -> vector<8x128xf32>
    %275 = vector.broadcast %1 : vector<1x128xf32> to vector<8x128xf32>
    %276 = arith.addf %274, %275 : vector<8x128xf32>
    %277 = math.tanh %276 : vector<8x128xf32>
    %cst_87 = arith.constant dense<0.000000e+00> : vector<8x128xf32>
    %278 = tpu.matmul %277, %2, %cst_87 {dimension_numbers = #tpu.dot_dimension_numbers<[1], [0], [0], [1], [0, 0, 1, 1], [], []>} : vector<8x128xf32>, vector<128x128xf32>, vector<8x128xf32> -> vector<8x128xf32>
    %279 = vector.broadcast %3 : vector<1x128xf32> to vector<8x128xf32>
    %280 = arith.addf %278, %279 : vector<8x128xf32>
    %cst_88 = arith.constant 2.000000e+00 : f32
    %281 = vector.broadcast %cst_88 : f32 to vector<8x128xf32>
    %282 = arith.mulf %281, %280 : vector<8x128xf32>
    %283 = arith.addf %270, %282 : vector<8x128xf32>
    %284 = vector.broadcast %248 : f32 to vector<8x128xf32>
    %285 = arith.mulf %284, %280 : vector<8x128xf32>
    %286 = arith.addf %182, %285 : vector<8x128xf32>
    %cst_89 = arith.constant dense<0.000000e+00> : vector<8x128xf32>
    %287 = tpu.matmul %286, %0, %cst_89 {dimension_numbers = #tpu.dot_dimension_numbers<[1], [0], [0], [1], [0, 0, 1, 1], [], []>} : vector<8x128xf32>, vector<128x128xf32>, vector<8x128xf32> -> vector<8x128xf32>
    %288 = vector.broadcast %1 : vector<1x128xf32> to vector<8x128xf32>
    %289 = arith.addf %287, %288 : vector<8x128xf32>
    %290 = math.tanh %289 : vector<8x128xf32>
    %cst_90 = arith.constant dense<0.000000e+00> : vector<8x128xf32>
    %291 = tpu.matmul %290, %2, %cst_90 {dimension_numbers = #tpu.dot_dimension_numbers<[1], [0], [0], [1], [0, 0, 1, 1], [], []>} : vector<8x128xf32>, vector<128x128xf32>, vector<8x128xf32> -> vector<8x128xf32>
    %292 = vector.broadcast %3 : vector<1x128xf32> to vector<8x128xf32>
    %293 = arith.addf %291, %292 : vector<8x128xf32>
    %294 = arith.addf %283, %293 : vector<8x128xf32>
    %295 = vector.broadcast %250 : f32 to vector<8x128xf32>
    %296 = arith.mulf %295, %294 : vector<8x128xf32>
    %297 = arith.addf %182, %296 : vector<8x128xf32>
    %cst_91 = arith.constant dense<0.000000e+00> : vector<8x128xf32>
    %298 = tpu.matmul %229, %0, %cst_91 {dimension_numbers = #tpu.dot_dimension_numbers<[1], [0], [0], [1], [0, 0, 1, 1], [], []>} : vector<8x128xf32>, vector<128x128xf32>, vector<8x128xf32> -> vector<8x128xf32>
    %299 = vector.broadcast %1 : vector<1x128xf32> to vector<8x128xf32>
    %300 = arith.addf %298, %299 : vector<8x128xf32>
    %301 = math.tanh %300 : vector<8x128xf32>
    %cst_92 = arith.constant dense<0.000000e+00> : vector<8x128xf32>
    %302 = tpu.matmul %301, %2, %cst_92 {dimension_numbers = #tpu.dot_dimension_numbers<[1], [0], [0], [1], [0, 0, 1, 1], [], []>} : vector<8x128xf32>, vector<128x128xf32>, vector<8x128xf32> -> vector<8x128xf32>
    %303 = vector.broadcast %3 : vector<1x128xf32> to vector<8x128xf32>
    %304 = arith.addf %302, %303 : vector<8x128xf32>
    %305 = vector.broadcast %249 : f32 to vector<8x128xf32>
    %306 = arith.mulf %305, %304 : vector<8x128xf32>
    %307 = arith.addf %229, %306 : vector<8x128xf32>
    %cst_93 = arith.constant dense<0.000000e+00> : vector<8x128xf32>
    %308 = tpu.matmul %307, %0, %cst_93 {dimension_numbers = #tpu.dot_dimension_numbers<[1], [0], [0], [1], [0, 0, 1, 1], [], []>} : vector<8x128xf32>, vector<128x128xf32>, vector<8x128xf32> -> vector<8x128xf32>
    %309 = vector.broadcast %1 : vector<1x128xf32> to vector<8x128xf32>
    %310 = arith.addf %308, %309 : vector<8x128xf32>
    %311 = math.tanh %310 : vector<8x128xf32>
    %cst_94 = arith.constant dense<0.000000e+00> : vector<8x128xf32>
    %312 = tpu.matmul %311, %2, %cst_94 {dimension_numbers = #tpu.dot_dimension_numbers<[1], [0], [0], [1], [0, 0, 1, 1], [], []>} : vector<8x128xf32>, vector<128x128xf32>, vector<8x128xf32> -> vector<8x128xf32>
    %313 = vector.broadcast %3 : vector<1x128xf32> to vector<8x128xf32>
    %314 = arith.addf %312, %313 : vector<8x128xf32>
    %cst_95 = arith.constant 2.000000e+00 : f32
    %315 = vector.broadcast %cst_95 : f32 to vector<8x128xf32>
    %316 = arith.mulf %315, %314 : vector<8x128xf32>
    %317 = arith.addf %304, %316 : vector<8x128xf32>
    %318 = vector.broadcast %249 : f32 to vector<8x128xf32>
    %319 = arith.mulf %318, %314 : vector<8x128xf32>
    %320 = arith.addf %229, %319 : vector<8x128xf32>
    %cst_96 = arith.constant dense<0.000000e+00> : vector<8x128xf32>
    %321 = tpu.matmul %320, %0, %cst_96 {dimension_numbers = #tpu.dot_dimension_numbers<[1], [0], [0], [1], [0, 0, 1, 1], [], []>} : vector<8x128xf32>, vector<128x128xf32>, vector<8x128xf32> -> vector<8x128xf32>
    %322 = vector.broadcast %1 : vector<1x128xf32> to vector<8x128xf32>
    %323 = arith.addf %321, %322 : vector<8x128xf32>
    %324 = math.tanh %323 : vector<8x128xf32>
    %cst_97 = arith.constant dense<0.000000e+00> : vector<8x128xf32>
    %325 = tpu.matmul %324, %2, %cst_97 {dimension_numbers = #tpu.dot_dimension_numbers<[1], [0], [0], [1], [0, 0, 1, 1], [], []>} : vector<8x128xf32>, vector<128x128xf32>, vector<8x128xf32> -> vector<8x128xf32>
    %326 = vector.broadcast %3 : vector<1x128xf32> to vector<8x128xf32>
    %327 = arith.addf %325, %326 : vector<8x128xf32>
    %cst_98 = arith.constant 2.000000e+00 : f32
    %328 = vector.broadcast %cst_98 : f32 to vector<8x128xf32>
    %329 = arith.mulf %328, %327 : vector<8x128xf32>
    %330 = arith.addf %317, %329 : vector<8x128xf32>
    %331 = vector.broadcast %248 : f32 to vector<8x128xf32>
    %332 = arith.mulf %331, %327 : vector<8x128xf32>
    %333 = arith.addf %229, %332 : vector<8x128xf32>
    %cst_99 = arith.constant dense<0.000000e+00> : vector<8x128xf32>
    %334 = tpu.matmul %333, %0, %cst_99 {dimension_numbers = #tpu.dot_dimension_numbers<[1], [0], [0], [1], [0, 0, 1, 1], [], []>} : vector<8x128xf32>, vector<128x128xf32>, vector<8x128xf32> -> vector<8x128xf32>
    %335 = vector.broadcast %1 : vector<1x128xf32> to vector<8x128xf32>
    %336 = arith.addf %334, %335 : vector<8x128xf32>
    %337 = math.tanh %336 : vector<8x128xf32>
    %cst_100 = arith.constant dense<0.000000e+00> : vector<8x128xf32>
    %338 = tpu.matmul %337, %2, %cst_100 {dimension_numbers = #tpu.dot_dimension_numbers<[1], [0], [0], [1], [0, 0, 1, 1], [], []>} : vector<8x128xf32>, vector<128x128xf32>, vector<8x128xf32> -> vector<8x128xf32>
    %339 = vector.broadcast %3 : vector<1x128xf32> to vector<8x128xf32>
    %340 = arith.addf %338, %339 : vector<8x128xf32>
    %341 = arith.addf %330, %340 : vector<8x128xf32>
    %342 = vector.broadcast %250 : f32 to vector<8x128xf32>
    %343 = arith.mulf %342, %341 : vector<8x128xf32>
    %344 = arith.addf %229, %343 : vector<8x128xf32>
    %c16_i32_101 = arith.constant 16 : i32
    %345 = arith.muli %c3_i32, %c16_i32_101 : i32
    %c0_i32_102 = arith.constant 0 : i32
    %346 = arith.addi %345, %c0_i32_102 : i32
    %347 = tpu.assume_multiple %346, 8 : i32
    %cst_103 = arith.constant dense<0.000000e+00> : vector<8x128xf32>
    %348 = tpu.matmul %297, %5, %cst_103 {dimension_numbers = #tpu.dot_dimension_numbers<[1], [0], [0], [1], [0, 0, 1, 1], [], []>} : vector<8x128xf32>, vector<128x128xf32>, vector<8x128xf32> -> vector<8x128xf32>
    %349 = vector.broadcast %4 : vector<1x128xf32> to vector<8x128xf32>
    %350 = arith.addf %348, %349 : vector<8x128xf32>
    %351 = arith.index_cast %347 : i32 to index
    %c0_104 = arith.constant 0 : index
    %352 = vector.load %arg9[%351, %c0_104] : memref<128x128xf32, #tpu.memory_space<vmem>>, vector<8x128xf32>
    tpu.vector_store %arg9[%351, %c0_104], %350 {strides = array<i32>} : memref<128x128xf32, #tpu.memory_space<vmem>>, vector<8x128xf32>,
    %c16_i32_105 = arith.constant 16 : i32
    %353 = arith.muli %c3_i32, %c16_i32_105 : i32
    %c8_i32_106 = arith.constant 8 : i32
    %354 = arith.addi %353, %c8_i32_106 : i32
    %355 = tpu.assume_multiple %354, 8 : i32
    %cst_107 = arith.constant dense<0.000000e+00> : vector<8x128xf32>
    %356 = tpu.matmul %344, %5, %cst_107 {dimension_numbers = #tpu.dot_dimension_numbers<[1], [0], [0], [1], [0, 0, 1, 1], [], []>} : vector<8x128xf32>, vector<128x128xf32>, vector<8x128xf32> -> vector<8x128xf32>
    %357 = vector.broadcast %4 : vector<1x128xf32> to vector<8x128xf32>
    %358 = arith.addf %356, %357 : vector<8x128xf32>
    %359 = arith.index_cast %355 : i32 to index
    %c0_108 = arith.constant 0 : index
    %360 = vector.load %arg9[%359, %c0_108] : memref<128x128xf32, #tpu.memory_space<vmem>>, vector<8x128xf32>
    tpu.vector_store %arg9[%359, %c0_108], %358 {strides = array<i32>} : memref<128x128xf32, #tpu.memory_space<vmem>>, vector<8x128xf32>,
    %c4_i32 = arith.constant 4 : i32
    %c1_i32_109 = arith.constant 1 : i32
    %361 = arith.subi %c4_i32, %c1_i32_109 : i32
    %362 = arith.index_cast %361 : i32 to index
    %363 = memref.load %arg1[%362] : memref<7xf32, #tpu.memory_space<smem>>
    %cst_110 = arith.constant 5.000000e-01 : f32
    %364 = arith.mulf %cst_110, %363 : f32
    %cst_111 = arith.constant 6.000000e+00 : f32
    %365 = arith.divf %363, %cst_111 : f32
    %cst_112 = arith.constant dense<0.000000e+00> : vector<8x128xf32>
    %366 = tpu.matmul %297, %0, %cst_112 {dimension_numbers = #tpu.dot_dimension_numbers<[1], [0], [0], [1], [0, 0, 1, 1], [], []>} : vector<8x128xf32>, vector<128x128xf32>, vector<8x128xf32> -> vector<8x128xf32>
    %367 = vector.broadcast %1 : vector<1x128xf32> to vector<8x128xf32>
    %368 = arith.addf %366, %367 : vector<8x128xf32>
    %369 = math.tanh %368 : vector<8x128xf32>
    %cst_113 = arith.constant dense<0.000000e+00> : vector<8x128xf32>
    %370 = tpu.matmul %369, %2, %cst_113 {dimension_numbers = #tpu.dot_dimension_numbers<[1], [0], [0], [1], [0, 0, 1, 1], [], []>} : vector<8x128xf32>, vector<128x128xf32>, vector<8x128xf32> -> vector<8x128xf32>
    %371 = vector.broadcast %3 : vector<1x128xf32> to vector<8x128xf32>
    %372 = arith.addf %370, %371 : vector<8x128xf32>
    %373 = vector.broadcast %364 : f32 to vector<8x128xf32>
    %374 = arith.mulf %373, %372 : vector<8x128xf32>
    %375 = arith.addf %297, %374 : vector<8x128xf32>
    %cst_114 = arith.constant dense<0.000000e+00> : vector<8x128xf32>
    %376 = tpu.matmul %375, %0, %cst_114 {dimension_numbers = #tpu.dot_dimension_numbers<[1], [0], [0], [1], [0, 0, 1, 1], [], []>} : vector<8x128xf32>, vector<128x128xf32>, vector<8x128xf32> -> vector<8x128xf32>
    %377 = vector.broadcast %1 : vector<1x128xf32> to vector<8x128xf32>
    %378 = arith.addf %376, %377 : vector<8x128xf32>
    %379 = math.tanh %378 : vector<8x128xf32>
    %cst_115 = arith.constant dense<0.000000e+00> : vector<8x128xf32>
    %380 = tpu.matmul %379, %2, %cst_115 {dimension_numbers = #tpu.dot_dimension_numbers<[1], [0], [0], [1], [0, 0, 1, 1], [], []>} : vector<8x128xf32>, vector<128x128xf32>, vector<8x128xf32> -> vector<8x128xf32>
    %381 = vector.broadcast %3 : vector<1x128xf32> to vector<8x128xf32>
    %382 = arith.addf %380, %381 : vector<8x128xf32>
    %cst_116 = arith.constant 2.000000e+00 : f32
    %383 = vector.broadcast %cst_116 : f32 to vector<8x128xf32>
    %384 = arith.mulf %383, %382 : vector<8x128xf32>
    %385 = arith.addf %372, %384 : vector<8x128xf32>
    %386 = vector.broadcast %364 : f32 to vector<8x128xf32>
    %387 = arith.mulf %386, %382 : vector<8x128xf32>
    %388 = arith.addf %297, %387 : vector<8x128xf32>
    %cst_117 = arith.constant dense<0.000000e+00> : vector<8x128xf32>
    %389 = tpu.matmul %388, %0, %cst_117 {dimension_numbers = #tpu.dot_dimension_numbers<[1], [0], [0], [1], [0, 0, 1, 1], [], []>} : vector<8x128xf32>, vector<128x128xf32>, vector<8x128xf32> -> vector<8x128xf32>
    %390 = vector.broadcast %1 : vector<1x128xf32> to vector<8x128xf32>
    %391 = arith.addf %389, %390 : vector<8x128xf32>
    %392 = math.tanh %391 : vector<8x128xf32>
    %cst_118 = arith.constant dense<0.000000e+00> : vector<8x128xf32>
    %393 = tpu.matmul %392, %2, %cst_118 {dimension_numbers = #tpu.dot_dimension_numbers<[1], [0], [0], [1], [0, 0, 1, 1], [], []>} : vector<8x128xf32>, vector<128x128xf32>, vector<8x128xf32> -> vector<8x128xf32>
    %394 = vector.broadcast %3 : vector<1x128xf32> to vector<8x128xf32>
    %395 = arith.addf %393, %394 : vector<8x128xf32>
    %cst_119 = arith.constant 2.000000e+00 : f32
    %396 = vector.broadcast %cst_119 : f32 to vector<8x128xf32>
    %397 = arith.mulf %396, %395 : vector<8x128xf32>
    %398 = arith.addf %385, %397 : vector<8x128xf32>
    %399 = vector.broadcast %363 : f32 to vector<8x128xf32>
    %400 = arith.mulf %399, %395 : vector<8x128xf32>
    %401 = arith.addf %297, %400 : vector<8x128xf32>
    %cst_120 = arith.constant dense<0.000000e+00> : vector<8x128xf32>
    %402 = tpu.matmul %401, %0, %cst_120 {dimension_numbers = #tpu.dot_dimension_numbers<[1], [0], [0], [1], [0, 0, 1, 1], [], []>} : vector<8x128xf32>, vector<128x128xf32>, vector<8x128xf32> -> vector<8x128xf32>
    %403 = vector.broadcast %1 : vector<1x128xf32> to vector<8x128xf32>
    %404 = arith.addf %402, %403 : vector<8x128xf32>
    %405 = math.tanh %404 : vector<8x128xf32>
    %cst_121 = arith.constant dense<0.000000e+00> : vector<8x128xf32>
    %406 = tpu.matmul %405, %2, %cst_121 {dimension_numbers = #tpu.dot_dimension_numbers<[1], [0], [0], [1], [0, 0, 1, 1], [], []>} : vector<8x128xf32>, vector<128x128xf32>, vector<8x128xf32> -> vector<8x128xf32>
    %407 = vector.broadcast %3 : vector<1x128xf32> to vector<8x128xf32>
    %408 = arith.addf %406, %407 : vector<8x128xf32>
    %409 = arith.addf %398, %408 : vector<8x128xf32>
    %410 = vector.broadcast %365 : f32 to vector<8x128xf32>
    %411 = arith.mulf %410, %409 : vector<8x128xf32>
    %412 = arith.addf %297, %411 : vector<8x128xf32>
    %cst_122 = arith.constant dense<0.000000e+00> : vector<8x128xf32>
    %413 = tpu.matmul %344, %0, %cst_122 {dimension_numbers = #tpu.dot_dimension_numbers<[1], [0], [0], [1], [0, 0, 1, 1], [], []>} : vector<8x128xf32>, vector<128x128xf32>, vector<8x128xf32> -> vector<8x128xf32>
    %414 = vector.broadcast %1 : vector<1x128xf32> to vector<8x128xf32>
    %415 = arith.addf %413, %414 : vector<8x128xf32>
    %416 = math.tanh %415 : vector<8x128xf32>
    %cst_123 = arith.constant dense<0.000000e+00> : vector<8x128xf32>
    %417 = tpu.matmul %416, %2, %cst_123 {dimension_numbers = #tpu.dot_dimension_numbers<[1], [0], [0], [1], [0, 0, 1, 1], [], []>} : vector<8x128xf32>, vector<128x128xf32>, vector<8x128xf32> -> vector<8x128xf32>
    %418 = vector.broadcast %3 : vector<1x128xf32> to vector<8x128xf32>
    %419 = arith.addf %417, %418 : vector<8x128xf32>
    %420 = vector.broadcast %364 : f32 to vector<8x128xf32>
    %421 = arith.mulf %420, %419 : vector<8x128xf32>
    %422 = arith.addf %344, %421 : vector<8x128xf32>
    %cst_124 = arith.constant dense<0.000000e+00> : vector<8x128xf32>
    %423 = tpu.matmul %422, %0, %cst_124 {dimension_numbers = #tpu.dot_dimension_numbers<[1], [0], [0], [1], [0, 0, 1, 1], [], []>} : vector<8x128xf32>, vector<128x128xf32>, vector<8x128xf32> -> vector<8x128xf32>
    %424 = vector.broadcast %1 : vector<1x128xf32> to vector<8x128xf32>
    %425 = arith.addf %423, %424 : vector<8x128xf32>
    %426 = math.tanh %425 : vector<8x128xf32>
    %cst_125 = arith.constant dense<0.000000e+00> : vector<8x128xf32>
    %427 = tpu.matmul %426, %2, %cst_125 {dimension_numbers = #tpu.dot_dimension_numbers<[1], [0], [0], [1], [0, 0, 1, 1], [], []>} : vector<8x128xf32>, vector<128x128xf32>, vector<8x128xf32> -> vector<8x128xf32>
    %428 = vector.broadcast %3 : vector<1x128xf32> to vector<8x128xf32>
    %429 = arith.addf %427, %428 : vector<8x128xf32>
    %cst_126 = arith.constant 2.000000e+00 : f32
    %430 = vector.broadcast %cst_126 : f32 to vector<8x128xf32>
    %431 = arith.mulf %430, %429 : vector<8x128xf32>
    %432 = arith.addf %419, %431 : vector<8x128xf32>
    %433 = vector.broadcast %364 : f32 to vector<8x128xf32>
    %434 = arith.mulf %433, %429 : vector<8x128xf32>
    %435 = arith.addf %344, %434 : vector<8x128xf32>
    %cst_127 = arith.constant dense<0.000000e+00> : vector<8x128xf32>
    %436 = tpu.matmul %435, %0, %cst_127 {dimension_numbers = #tpu.dot_dimension_numbers<[1], [0], [0], [1], [0, 0, 1, 1], [], []>} : vector<8x128xf32>, vector<128x128xf32>, vector<8x128xf32> -> vector<8x128xf32>
    %437 = vector.broadcast %1 : vector<1x128xf32> to vector<8x128xf32>
    %438 = arith.addf %436, %437 : vector<8x128xf32>
    %439 = math.tanh %438 : vector<8x128xf32>
    %cst_128 = arith.constant dense<0.000000e+00> : vector<8x128xf32>
    %440 = tpu.matmul %439, %2, %cst_128 {dimension_numbers = #tpu.dot_dimension_numbers<[1], [0], [0], [1], [0, 0, 1, 1], [], []>} : vector<8x128xf32>, vector<128x128xf32>, vector<8x128xf32> -> vector<8x128xf32>
    %441 = vector.broadcast %3 : vector<1x128xf32> to vector<8x128xf32>
    %442 = arith.addf %440, %441 : vector<8x128xf32>
    %cst_129 = arith.constant 2.000000e+00 : f32
    %443 = vector.broadcast %cst_129 : f32 to vector<8x128xf32>
    %444 = arith.mulf %443, %442 : vector<8x128xf32>
    %445 = arith.addf %432, %444 : vector<8x128xf32>
    %446 = vector.broadcast %363 : f32 to vector<8x128xf32>
    %447 = arith.mulf %446, %442 : vector<8x128xf32>
    %448 = arith.addf %344, %447 : vector<8x128xf32>
    %cst_130 = arith.constant dense<0.000000e+00> : vector<8x128xf32>
    %449 = tpu.matmul %448, %0, %cst_130 {dimension_numbers = #tpu.dot_dimension_numbers<[1], [0], [0], [1], [0, 0, 1, 1], [], []>} : vector<8x128xf32>, vector<128x128xf32>, vector<8x128xf32> -> vector<8x128xf32>
    %450 = vector.broadcast %1 : vector<1x128xf32> to vector<8x128xf32>
    %451 = arith.addf %449, %450 : vector<8x128xf32>
    %452 = math.tanh %451 : vector<8x128xf32>
    %cst_131 = arith.constant dense<0.000000e+00> : vector<8x128xf32>
    %453 = tpu.matmul %452, %2, %cst_131 {dimension_numbers = #tpu.dot_dimension_numbers<[1], [0], [0], [1], [0, 0, 1, 1], [], []>} : vector<8x128xf32>, vector<128x128xf32>, vector<8x128xf32> -> vector<8x128xf32>
    %454 = vector.broadcast %3 : vector<1x128xf32> to vector<8x128xf32>
    %455 = arith.addf %453, %454 : vector<8x128xf32>
    %456 = arith.addf %445, %455 : vector<8x128xf32>
    %457 = vector.broadcast %365 : f32 to vector<8x128xf32>
    %458 = arith.mulf %457, %456 : vector<8x128xf32>
    %459 = arith.addf %344, %458 : vector<8x128xf32>
    %c16_i32_132 = arith.constant 16 : i32
    %460 = arith.muli %c4_i32, %c16_i32_132 : i32
    %c0_i32_133 = arith.constant 0 : i32
    %461 = arith.addi %460, %c0_i32_133 : i32
    %462 = tpu.assume_multiple %461, 8 : i32
    %cst_134 = arith.constant dense<0.000000e+00> : vector<8x128xf32>
    %463 = tpu.matmul %412, %5, %cst_134 {dimension_numbers = #tpu.dot_dimension_numbers<[1], [0], [0], [1], [0, 0, 1, 1], [], []>} : vector<8x128xf32>, vector<128x128xf32>, vector<8x128xf32> -> vector<8x128xf32>
    %464 = vector.broadcast %4 : vector<1x128xf32> to vector<8x128xf32>
    %465 = arith.addf %463, %464 : vector<8x128xf32>
    %466 = arith.index_cast %462 : i32 to index
    %c0_135 = arith.constant 0 : index
    %467 = vector.load %arg9[%466, %c0_135] : memref<128x128xf32, #tpu.memory_space<vmem>>, vector<8x128xf32>
    tpu.vector_store %arg9[%466, %c0_135], %465 {strides = array<i32>} : memref<128x128xf32, #tpu.memory_space<vmem>>, vector<8x128xf32>,
    %c16_i32_136 = arith.constant 16 : i32
    %468 = arith.muli %c4_i32, %c16_i32_136 : i32
    %c8_i32_137 = arith.constant 8 : i32
    %469 = arith.addi %468, %c8_i32_137 : i32
    %470 = tpu.assume_multiple %469, 8 : i32
    %cst_138 = arith.constant dense<0.000000e+00> : vector<8x128xf32>
    %471 = tpu.matmul %459, %5, %cst_138 {dimension_numbers = #tpu.dot_dimension_numbers<[1], [0], [0], [1], [0, 0, 1, 1], [], []>} : vector<8x128xf32>, vector<128x128xf32>, vector<8x128xf32> -> vector<8x128xf32>
    %472 = vector.broadcast %4 : vector<1x128xf32> to vector<8x128xf32>
    %473 = arith.addf %471, %472 : vector<8x128xf32>
    %474 = arith.index_cast %470 : i32 to index
    %c0_139 = arith.constant 0 : index
    %475 = vector.load %arg9[%474, %c0_139] : memref<128x128xf32, #tpu.memory_space<vmem>>, vector<8x128xf32>
    tpu.vector_store %arg9[%474, %c0_139], %473 {strides = array<i32>} : memref<128x128xf32, #tpu.memory_space<vmem>>, vector<8x128xf32>,
    %c5_i32 = arith.constant 5 : i32
    %c1_i32_140 = arith.constant 1 : i32
    %476 = arith.subi %c5_i32, %c1_i32_140 : i32
    %477 = arith.index_cast %476 : i32 to index
    %478 = memref.load %arg1[%477] : memref<7xf32, #tpu.memory_space<smem>>
    %cst_141 = arith.constant 5.000000e-01 : f32
    %479 = arith.mulf %cst_141, %478 : f32
    %cst_142 = arith.constant 6.000000e+00 : f32
    %480 = arith.divf %478, %cst_142 : f32
    %cst_143 = arith.constant dense<0.000000e+00> : vector<8x128xf32>
    %481 = tpu.matmul %412, %0, %cst_143 {dimension_numbers = #tpu.dot_dimension_numbers<[1], [0], [0], [1], [0, 0, 1, 1], [], []>} : vector<8x128xf32>, vector<128x128xf32>, vector<8x128xf32> -> vector<8x128xf32>
    %482 = vector.broadcast %1 : vector<1x128xf32> to vector<8x128xf32>
    %483 = arith.addf %481, %482 : vector<8x128xf32>
    %484 = math.tanh %483 : vector<8x128xf32>
    %cst_144 = arith.constant dense<0.000000e+00> : vector<8x128xf32>
    %485 = tpu.matmul %484, %2, %cst_144 {dimension_numbers = #tpu.dot_dimension_numbers<[1], [0], [0], [1], [0, 0, 1, 1], [], []>} : vector<8x128xf32>, vector<128x128xf32>, vector<8x128xf32> -> vector<8x128xf32>
    %486 = vector.broadcast %3 : vector<1x128xf32> to vector<8x128xf32>
    %487 = arith.addf %485, %486 : vector<8x128xf32>
    %488 = vector.broadcast %479 : f32 to vector<8x128xf32>
    %489 = arith.mulf %488, %487 : vector<8x128xf32>
    %490 = arith.addf %412, %489 : vector<8x128xf32>
    %cst_145 = arith.constant dense<0.000000e+00> : vector<8x128xf32>
    %491 = tpu.matmul %490, %0, %cst_145 {dimension_numbers = #tpu.dot_dimension_numbers<[1], [0], [0], [1], [0, 0, 1, 1], [], []>} : vector<8x128xf32>, vector<128x128xf32>, vector<8x128xf32> -> vector<8x128xf32>
    %492 = vector.broadcast %1 : vector<1x128xf32> to vector<8x128xf32>
    %493 = arith.addf %491, %492 : vector<8x128xf32>
    %494 = math.tanh %493 : vector<8x128xf32>
    %cst_146 = arith.constant dense<0.000000e+00> : vector<8x128xf32>
    %495 = tpu.matmul %494, %2, %cst_146 {dimension_numbers = #tpu.dot_dimension_numbers<[1], [0], [0], [1], [0, 0, 1, 1], [], []>} : vector<8x128xf32>, vector<128x128xf32>, vector<8x128xf32> -> vector<8x128xf32>
    %496 = vector.broadcast %3 : vector<1x128xf32> to vector<8x128xf32>
    %497 = arith.addf %495, %496 : vector<8x128xf32>
    %cst_147 = arith.constant 2.000000e+00 : f32
    %498 = vector.broadcast %cst_147 : f32 to vector<8x128xf32>
    %499 = arith.mulf %498, %497 : vector<8x128xf32>
    %500 = arith.addf %487, %499 : vector<8x128xf32>
    %501 = vector.broadcast %479 : f32 to vector<8x128xf32>
    %502 = arith.mulf %501, %497 : vector<8x128xf32>
    %503 = arith.addf %412, %502 : vector<8x128xf32>
    %cst_148 = arith.constant dense<0.000000e+00> : vector<8x128xf32>
    %504 = tpu.matmul %503, %0, %cst_148 {dimension_numbers = #tpu.dot_dimension_numbers<[1], [0], [0], [1], [0, 0, 1, 1], [], []>} : vector<8x128xf32>, vector<128x128xf32>, vector<8x128xf32> -> vector<8x128xf32>
    %505 = vector.broadcast %1 : vector<1x128xf32> to vector<8x128xf32>
    %506 = arith.addf %504, %505 : vector<8x128xf32>
    %507 = math.tanh %506 : vector<8x128xf32>
    %cst_149 = arith.constant dense<0.000000e+00> : vector<8x128xf32>
    %508 = tpu.matmul %507, %2, %cst_149 {dimension_numbers = #tpu.dot_dimension_numbers<[1], [0], [0], [1], [0, 0, 1, 1], [], []>} : vector<8x128xf32>, vector<128x128xf32>, vector<8x128xf32> -> vector<8x128xf32>
    %509 = vector.broadcast %3 : vector<1x128xf32> to vector<8x128xf32>
    %510 = arith.addf %508, %509 : vector<8x128xf32>
    %cst_150 = arith.constant 2.000000e+00 : f32
    %511 = vector.broadcast %cst_150 : f32 to vector<8x128xf32>
    %512 = arith.mulf %511, %510 : vector<8x128xf32>
    %513 = arith.addf %500, %512 : vector<8x128xf32>
    %514 = vector.broadcast %478 : f32 to vector<8x128xf32>
    %515 = arith.mulf %514, %510 : vector<8x128xf32>
    %516 = arith.addf %412, %515 : vector<8x128xf32>
    %cst_151 = arith.constant dense<0.000000e+00> : vector<8x128xf32>
    %517 = tpu.matmul %516, %0, %cst_151 {dimension_numbers = #tpu.dot_dimension_numbers<[1], [0], [0], [1], [0, 0, 1, 1], [], []>} : vector<8x128xf32>, vector<128x128xf32>, vector<8x128xf32> -> vector<8x128xf32>
    %518 = vector.broadcast %1 : vector<1x128xf32> to vector<8x128xf32>
    %519 = arith.addf %517, %518 : vector<8x128xf32>
    %520 = math.tanh %519 : vector<8x128xf32>
    %cst_152 = arith.constant dense<0.000000e+00> : vector<8x128xf32>
    %521 = tpu.matmul %520, %2, %cst_152 {dimension_numbers = #tpu.dot_dimension_numbers<[1], [0], [0], [1], [0, 0, 1, 1], [], []>} : vector<8x128xf32>, vector<128x128xf32>, vector<8x128xf32> -> vector<8x128xf32>
    %522 = vector.broadcast %3 : vector<1x128xf32> to vector<8x128xf32>
    %523 = arith.addf %521, %522 : vector<8x128xf32>
    %524 = arith.addf %513, %523 : vector<8x128xf32>
    %525 = vector.broadcast %480 : f32 to vector<8x128xf32>
    %526 = arith.mulf %525, %524 : vector<8x128xf32>
    %527 = arith.addf %412, %526 : vector<8x128xf32>
    %cst_153 = arith.constant dense<0.000000e+00> : vector<8x128xf32>
    %528 = tpu.matmul %459, %0, %cst_153 {dimension_numbers = #tpu.dot_dimension_numbers<[1], [0], [0], [1], [0, 0, 1, 1], [], []>} : vector<8x128xf32>, vector<128x128xf32>, vector<8x128xf32> -> vector<8x128xf32>
    %529 = vector.broadcast %1 : vector<1x128xf32> to vector<8x128xf32>
    %530 = arith.addf %528, %529 : vector<8x128xf32>
    %531 = math.tanh %530 : vector<8x128xf32>
    %cst_154 = arith.constant dense<0.000000e+00> : vector<8x128xf32>
    %532 = tpu.matmul %531, %2, %cst_154 {dimension_numbers = #tpu.dot_dimension_numbers<[1], [0], [0], [1], [0, 0, 1, 1], [], []>} : vector<8x128xf32>, vector<128x128xf32>, vector<8x128xf32> -> vector<8x128xf32>
    %533 = vector.broadcast %3 : vector<1x128xf32> to vector<8x128xf32>
    %534 = arith.addf %532, %533 : vector<8x128xf32>
    %535 = vector.broadcast %479 : f32 to vector<8x128xf32>
    %536 = arith.mulf %535, %534 : vector<8x128xf32>
    %537 = arith.addf %459, %536 : vector<8x128xf32>
    %cst_155 = arith.constant dense<0.000000e+00> : vector<8x128xf32>
    %538 = tpu.matmul %537, %0, %cst_155 {dimension_numbers = #tpu.dot_dimension_numbers<[1], [0], [0], [1], [0, 0, 1, 1], [], []>} : vector<8x128xf32>, vector<128x128xf32>, vector<8x128xf32> -> vector<8x128xf32>
    %539 = vector.broadcast %1 : vector<1x128xf32> to vector<8x128xf32>
    %540 = arith.addf %538, %539 : vector<8x128xf32>
    %541 = math.tanh %540 : vector<8x128xf32>
    %cst_156 = arith.constant dense<0.000000e+00> : vector<8x128xf32>
    %542 = tpu.matmul %541, %2, %cst_156 {dimension_numbers = #tpu.dot_dimension_numbers<[1], [0], [0], [1], [0, 0, 1, 1], [], []>} : vector<8x128xf32>, vector<128x128xf32>, vector<8x128xf32> -> vector<8x128xf32>
    %543 = vector.broadcast %3 : vector<1x128xf32> to vector<8x128xf32>
    %544 = arith.addf %542, %543 : vector<8x128xf32>
    %cst_157 = arith.constant 2.000000e+00 : f32
    %545 = vector.broadcast %cst_157 : f32 to vector<8x128xf32>
    %546 = arith.mulf %545, %544 : vector<8x128xf32>
    %547 = arith.addf %534, %546 : vector<8x128xf32>
    %548 = vector.broadcast %479 : f32 to vector<8x128xf32>
    %549 = arith.mulf %548, %544 : vector<8x128xf32>
    %550 = arith.addf %459, %549 : vector<8x128xf32>
    %cst_158 = arith.constant dense<0.000000e+00> : vector<8x128xf32>
    %551 = tpu.matmul %550, %0, %cst_158 {dimension_numbers = #tpu.dot_dimension_numbers<[1], [0], [0], [1], [0, 0, 1, 1], [], []>} : vector<8x128xf32>, vector<128x128xf32>, vector<8x128xf32> -> vector<8x128xf32>
    %552 = vector.broadcast %1 : vector<1x128xf32> to vector<8x128xf32>
    %553 = arith.addf %551, %552 : vector<8x128xf32>
    %554 = math.tanh %553 : vector<8x128xf32>
    %cst_159 = arith.constant dense<0.000000e+00> : vector<8x128xf32>
    %555 = tpu.matmul %554, %2, %cst_159 {dimension_numbers = #tpu.dot_dimension_numbers<[1], [0], [0], [1], [0, 0, 1, 1], [], []>} : vector<8x128xf32>, vector<128x128xf32>, vector<8x128xf32> -> vector<8x128xf32>
    %556 = vector.broadcast %3 : vector<1x128xf32> to vector<8x128xf32>
    %557 = arith.addf %555, %556 : vector<8x128xf32>
    %cst_160 = arith.constant 2.000000e+00 : f32
    %558 = vector.broadcast %cst_160 : f32 to vector<8x128xf32>
    %559 = arith.mulf %558, %557 : vector<8x128xf32>
    %560 = arith.addf %547, %559 : vector<8x128xf32>
    %561 = vector.broadcast %478 : f32 to vector<8x128xf32>
    %562 = arith.mulf %561, %557 : vector<8x128xf32>
    %563 = arith.addf %459, %562 : vector<8x128xf32>
    %cst_161 = arith.constant dense<0.000000e+00> : vector<8x128xf32>
    %564 = tpu.matmul %563, %0, %cst_161 {dimension_numbers = #tpu.dot_dimension_numbers<[1], [0], [0], [1], [0, 0, 1, 1], [], []>} : vector<8x128xf32>, vector<128x128xf32>, vector<8x128xf32> -> vector<8x128xf32>
    %565 = vector.broadcast %1 : vector<1x128xf32> to vector<8x128xf32>
    %566 = arith.addf %564, %565 : vector<8x128xf32>
    %567 = math.tanh %566 : vector<8x128xf32>
    %cst_162 = arith.constant dense<0.000000e+00> : vector<8x128xf32>
    %568 = tpu.matmul %567, %2, %cst_162 {dimension_numbers = #tpu.dot_dimension_numbers<[1], [0], [0], [1], [0, 0, 1, 1], [], []>} : vector<8x128xf32>, vector<128x128xf32>, vector<8x128xf32> -> vector<8x128xf32>
    %569 = vector.broadcast %3 : vector<1x128xf32> to vector<8x128xf32>
    %570 = arith.addf %568, %569 : vector<8x128xf32>
    %571 = arith.addf %560, %570 : vector<8x128xf32>
    %572 = vector.broadcast %480 : f32 to vector<8x128xf32>
    %573 = arith.mulf %572, %571 : vector<8x128xf32>
    %574 = arith.addf %459, %573 : vector<8x128xf32>
    %c16_i32_163 = arith.constant 16 : i32
    %575 = arith.muli %c5_i32, %c16_i32_163 : i32
    %c0_i32_164 = arith.constant 0 : i32
    %576 = arith.addi %575, %c0_i32_164 : i32
    %577 = tpu.assume_multiple %576, 8 : i32
    %cst_165 = arith.constant dense<0.000000e+00> : vector<8x128xf32>
    %578 = tpu.matmul %527, %5, %cst_165 {dimension_numbers = #tpu.dot_dimension_numbers<[1], [0], [0], [1], [0, 0, 1, 1], [], []>} : vector<8x128xf32>, vector<128x128xf32>, vector<8x128xf32> -> vector<8x128xf32>
    %579 = vector.broadcast %4 : vector<1x128xf32> to vector<8x128xf32>
    %580 = arith.addf %578, %579 : vector<8x128xf32>
    %581 = arith.index_cast %577 : i32 to index
    %c0_166 = arith.constant 0 : index
    %582 = vector.load %arg9[%581, %c0_166] : memref<128x128xf32, #tpu.memory_space<vmem>>, vector<8x128xf32>
    tpu.vector_store %arg9[%581, %c0_166], %580 {strides = array<i32>} : memref<128x128xf32, #tpu.memory_space<vmem>>, vector<8x128xf32>,
    %c16_i32_167 = arith.constant 16 : i32
    %583 = arith.muli %c5_i32, %c16_i32_167 : i32
    %c8_i32_168 = arith.constant 8 : i32
    %584 = arith.addi %583, %c8_i32_168 : i32
    %585 = tpu.assume_multiple %584, 8 : i32
    %cst_169 = arith.constant dense<0.000000e+00> : vector<8x128xf32>
    %586 = tpu.matmul %574, %5, %cst_169 {dimension_numbers = #tpu.dot_dimension_numbers<[1], [0], [0], [1], [0, 0, 1, 1], [], []>} : vector<8x128xf32>, vector<128x128xf32>, vector<8x128xf32> -> vector<8x128xf32>
    %587 = vector.broadcast %4 : vector<1x128xf32> to vector<8x128xf32>
    %588 = arith.addf %586, %587 : vector<8x128xf32>
    %589 = arith.index_cast %585 : i32 to index
    %c0_170 = arith.constant 0 : index
    %590 = vector.load %arg9[%589, %c0_170] : memref<128x128xf32, #tpu.memory_space<vmem>>, vector<8x128xf32>
    tpu.vector_store %arg9[%589, %c0_170], %588 {strides = array<i32>} : memref<128x128xf32, #tpu.memory_space<vmem>>, vector<8x128xf32>,
    %c6_i32 = arith.constant 6 : i32
    %c1_i32_171 = arith.constant 1 : i32
    %591 = arith.subi %c6_i32, %c1_i32_171 : i32
    %592 = arith.index_cast %591 : i32 to index
    %593 = memref.load %arg1[%592] : memref<7xf32, #tpu.memory_space<smem>>
    %cst_172 = arith.constant 5.000000e-01 : f32
    %594 = arith.mulf %cst_172, %593 : f32
    %cst_173 = arith.constant 6.000000e+00 : f32
    %595 = arith.divf %593, %cst_173 : f32
    %cst_174 = arith.constant dense<0.000000e+00> : vector<8x128xf32>
    %596 = tpu.matmul %527, %0, %cst_174 {dimension_numbers = #tpu.dot_dimension_numbers<[1], [0], [0], [1], [0, 0, 1, 1], [], []>} : vector<8x128xf32>, vector<128x128xf32>, vector<8x128xf32> -> vector<8x128xf32>
    %597 = vector.broadcast %1 : vector<1x128xf32> to vector<8x128xf32>
    %598 = arith.addf %596, %597 : vector<8x128xf32>
    %599 = math.tanh %598 : vector<8x128xf32>
    %cst_175 = arith.constant dense<0.000000e+00> : vector<8x128xf32>
    %600 = tpu.matmul %599, %2, %cst_175 {dimension_numbers = #tpu.dot_dimension_numbers<[1], [0], [0], [1], [0, 0, 1, 1], [], []>} : vector<8x128xf32>, vector<128x128xf32>, vector<8x128xf32> -> vector<8x128xf32>
    %601 = vector.broadcast %3 : vector<1x128xf32> to vector<8x128xf32>
    %602 = arith.addf %600, %601 : vector<8x128xf32>
    %603 = vector.broadcast %594 : f32 to vector<8x128xf32>
    %604 = arith.mulf %603, %602 : vector<8x128xf32>
    %605 = arith.addf %527, %604 : vector<8x128xf32>
    %cst_176 = arith.constant dense<0.000000e+00> : vector<8x128xf32>
    %606 = tpu.matmul %605, %0, %cst_176 {dimension_numbers = #tpu.dot_dimension_numbers<[1], [0], [0], [1], [0, 0, 1, 1], [], []>} : vector<8x128xf32>, vector<128x128xf32>, vector<8x128xf32> -> vector<8x128xf32>
    %607 = vector.broadcast %1 : vector<1x128xf32> to vector<8x128xf32>
    %608 = arith.addf %606, %607 : vector<8x128xf32>
    %609 = math.tanh %608 : vector<8x128xf32>
    %cst_177 = arith.constant dense<0.000000e+00> : vector<8x128xf32>
    %610 = tpu.matmul %609, %2, %cst_177 {dimension_numbers = #tpu.dot_dimension_numbers<[1], [0], [0], [1], [0, 0, 1, 1], [], []>} : vector<8x128xf32>, vector<128x128xf32>, vector<8x128xf32> -> vector<8x128xf32>
    %611 = vector.broadcast %3 : vector<1x128xf32> to vector<8x128xf32>
    %612 = arith.addf %610, %611 : vector<8x128xf32>
    %cst_178 = arith.constant 2.000000e+00 : f32
    %613 = vector.broadcast %cst_178 : f32 to vector<8x128xf32>
    %614 = arith.mulf %613, %612 : vector<8x128xf32>
    %615 = arith.addf %602, %614 : vector<8x128xf32>
    %616 = vector.broadcast %594 : f32 to vector<8x128xf32>
    %617 = arith.mulf %616, %612 : vector<8x128xf32>
    %618 = arith.addf %527, %617 : vector<8x128xf32>
    %cst_179 = arith.constant dense<0.000000e+00> : vector<8x128xf32>
    %619 = tpu.matmul %618, %0, %cst_179 {dimension_numbers = #tpu.dot_dimension_numbers<[1], [0], [0], [1], [0, 0, 1, 1], [], []>} : vector<8x128xf32>, vector<128x128xf32>, vector<8x128xf32> -> vector<8x128xf32>
    %620 = vector.broadcast %1 : vector<1x128xf32> to vector<8x128xf32>
    %621 = arith.addf %619, %620 : vector<8x128xf32>
    %622 = math.tanh %621 : vector<8x128xf32>
    %cst_180 = arith.constant dense<0.000000e+00> : vector<8x128xf32>
    %623 = tpu.matmul %622, %2, %cst_180 {dimension_numbers = #tpu.dot_dimension_numbers<[1], [0], [0], [1], [0, 0, 1, 1], [], []>} : vector<8x128xf32>, vector<128x128xf32>, vector<8x128xf32> -> vector<8x128xf32>
    %624 = vector.broadcast %3 : vector<1x128xf32> to vector<8x128xf32>
    %625 = arith.addf %623, %624 : vector<8x128xf32>
    %cst_181 = arith.constant 2.000000e+00 : f32
    %626 = vector.broadcast %cst_181 : f32 to vector<8x128xf32>
    %627 = arith.mulf %626, %625 : vector<8x128xf32>
    %628 = arith.addf %615, %627 : vector<8x128xf32>
    %629 = vector.broadcast %593 : f32 to vector<8x128xf32>
    %630 = arith.mulf %629, %625 : vector<8x128xf32>
    %631 = arith.addf %527, %630 : vector<8x128xf32>
    %cst_182 = arith.constant dense<0.000000e+00> : vector<8x128xf32>
    %632 = tpu.matmul %631, %0, %cst_182 {dimension_numbers = #tpu.dot_dimension_numbers<[1], [0], [0], [1], [0, 0, 1, 1], [], []>} : vector<8x128xf32>, vector<128x128xf32>, vector<8x128xf32> -> vector<8x128xf32>
    %633 = vector.broadcast %1 : vector<1x128xf32> to vector<8x128xf32>
    %634 = arith.addf %632, %633 : vector<8x128xf32>
    %635 = math.tanh %634 : vector<8x128xf32>
    %cst_183 = arith.constant dense<0.000000e+00> : vector<8x128xf32>
    %636 = tpu.matmul %635, %2, %cst_183 {dimension_numbers = #tpu.dot_dimension_numbers<[1], [0], [0], [1], [0, 0, 1, 1], [], []>} : vector<8x128xf32>, vector<128x128xf32>, vector<8x128xf32> -> vector<8x128xf32>
    %637 = vector.broadcast %3 : vector<1x128xf32> to vector<8x128xf32>
    %638 = arith.addf %636, %637 : vector<8x128xf32>
    %639 = arith.addf %628, %638 : vector<8x128xf32>
    %640 = vector.broadcast %595 : f32 to vector<8x128xf32>
    %641 = arith.mulf %640, %639 : vector<8x128xf32>
    %642 = arith.addf %527, %641 : vector<8x128xf32>
    %cst_184 = arith.constant dense<0.000000e+00> : vector<8x128xf32>
    %643 = tpu.matmul %574, %0, %cst_184 {dimension_numbers = #tpu.dot_dimension_numbers<[1], [0], [0], [1], [0, 0, 1, 1], [], []>} : vector<8x128xf32>, vector<128x128xf32>, vector<8x128xf32> -> vector<8x128xf32>
    %644 = vector.broadcast %1 : vector<1x128xf32> to vector<8x128xf32>
    %645 = arith.addf %643, %644 : vector<8x128xf32>
    %646 = math.tanh %645 : vector<8x128xf32>
    %cst_185 = arith.constant dense<0.000000e+00> : vector<8x128xf32>
    %647 = tpu.matmul %646, %2, %cst_185 {dimension_numbers = #tpu.dot_dimension_numbers<[1], [0], [0], [1], [0, 0, 1, 1], [], []>} : vector<8x128xf32>, vector<128x128xf32>, vector<8x128xf32> -> vector<8x128xf32>
    %648 = vector.broadcast %3 : vector<1x128xf32> to vector<8x128xf32>
    %649 = arith.addf %647, %648 : vector<8x128xf32>
    %650 = vector.broadcast %594 : f32 to vector<8x128xf32>
    %651 = arith.mulf %650, %649 : vector<8x128xf32>
    %652 = arith.addf %574, %651 : vector<8x128xf32>
    %cst_186 = arith.constant dense<0.000000e+00> : vector<8x128xf32>
    %653 = tpu.matmul %652, %0, %cst_186 {dimension_numbers = #tpu.dot_dimension_numbers<[1], [0], [0], [1], [0, 0, 1, 1], [], []>} : vector<8x128xf32>, vector<128x128xf32>, vector<8x128xf32> -> vector<8x128xf32>
    %654 = vector.broadcast %1 : vector<1x128xf32> to vector<8x128xf32>
    %655 = arith.addf %653, %654 : vector<8x128xf32>
    %656 = math.tanh %655 : vector<8x128xf32>
    %cst_187 = arith.constant dense<0.000000e+00> : vector<8x128xf32>
    %657 = tpu.matmul %656, %2, %cst_187 {dimension_numbers = #tpu.dot_dimension_numbers<[1], [0], [0], [1], [0, 0, 1, 1], [], []>} : vector<8x128xf32>, vector<128x128xf32>, vector<8x128xf32> -> vector<8x128xf32>
    %658 = vector.broadcast %3 : vector<1x128xf32> to vector<8x128xf32>
    %659 = arith.addf %657, %658 : vector<8x128xf32>
    %cst_188 = arith.constant 2.000000e+00 : f32
    %660 = vector.broadcast %cst_188 : f32 to vector<8x128xf32>
    %661 = arith.mulf %660, %659 : vector<8x128xf32>
    %662 = arith.addf %649, %661 : vector<8x128xf32>
    %663 = vector.broadcast %594 : f32 to vector<8x128xf32>
    %664 = arith.mulf %663, %659 : vector<8x128xf32>
    %665 = arith.addf %574, %664 : vector<8x128xf32>
    %cst_189 = arith.constant dense<0.000000e+00> : vector<8x128xf32>
    %666 = tpu.matmul %665, %0, %cst_189 {dimension_numbers = #tpu.dot_dimension_numbers<[1], [0], [0], [1], [0, 0, 1, 1], [], []>} : vector<8x128xf32>, vector<128x128xf32>, vector<8x128xf32> -> vector<8x128xf32>
    %667 = vector.broadcast %1 : vector<1x128xf32> to vector<8x128xf32>
    %668 = arith.addf %666, %667 : vector<8x128xf32>
    %669 = math.tanh %668 : vector<8x128xf32>
    %cst_190 = arith.constant dense<0.000000e+00> : vector<8x128xf32>
    %670 = tpu.matmul %669, %2, %cst_190 {dimension_numbers = #tpu.dot_dimension_numbers<[1], [0], [0], [1], [0, 0, 1, 1], [], []>} : vector<8x128xf32>, vector<128x128xf32>, vector<8x128xf32> -> vector<8x128xf32>
    %671 = vector.broadcast %3 : vector<1x128xf32> to vector<8x128xf32>
    %672 = arith.addf %670, %671 : vector<8x128xf32>
    %cst_191 = arith.constant 2.000000e+00 : f32
    %673 = vector.broadcast %cst_191 : f32 to vector<8x128xf32>
    %674 = arith.mulf %673, %672 : vector<8x128xf32>
    %675 = arith.addf %662, %674 : vector<8x128xf32>
    %676 = vector.broadcast %593 : f32 to vector<8x128xf32>
    %677 = arith.mulf %676, %672 : vector<8x128xf32>
    %678 = arith.addf %574, %677 : vector<8x128xf32>
    %cst_192 = arith.constant dense<0.000000e+00> : vector<8x128xf32>
    %679 = tpu.matmul %678, %0, %cst_192 {dimension_numbers = #tpu.dot_dimension_numbers<[1], [0], [0], [1], [0, 0, 1, 1], [], []>} : vector<8x128xf32>, vector<128x128xf32>, vector<8x128xf32> -> vector<8x128xf32>
    %680 = vector.broadcast %1 : vector<1x128xf32> to vector<8x128xf32>
    %681 = arith.addf %679, %680 : vector<8x128xf32>
    %682 = math.tanh %681 : vector<8x128xf32>
    %cst_193 = arith.constant dense<0.000000e+00> : vector<8x128xf32>
    %683 = tpu.matmul %682, %2, %cst_193 {dimension_numbers = #tpu.dot_dimension_numbers<[1], [0], [0], [1], [0, 0, 1, 1], [], []>} : vector<8x128xf32>, vector<128x128xf32>, vector<8x128xf32> -> vector<8x128xf32>
    %684 = vector.broadcast %3 : vector<1x128xf32> to vector<8x128xf32>
    %685 = arith.addf %683, %684 : vector<8x128xf32>
    %686 = arith.addf %675, %685 : vector<8x128xf32>
    %687 = vector.broadcast %595 : f32 to vector<8x128xf32>
    %688 = arith.mulf %687, %686 : vector<8x128xf32>
    %689 = arith.addf %574, %688 : vector<8x128xf32>
    %c16_i32_194 = arith.constant 16 : i32
    %690 = arith.muli %c6_i32, %c16_i32_194 : i32
    %c0_i32_195 = arith.constant 0 : i32
    %691 = arith.addi %690, %c0_i32_195 : i32
    %692 = tpu.assume_multiple %691, 8 : i32
    %cst_196 = arith.constant dense<0.000000e+00> : vector<8x128xf32>
    %693 = tpu.matmul %642, %5, %cst_196 {dimension_numbers = #tpu.dot_dimension_numbers<[1], [0], [0], [1], [0, 0, 1, 1], [], []>} : vector<8x128xf32>, vector<128x128xf32>, vector<8x128xf32> -> vector<8x128xf32>
    %694 = vector.broadcast %4 : vector<1x128xf32> to vector<8x128xf32>
    %695 = arith.addf %693, %694 : vector<8x128xf32>
    %696 = arith.index_cast %692 : i32 to index
    %c0_197 = arith.constant 0 : index
    %697 = vector.load %arg9[%696, %c0_197] : memref<128x128xf32, #tpu.memory_space<vmem>>, vector<8x128xf32>
    tpu.vector_store %arg9[%696, %c0_197], %695 {strides = array<i32>} : memref<128x128xf32, #tpu.memory_space<vmem>>, vector<8x128xf32>,
    %c16_i32_198 = arith.constant 16 : i32
    %698 = arith.muli %c6_i32, %c16_i32_198 : i32
    %c8_i32_199 = arith.constant 8 : i32
    %699 = arith.addi %698, %c8_i32_199 : i32
    %700 = tpu.assume_multiple %699, 8 : i32
    %cst_200 = arith.constant dense<0.000000e+00> : vector<8x128xf32>
    %701 = tpu.matmul %689, %5, %cst_200 {dimension_numbers = #tpu.dot_dimension_numbers<[1], [0], [0], [1], [0, 0, 1, 1], [], []>} : vector<8x128xf32>, vector<128x128xf32>, vector<8x128xf32> -> vector<8x128xf32>
    %702 = vector.broadcast %4 : vector<1x128xf32> to vector<8x128xf32>
    %703 = arith.addf %701, %702 : vector<8x128xf32>
    %704 = arith.index_cast %700 : i32 to index
    %c0_201 = arith.constant 0 : index
    %705 = vector.load %arg9[%704, %c0_201] : memref<128x128xf32, #tpu.memory_space<vmem>>, vector<8x128xf32>
    tpu.vector_store %arg9[%704, %c0_201], %703 {strides = array<i32>} : memref<128x128xf32, #tpu.memory_space<vmem>>, vector<8x128xf32>,
    %c7_i32 = arith.constant 7 : i32
    %c1_i32_202 = arith.constant 1 : i32
    %706 = arith.subi %c7_i32, %c1_i32_202 : i32
    %707 = arith.index_cast %706 : i32 to index
    %708 = memref.load %arg1[%707] : memref<7xf32, #tpu.memory_space<smem>>
    %cst_203 = arith.constant 5.000000e-01 : f32
    %709 = arith.mulf %cst_203, %708 : f32
    %cst_204 = arith.constant 6.000000e+00 : f32
    %710 = arith.divf %708, %cst_204 : f32
    %cst_205 = arith.constant dense<0.000000e+00> : vector<8x128xf32>
    %711 = tpu.matmul %642, %0, %cst_205 {dimension_numbers = #tpu.dot_dimension_numbers<[1], [0], [0], [1], [0, 0, 1, 1], [], []>} : vector<8x128xf32>, vector<128x128xf32>, vector<8x128xf32> -> vector<8x128xf32>
    %712 = vector.broadcast %1 : vector<1x128xf32> to vector<8x128xf32>
    %713 = arith.addf %711, %712 : vector<8x128xf32>
    %714 = math.tanh %713 : vector<8x128xf32>
    %cst_206 = arith.constant dense<0.000000e+00> : vector<8x128xf32>
    %715 = tpu.matmul %714, %2, %cst_206 {dimension_numbers = #tpu.dot_dimension_numbers<[1], [0], [0], [1], [0, 0, 1, 1], [], []>} : vector<8x128xf32>, vector<128x128xf32>, vector<8x128xf32> -> vector<8x128xf32>
    %716 = vector.broadcast %3 : vector<1x128xf32> to vector<8x128xf32>
    %717 = arith.addf %715, %716 : vector<8x128xf32>
    %718 = vector.broadcast %709 : f32 to vector<8x128xf32>
    %719 = arith.mulf %718, %717 : vector<8x128xf32>
    %720 = arith.addf %642, %719 : vector<8x128xf32>
    %cst_207 = arith.constant dense<0.000000e+00> : vector<8x128xf32>
    %721 = tpu.matmul %720, %0, %cst_207 {dimension_numbers = #tpu.dot_dimension_numbers<[1], [0], [0], [1], [0, 0, 1, 1], [], []>} : vector<8x128xf32>, vector<128x128xf32>, vector<8x128xf32> -> vector<8x128xf32>
    %722 = vector.broadcast %1 : vector<1x128xf32> to vector<8x128xf32>
    %723 = arith.addf %721, %722 : vector<8x128xf32>
    %724 = math.tanh %723 : vector<8x128xf32>
    %cst_208 = arith.constant dense<0.000000e+00> : vector<8x128xf32>
    %725 = tpu.matmul %724, %2, %cst_208 {dimension_numbers = #tpu.dot_dimension_numbers<[1], [0], [0], [1], [0, 0, 1, 1], [], []>} : vector<8x128xf32>, vector<128x128xf32>, vector<8x128xf32> -> vector<8x128xf32>
    %726 = vector.broadcast %3 : vector<1x128xf32> to vector<8x128xf32>
    %727 = arith.addf %725, %726 : vector<8x128xf32>
    %cst_209 = arith.constant 2.000000e+00 : f32
    %728 = vector.broadcast %cst_209 : f32 to vector<8x128xf32>
    %729 = arith.mulf %728, %727 : vector<8x128xf32>
    %730 = arith.addf %717, %729 : vector<8x128xf32>
    %731 = vector.broadcast %709 : f32 to vector<8x128xf32>
    %732 = arith.mulf %731, %727 : vector<8x128xf32>
    %733 = arith.addf %642, %732 : vector<8x128xf32>
    %cst_210 = arith.constant dense<0.000000e+00> : vector<8x128xf32>
    %734 = tpu.matmul %733, %0, %cst_210 {dimension_numbers = #tpu.dot_dimension_numbers<[1], [0], [0], [1], [0, 0, 1, 1], [], []>} : vector<8x128xf32>, vector<128x128xf32>, vector<8x128xf32> -> vector<8x128xf32>
    %735 = vector.broadcast %1 : vector<1x128xf32> to vector<8x128xf32>
    %736 = arith.addf %734, %735 : vector<8x128xf32>
    %737 = math.tanh %736 : vector<8x128xf32>
    %cst_211 = arith.constant dense<0.000000e+00> : vector<8x128xf32>
    %738 = tpu.matmul %737, %2, %cst_211 {dimension_numbers = #tpu.dot_dimension_numbers<[1], [0], [0], [1], [0, 0, 1, 1], [], []>} : vector<8x128xf32>, vector<128x128xf32>, vector<8x128xf32> -> vector<8x128xf32>
    %739 = vector.broadcast %3 : vector<1x128xf32> to vector<8x128xf32>
    %740 = arith.addf %738, %739 : vector<8x128xf32>
    %cst_212 = arith.constant 2.000000e+00 : f32
    %741 = vector.broadcast %cst_212 : f32 to vector<8x128xf32>
    %742 = arith.mulf %741, %740 : vector<8x128xf32>
    %743 = arith.addf %730, %742 : vector<8x128xf32>
    %744 = vector.broadcast %708 : f32 to vector<8x128xf32>
    %745 = arith.mulf %744, %740 : vector<8x128xf32>
    %746 = arith.addf %642, %745 : vector<8x128xf32>
    %cst_213 = arith.constant dense<0.000000e+00> : vector<8x128xf32>
    %747 = tpu.matmul %746, %0, %cst_213 {dimension_numbers = #tpu.dot_dimension_numbers<[1], [0], [0], [1], [0, 0, 1, 1], [], []>} : vector<8x128xf32>, vector<128x128xf32>, vector<8x128xf32> -> vector<8x128xf32>
    %748 = vector.broadcast %1 : vector<1x128xf32> to vector<8x128xf32>
    %749 = arith.addf %747, %748 : vector<8x128xf32>
    %750 = math.tanh %749 : vector<8x128xf32>
    %cst_214 = arith.constant dense<0.000000e+00> : vector<8x128xf32>
    %751 = tpu.matmul %750, %2, %cst_214 {dimension_numbers = #tpu.dot_dimension_numbers<[1], [0], [0], [1], [0, 0, 1, 1], [], []>} : vector<8x128xf32>, vector<128x128xf32>, vector<8x128xf32> -> vector<8x128xf32>
    %752 = vector.broadcast %3 : vector<1x128xf32> to vector<8x128xf32>
    %753 = arith.addf %751, %752 : vector<8x128xf32>
    %754 = arith.addf %743, %753 : vector<8x128xf32>
    %755 = vector.broadcast %710 : f32 to vector<8x128xf32>
    %756 = arith.mulf %755, %754 : vector<8x128xf32>
    %757 = arith.addf %642, %756 : vector<8x128xf32>
    %cst_215 = arith.constant dense<0.000000e+00> : vector<8x128xf32>
    %758 = tpu.matmul %689, %0, %cst_215 {dimension_numbers = #tpu.dot_dimension_numbers<[1], [0], [0], [1], [0, 0, 1, 1], [], []>} : vector<8x128xf32>, vector<128x128xf32>, vector<8x128xf32> -> vector<8x128xf32>
    %759 = vector.broadcast %1 : vector<1x128xf32> to vector<8x128xf32>
    %760 = arith.addf %758, %759 : vector<8x128xf32>
    %761 = math.tanh %760 : vector<8x128xf32>
    %cst_216 = arith.constant dense<0.000000e+00> : vector<8x128xf32>
    %762 = tpu.matmul %761, %2, %cst_216 {dimension_numbers = #tpu.dot_dimension_numbers<[1], [0], [0], [1], [0, 0, 1, 1], [], []>} : vector<8x128xf32>, vector<128x128xf32>, vector<8x128xf32> -> vector<8x128xf32>
    %763 = vector.broadcast %3 : vector<1x128xf32> to vector<8x128xf32>
    %764 = arith.addf %762, %763 : vector<8x128xf32>
    %765 = vector.broadcast %709 : f32 to vector<8x128xf32>
    %766 = arith.mulf %765, %764 : vector<8x128xf32>
    %767 = arith.addf %689, %766 : vector<8x128xf32>
    %cst_217 = arith.constant dense<0.000000e+00> : vector<8x128xf32>
    %768 = tpu.matmul %767, %0, %cst_217 {dimension_numbers = #tpu.dot_dimension_numbers<[1], [0], [0], [1], [0, 0, 1, 1], [], []>} : vector<8x128xf32>, vector<128x128xf32>, vector<8x128xf32> -> vector<8x128xf32>
    %769 = vector.broadcast %1 : vector<1x128xf32> to vector<8x128xf32>
    %770 = arith.addf %768, %769 : vector<8x128xf32>
    %771 = math.tanh %770 : vector<8x128xf32>
    %cst_218 = arith.constant dense<0.000000e+00> : vector<8x128xf32>
    %772 = tpu.matmul %771, %2, %cst_218 {dimension_numbers = #tpu.dot_dimension_numbers<[1], [0], [0], [1], [0, 0, 1, 1], [], []>} : vector<8x128xf32>, vector<128x128xf32>, vector<8x128xf32> -> vector<8x128xf32>
    %773 = vector.broadcast %3 : vector<1x128xf32> to vector<8x128xf32>
    %774 = arith.addf %772, %773 : vector<8x128xf32>
    %cst_219 = arith.constant 2.000000e+00 : f32
    %775 = vector.broadcast %cst_219 : f32 to vector<8x128xf32>
    %776 = arith.mulf %775, %774 : vector<8x128xf32>
    %777 = arith.addf %764, %776 : vector<8x128xf32>
    %778 = vector.broadcast %709 : f32 to vector<8x128xf32>
    %779 = arith.mulf %778, %774 : vector<8x128xf32>
    %780 = arith.addf %689, %779 : vector<8x128xf32>
    %cst_220 = arith.constant dense<0.000000e+00> : vector<8x128xf32>
    %781 = tpu.matmul %780, %0, %cst_220 {dimension_numbers = #tpu.dot_dimension_numbers<[1], [0], [0], [1], [0, 0, 1, 1], [], []>} : vector<8x128xf32>, vector<128x128xf32>, vector<8x128xf32> -> vector<8x128xf32>
    %782 = vector.broadcast %1 : vector<1x128xf32> to vector<8x128xf32>
    %783 = arith.addf %781, %782 : vector<8x128xf32>
    %784 = math.tanh %783 : vector<8x128xf32>
    %cst_221 = arith.constant dense<0.000000e+00> : vector<8x128xf32>
    %785 = tpu.matmul %784, %2, %cst_221 {dimension_numbers = #tpu.dot_dimension_numbers<[1], [0], [0], [1], [0, 0, 1, 1], [], []>} : vector<8x128xf32>, vector<128x128xf32>, vector<8x128xf32> -> vector<8x128xf32>
    %786 = vector.broadcast %3 : vector<1x128xf32> to vector<8x128xf32>
    %787 = arith.addf %785, %786 : vector<8x128xf32>
    %cst_222 = arith.constant 2.000000e+00 : f32
    %788 = vector.broadcast %cst_222 : f32 to vector<8x128xf32>
    %789 = arith.mulf %788, %787 : vector<8x128xf32>
    %790 = arith.addf %777, %789 : vector<8x128xf32>
    %791 = vector.broadcast %708 : f32 to vector<8x128xf32>
    %792 = arith.mulf %791, %787 : vector<8x128xf32>
    %793 = arith.addf %689, %792 : vector<8x128xf32>
    %cst_223 = arith.constant dense<0.000000e+00> : vector<8x128xf32>
    %794 = tpu.matmul %793, %0, %cst_223 {dimension_numbers = #tpu.dot_dimension_numbers<[1], [0], [0], [1], [0, 0, 1, 1], [], []>} : vector<8x128xf32>, vector<128x128xf32>, vector<8x128xf32> -> vector<8x128xf32>
    %795 = vector.broadcast %1 : vector<1x128xf32> to vector<8x128xf32>
    %796 = arith.addf %794, %795 : vector<8x128xf32>
    %797 = math.tanh %796 : vector<8x128xf32>
    %cst_224 = arith.constant dense<0.000000e+00> : vector<8x128xf32>
    %798 = tpu.matmul %797, %2, %cst_224 {dimension_numbers = #tpu.dot_dimension_numbers<[1], [0], [0], [1], [0, 0, 1, 1], [], []>} : vector<8x128xf32>, vector<128x128xf32>, vector<8x128xf32> -> vector<8x128xf32>
    %799 = vector.broadcast %3 : vector<1x128xf32> to vector<8x128xf32>
    %800 = arith.addf %798, %799 : vector<8x128xf32>
    %801 = arith.addf %790, %800 : vector<8x128xf32>
    %802 = vector.broadcast %710 : f32 to vector<8x128xf32>
    %803 = arith.mulf %802, %801 : vector<8x128xf32>
    %804 = arith.addf %689, %803 : vector<8x128xf32>
    %c16_i32_225 = arith.constant 16 : i32
    %805 = arith.muli %c7_i32, %c16_i32_225 : i32
    %c0_i32_226 = arith.constant 0 : i32
    %806 = arith.addi %805, %c0_i32_226 : i32
    %807 = tpu.assume_multiple %806, 8 : i32
    %cst_227 = arith.constant dense<0.000000e+00> : vector<8x128xf32>
    %808 = tpu.matmul %757, %5, %cst_227 {dimension_numbers = #tpu.dot_dimension_numbers<[1], [0], [0], [1], [0, 0, 1, 1], [], []>} : vector<8x128xf32>, vector<128x128xf32>, vector<8x128xf32> -> vector<8x128xf32>
    %809 = vector.broadcast %4 : vector<1x128xf32> to vector<8x128xf32>
    %810 = arith.addf %808, %809 : vector<8x128xf32>
    %811 = arith.index_cast %807 : i32 to index
    %c0_228 = arith.constant 0 : index
    %812 = vector.load %arg9[%811, %c0_228] : memref<128x128xf32, #tpu.memory_space<vmem>>, vector<8x128xf32>
    tpu.vector_store %arg9[%811, %c0_228], %810 {strides = array<i32>} : memref<128x128xf32, #tpu.memory_space<vmem>>, vector<8x128xf32>,
    %c16_i32_229 = arith.constant 16 : i32
    %813 = arith.muli %c7_i32, %c16_i32_229 : i32
    %c8_i32_230 = arith.constant 8 : i32
    %814 = arith.addi %813, %c8_i32_230 : i32
    %815 = tpu.assume_multiple %814, 8 : i32
    %cst_231 = arith.constant dense<0.000000e+00> : vector<8x128xf32>
    %816 = tpu.matmul %804, %5, %cst_231 {dimension_numbers = #tpu.dot_dimension_numbers<[1], [0], [0], [1], [0, 0, 1, 1], [], []>} : vector<8x128xf32>, vector<128x128xf32>, vector<8x128xf32> -> vector<8x128xf32>
    %817 = vector.broadcast %4 : vector<1x128xf32> to vector<8x128xf32>
    %818 = arith.addf %816, %817 : vector<8x128xf32>
    %819 = arith.index_cast %815 : i32 to index
    %c0_232 = arith.constant 0 : index
    %820 = vector.load %arg9[%819, %c0_232] : memref<128x128xf32, #tpu.memory_space<vmem>>, vector<8x128xf32>
    tpu.vector_store %arg9[%819, %c0_232], %818 {strides = array<i32>} : memref<128x128xf32, #tpu.memory_space<vmem>>, vector<8x128xf32>,
    %c7_i32_233 = arith.constant 7 : i32
    return
  }
  func.func @transform_0(%arg0: i32, %arg1: memref<7xf32, #tpu.memory_space<smem>>) -> (i32, i32) {
    %c0_i32 = arith.constant 0 : i32
    %c0_i32_0 = arith.constant 0 : i32
    return %arg0, %c0_i32 : i32, i32
  }
  func.func @transform_1(%arg0: i32, %arg1: memref<7xf32, #tpu.memory_space<smem>>) -> (i32, i32) {
    %c0_i32 = arith.constant 0 : i32
    %c0_i32_0 = arith.constant 0 : i32
    %c0_i32_1 = arith.constant 0 : i32
    return %c0_i32, %c0_i32_0 : i32, i32
  }
  func.func @transform_2(%arg0: i32, %arg1: memref<7xf32, #tpu.memory_space<smem>>) -> (i32, i32) {
    %c0_i32 = arith.constant 0 : i32
    %c0_i32_0 = arith.constant 0 : i32
    %c0_i32_1 = arith.constant 0 : i32
    return %c0_i32, %c0_i32_0 : i32, i32
  }
  func.func @transform_3(%arg0: i32, %arg1: memref<7xf32, #tpu.memory_space<smem>>) -> (i32, i32) {
    %c0_i32 = arith.constant 0 : i32
    %c0_i32_0 = arith.constant 0 : i32
    %c0_i32_1 = arith.constant 0 : i32
    return %c0_i32, %c0_i32_0 : i32, i32
  }
  func.func @transform_4(%arg0: i32, %arg1: memref<7xf32, #tpu.memory_space<smem>>) -> (i32, i32) {
    %c0_i32 = arith.constant 0 : i32
    %c0_i32_0 = arith.constant 0 : i32
    %c0_i32_1 = arith.constant 0 : i32
    return %c0_i32, %c0_i32_0 : i32, i32
  }
  func.func @transform_5(%arg0: i32, %arg1: memref<7xf32, #tpu.memory_space<smem>>) -> (i32, i32) {
    %c0_i32 = arith.constant 0 : i32
    %c0_i32_0 = arith.constant 0 : i32
    %c0_i32_1 = arith.constant 0 : i32
    return %c0_i32, %c0_i32_0 : i32, i32
  }
  func.func @transform_6(%arg0: i32, %arg1: memref<7xf32, #tpu.memory_space<smem>>) -> (i32, i32) {
    %c0_i32 = arith.constant 0 : i32
    %c0_i32_0 = arith.constant 0 : i32
    %c0_i32_1 = arith.constant 0 : i32
    return %c0_i32, %c0_i32_0 : i32, i32
  }
  func.func @transform_7(%arg0: i32, %arg1: memref<7xf32, #tpu.memory_space<smem>>) -> (i32, i32) {
    %c0_i32 = arith.constant 0 : i32
    %c0_i32_0 = arith.constant 0 : i32
    return %arg0, %c0_i32 : i32, i32
  }
}

</mosaic_0001>

<llo_original>
// kernel: tpu_custom_call.1
$region0: #{tpu_custom_call.1}
  #allocation0 [shape = 'u32[]', space=smem, size = 0x4, offset = 0x4, fixed_abs, tag = 'smem constant byte address 0x4 - core index']
  #allocation1 [shape = 'u32[144,128]{1,0:T(1,128)}', space=vmem, size = 0x12000, scoped, tag = 'internal scratch']
  #allocation2 [shape = 's32[1]{0}', space=sflag, size = 0x4, scoped, tag = 'scoped memory for tpu_custom_call.1']
  #allocation3 [shape = 'u8[512]{0}', space=smem, size = 0x200, scoped, tag = 'prefetched SMEM operand 0']
  %s0 = inlined_call_operand.hbm [shape: f32[7], index: 0, kind: input, shape index: {}]
  %s1 = inlined_call_operand.hbm [shape: f32[16,128], index: 1, kind: input, shape index: {}]
  %s2 = inlined_call_operand.hbm [shape: f32[128,128], index: 2, kind: input, shape index: {}]
  %s3 = inlined_call_operand.vmem [shape: f32[1,128], index: 3, kind: input, shape index: {}]
  %s4 = inlined_call_operand.hbm [shape: f32[128,128], index: 4, kind: input, shape index: {}]
  %s5 = inlined_call_operand.vmem [shape: f32[1,128], index: 5, kind: input, shape index: {}]
  %s6 = inlined_call_operand.hbm [shape: f32[128,128], index: 6, kind: input, shape index: {}]
  %s7 = inlined_call_operand.vmem [shape: f32[1,128], index: 7, kind: input, shape index: {}]
  %s8 = inlined_call_operand.hbm [shape: f32[128,128], index: 8, kind: output, shape index: {}]
  %s9 = sld [smem:[#allocation0]]
  $region54: #{tpu_custom_call.1} parent=0
    _
  %s11 = ssub.s32 1, %s9
  %s12 = scalar_select 0, %s11, %s9
  %14 = dma.hbm_to_smem %s0, 16, [#allocation3], [#allocation2]
  %15 = dma.done [#allocation2], 16
  %16 = sfence
  $region1: #{tpu_custom_call.1} parent=0
    #allocation4 [shape = 'u8[8192]{0}', space=vmem, size = 0x2000, scoped, tag = 'input window, operand 1, single buffered']
    #allocation5 [shape = 's32[1]{0}', space=sflag, size = 0x4, scoped, tag = 'scoped memory for tpu_custom_call.1']
    #allocation6 [shape = 's32[1]{0}', space=sflag, size = 0x4, scoped, tag = 'scoped memory for tpu_custom_call.1']
    #allocation7 [shape = 'u8[65536]{0}', space=vmem, size = 0x10000, scoped, tag = 'input window, operand 2, single buffered']
    #allocation8 [shape = 's32[1]{0}', space=sflag, size = 0x4, scoped, tag = 'scoped memory for tpu_custom_call.1']
    #allocation9 [shape = 'u8[65536]{0}', space=vmem, size = 0x10000, scoped, tag = 'input window, operand 4, single buffered']
    #allocation10 [shape = 'u8[65536]{0}', space=vmem, size = 0x10000, scoped, tag = 'input window, operand 6, single buffered']
    #allocation11 [shape = 's32[1]{0}', space=sflag, size = 0x4, scoped, tag = 'scoped memory for tpu_custom_call.1']
    #allocation12 [shape = 'u8[65536]{0}', space=vmem, size = 0x10000, scoped, tag = 'output window, operand 0, single buffered']
    %17 = vsyncpa [#allocation5], 0
    %18 = vsyncpa [#allocation8], 0
    %19 = vsyncpa [#allocation11], 0
    %20 = vsyncpa [#allocation6], 0
    // Predicated region
    $region2: #{tpu_custom_call.1} parent=1 // pred_check
      _
    $region3: #{tpu_custom_call.1} parent=1 // pred_check_branch
      %22 = sbr.rel (0) target = $region5
    $region4: #{tpu_custom_call.1} parent=1 // pred_region
      %s24 = ssub.s32 256, 256
      %25 = vsyncadd [#allocation5], %s24
      %s26 = sshll.u32 [#allocation4], 4
      %s27 = int_to_ptr.vmem [resolvable:$true] %s26
      %32 = dma.hbm_to_vmem [thread:$0]  %s1, 256, %s27, [#allocation5], 128, 128, 8
    $region5: #{tpu_custom_call.1} parent=1 // pred_fallthru
      _
    // Predicated region
    $region6: #{tpu_custom_call.1} parent=1 // pred_check
      _
    $region7: #{tpu_custom_call.1} parent=1 // pred_check_branch
      %34 = sbr.rel (0) target = $region9
    $region8: #{tpu_custom_call.1} parent=1 // pred_region
      %s36 = ssub.s32 2048, 2048
      %37 = vsyncadd [#allocation8], %s36
      %s38 = sshll.u32 [#allocation7], 4
      %s39 = int_to_ptr.vmem [resolvable:$true] %s38
      %44 = dma.hbm_to_vmem [thread:$0]  %s2, 2048, %s39, [#allocation8], 128, 128, 8
    $region9: #{tpu_custom_call.1} parent=1 // pred_fallthru
      _
    // Predicated region
    $region10: #{tpu_custom_call.1} parent=1 // pred_check
      _
    $region11: #{tpu_custom_call.1} parent=1 // pred_check_branch
      %46 = sbr.rel (0) target = $region13
    $region12: #{tpu_custom_call.1} parent=1 // pred_region
      _
    $region13: #{tpu_custom_call.1} parent=1 // pred_fallthru
      _
    // Predicated region
    $region14: #{tpu_custom_call.1} parent=1 // pred_check
      _
    $region15: #{tpu_custom_call.1} parent=1 // pred_check_branch
      %48 = sbr.rel (0) target = $region17
    $region16: #{tpu_custom_call.1} parent=1 // pred_region
      %s50 = ssub.s32 2048, 2048
      %51 = vsyncadd [#allocation8], %s50
      %s52 = sshll.u32 [#allocation9], 4
      %s53 = int_to_ptr.vmem [resolvable:$true] %s52
      %58 = dma.hbm_to_vmem [thread:$0]  %s4, 2048, %s53, [#allocation8], 128, 128, 8
    $region17: #{tpu_custom_call.1} parent=1 // pred_fallthru
      _
    // Predicated region
    $region18: #{tpu_custom_call.1} parent=1 // pred_check
      _
    $region19: #{tpu_custom_call.1} parent=1 // pred_check_branch
      %60 = sbr.rel (0) target = $region21
    $region20: #{tpu_custom_call.1} parent=1 // pred_region
      _
    $region21: #{tpu_custom_call.1} parent=1 // pred_fallthru
      _
    // Predicated region
    $region22: #{tpu_custom_call.1} parent=1 // pred_check
      _
    $region23: #{tpu_custom_call.1} parent=1 // pred_check_branch
      %62 = sbr.rel (0) target = $region25
    $region24: #{tpu_custom_call.1} parent=1 // pred_region
      %s64 = ssub.s32 2048, 2048
      %65 = vsyncadd [#allocation11], %s64
      %s66 = sshll.u32 [#allocation10], 4
      %s67 = int_to_ptr.vmem [resolvable:$true] %s66
      %72 = dma.hbm_to_vmem [thread:$0]  %s6, 2048, %s67, [#allocation11], 128, 128, 8
    $region25: #{tpu_custom_call.1} parent=1 // pred_fallthru
      _
    // Predicated region
    $region26: #{tpu_custom_call.1} parent=1 // pred_check
      _
    $region27: #{tpu_custom_call.1} parent=1 // pred_check_branch
      %74 = sbr.rel (0) target = $region29
    $region28: #{tpu_custom_call.1} parent=1 // pred_region
      _
    $region29: #{tpu_custom_call.1} parent=1 // pred_fallthru
      _
    // Predicated region
    $region30: #{tpu_custom_call.1} parent=1 // pred_check
      _
    $region31: #{tpu_custom_call.1} parent=1 // pred_check_branch
      %76 = sbr.rel (0) target = $region33
    $region32: #{tpu_custom_call.1} parent=1 // pred_region
      %77 = dma.done [#allocation5], 256
    $region33: #{tpu_custom_call.1} parent=1 // pred_fallthru
      _
    // Predicated region
    $region34: #{tpu_custom_call.1} parent=1 // pred_check
      _
    $region35: #{tpu_custom_call.1} parent=1 // pred_check_branch
      %79 = sbr.rel (0) target = $region37
    $region36: #{tpu_custom_call.1} parent=1 // pred_region
      %80 = dma.done [#allocation8], 2048
    $region37: #{tpu_custom_call.1} parent=1 // pred_fallthru
      _
    // Predicated region
    $region38: #{tpu_custom_call.1} parent=1 // pred_check
      _
    $region39: #{tpu_custom_call.1} parent=1 // pred_check_branch
      %82 = sbr.rel (0) target = $region41
    $region40: #{tpu_custom_call.1} parent=1 // pred_region
      %83 = dma.done [#allocation8], 2048
    $region41: #{tpu_custom_call.1} parent=1 // pred_fallthru
      _
    // Predicated region
    $region42: #{tpu_custom_call.1} parent=1 // pred_check
      _
    $region43: #{tpu_custom_call.1} parent=1 // pred_check_branch
      %85 = sbr.rel (0) target = $region45
    $region44: #{tpu_custom_call.1} parent=1 // pred_region
      %86 = dma.done [#allocation11], 2048
    $region45: #{tpu_custom_call.1} parent=1 // pred_fallthru
      _
    %v87 = vld [vmem:[#allocation7] sm:$0xff]
    %v88 = vld [vmem:[#allocation7 + $0x8] sm:$0xff]
    %v89 = vld [vmem:[#allocation7 + $0x10] sm:$0xff]
    %v90 = vld [vmem:[#allocation7 + $0x18] sm:$0xff]
    %v91 = vld [vmem:[#allocation7 + $0x20] sm:$0xff]
    %v92 = vld [vmem:[#allocation7 + $0x28] sm:$0xff]
    %v93 = vld [vmem:[#allocation7 + $0x30] sm:$0xff]
    %v94 = vld [vmem:[#allocation7 + $0x38] sm:$0xff]
    %v95 = vld [vmem:[#allocation7 + $0x40] sm:$0xff]
    %v96 = vld [vmem:[#allocation7 + $0x48] sm:$0xff]
    %v97 = vld [vmem:[#allocation7 + $0x50] sm:$0xff]
    %v98 = vld [vmem:[#allocation7 + $0x58] sm:$0xff]
    %v99 = vld [vmem:[#allocation7 + $0x60] sm:$0xff]
    %v100 = vld [vmem:[#allocation7 + $0x68] sm:$0xff]
    %v101 = vld [vmem:[#allocation7 + $0x70] sm:$0xff]
    %v102 = vld [vmem:[#allocation7 + $0x78] sm:$0xff]
    %v103 = vld [vmem:[%s3] sm:$0x1]
    %v104 = vld [vmem:[#allocation9] sm:$0xff]
    %v105 = vld [vmem:[#allocation9 + $0x8] sm:$0xff]
    %v106 = vld [vmem:[#allocation9 + $0x10] sm:$0xff]
    %v107 = vld [vmem:[#allocation9 + $0x18] sm:$0xff]
    %v108 = vld [vmem:[#allocation9 + $0x20] sm:$0xff]
    %v109 = vld [vmem:[#allocation9 + $0x28] sm:$0xff]
    %v110 = vld [vmem:[#allocation9 + $0x30] sm:$0xff]
    %v111 = vld [vmem:[#allocation9 + $0x38] sm:$0xff]
    %v112 = vld [vmem:[#allocation9 + $0x40] sm:$0xff]
    %v113 = vld [vmem:[#allocation9 + $0x48] sm:$0xff]
    %v114 = vld [vmem:[#allocation9 + $0x50] sm:$0xff]
    %v115 = vld [vmem:[#allocation9 + $0x58] sm:$0xff]
    %v116 = vld [vmem:[#allocation9 + $0x60] sm:$0xff]
    %v117 = vld [vmem:[#allocation9 + $0x68] sm:$0xff]
    %v118 = vld [vmem:[#allocation9 + $0x70] sm:$0xff]
    %v119 = vld [vmem:[#allocation9 + $0x78] sm:$0xff]
    %v120 = vld [vmem:[%s5] sm:$0x1]
    %v121 = vld [vmem:[%s7] sm:$0x1]
    %v122 = vld [vmem:[#allocation10] sm:$0xff]
    %v123 = vld [vmem:[#allocation10 + $0x8] sm:$0xff]
    %v124 = vld [vmem:[#allocation10 + $0x10] sm:$0xff]
    %v125 = vld [vmem:[#allocation10 + $0x18] sm:$0xff]
    %v126 = vld [vmem:[#allocation10 + $0x20] sm:$0xff]
    %v127 = vld [vmem:[#allocation10 + $0x28] sm:$0xff]
    %v128 = vld [vmem:[#allocation10 + $0x30] sm:$0xff]
    %v129 = vld [vmem:[#allocation10 + $0x38] sm:$0xff]
    %v130 = vld [vmem:[#allocation10 + $0x40] sm:$0xff]
    %v131 = vld [vmem:[#allocation10 + $0x48] sm:$0xff]
    %v132 = vld [vmem:[#allocation10 + $0x50] sm:$0xff]
    %v133 = vld [vmem:[#allocation10 + $0x58] sm:$0xff]
    %v134 = vld [vmem:[#allocation10 + $0x60] sm:$0xff]
    %v135 = vld [vmem:[#allocation10 + $0x68] sm:$0xff]
    %v136 = vld [vmem:[#allocation10 + $0x70] sm:$0xff]
    %v137 = vld [vmem:[#allocation10 + $0x78] sm:$0xff]
    %v138 = vld [vmem:[#allocation4] sm:$0xff]
    %v140 = vlaneseq
    %v141 = vshrl.u32 %v140, 7
    %v142 = vsub.s32 0, %v141
    %v143 = vrot.slane %v121, %v142
    %145 = vmatprep.subr.mxu0 0.0
    %146 = vmatpush1.msra.mxu0 %v122
    %147 = vmatprep.subr.mxu0 0.0
    %148 = vmatpush1.msra.mxu0 %v123
    %149 = vmatprep.subr.mxu0 0.0
    %150 = vmatpush1.msra.mxu0 %v124
    %151 = vmatprep.subr.mxu0 0.0
    %152 = vmatpush1.msra.mxu0 %v125
    %153 = vmatprep.subr.mxu0 0.0
    %154 = vmatpush1.msra.mxu0 %v126
    %155 = vmatprep.subr.mxu0 0.0
    %156 = vmatpush1.msra.mxu0 %v127
    %157 = vmatprep.subr.mxu0 0.0
    %158 = vmatpush1.msra.mxu0 %v128
    %159 = vmatprep.subr.mxu0 0.0
    %160 = vmatpush1.msra.mxu0 %v129
    %161 = vmatprep.subr.mxu0 0.0
    %162 = vmatpush1.msra.mxu0 %v130
    %163 = vmatprep.subr.mxu0 0.0
    %164 = vmatpush1.msra.mxu0 %v131
    %165 = vmatprep.subr.mxu0 0.0
    %166 = vmatpush1.msra.mxu0 %v132
    %167 = vmatprep.subr.mxu0 0.0
    %168 = vmatpush1.msra.mxu0 %v133
    %169 = vmatprep.subr.mxu0 0.0
    %170 = vmatpush1.msra.mxu0 %v134
    %171 = vmatprep.subr.mxu0 0.0
    %172 = vmatpush1.msra.mxu0 %v135
    %173 = vmatprep.subr.mxu0 0.0
    %174 = vmatpush1.msra.mxu0 %v136
    %175 = vmatprep.subr.mxu0 0.0
    %176 = vmatpush1.msra.mxu0 %v137
    %177 = vmatprep.subr.mxu0 0.0
    %178 = vmatpush1.msra.mxu0 0.0
    %179 = vmatprep.subr.mxu0 0.0
    %180 = vmatpush1.msra.mxu0 0.0
    %181 = vmatprep.subr.mxu0 0.0
    %182 = vmatpush1.msra.mxu0 0.0
    %183 = vmatprep.subr.mxu0 0.0
    %184 = vmatpush1.msra.mxu0 0.0
    %185 = vmatprep.subr.mxu0 0.0
    %186 = vmatpush1.msra.mxu0 0.0
    %187 = vmatprep.subr.mxu0 0.0
    %188 = vmatpush1.msra.mxu0 0.0
    %189 = vmatprep.subr.mxu0 0.0
    %190 = vmatpush1.msra.mxu0 0.0
    %191 = vmatprep.subr.mxu0 0.0
    %192 = vmatpush1.msra.mxu0 0.0
    %193 = vmatprep.subr.mxu0 0.0
    %194 = vmatpush1.msra.mxu0 0.0
    %195 = vmatprep.subr.mxu0 0.0
    %196 = vmatpush1.msra.mxu0 0.0
    %197 = vmatprep.subr.mxu0 0.0
    %198 = vmatpush1.msra.mxu0 0.0
    %199 = vmatprep.subr.mxu0 0.0
    %200 = vmatpush1.msra.mxu0 0.0
    %201 = vmatprep.subr.mxu0 0.0
    %202 = vmatpush1.msra.mxu0 0.0
    %203 = vmatprep.subr.mxu0 0.0
    %204 = vmatpush1.msra.mxu0 0.0
    %205 = vmatprep.subr.mxu0 0.0
    %206 = vmatpush1.msra.mxu0 0.0
    %207 = vmatprep.subr.mxu0 0.0
    %208 = vmatpush1.msra.mxu0 0.0
    %209 = vmatprep.mubr.f32.mxu0 0.0
    %210 = vmatmul.mubr.f32.gmra.mrb[0].mxu0 %v138
    %v211 = vpop.f32.mrb[0].mxu0
    %v212 = vadd.f32 %v143, %v211
    %v213 = vpop.f32.mrb[0].mxu0
    %214 = vdwg.mxu0
    %215 = vst [vmem:[#allocation12] sm:$0xff] %v212
    %v216 = vld [vmem:[#allocation4 + $0x8] sm:$0xff]
    %217 = vmatprep.subr.mxu0 0.0
    %218 = vmatpush1.msra.mxu0 %v122
    %219 = vmatprep.subr.mxu0 0.0
    %220 = vmatpush1.msra.mxu0 %v123
    %221 = vmatprep.subr.mxu0 0.0
    %222 = vmatpush1.msra.mxu0 %v124
    %223 = vmatprep.subr.mxu0 0.0
    %224 = vmatpush1.msra.mxu0 %v125
    %225 = vmatprep.subr.mxu0 0.0
    %226 = vmatpush1.msra.mxu0 %v126
    %227 = vmatprep.subr.mxu0 0.0
    %228 = vmatpush1.msra.mxu0 %v127
    %229 = vmatprep.subr.mxu0 0.0
    %230 = vmatpush1.msra.mxu0 %v128
    %231 = vmatprep.subr.mxu0 0.0
    %232 = vmatpush1.msra.mxu0 %v129
    %233 = vmatprep.subr.mxu0 0.0
    %234 = vmatpush1.msra.mxu0 %v130
    %235 = vmatprep.subr.mxu0 0.0
    %236 = vmatpush1.msra.mxu0 %v131
    %237 = vmatprep.subr.mxu0 0.0
    %238 = vmatpush1.msra.mxu0 %v132
    %239 = vmatprep.subr.mxu0 0.0
    %240 = vmatpush1.msra.mxu0 %v133
    %241 = vmatprep.subr.mxu0 0.0
    %242 = vmatpush1.msra.mxu0 %v134
    %243 = vmatprep.subr.mxu0 0.0
    %244 = vmatpush1.msra.mxu0 %v135
    %245 = vmatprep.subr.mxu0 0.0
    %246 = vmatpush1.msra.mxu0 %v136
    %247 = vmatprep.subr.mxu0 0.0
    %248 = vmatpush1.msra.mxu0 %v137
    %249 = vmatprep.subr.mxu0 0.0
    %250 = vmatpush1.msra.mxu0 0.0
    %251 = vmatprep.subr.mxu0 0.0
    %252 = vmatpush1.msra.mxu0 0.0
    %253 = vmatprep.subr.mxu0 0.0
    %254 = vmatpush1.msra.mxu0 0.0
    %255 = vmatprep.subr.mxu0 0.0
    %256 = vmatpush1.msra.mxu0 0.0
    %257 = vmatprep.subr.mxu0 0.0
    %258 = vmatpush1.msra.mxu0 0.0
    %259 = vmatprep.subr.mxu0 0.0
    %260 = vmatpush1.msra.mxu0 0.0
    %261 = vmatprep.subr.mxu0 0.0
    %262 = vmatpush1.msra.mxu0 0.0
    %263 = vmatprep.subr.mxu0 0.0
    %264 = vmatpush1.msra.mxu0 0.0
    %265 = vmatprep.subr.mxu0 0.0
    %266 = vmatpush1.msra.mxu0 0.0
    %267 = vmatprep.subr.mxu0 0.0
    %268 = vmatpush1.msra.mxu0 0.0
    %269 = vmatprep.subr.mxu0 0.0
    %270 = vmatpush1.msra.mxu0 0.0
    %271 = vmatprep.subr.mxu0 0.0
    %272 = vmatpush1.msra.mxu0 0.0
    %273 = vmatprep.subr.mxu0 0.0
    %274 = vmatpush1.msra.mxu0 0.0
    %275 = vmatprep.subr.mxu0 0.0
    %276 = vmatpush1.msra.mxu0 0.0
    %277 = vmatprep.subr.mxu0 0.0
    %278 = vmatpush1.msra.mxu0 0.0
    %279 = vmatprep.subr.mxu0 0.0
    %280 = vmatpush1.msra.mxu0 0.0
    %281 = vmatprep.mubr.f32.mxu0 0.0
    %282 = vmatmul.mubr.f32.gmra.mrb[0].mxu0 %v216
    %v283 = vpop.f32.mrb[0].mxu0
    %v284 = vadd.f32 %v143, %v283
    %v285 = vpop.f32.mrb[0].mxu0
    %286 = vdwg.mxu0
    %287 = vst [vmem:[#allocation12 + $0x8] sm:$0xff] %v284
    %s288 = sld [smem:[#allocation3]]
    %s289 = smul.f32 %s288, 0.5
    %v290 = vrcp.pop 6.0
    %s291 = vtos %v290
    %s292 = smul.f32 %s288, %s291
    %v294 = vlaneseq
    %v295 = vshrl.u32 %v294, 7
    %v296 = vsub.s32 0, %v295
    %v297 = vrot.slane %v103, %v296
    %299 = vmatprep.subr.mxu0 0.0
    %300 = vmatpush1.msra.mxu0 %v87
    %301 = vmatprep.subr.mxu0 0.0
    %302 = vmatpush1.msra.mxu0 %v88
    %303 = vmatprep.subr.mxu0 0.0
    %304 = vmatpush1.msra.mxu0 %v89
    %305 = vmatprep.subr.mxu0 0.0
    %306 = vmatpush1.msra.mxu0 %v90
    %307 = vmatprep.subr.mxu0 0.0
    %308 = vmatpush1.msra.mxu0 %v91
    %309 = vmatprep.subr.mxu0 0.0
    %310 = vmatpush1.msra.mxu0 %v92
    %311 = vmatprep.subr.mxu0 0.0
    %312 = vmatpush1.msra.mxu0 %v93
    %313 = vmatprep.subr.mxu0 0.0
    %314 = vmatpush1.msra.mxu0 %v94
    %315 = vmatprep.subr.mxu0 0.0
    %316 = vmatpush1.msra.mxu0 %v95
    %317 = vmatprep.subr.mxu0 0.0
    %318 = vmatpush1.msra.mxu0 %v96
    %319 = vmatprep.subr.mxu0 0.0
    %320 = vmatpush1.msra.mxu0 %v97
    %321 = vmatprep.subr.mxu0 0.0
    %322 = vmatpush1.msra.mxu0 %v98
    %323 = vmatprep.subr.mxu0 0.0
    %324 = vmatpush1.msra.mxu0 %v99
    %325 = vmatprep.subr.mxu0 0.0
    %326 = vmatpush1.msra.mxu0 %v100
    %327 = vmatprep.subr.mxu0 0.0
    %328 = vmatpush1.msra.mxu0 %v101
    %329 = vmatprep.subr.mxu0 0.0
    %330 = vmatpush1.msra.mxu0 %v102
    %331 = vmatprep.subr.mxu0 0.0
    %332 = vmatpush1.msra.mxu0 0.0
    %333 = vmatprep.subr.mxu0 0.0
    %334 = vmatpush1.msra.mxu0 0.0
    %335 = vmatprep.subr.mxu0 0.0
    %336 = vmatpush1.msra.mxu0 0.0
    %337 = vmatprep.subr.mxu0 0.0
    %338 = vmatpush1.msra.mxu0 0.0
    %339 = vmatprep.subr.mxu0 0.0
    %340 = vmatpush1.msra.mxu0 0.0
    %341 = vmatprep.subr.mxu0 0.0
    %342 = vmatpush1.msra.mxu0 0.0
    %343 = vmatprep.subr.mxu0 0.0
    %344 = vmatpush1.msra.mxu0 0.0
    %345 = vmatprep.subr.mxu0 0.0
    %346 = vmatpush1.msra.mxu0 0.0
    %347 = vmatprep.subr.mxu0 0.0
    %348 = vmatpush1.msra.mxu0 0.0
    %349 = vmatprep.subr.mxu0 0.0
    %350 = vmatpush1.msra.mxu0 0.0
    %351 = vmatprep.subr.mxu0 0.0
    %352 = vmatpush1.msra.mxu0 0.0
    %353 = vmatprep.subr.mxu0 0.0
    %354 = vmatpush1.msra.mxu0 0.0
    %355 = vmatprep.subr.mxu0 0.0
    %356 = vmatpush1.msra.mxu0 0.0
    %357 = vmatprep.subr.mxu0 0.0
    %358 = vmatpush1.msra.mxu0 0.0
    %359 = vmatprep.subr.mxu0 0.0
    %360 = vmatpush1.msra.mxu0 0.0
    %361 = vmatprep.subr.mxu0 0.0
    %362 = vmatpush1.msra.mxu0 0.0
    %363 = vmatprep.mubr.f32.mxu0 0.0
    %364 = vmatmul.mubr.f32.gmra.mrb[0].mxu0 %v138
    %v365 = vpop.f32.mrb[0].mxu0
    %v366 = vadd.f32 %v297, %v365
    %v367 = vpop.f32.mrb[0].mxu0
    %368 = vdwg.mxu0
    %v369 = vtanh.pop %v366
    %v371 = vlaneseq
    %v372 = vshrl.u32 %v371, 7
    %v373 = vsub.s32 0, %v372
    %v374 = vrot.slane %v120, %v373
    %376 = vmatprep.subr.mxu0 0.0
    %377 = vmatpush1.msra.mxu0 %v104
    %378 = vmatprep.subr.mxu0 0.0
    %379 = vmatpush1.msra.mxu0 %v105
    %380 = vmatprep.subr.mxu0 0.0
    %381 = vmatpush1.msra.mxu0 %v106
    %382 = vmatprep.subr.mxu0 0.0
    %383 = vmatpush1.msra.mxu0 %v107
    %384 = vmatprep.subr.mxu0 0.0
    %385 = vmatpush1.msra.mxu0 %v108
    %386 = vmatprep.subr.mxu0 0.0
    %387 = vmatpush1.msra.mxu0 %v109
    %388 = vmatprep.subr.mxu0 0.0
    %389 = vmatpush1.msra.mxu0 %v110
    %390 = vmatprep.subr.mxu0 0.0
    %391 = vmatpush1.msra.mxu0 %v111
    %392 = vmatprep.subr.mxu0 0.0
    %393 = vmatpush1.msra.mxu0 %v112
    %394 = vmatprep.subr.mxu0 0.0
    %395 = vmatpush1.msra.mxu0 %v113
    %396 = vmatprep.subr.mxu0 0.0
    %397 = vmatpush1.msra.mxu0 %v114
    %398 = vmatprep.subr.mxu0 0.0
    %399 = vmatpush1.msra.mxu0 %v115
    %400 = vmatprep.subr.mxu0 0.0
    %401 = vmatpush1.msra.mxu0 %v116
    %402 = vmatprep.subr.mxu0 0.0
    %403 = vmatpush1.msra.mxu0 %v117
    %404 = vmatprep.subr.mxu0 0.0
    %405 = vmatpush1.msra.mxu0 %v118
    %406 = vmatprep.subr.mxu0 0.0
    %407 = vmatpush1.msra.mxu0 %v119
    %408 = vmatprep.subr.mxu0 0.0
    %409 = vmatpush1.msra.mxu0 0.0
    %410 = vmatprep.subr.mxu0 0.0
    %411 = vmatpush1.msra.mxu0 0.0
    %412 = vmatprep.subr.mxu0 0.0
    %413 = vmatpush1.msra.mxu0 0.0
    %414 = vmatprep.subr.mxu0 0.0
    %415 = vmatpush1.msra.mxu0 0.0
    %416 = vmatprep.subr.mxu0 0.0
    %417 = vmatpush1.msra.mxu0 0.0
    %418 = vmatprep.subr.mxu0 0.0
    %419 = vmatpush1.msra.mxu0 0.0
    %420 = vmatprep.subr.mxu0 0.0
    %421 = vmatpush1.msra.mxu0 0.0
    %422 = vmatprep.subr.mxu0 0.0
    %423 = vmatpush1.msra.mxu0 0.0
    %424 = vmatprep.subr.mxu0 0.0
    %425 = vmatpush1.msra.mxu0 0.0
    %426 = vmatprep.subr.mxu0 0.0
    %427 = vmatpush1.msra.mxu0 0.0
    %428 = vmatprep.subr.mxu0 0.0
    %429 = vmatpush1.msra.mxu0 0.0
    %430 = vmatprep.subr.mxu0 0.0
    %431 = vmatpush1.msra.mxu0 0.0
    %432 = vmatprep.subr.mxu0 0.0
    %433 = vmatpush1.msra.mxu0 0.0
    %434 = vmatprep.subr.mxu0 0.0
    %435 = vmatpush1.msra.mxu0 0.0
    %436 = vmatprep.subr.mxu0 0.0
    %437 = vmatpush1.msra.mxu0 0.0
    %438 = vmatprep.subr.mxu0 0.0
    %439 = vmatpush1.msra.mxu0 0.0
    %440 = vmatprep.mubr.f32.mxu0 0.0
    %441 = vmatmul.mubr.f32.gmra.mrb[0].mxu0 %v369
    %v442 = vpop.f32.mrb[0].mxu0
    %v443 = vadd.f32 %v374, %v442
    %v444 = vpop.f32.mrb[0].mxu0
    %445 = vdwg.mxu0
    %v446 = vstv %s289
    %v447 = vmul.f32 %v446, %v443
    %v448 = vadd.f32 %v138, %v447
    %449 = vmatprep.subr.mxu0 0.0
    %450 = vmatpush1.msra.mxu0 %v87
    %451 = vmatprep.subr.mxu0 0.0
    %452 = vmatpush1.msra.mxu0 %v88
    %453 = vmatprep.subr.mxu0 0.0
    %454 = vmatpush1.msra.mxu0 %v89
    %455 = vmatprep.subr.mxu0 0.0
    %456 = vmatpush1.msra.mxu0 %v90
    %457 = vmatprep.subr.mxu0 0.0
    %458 = vmatpush1.msra.mxu0 %v91
    %459 = vmatprep.subr.mxu0 0.0
    %460 = vmatpush1.msra.mxu0 %v92
    %461 = vmatprep.subr.mxu0 0.0
    %462 = vmatpush1.msra.mxu0 %v93
    %463 = vmatprep.subr.mxu0 0.0
    %464 = vmatpush1.msra.mxu0 %v94
    %465 = vmatprep.subr.mxu0 0.0
    %466 = vmatpush1.msra.mxu0 %v95
    %467 = vmatprep.subr.mxu0 0.0
    %468 = vmatpush1.msra.mxu0 %v96
    %469 = vmatprep.subr.mxu0 0.0
    %470 = vmatpush1.msra.mxu0 %v97
    %471 = vmatprep.subr.mxu0 0.0
    %472 = vmatpush1.msra.mxu0 %v98
    %473 = vmatprep.subr.mxu0 0.0
    %474 = vmatpush1.msra.mxu0 %v99
    %475 = vmatprep.subr.mxu0 0.0
    %476 = vmatpush1.msra.mxu0 %v100
    %477 = vmatprep.subr.mxu0 0.0
    %478 = vmatpush1.msra.mxu0 %v101
    %479 = vmatprep.subr.mxu0 0.0
    %480 = vmatpush1.msra.mxu0 %v102
    %481 = vmatprep.subr.mxu0 0.0
    %482 = vmatpush1.msra.mxu0 0.0
    %483 = vmatprep.subr.mxu0 0.0
    %484 = vmatpush1.msra.mxu0 0.0
    %485 = vmatprep.subr.mxu0 0.0
    %486 = vmatpush1.msra.mxu0 0.0
    %487 = vmatprep.subr.mxu0 0.0
    %488 = vmatpush1.msra.mxu0 0.0
    %489 = vmatprep.subr.mxu0 0.0
    %490 = vmatpush1.msra.mxu0 0.0
    %491 = vmatprep.subr.mxu0 0.0
    %492 = vmatpush1.msra.mxu0 0.0
    %493 = vmatprep.subr.mxu0 0.0
    %494 = vmatpush1.msra.mxu0 0.0
    %495 = vmatprep.subr.mxu0 0.0
    %496 = vmatpush1.msra.mxu0 0.0
    %497 = vmatprep.subr.mxu0 0.0
    %498 = vmatpush1.msra.mxu0 0.0
    %499 = vmatprep.subr.mxu0 0.0
    %500 = vmatpush1.msra.mxu0 0.0
    %501 = vmatprep.subr.mxu0 0.0
    %502 = vmatpush1.msra.mxu0 0.0
    %503 = vmatprep.subr.mxu0 0.0
    %504 = vmatpush1.msra.mxu0 0.0
    %505 = vmatprep.subr.mxu0 0.0
    %506 = vmatpush1.msra.mxu0 0.0
    %507 = vmatprep.subr.mxu0 0.0
    %508 = vmatpush1.msra.mxu0 0.0
    %509 = vmatprep.subr.mxu0 0.0
    %510 = vmatpush1.msra.mxu0 0.0
    %511 = vmatprep.subr.mxu0 0.0
    %512 = vmatpush1.msra.mxu0 0.0
    %513 = vmatprep.mubr.f32.mxu0 0.0
    %514 = vmatmul.mubr.f32.gmra.mrb[0].mxu0 %v448
    %v515 = vpop.f32.mrb[0].mxu0
    %v516 = vadd.f32 %v297, %v515
    %v517 = vpop.f32.mrb[0].mxu0
    %518 = vdwg.mxu0
    %v519 = vtanh.pop %v516
    %520 = vmatprep.subr.mxu0 0.0
    %521 = vmatpush1.msra.mxu0 %v104
    %522 = vmatprep.subr.mxu0 0.0
    %523 = vmatpush1.msra.mxu0 %v105
    %524 = vmatprep.subr.mxu0 0.0
    %525 = vmatpush1.msra.mxu0 %v106
    %526 = vmatprep.subr.mxu0 0.0
    %527 = vmatpush1.msra.mxu0 %v107
    %528 = vmatprep.subr.mxu0 0.0
    %529 = vmatpush1.msra.mxu0 %v108
    %530 = vmatprep.subr.mxu0 0.0
    %531 = vmatpush1.msra.mxu0 %v109
    %532 = vmatprep.subr.mxu0 0.0
    %533 = vmatpush1.msra.mxu0 %v110
    %534 = vmatprep.subr.mxu0 0.0
    %535 = vmatpush1.msra.mxu0 %v111
    %536 = vmatprep.subr.mxu0 0.0
    %537 = vmatpush1.msra.mxu0 %v112
    %538 = vmatprep.subr.mxu0 0.0
    %539 = vmatpush1.msra.mxu0 %v113
    %540 = vmatprep.subr.mxu0 0.0
    %541 = vmatpush1.msra.mxu0 %v114
    %542 = vmatprep.subr.mxu0 0.0
    %543 = vmatpush1.msra.mxu0 %v115
    %544 = vmatprep.subr.mxu0 0.0
    %545 = vmatpush1.msra.mxu0 %v116
    %546 = vmatprep.subr.mxu0 0.0
    %547 = vmatpush1.msra.mxu0 %v117
    %548 = vmatprep.subr.mxu0 0.0
    %549 = vmatpush1.msra.mxu0 %v118
    %550 = vmatprep.subr.mxu0 0.0
    %551 = vmatpush1.msra.mxu0 %v119
    %552 = vmatprep.subr.mxu0 0.0
    %553 = vmatpush1.msra.mxu0 0.0
    %554 = vmatprep.subr.mxu0 0.0
    %555 = vmatpush1.msra.mxu0 0.0
    %556 = vmatprep.subr.mxu0 0.0
    %557 = vmatpush1.msra.mxu0 0.0
    %558 = vmatprep.subr.mxu0 0.0
    %559 = vmatpush1.msra.mxu0 0.0
    %560 = vmatprep.subr.mxu0 0.0
    %561 = vmatpush1.msra.mxu0 0.0
    %562 = vmatprep.subr.mxu0 0.0
    %563 = vmatpush1.msra.mxu0 0.0
    %564 = vmatprep.subr.mxu0 0.0
    %565 = vmatpush1.msra.mxu0 0.0
    %566 = vmatprep.subr.mxu0 0.0
    %567 = vmatpush1.msra.mxu0 0.0
    %568 = vmatprep.subr.mxu0 0.0
    %569 = vmatpush1.msra.mxu0 0.0
    %570 = vmatprep.subr.mxu0 0.0
    %571 = vmatpush1.msra.mxu0 0.0
    %572 = vmatprep.subr.mxu0 0.0
    %573 = vmatpush1.msra.mxu0 0.0
    %574 = vmatprep.subr.mxu0 0.0
    %575 = vmatpush1.msra.mxu0 0.0
    %576 = vmatprep.subr.mxu0 0.0
    %577 = vmatpush1.msra.mxu0 0.0
    %578 = vmatprep.subr.mxu0 0.0
    %579 = vmatpush1.msra.mxu0 0.0
    %580 = vmatprep.subr.mxu0 0.0
    %581 = vmatpush1.msra.mxu0 0.0
    %582 = vmatprep.subr.mxu0 0.0
    %583 = vmatpush1.msra.mxu0 0.0
    %584 = vmatprep.mubr.f32.mxu0 0.0
    %585 = vmatmul.mubr.f32.gmra.mrb[0].mxu0 %v519
    %v586 = vpop.f32.mrb[0].mxu0
    %v587 = vadd.f32 %v374, %v586
    %v588 = vpop.f32.mrb[0].mxu0
    %589 = vdwg.mxu0
    %v590 = vmul.f32 %v587, 2.0
    %v591 = vadd.f32 %v443, %v590
    %v592 = vmul.f32 %v446, %v587
    %v593 = vadd.f32 %v138, %v592
    %594 = vmatprep.subr.mxu0 0.0
    %595 = vmatpush1.msra.mxu0 %v87
    %596 = vmatprep.subr.mxu0 0.0
    %597 = vmatpush1.msra.mxu0 %v88
    %598 = vmatprep.subr.mxu0 0.0
    %599 = vmatpush1.msra.mxu0 %v89
    %600 = vmatprep.subr.mxu0 0.0
    %601 = vmatpush1.msra.mxu0 %v90
    %602 = vmatprep.subr.mxu0 0.0
    %603 = vmatpush1.msra.mxu0 %v91
    %604 = vmatprep.subr.mxu0 0.0
    %605 = vmatpush1.msra.mxu0 %v92
    %606 = vmatprep.subr.mxu0 0.0
    %607 = vmatpush1.msra.mxu0 %v93
    %608 = vmatprep.subr.mxu0 0.0
    %609 = vmatpush1.msra.mxu0 %v94
    %610 = vmatprep.subr.mxu0 0.0
    %611 = vmatpush1.msra.mxu0 %v95
    %612 = vmatprep.subr.mxu0 0.0
    %613 = vmatpush1.msra.mxu0 %v96
    %614 = vmatprep.subr.mxu0 0.0
    %615 = vmatpush1.msra.mxu0 %v97
    %616 = vmatprep.subr.mxu0 0.0
    %617 = vmatpush1.msra.mxu0 %v98
    %618 = vmatprep.subr.mxu0 0.0
    %619 = vmatpush1.msra.mxu0 %v99
    %620 = vmatprep.subr.mxu0 0.0
    %621 = vmatpush1.msra.mxu0 %v100
    %622 = vmatprep.subr.mxu0 0.0
    %623 = vmatpush1.msra.mxu0 %v101
    %624 = vmatprep.subr.mxu0 0.0
    %625 = vmatpush1.msra.mxu0 %v102
    %626 = vmatprep.subr.mxu0 0.0
    %627 = vmatpush1.msra.mxu0 0.0
    %628 = vmatprep.subr.mxu0 0.0
    %629 = vmatpush1.msra.mxu0 0.0
    %630 = vmatprep.subr.mxu0 0.0
    %631 = vmatpush1.msra.mxu0 0.0
    %632 = vmatprep.subr.mxu0 0.0
    %633 = vmatpush1.msra.mxu0 0.0
    %634 = vmatprep.subr.mxu0 0.0
    %635 = vmatpush1.msra.mxu0 0.0
    %636 = vmatprep.subr.mxu0 0.0
    %637 = vmatpush1.msra.mxu0 0.0
    %638 = vmatprep.subr.mxu0 0.0
    %639 = vmatpush1.msra.mxu0 0.0
    %640 = vmatprep.subr.mxu0 0.0
    %641 = vmatpush1.msra.mxu0 0.0
    %642 = vmatprep.subr.mxu0 0.0
    %643 = vmatpush1.msra.mxu0 0.0
    %644 = vmatprep.subr.mxu0 0.0
    %645 = vmatpush1.msra.mxu0 0.0
    %646 = vmatprep.subr.mxu0 0.0
    %647 = vmatpush1.msra.mxu0 0.0
    %648 = vmatprep.subr.mxu0 0.0
    %649 = vmatpush1.msra.mxu0 0.0
    %650 = vmatprep.subr.mxu0 0.0
    %651 = vmatpush1.msra.mxu0 0.0
    %652 = vmatprep.subr.mxu0 0.0
    %653 = vmatpush1.msra.mxu0 0.0
    %654 = vmatprep.subr.mxu0 0.0
    %655 = vmatpush1.msra.mxu0 0.0
    %656 = vmatprep.subr.mxu0 0.0
    %657 = vmatpush1.msra.mxu0 0.0
    %658 = vmatprep.mubr.f32.mxu0 0.0
    %659 = vmatmul.mubr.f32.gmra.mrb[0].mxu0 %v593
    %v660 = vpop.f32.mrb[0].mxu0
    %v661 = vadd.f32 %v297, %v660
    %v662 = vpop.f32.mrb[0].mxu0
    %663 = vdwg.mxu0
    %v664 = vtanh.pop %v661
    %665 = vmatprep.subr.mxu0 0.0
    %666 = vmatpush1.msra.mxu0 %v104
    %667 = vmatprep.subr.mxu0 0.0
    %668 = vmatpush1.msra.mxu0 %v105
    %669 = vmatprep.subr.mxu0 0.0
    %670 = vmatpush1.msra.mxu0 %v106
    %671 = vmatprep.subr.mxu0 0.0
    %672 = vmatpush1.msra.mxu0 %v107
    %673 = vmatprep.subr.mxu0 0.0
    %674 = vmatpush1.msra.mxu0 %v108
    %675 = vmatprep.subr.mxu0 0.0
    %676 = vmatpush1.msra.mxu0 %v109
    %677 = vmatprep.subr.mxu0 0.0
    %678 = vmatpush1.msra.mxu0 %v110
    %679 = vmatprep.subr.mxu0 0.0
    %680 = vmatpush1.msra.mxu0 %v111
    %681 = vmatprep.subr.mxu0 0.0
    %682 = vmatpush1.msra.mxu0 %v112
    %683 = vmatprep.subr.mxu0 0.0
    %684 = vmatpush1.msra.mxu0 %v113
    %685 = vmatprep.subr.mxu0 0.0
    %686 = vmatpush1.msra.mxu0 %v114
    %687 = vmatprep.subr.mxu0 0.0
    %688 = vmatpush1.msra.mxu0 %v115
    %689 = vmatprep.subr.mxu0 0.0
    %690 = vmatpush1.msra.mxu0 %v116
    %691 = vmatprep.subr.mxu0 0.0
    %692 = vmatpush1.msra.mxu0 %v117
    %693 = vmatprep.subr.mxu0 0.0
    %694 = vmatpush1.msra.mxu0 %v118
    %695 = vmatprep.subr.mxu0 0.0
    %696 = vmatpush1.msra.mxu0 %v119
    %697 = vmatprep.subr.mxu0 0.0
    %698 = vmatpush1.msra.mxu0 0.0
    %699 = vmatprep.subr.mxu0 0.0
    %700 = vmatpush1.msra.mxu0 0.0
    %701 = vmatprep.subr.mxu0 0.0
    %702 = vmatpush1.msra.mxu0 0.0
    %703 = vmatprep.subr.mxu0 0.0
    %704 = vmatpush1.msra.mxu0 0.0
    %705 = vmatprep.subr.mxu0 0.0
    %706 = vmatpush1.msra.mxu0 0.0
    %707 = vmatprep.subr.mxu0 0.0
    %708 = vmatpush1.msra.mxu0 0.0
    %709 = vmatprep.subr.mxu0 0.0
    %710 = vmatpush1.msra.mxu0 0.0
    %711 = vmatprep.subr.mxu0 0.0
    %712 = vmatpush1.msra.mxu0 0.0
    %713 = vmatprep.subr.mxu0 0.0
    %714 = vmatpush1.msra.mxu0 0.0
    %715 = vmatprep.subr.mxu0 0.0
    %716 = vmatpush1.msra.mxu0 0.0
    %717 = vmatprep.subr.mxu0 0.0
    %718 = vmatpush1.msra.mxu0 0.0
    %719 = vmatprep.subr.mxu0 0.0
    %720 = vmatpush1.msra.mxu0 0.0
    %721 = vmatprep.subr.mxu0 0.0
    %722 = vmatpush1.msra.mxu0 0.0
    %723 = vmatprep.subr.mxu0 0.0
    %724 = vmatpush1.msra.mxu0 0.0
    %725 = vmatprep.subr.mxu0 0.0
    %726 = vmatpush1.msra.mxu0 0.0
    %727 = vmatprep.subr.mxu0 0.0
    %728 = vmatpush1.msra.mxu0 0.0
    %729 = vmatprep.mubr.f32.mxu0 0.0
    %730 = vmatmul.mubr.f32.gmra.mrb[0].mxu0 %v664
    %v731 = vpop.f32.mrb[0].mxu0
    %v732 = vadd.f32 %v374, %v731
    %v733 = vpop.f32.mrb[0].mxu0
    %734 = vdwg.mxu0
    %v735 = vmul.f32 %v732, 2.0
    %v736 = vadd.f32 %v591, %v735
    %v737 = vstv %s288
    %v738 = vmul.f32 %v737, %v732
    %v739 = vadd.f32 %v138, %v738
    %740 = vmatprep.subr.mxu0 0.0
    %741 = vmatpush1.msra.mxu0 %v87
    %742 = vmatprep.subr.mxu0 0.0
    %743 = vmatpush1.msra.mxu0 %v88
    %744 = vmatprep.subr.mxu0 0.0
    %745 = vmatpush1.msra.mxu0 %v89
    %746 = vmatprep.subr.mxu0 0.0
    %747 = vmatpush1.msra.mxu0 %v90
    %748 = vmatprep.subr.mxu0 0.0
    %749 = vmatpush1.msra.mxu0 %v91
    %750 = vmatprep.subr.mxu0 0.0
    %751 = vmatpush1.msra.mxu0 %v92
    %752 = vmatprep.subr.mxu0 0.0
    %753 = vmatpush1.msra.mxu0 %v93
    %754 = vmatprep.subr.mxu0 0.0
    %755 = vmatpush1.msra.mxu0 %v94
    %756 = vmatprep.subr.mxu0 0.0
    %757 = vmatpush1.msra.mxu0 %v95
    %758 = vmatprep.subr.mxu0 0.0
    %759 = vmatpush1.msra.mxu0 %v96
    %760 = vmatprep.subr.mxu0 0.0
    %761 = vmatpush1.msra.mxu0 %v97
    %762 = vmatprep.subr.mxu0 0.0
    %763 = vmatpush1.msra.mxu0 %v98
    %764 = vmatprep.subr.mxu0 0.0
    %765 = vmatpush1.msra.mxu0 %v99
    %766 = vmatprep.subr.mxu0 0.0
    %767 = vmatpush1.msra.mxu0 %v100
    %768 = vmatprep.subr.mxu0 0.0
    %769 = vmatpush1.msra.mxu0 %v101
    %770 = vmatprep.subr.mxu0 0.0
    %771 = vmatpush1.msra.mxu0 %v102
    %772 = vmatprep.subr.mxu0 0.0
    %773 = vmatpush1.msra.mxu0 0.0
    %774 = vmatprep.subr.mxu0 0.0
    %775 = vmatpush1.msra.mxu0 0.0
    %776 = vmatprep.subr.mxu0 0.0
    %777 = vmatpush1.msra.mxu0 0.0
    %778 = vmatprep.subr.mxu0 0.0
    %779 = vmatpush1.msra.mxu0 0.0
    %780 = vmatprep.subr.mxu0 0.0
    %781 = vmatpush1.msra.mxu0 0.0
    %782 = vmatprep.subr.mxu0 0.0
    %783 = vmatpush1.msra.mxu0 0.0
    %784 = vmatprep.subr.mxu0 0.0
    %785 = vmatpush1.msra.mxu0 0.0
    %786 = vmatprep.subr.mxu0 0.0
    %787 = vmatpush1.msra.mxu0 0.0
    %788 = vmatprep.subr.mxu0 0.0
    %789 = vmatpush1.msra.mxu0 0.0
    %790 = vmatprep.subr.mxu0 0.0
    %791 = vmatpush1.msra.mxu0 0.0
    %792 = vmatprep.subr.mxu0 0.0
    %793 = vmatpush1.msra.mxu0 0.0
    %794 = vmatprep.subr.mxu0 0.0
    %795 = vmatpush1.msra.mxu0 0.0
    %796 = vmatprep.subr.mxu0 0.0
    %797 = vmatpush1.msra.mxu0 0.0
    %798 = vmatprep.subr.mxu0 0.0
    %799 = vmatpush1.msra.mxu0 0.0
    %800 = vmatprep.subr.mxu0 0.0
    %801 = vmatpush1.msra.mxu0 0.0
    %802 = vmatprep.subr.mxu0 0.0
    %803 = vmatpush1.msra.mxu0 0.0
    %804 = vmatprep.mubr.f32.mxu0 0.0
    %805 = vmatmul.mubr.f32.gmra.mrb[0].mxu0 %v739
    %v806 = vpop.f32.mrb[0].mxu0
    %v807 = vadd.f32 %v297, %v806
    %v808 = vpop.f32.mrb[0].mxu0
    %809 = vdwg.mxu0
    %v810 = vtanh.pop %v807
    %811 = vmatprep.subr.mxu0 0.0
    %812 = vmatpush1.msra.mxu0 %v104
    %813 = vmatprep.subr.mxu0 0.0
    %814 = vmatpush1.msra.mxu0 %v105
    %815 = vmatprep.subr.mxu0 0.0
    %816 = vmatpush1.msra.mxu0 %v106
    %817 = vmatprep.subr.mxu0 0.0
    %818 = vmatpush1.msra.mxu0 %v107
    %819 = vmatprep.subr.mxu0 0.0
    %820 = vmatpush1.msra.mxu0 %v108
    %821 = vmatprep.subr.mxu0 0.0
    %822 = vmatpush1.msra.mxu0 %v109
    %823 = vmatprep.subr.mxu0 0.0
    %824 = vmatpush1.msra.mxu0 %v110
    %825 = vmatprep.subr.mxu0 0.0
    %826 = vmatpush1.msra.mxu0 %v111
    %827 = vmatprep.subr.mxu0 0.0
    %828 = vmatpush1.msra.mxu0 %v112
    %829 = vmatprep.subr.mxu0 0.0
    %830 = vmatpush1.msra.mxu0 %v113
    %831 = vmatprep.subr.mxu0 0.0
    %832 = vmatpush1.msra.mxu0 %v114
    %833 = vmatprep.subr.mxu0 0.0
    %834 = vmatpush1.msra.mxu0 %v115
    %835 = vmatprep.subr.mxu0 0.0
    %836 = vmatpush1.msra.mxu0 %v116
    %837 = vmatprep.subr.mxu0 0.0
    %838 = vmatpush1.msra.mxu0 %v117
    %839 = vmatprep.subr.mxu0 0.0
    %840 = vmatpush1.msra.mxu0 %v118
    %841 = vmatprep.subr.mxu0 0.0
    %842 = vmatpush1.msra.mxu0 %v119
    %843 = vmatprep.subr.mxu0 0.0
    %844 = vmatpush1.msra.mxu0 0.0
    %845 = vmatprep.subr.mxu0 0.0
    %846 = vmatpush1.msra.mxu0 0.0
    %847 = vmatprep.subr.mxu0 0.0
    %848 = vmatpush1.msra.mxu0 0.0
    %849 = vmatprep.subr.mxu0 0.0
    %850 = vmatpush1.msra.mxu0 0.0
    %851 = vmatprep.subr.mxu0 0.0
    %852 = vmatpush1.msra.mxu0 0.0
    %853 = vmatprep.subr.mxu0 0.0
    %854 = vmatpush1.msra.mxu0 0.0
    %855 = vmatprep.subr.mxu0 0.0
    %856 = vmatpush1.msra.mxu0 0.0
    %857 = vmatprep.subr.mxu0 0.0
    %858 = vmatpush1.msra.mxu0 0.0
    %859 = vmatprep.subr.mxu0 0.0
    %860 = vmatpush1.msra.mxu0 0.0
    %861 = vmatprep.subr.mxu0 0.0
    %862 = vmatpush1.msra.mxu0 0.0
    %863 = vmatprep.subr.mxu0 0.0
    %864 = vmatpush1.msra.mxu0 0.0
    %865 = vmatprep.subr.mxu0 0.0
    %866 = vmatpush1.msra.mxu0 0.0
    %867 = vmatprep.subr.mxu0 0.0
    %868 = vmatpush1.msra.mxu0 0.0
    %869 = vmatprep.subr.mxu0 0.0
    %870 = vmatpush1.msra.mxu0 0.0
    %871 = vmatprep.subr.mxu0 0.0
    %872 = vmatpush1.msra.mxu0 0.0
    %873 = vmatprep.subr.mxu0 0.0
    %874 = vmatpush1.msra.mxu0 0.0
    %875 = vmatprep.mubr.f32.mxu0 0.0
    %876 = vmatmul.mubr.f32.gmra.mrb[0].mxu0 %v810
    %v877 = vpop.f32.mrb[0].mxu0
    %v878 = vadd.f32 %v374, %v877
    %v879 = vpop.f32.mrb[0].mxu0
    %880 = vdwg.mxu0
    %v881 = vadd.f32 %v736, %v878
    %v882 = vstv %s292
    %v883 = vmul.f32 %v882, %v881
    %v884 = vadd.f32 %v138, %v883
    %885 = vmatprep.subr.mxu0 0.0
    %886 = vmatpush1.msra.mxu0 %v87
    %887 = vmatprep.subr.mxu0 0.0
    %888 = vmatpush1.msra.mxu0 %v88
    %889 = vmatprep.subr.mxu0 0.0
    %890 = vmatpush1.msra.mxu0 %v89
    %891 = vmatprep.subr.mxu0 0.0
    %892 = vmatpush1.msra.mxu0 %v90
    %893 = vmatprep.subr.mxu0 0.0
    %894 = vmatpush1.msra.mxu0 %v91
    %895 = vmatprep.subr.mxu0 0.0
    %896 = vmatpush1.msra.mxu0 %v92
    %897 = vmatprep.subr.mxu0 0.0
    %898 = vmatpush1.msra.mxu0 %v93
    %899 = vmatprep.subr.mxu0 0.0
    %900 = vmatpush1.msra.mxu0 %v94
    %901 = vmatprep.subr.mxu0 0.0
    %902 = vmatpush1.msra.mxu0 %v95
    %903 = vmatprep.subr.mxu0 0.0
    %904 = vmatpush1.msra.mxu0 %v96
    %905 = vmatprep.subr.mxu0 0.0
    %906 = vmatpush1.msra.mxu0 %v97
    %907 = vmatprep.subr.mxu0 0.0
    %908 = vmatpush1.msra.mxu0 %v98
    %909 = vmatprep.subr.mxu0 0.0
    %910 = vmatpush1.msra.mxu0 %v99
    %911 = vmatprep.subr.mxu0 0.0
    %912 = vmatpush1.msra.mxu0 %v100
    %913 = vmatprep.subr.mxu0 0.0
    %914 = vmatpush1.msra.mxu0 %v101
    %915 = vmatprep.subr.mxu0 0.0
    %916 = vmatpush1.msra.mxu0 %v102
    %917 = vmatprep.subr.mxu0 0.0
    %918 = vmatpush1.msra.mxu0 0.0
    %919 = vmatprep.subr.mxu0 0.0
    %920 = vmatpush1.msra.mxu0 0.0
    %921 = vmatprep.subr.mxu0 0.0
    %922 = vmatpush1.msra.mxu0 0.0
    %923 = vmatprep.subr.mxu0 0.0
    %924 = vmatpush1.msra.mxu0 0.0
    %925 = vmatprep.subr.mxu0 0.0
    %926 = vmatpush1.msra.mxu0 0.0
    %927 = vmatprep.subr.mxu0 0.0
    %928 = vmatpush1.msra.mxu0 0.0
    %929 = vmatprep.subr.mxu0 0.0
    %930 = vmatpush1.msra.mxu0 0.0
    %931 = vmatprep.subr.mxu0 0.0
    %932 = vmatpush1.msra.mxu0 0.0
    %933 = vmatprep.subr.mxu0 0.0
    %934 = vmatpush1.msra.mxu0 0.0
    %935 = vmatprep.subr.mxu0 0.0
    %936 = vmatpush1.msra.mxu0 0.0
    %937 = vmatprep.subr.mxu0 0.0
    %938 = vmatpush1.msra.mxu0 0.0
    %939 = vmatprep.subr.mxu0 0.0
    %940 = vmatpush1.msra.mxu0 0.0
    %941 = vmatprep.subr.mxu0 0.0
    %942 = vmatpush1.msra.mxu0 0.0
    %943 = vmatprep.subr.mxu0 0.0
    %944 = vmatpush1.msra.mxu0 0.0
    %945 = vmatprep.subr.mxu0 0.0
    %946 = vmatpush1.msra.mxu0 0.0
    %947 = vmatprep.subr.mxu0 0.0
    %948 = vmatpush1.msra.mxu0 0.0
    %949 = vmatprep.mubr.f32.mxu0 0.0
    %950 = vmatmul.mubr.f32.gmra.mrb[0].mxu0 %v216
    %v951 = vpop.f32.mrb[0].mxu0
    %v952 = vadd.f32 %v297, %v951
    %v953 = vpop.f32.mrb[0].mxu0
    %954 = vdwg.mxu0
    %v955 = vtanh.pop %v952
    %956 = vmatprep.subr.mxu0 0.0
    %957 = vmatpush1.msra.mxu0 %v104
    %958 = vmatprep.subr.mxu0 0.0
    %959 = vmatpush1.msra.mxu0 %v105
    %960 = vmatprep.subr.mxu0 0.0
    %961 = vmatpush1.msra.mxu0 %v106
    %962 = vmatprep.subr.mxu0 0.0
    %963 = vmatpush1.msra.mxu0 %v107
    %964 = vmatprep.subr.mxu0 0.0
    %965 = vmatpush1.msra.mxu0 %v108
    %966 = vmatprep.subr.mxu0 0.0
    %967 = vmatpush1.msra.mxu0 %v109
    %968 = vmatprep.subr.mxu0 0.0
    %969 = vmatpush1.msra.mxu0 %v110
    %970 = vmatprep.subr.mxu0 0.0
    %971 = vmatpush1.msra.mxu0 %v111
    %972 = vmatprep.subr.mxu0 0.0
    %973 = vmatpush1.msra.mxu0 %v112
    %974 = vmatprep.subr.mxu0 0.0
    %975 = vmatpush1.msra.mxu0 %v113
    %976 = vmatprep.subr.mxu0 0.0
    %977 = vmatpush1.msra.mxu0 %v114
    %978 = vmatprep.subr.mxu0 0.0
    %979 = vmatpush1.msra.mxu0 %v115
    %980 = vmatprep.subr.mxu0 0.0
    %981 = vmatpush1.msra.mxu0 %v116
    %982 = vmatprep.subr.mxu0 0.0
    %983 = vmatpush1.msra.mxu0 %v117
    %984 = vmatprep.subr.mxu0 0.0
    %985 = vmatpush1.msra.mxu0 %v118
    %986 = vmatprep.subr.mxu0 0.0
    %987 = vmatpush1.msra.mxu0 %v119
    %988 = vmatprep.subr.mxu0 0.0
    %989 = vmatpush1.msra.mxu0 0.0
    %990 = vmatprep.subr.mxu0 0.0
    %991 = vmatpush1.msra.mxu0 0.0
    %992 = vmatprep.subr.mxu0 0.0
    %993 = vmatpush1.msra.mxu0 0.0
    %994 = vmatprep.subr.mxu0 0.0
    %995 = vmatpush1.msra.mxu0 0.0
    %996 = vmatprep.subr.mxu0 0.0
    %997 = vmatpush1.msra.mxu0 0.0
    %998 = vmatprep.subr.mxu0 0.0
    %999 = vmatpush1.msra.mxu0 0.0
    %1000 = vmatprep.subr.mxu0 0.0
    %1001 = vmatpush1.msra.mxu0 0.0
    %1002 = vmatprep.subr.mxu0 0.0
    %1003 = vmatpush1.msra.mxu0 0.0
    %1004 = vmatprep.subr.mxu0 0.0
    %1005 = vmatpush1.msra.mxu0 0.0
    %1006 = vmatprep.subr.mxu0 0.0
    %1007 = vmatpush1.msra.mxu0 0.0
    %1008 = vmatprep.subr.mxu0 0.0
    %1009 = vmatpush1.msra.mxu0 0.0
    %1010 = vmatprep.subr.mxu0 0.0
    %1011 = vmatpush1.msra.mxu0 0.0
    %1012 = vmatprep.subr.mxu0 0.0
    %1013 = vmatpush1.msra.mxu0 0.0
    %1014 = vmatprep.subr.mxu0 0.0
    %1015 = vmatpush1.msra.mxu0 0.0
    %1016 = vmatprep.subr.mxu0 0.0
    %1017 = vmatpush1.msra.mxu0 0.0
    %1018 = vmatprep.subr.mxu0 0.0
    %1019 = vmatpush1.msra.mxu0 0.0
    %1020 = vmatprep.mubr.f32.mxu0 0.0
    %1021 = vmatmul.mubr.f32.gmra.mrb[0].mxu0 %v955
    %v1022 = vpop.f32.mrb[0].mxu0
    %v1023 = vadd.f32 %v374, %v1022
    %v1024 = vpop.f32.mrb[0].mxu0
    %1025 = vdwg.mxu0
    %v1026 = vmul.f32 %v446, %v1023
    %v1027 = vadd.f32 %v216, %v1026
    %1028 = vmatprep.subr.mxu0 0.0
    %1029 = vmatpush1.msra.mxu0 %v87
    %1030 = vmatprep.subr.mxu0 0.0
    %1031 = vmatpush1.msra.mxu0 %v88
    %1032 = vmatprep.subr.mxu0 0.0
    %1033 = vmatpush1.msra.mxu0 %v89
    %1034 = vmatprep.subr.mxu0 0.0
    %1035 = vmatpush1.msra.mxu0 %v90
    %1036 = vmatprep.subr.mxu0 0.0
    %1037 = vmatpush1.msra.mxu0 %v91
    %1038 = vmatprep.subr.mxu0 0.0
    %1039 = vmatpush1.msra.mxu0 %v92
    %1040 = vmatprep.subr.mxu0 0.0
    %1041 = vmatpush1.msra.mxu0 %v93
    %1042 = vmatprep.subr.mxu0 0.0
    %1043 = vmatpush1.msra.mxu0 %v94
    %1044 = vmatprep.subr.mxu0 0.0
    %1045 = vmatpush1.msra.mxu0 %v95
    %1046 = vmatprep.subr.mxu0 0.0
    %1047 = vmatpush1.msra.mxu0 %v96
    %1048 = vmatprep.subr.mxu0 0.0
    %1049 = vmatpush1.msra.mxu0 %v97
    %1050 = vmatprep.subr.mxu0 0.0
    %1051 = vmatpush1.msra.mxu0 %v98
    %1052 = vmatprep.subr.mxu0 0.0
    %1053 = vmatpush1.msra.mxu0 %v99
    %1054 = vmatprep.subr.mxu0 0.0
    %1055 = vmatpush1.msra.mxu0 %v100
    %1056 = vmatprep.subr.mxu0 0.0
    %1057 = vmatpush1.msra.mxu0 %v101
    %1058 = vmatprep.subr.mxu0 0.0
    %1059 = vmatpush1.msra.mxu0 %v102
    %1060 = vmatprep.subr.mxu0 0.0
    %1061 = vmatpush1.msra.mxu0 0.0
    %1062 = vmatprep.subr.mxu0 0.0
    %1063 = vmatpush1.msra.mxu0 0.0
    %1064 = vmatprep.subr.mxu0 0.0
    %1065 = vmatpush1.msra.mxu0 0.0
    %1066 = vmatprep.subr.mxu0 0.0
    %1067 = vmatpush1.msra.mxu0 0.0
    %1068 = vmatprep.subr.mxu0 0.0
    %1069 = vmatpush1.msra.mxu0 0.0
    %1070 = vmatprep.subr.mxu0 0.0
    %1071 = vmatpush1.msra.mxu0 0.0
    %1072 = vmatprep.subr.mxu0 0.0
    %1073 = vmatpush1.msra.mxu0 0.0
    %1074 = vmatprep.subr.mxu0 0.0
    %1075 = vmatpush1.msra.mxu0 0.0
    %1076 = vmatprep.subr.mxu0 0.0
    %1077 = vmatpush1.msra.mxu0 0.0
    %1078 = vmatprep.subr.mxu0 0.0
    %1079 = vmatpush1.msra.mxu0 0.0
    %1080 = vmatprep.subr.mxu0 0.0
    %1081 = vmatpush1.msra.mxu0 0.0
    %1082 = vmatprep.subr.mxu0 0.0
    %1083 = vmatpush1.msra.mxu0 0.0
    %1084 = vmatprep.subr.mxu0 0.0
    %1085 = vmatpush1.msra.mxu0 0.0
    %1086 = vmatprep.subr.mxu0 0.0
    %1087 = vmatpush1.msra.mxu0 0.0
    %1088 = vmatprep.subr.mxu0 0.0
    %1089 = vmatpush1.msra.mxu0 0.0
    %1090 = vmatprep.subr.mxu0 0.0
    %1091 = vmatpush1.msra.mxu0 0.0
    %1092 = vmatprep.mubr.f32.mxu0 0.0
    %1093 = vmatmul.mubr.f32.gmra.mrb[0].mxu0 %v1027
    %v1094 = vpop.f32.mrb[0].mxu0
    %v1095 = vadd.f32 %v297, %v1094
    %v1096 = vpop.f32.mrb[0].mxu0
    %1097 = vdwg.mxu0
    %v1098 = vtanh.pop %v1095
    %1099 = vmatprep.subr.mxu0 0.0
    %1100 = vmatpush1.msra.mxu0 %v104
    %1101 = vmatprep.subr.mxu0 0.0
    %1102 = vmatpush1.msra.mxu0 %v105
    %1103 = vmatprep.subr.mxu0 0.0
    %1104 = vmatpush1.msra.mxu0 %v106
    %1105 = vmatprep.subr.mxu0 0.0
    %1106 = vmatpush1.msra.mxu0 %v107
    %1107 = vmatprep.subr.mxu0 0.0
    %1108 = vmatpush1.msra.mxu0 %v108
    %1109 = vmatprep.subr.mxu0 0.0
    %1110 = vmatpush1.msra.mxu0 %v109
    %1111 = vmatprep.subr.mxu0 0.0
    %1112 = vmatpush1.msra.mxu0 %v110
    %1113 = vmatprep.subr.mxu0 0.0
    %1114 = vmatpush1.msra.mxu0 %v111
    %1115 = vmatprep.subr.mxu0 0.0
    %1116 = vmatpush1.msra.mxu0 %v112
    %1117 = vmatprep.subr.mxu0 0.0
    %1118 = vmatpush1.msra.mxu0 %v113
    %1119 = vmatprep.subr.mxu0 0.0
    %1120 = vmatpush1.msra.mxu0 %v114
    %1121 = vmatprep.subr.mxu0 0.0
    %1122 = vmatpush1.msra.mxu0 %v115
    %1123 = vmatprep.subr.mxu0 0.0
    %1124 = vmatpush1.msra.mxu0 %v116
    %1125 = vmatprep.subr.mxu0 0.0
    %1126 = vmatpush1.msra.mxu0 %v117
    %1127 = vmatprep.subr.mxu0 0.0
    %1128 = vmatpush1.msra.mxu0 %v118
    %1129 = vmatprep.subr.mxu0 0.0
    %1130 = vmatpush1.msra.mxu0 %v119
    %1131 = vmatprep.subr.mxu0 0.0
    %1132 = vmatpush1.msra.mxu0 0.0
    %1133 = vmatprep.subr.mxu0 0.0
    %1134 = vmatpush1.msra.mxu0 0.0
    %1135 = vmatprep.subr.mxu0 0.0
    %1136 = vmatpush1.msra.mxu0 0.0
    %1137 = vmatprep.subr.mxu0 0.0
    %1138 = vmatpush1.msra.mxu0 0.0
    %1139 = vmatprep.subr.mxu0 0.0
    %1140 = vmatpush1.msra.mxu0 0.0
    %1141 = vmatprep.subr.mxu0 0.0
    %1142 = vmatpush1.msra.mxu0 0.0
    %1143 = vmatprep.subr.mxu0 0.0
    %1144 = vmatpush1.msra.mxu0 0.0
    %1145 = vmatprep.subr.mxu0 0.0
    %1146 = vmatpush1.msra.mxu0 0.0
    %1147 = vmatprep.subr.mxu0 0.0
    %1148 = vmatpush1.msra.mxu0 0.0
    %1149 = vmatprep.subr.mxu0 0.0
    %1150 = vmatpush1.msra.mxu0 0.0
    %1151 = vmatprep.subr.mxu0 0.0
    %1152 = vmatpush1.msra.mxu0 0.0
    %1153 = vmatprep.subr.mxu0 0.0
    %1154 = vmatpush1.msra.mxu0 0.0
    %1155 = vmatprep.subr.mxu0 0.0
    %1156 = vmatpush1.msra.mxu0 0.0
    %1157 = vmatprep.subr.mxu0 0.0
    %1158 = vmatpush1.msra.mxu0 0.0
    %1159 = vmatprep.subr.mxu0 0.0
    %1160 = vmatpush1.msra.mxu0 0.0
    %1161 = vmatprep.subr.mxu0 0.0
    %1162 = vmatpush1.msra.mxu0 0.0
    %1163 = vmatprep.mubr.f32.mxu0 0.0
    %1164 = vmatmul.mubr.f32.gmra.mrb[0].mxu0 %v1098
    %v1165 = vpop.f32.mrb[0].mxu0
    %v1166 = vadd.f32 %v374, %v1165
    %v1167 = vpop.f32.mrb[0].mxu0
    %1168 = vdwg.mxu0
    %v1169 = vmul.f32 %v1166, 2.0
    %v1170 = vadd.f32 %v1023, %v1169
    %v1171 = vmul.f32 %v446, %v1166
    %v1172 = vadd.f32 %v216, %v1171
    %1173 = vmatprep.subr.mxu0 0.0
    %1174 = vmatpush1.msra.mxu0 %v87
    %1175 = vmatprep.subr.mxu0 0.0
    %1176 = vmatpush1.msra.mxu0 %v88
    %1177 = vmatprep.subr.mxu0 0.0
    %1178 = vmatpush1.msra.mxu0 %v89
    %1179 = vmatprep.subr.mxu0 0.0
    %1180 = vmatpush1.msra.mxu0 %v90
    %1181 = vmatprep.subr.mxu0 0.0
    %1182 = vmatpush1.msra.mxu0 %v91
    %1183 = vmatprep.subr.mxu0 0.0
    %1184 = vmatpush1.msra.mxu0 %v92
    %1185 = vmatprep.subr.mxu0 0.0
    %1186 = vmatpush1.msra.mxu0 %v93
    %1187 = vmatprep.subr.mxu0 0.0
    %1188 = vmatpush1.msra.mxu0 %v94
    %1189 = vmatprep.subr.mxu0 0.0
    %1190 = vmatpush1.msra.mxu0 %v95
    %1191 = vmatprep.subr.mxu0 0.0
    %1192 = vmatpush1.msra.mxu0 %v96
    %1193 = vmatprep.subr.mxu0 0.0
    %1194 = vmatpush1.msra.mxu0 %v97
    %1195 = vmatprep.subr.mxu0 0.0
    %1196 = vmatpush1.msra.mxu0 %v98
    %1197 = vmatprep.subr.mxu0 0.0
    %1198 = vmatpush1.msra.mxu0 %v99
    %1199 = vmatprep.subr.mxu0 0.0
    %1200 = vmatpush1.msra.mxu0 %v100
    %1201 = vmatprep.subr.mxu0 0.0
    %1202 = vmatpush1.msra.mxu0 %v101
    %1203 = vmatprep.subr.mxu0 0.0
    %1204 = vmatpush1.msra.mxu0 %v102
    %1205 = vmatprep.subr.mxu0 0.0
    %1206 = vmatpush1.msra.mxu0 0.0
    %1207 = vmatprep.subr.mxu0 0.0
    %1208 = vmatpush1.msra.mxu0 0.0
    %1209 = vmatprep.subr.mxu0 0.0
    %1210 = vmatpush1.msra.mxu0 0.0
    %1211 = vmatprep.subr.mxu0 0.0
    %1212 = vmatpush1.msra.mxu0 0.0
    %1213 = vmatprep.subr.mxu0 0.0
    %1214 = vmatpush1.msra.mxu0 0.0
    %1215 = vmatprep.subr.mxu0 0.0
    %1216 = vmatpush1.msra.mxu0 0.0
    %1217 = vmatprep.subr.mxu0 0.0
    %1218 = vmatpush1.msra.mxu0 0.0
    %1219 = vmatprep.subr.mxu0 0.0
    %1220 = vmatpush1.msra.mxu0 0.0
    %1221 = vmatprep.subr.mxu0 0.0
    %1222 = vmatpush1.msra.mxu0 0.0
    %1223 = vmatprep.subr.mxu0 0.0
    %1224 = vmatpush1.msra.mxu0 0.0
    %1225 = vmatprep.subr.mxu0 0.0
    %1226 = vmatpush1.msra.mxu0 0.0
    %1227 = vmatprep.subr.mxu0 0.0
    %1228 = vmatpush1.msra.mxu0 0.0
    %1229 = vmatprep.subr.mxu0 0.0
    %1230 = vmatpush1.msra.mxu0 0.0
    %1231 = vmatprep.subr.mxu0 0.0
    %1232 = vmatpush1.msra.mxu0 0.0
    %1233 = vmatprep.subr.mxu0 0.0
    %1234 = vmatpush1.msra.mxu0 0.0
    %1235 = vmatprep.subr.mxu0 0.0
    %1236 = vmatpush1.msra.mxu0 0.0
    %1237 = vmatprep.mubr.f32.mxu0 0.0
    %1238 = vmatmul.mubr.f32.gmra.mrb[0].mxu0 %v1172
    %v1239 = vpop.f32.mrb[0].mxu0
    %v1240 = vadd.f32 %v297, %v1239
    %v1241 = vpop.f32.mrb[0].mxu0
    %1242 = vdwg.mxu0
    %v1243 = vtanh.pop %v1240
    %1244 = vmatprep.subr.mxu0 0.0
    %1245 = vmatpush1.msra.mxu0 %v104
    %1246 = vmatprep.subr.mxu0 0.0
    %1247 = vmatpush1.msra.mxu0 %v105
    %1248 = vmatprep.subr.mxu0 0.0
    %1249 = vmatpush1.msra.mxu0 %v106
    %1250 = vmatprep.subr.mxu0 0.0
    %1251 = vmatpush1.msra.mxu0 %v107
    %1252 = vmatprep.subr.mxu0 0.0
    %1253 = vmatpush1.msra.mxu0 %v108
    %1254 = vmatprep.subr.mxu0 0.0
    %1255 = vmatpush1.msra.mxu0 %v109
    %1256 = vmatprep.subr.mxu0 0.0
    %1257 = vmatpush1.msra.mxu0 %v110
    %1258 = vmatprep.subr.mxu0 0.0
    %1259 = vmatpush1.msra.mxu0 %v111
    %1260 = vmatprep.subr.mxu0 0.0
    %1261 = vmatpush1.msra.mxu0 %v112
    %1262 = vmatprep.subr.mxu0 0.0
    %1263 = vmatpush1.msra.mxu0 %v113
    %1264 = vmatprep.subr.mxu0 0.0
    %1265 = vmatpush1.msra.mxu0 %v114
    %1266 = vmatprep.subr.mxu0 0.0
    %1267 = vmatpush1.msra.mxu0 %v115
    %1268 = vmatprep.subr.mxu0 0.0
    %1269 = vmatpush1.msra.mxu0 %v116
    %1270 = vmatprep.subr.mxu0 0.0
    %1271 = vmatpush1.msra.mxu0 %v117
    %1272 = vmatprep.subr.mxu0 0.0
    %1273 = vmatpush1.msra.mxu0 %v118
    %1274 = vmatprep.subr.mxu0 0.0
    %1275 = vmatpush1.msra.mxu0 %v119
    %1276 = vmatprep.subr.mxu0 0.0
    %1277 = vmatpush1.msra.mxu0 0.0
    %1278 = vmatprep.subr.mxu0 0.0
    %1279 = vmatpush1.msra.mxu0 0.0
    %1280 = vmatprep.subr.mxu0 0.0
    %1281 = vmatpush1.msra.mxu0 0.0
    %1282 = vmatprep.subr.mxu0 0.0
    %1283 = vmatpush1.msra.mxu0 0.0
    %1284 = vmatprep.subr.mxu0 0.0
    %1285 = vmatpush1.msra.mxu0 0.0
    %1286 = vmatprep.subr.mxu0 0.0
    %1287 = vmatpush1.msra.mxu0 0.0
    %1288 = vmatprep.subr.mxu0 0.0
    %1289 = vmatpush1.msra.mxu0 0.0
    %1290 = vmatprep.subr.mxu0 0.0
    %1291 = vmatpush1.msra.mxu0 0.0
    %1292 = vmatprep.subr.mxu0 0.0
    %1293 = vmatpush1.msra.mxu0 0.0
    %1294 = vmatprep.subr.mxu0 0.0
    %1295 = vmatpush1.msra.mxu0 0.0
    %1296 = vmatprep.subr.mxu0 0.0
    %1297 = vmatpush1.msra.mxu0 0.0
    %1298 = vmatprep.subr.mxu0 0.0
    %1299 = vmatpush1.msra.mxu0 0.0
    %1300 = vmatprep.subr.mxu0 0.0
    %1301 = vmatpush1.msra.mxu0 0.0
    %1302 = vmatprep.subr.mxu0 0.0
    %1303 = vmatpush1.msra.mxu0 0.0
    %1304 = vmatprep.subr.mxu0 0.0
    %1305 = vmatpush1.msra.mxu0 0.0
    %1306 = vmatprep.subr.mxu0 0.0
    %1307 = vmatpush1.msra.mxu0 0.0
    %1308 = vmatprep.mubr.f32.mxu0 0.0
    %1309 = vmatmul.mubr.f32.gmra.mrb[0].mxu0 %v1243
    %v1310 = vpop.f32.mrb[0].mxu0
    %v1311 = vadd.f32 %v374, %v1310
    %v1312 = vpop.f32.mrb[0].mxu0
    %1313 = vdwg.mxu0
    %v1314 = vmul.f32 %v1311, 2.0
    %v1315 = vadd.f32 %v1170, %v1314
    %v1316 = vmul.f32 %v737, %v1311
    %v1317 = vadd.f32 %v216, %v1316
    %1318 = vmatprep.subr.mxu0 0.0
    %1319 = vmatpush1.msra.mxu0 %v87
    %1320 = vmatprep.subr.mxu0 0.0
    %1321 = vmatpush1.msra.mxu0 %v88
    %1322 = vmatprep.subr.mxu0 0.0
    %1323 = vmatpush1.msra.mxu0 %v89
    %1324 = vmatprep.subr.mxu0 0.0
    %1325 = vmatpush1.msra.mxu0 %v90
    %1326 = vmatprep.subr.mxu0 0.0
    %1327 = vmatpush1.msra.mxu0 %v91
    %1328 = vmatprep.subr.mxu0 0.0
    %1329 = vmatpush1.msra.mxu0 %v92
    %1330 = vmatprep.subr.mxu0 0.0
    %1331 = vmatpush1.msra.mxu0 %v93
    %1332 = vmatprep.subr.mxu0 0.0
    %1333 = vmatpush1.msra.mxu0 %v94
    %1334 = vmatprep.subr.mxu0 0.0
    %1335 = vmatpush1.msra.mxu0 %v95
    %1336 = vmatprep.subr.mxu0 0.0
    %1337 = vmatpush1.msra.mxu0 %v96
    %1338 = vmatprep.subr.mxu0 0.0
    %1339 = vmatpush1.msra.mxu0 %v97
    %1340 = vmatprep.subr.mxu0 0.0
    %1341 = vmatpush1.msra.mxu0 %v98
    %1342 = vmatprep.subr.mxu0 0.0
    %1343 = vmatpush1.msra.mxu0 %v99
    %1344 = vmatprep.subr.mxu0 0.0
    %1345 = vmatpush1.msra.mxu0 %v100
    %1346 = vmatprep.subr.mxu0 0.0
    %1347 = vmatpush1.msra.mxu0 %v101
    %1348 = vmatprep.subr.mxu0 0.0
    %1349 = vmatpush1.msra.mxu0 %v102
    %1350 = vmatprep.subr.mxu0 0.0
    %1351 = vmatpush1.msra.mxu0 0.0
    %1352 = vmatprep.subr.mxu0 0.0
    %1353 = vmatpush1.msra.mxu0 0.0
    %1354 = vmatprep.subr.mxu0 0.0
    %1355 = vmatpush1.msra.mxu0 0.0
    %1356 = vmatprep.subr.mxu0 0.0
    %1357 = vmatpush1.msra.mxu0 0.0
    %1358 = vmatprep.subr.mxu0 0.0
    %1359 = vmatpush1.msra.mxu0 0.0
    %1360 = vmatprep.subr.mxu0 0.0
    %1361 = vmatpush1.msra.mxu0 0.0
    %1362 = vmatprep.subr.mxu0 0.0
    %1363 = vmatpush1.msra.mxu0 0.0
    %1364 = vmatprep.subr.mxu0 0.0
    %1365 = vmatpush1.msra.mxu0 0.0
    %1366 = vmatprep.subr.mxu0 0.0
    %1367 = vmatpush1.msra.mxu0 0.0
    %1368 = vmatprep.subr.mxu0 0.0
    %1369 = vmatpush1.msra.mxu0 0.0
    %1370 = vmatprep.subr.mxu0 0.0
    %1371 = vmatpush1.msra.mxu0 0.0
    %1372 = vmatprep.subr.mxu0 0.0
    %1373 = vmatpush1.msra.mxu0 0.0
    %1374 = vmatprep.subr.mxu0 0.0
    %1375 = vmatpush1.msra.mxu0 0.0
    %1376 = vmatprep.subr.mxu0 0.0
    %1377 = vmatpush1.msra.mxu0 0.0
    %1378 = vmatprep.subr.mxu0 0.0
    %1379 = vmatpush1.msra.mxu0 0.0
    %1380 = vmatprep.subr.mxu0 0.0
    %1381 = vmatpush1.msra.mxu0 0.0
    %1382 = vmatprep.mubr.f32.mxu0 0.0
    %1383 = vmatmul.mubr.f32.gmra.mrb[0].mxu0 %v1317
    %v1384 = vpop.f32.mrb[0].mxu0
    %v1385 = vadd.f32 %v297, %v1384
    %v1386 = vpop.f32.mrb[0].mxu0
    %1387 = vdwg.mxu0
    %v1388 = vtanh.pop %v1385
    %1389 = vmatprep.subr.mxu0 0.0
    %1390 = vmatpush1.msra.mxu0 %v104
    %1391 = vmatprep.subr.mxu0 0.0
    %1392 = vmatpush1.msra.mxu0 %v105
    %1393 = vmatprep.subr.mxu0 0.0
    %1394 = vmatpush1.msra.mxu0 %v106
    %1395 = vmatprep.subr.mxu0 0.0
    %1396 = vmatpush1.msra.mxu0 %v107
    %1397 = vmatprep.subr.mxu0 0.0
    %1398 = vmatpush1.msra.mxu0 %v108
    %1399 = vmatprep.subr.mxu0 0.0
    %1400 = vmatpush1.msra.mxu0 %v109
    %1401 = vmatprep.subr.mxu0 0.0
    %1402 = vmatpush1.msra.mxu0 %v110
    %1403 = vmatprep.subr.mxu0 0.0
    %1404 = vmatpush1.msra.mxu0 %v111
    %1405 = vmatprep.subr.mxu0 0.0
    %1406 = vmatpush1.msra.mxu0 %v112
    %1407 = vmatprep.subr.mxu0 0.0
    %1408 = vmatpush1.msra.mxu0 %v113
    %1409 = vmatprep.subr.mxu0 0.0
    %1410 = vmatpush1.msra.mxu0 %v114
    %1411 = vmatprep.subr.mxu0 0.0
    %1412 = vmatpush1.msra.mxu0 %v115
    %1413 = vmatprep.subr.mxu0 0.0
    %1414 = vmatpush1.msra.mxu0 %v116
    %1415 = vmatprep.subr.mxu0 0.0
    %1416 = vmatpush1.msra.mxu0 %v117
    %1417 = vmatprep.subr.mxu0 0.0
    %1418 = vmatpush1.msra.mxu0 %v118
    %1419 = vmatprep.subr.mxu0 0.0
    %1420 = vmatpush1.msra.mxu0 %v119
    %1421 = vmatprep.subr.mxu0 0.0
    %1422 = vmatpush1.msra.mxu0 0.0
    %1423 = vmatprep.subr.mxu0 0.0
    %1424 = vmatpush1.msra.mxu0 0.0
    %1425 = vmatprep.subr.mxu0 0.0
    %1426 = vmatpush1.msra.mxu0 0.0
    %1427 = vmatprep.subr.mxu0 0.0
    %1428 = vmatpush1.msra.mxu0 0.0
    %1429 = vmatprep.subr.mxu0 0.0
    %1430 = vmatpush1.msra.mxu0 0.0
    %1431 = vmatprep.subr.mxu0 0.0
    %1432 = vmatpush1.msra.mxu0 0.0
    %1433 = vmatprep.subr.mxu0 0.0
    %1434 = vmatpush1.msra.mxu0 0.0
    %1435 = vmatprep.subr.mxu0 0.0
    %1436 = vmatpush1.msra.mxu0 0.0
    %1437 = vmatprep.subr.mxu0 0.0
    %1438 = vmatpush1.msra.mxu0 0.0
    %1439 = vmatprep.subr.mxu0 0.0
    %1440 = vmatpush1.msra.mxu0 0.0
    %1441 = vmatprep.subr.mxu0 0.0
    %1442 = vmatpush1.msra.mxu0 0.0
    %1443 = vmatprep.subr.mxu0 0.0
    %1444 = vmatpush1.msra.mxu0 0.0
    %1445 = vmatprep.subr.mxu0 0.0
    %1446 = vmatpush1.msra.mxu0 0.0
    %1447 = vmatprep.subr.mxu0 0.0
    %1448 = vmatpush1.msra.mxu0 0.0
    %1449 = vmatprep.subr.mxu0 0.0
    %1450 = vmatpush1.msra.mxu0 0.0
    %1451 = vmatprep.subr.mxu0 0.0
    %1452 = vmatpush1.msra.mxu0 0.0
    %1453 = vmatprep.mubr.f32.mxu0 0.0
    %1454 = vmatmul.mubr.f32.gmra.mrb[0].mxu0 %v1388
    %v1455 = vpop.f32.mrb[0].mxu0
    %v1456 = vadd.f32 %v374, %v1455
    %v1457 = vpop.f32.mrb[0].mxu0
    %1458 = vdwg.mxu0
    %v1459 = vadd.f32 %v1315, %v1456
    %v1460 = vmul.f32 %v882, %v1459
    %v1461 = vadd.f32 %v216, %v1460
    %1462 = vmatprep.subr.mxu0 0.0
    %1463 = vmatpush1.msra.mxu0 %v122
    %1464 = vmatprep.subr.mxu0 0.0
    %1465 = vmatpush1.msra.mxu0 %v123
    %1466 = vmatprep.subr.mxu0 0.0
    %1467 = vmatpush1.msra.mxu0 %v124
    %1468 = vmatprep.subr.mxu0 0.0
    %1469 = vmatpush1.msra.mxu0 %v125
    %1470 = vmatprep.subr.mxu0 0.0
    %1471 = vmatpush1.msra.mxu0 %v126
    %1472 = vmatprep.subr.mxu0 0.0
    %1473 = vmatpush1.msra.mxu0 %v127
    %1474 = vmatprep.subr.mxu0 0.0
    %1475 = vmatpush1.msra.mxu0 %v128
    %1476 = vmatprep.subr.mxu0 0.0
    %1477 = vmatpush1.msra.mxu0 %v129
    %1478 = vmatprep.subr.mxu0 0.0
    %1479 = vmatpush1.msra.mxu0 %v130
    %1480 = vmatprep.subr.mxu0 0.0
    %1481 = vmatpush1.msra.mxu0 %v131
    %1482 = vmatprep.subr.mxu0 0.0
    %1483 = vmatpush1.msra.mxu0 %v132
    %1484 = vmatprep.subr.mxu0 0.0
    %1485 = vmatpush1.msra.mxu0 %v133
    %1486 = vmatprep.subr.mxu0 0.0
    %1487 = vmatpush1.msra.mxu0 %v134
    %1488 = vmatprep.subr.mxu0 0.0
    %1489 = vmatpush1.msra.mxu0 %v135
    %1490 = vmatprep.subr.mxu0 0.0
    %1491 = vmatpush1.msra.mxu0 %v136
    %1492 = vmatprep.subr.mxu0 0.0
    %1493 = vmatpush1.msra.mxu0 %v137
    %1494 = vmatprep.subr.mxu0 0.0
    %1495 = vmatpush1.msra.mxu0 0.0
    %1496 = vmatprep.subr.mxu0 0.0
    %1497 = vmatpush1.msra.mxu0 0.0
    %1498 = vmatprep.subr.mxu0 0.0
    %1499 = vmatpush1.msra.mxu0 0.0
    %1500 = vmatprep.subr.mxu0 0.0
    %1501 = vmatpush1.msra.mxu0 0.0
    %1502 = vmatprep.subr.mxu0 0.0
    %1503 = vmatpush1.msra.mxu0 0.0
    %1504 = vmatprep.subr.mxu0 0.0
    %1505 = vmatpush1.msra.mxu0 0.0
    %1506 = vmatprep.subr.mxu0 0.0
    %1507 = vmatpush1.msra.mxu0 0.0
    %1508 = vmatprep.subr.mxu0 0.0
    %1509 = vmatpush1.msra.mxu0 0.0
    %1510 = vmatprep.subr.mxu0 0.0
    %1511 = vmatpush1.msra.mxu0 0.0
    %1512 = vmatprep.subr.mxu0 0.0
    %1513 = vmatpush1.msra.mxu0 0.0
    %1514 = vmatprep.subr.mxu0 0.0
    %1515 = vmatpush1.msra.mxu0 0.0
    %1516 = vmatprep.subr.mxu0 0.0
    %1517 = vmatpush1.msra.mxu0 0.0
    %1518 = vmatprep.subr.mxu0 0.0
    %1519 = vmatpush1.msra.mxu0 0.0
    %1520 = vmatprep.subr.mxu0 0.0
    %1521 = vmatpush1.msra.mxu0 0.0
    %1522 = vmatprep.subr.mxu0 0.0
    %1523 = vmatpush1.msra.mxu0 0.0
    %1524 = vmatprep.subr.mxu0 0.0
    %1525 = vmatpush1.msra.mxu0 0.0
    %1526 = vmatprep.mubr.f32.mxu0 0.0
    %1527 = vmatmul.mubr.f32.gmra.mrb[0].mxu0 %v884
    %v1528 = vpop.f32.mrb[0].mxu0
    %v1529 = vadd.f32 %v143, %v1528
    %v1530 = vpop.f32.mrb[0].mxu0
    %1531 = vdwg.mxu0
    %s1532 = scalar_lea.vmem [#allocation12], 16
    %1533 = vst [vmem:[%s1532] sm:$0xff] %v1529
    %1534 = vmatprep.subr.mxu0 0.0
    %1535 = vmatpush1.msra.mxu0 %v122
    %1536 = vmatprep.subr.mxu0 0.0
    %1537 = vmatpush1.msra.mxu0 %v123
    %1538 = vmatprep.subr.mxu0 0.0
    %1539 = vmatpush1.msra.mxu0 %v124
    %1540 = vmatprep.subr.mxu0 0.0
    %1541 = vmatpush1.msra.mxu0 %v125
    %1542 = vmatprep.subr.mxu0 0.0
    %1543 = vmatpush1.msra.mxu0 %v126
    %1544 = vmatprep.subr.mxu0 0.0
    %1545 = vmatpush1.msra.mxu0 %v127
    %1546 = vmatprep.subr.mxu0 0.0
    %1547 = vmatpush1.msra.mxu0 %v128
    %1548 = vmatprep.subr.mxu0 0.0
    %1549 = vmatpush1.msra.mxu0 %v129
    %1550 = vmatprep.subr.mxu0 0.0
    %1551 = vmatpush1.msra.mxu0 %v130
    %1552 = vmatprep.subr.mxu0 0.0
    %1553 = vmatpush1.msra.mxu0 %v131
    %1554 = vmatprep.subr.mxu0 0.0
    %1555 = vmatpush1.msra.mxu0 %v132
    %1556 = vmatprep.subr.mxu0 0.0
    %1557 = vmatpush1.msra.mxu0 %v133
    %1558 = vmatprep.subr.mxu0 0.0
    %1559 = vmatpush1.msra.mxu0 %v134
    %1560 = vmatprep.subr.mxu0 0.0
    %1561 = vmatpush1.msra.mxu0 %v135
    %1562 = vmatprep.subr.mxu0 0.0
    %1563 = vmatpush1.msra.mxu0 %v136
    %1564 = vmatprep.subr.mxu0 0.0
    %1565 = vmatpush1.msra.mxu0 %v137
    %1566 = vmatprep.subr.mxu0 0.0
    %1567 = vmatpush1.msra.mxu0 0.0
    %1568 = vmatprep.subr.mxu0 0.0
    %1569 = vmatpush1.msra.mxu0 0.0
    %1570 = vmatprep.subr.mxu0 0.0
    %1571 = vmatpush1.msra.mxu0 0.0
    %1572 = vmatprep.subr.mxu0 0.0
    %1573 = vmatpush1.msra.mxu0 0.0
    %1574 = vmatprep.subr.mxu0 0.0
    %1575 = vmatpush1.msra.mxu0 0.0
    %1576 = vmatprep.subr.mxu0 0.0
    %1577 = vmatpush1.msra.mxu0 0.0
    %1578 = vmatprep.subr.mxu0 0.0
    %1579 = vmatpush1.msra.mxu0 0.0
    %1580 = vmatprep.subr.mxu0 0.0
    %1581 = vmatpush1.msra.mxu0 0.0
    %1582 = vmatprep.subr.mxu0 0.0
    %1583 = vmatpush1.msra.mxu0 0.0
    %1584 = vmatprep.subr.mxu0 0.0
    %1585 = vmatpush1.msra.mxu0 0.0
    %1586 = vmatprep.subr.mxu0 0.0
    %1587 = vmatpush1.msra.mxu0 0.0
    %1588 = vmatprep.subr.mxu0 0.0
    %1589 = vmatpush1.msra.mxu0 0.0
    %1590 = vmatprep.subr.mxu0 0.0
    %1591 = vmatpush1.msra.mxu0 0.0
    %1592 = vmatprep.subr.mxu0 0.0
    %1593 = vmatpush1.msra.mxu0 0.0
    %1594 = vmatprep.subr.mxu0 0.0
    %1595 = vmatpush1.msra.mxu0 0.0
    %1596 = vmatprep.subr.mxu0 0.0
    %1597 = vmatpush1.msra.mxu0 0.0
    %1598 = vmatprep.mubr.f32.mxu0 0.0
    %1599 = vmatmul.mubr.f32.gmra.mrb[0].mxu0 %v1461
    %v1600 = vpop.f32.mrb[0].mxu0
    %v1601 = vadd.f32 %v143, %v1600
    %v1602 = vpop.f32.mrb[0].mxu0
    %1603 = vdwg.mxu0
    %s1604 = scalar_lea.vmem [#allocation12], 24
    %1605 = vst [vmem:[%s1604] sm:$0xff] %v1601
    %s1606 = sld [smem:[#allocation3 + $0x1]]
    %s1607 = smul.f32 %s1606, 0.5
    %v1608 = vrcp.pop 6.0
    %s1609 = vtos %v1608
    %s1610 = smul.f32 %s1606, %s1609
    %1611 = vmatprep.subr.mxu0 0.0
    %1612 = vmatpush1.msra.mxu0 %v87
    %1613 = vmatprep.subr.mxu0 0.0
    %1614 = vmatpush1.msra.mxu0 %v88
    %1615 = vmatprep.subr.mxu0 0.0
    %1616 = vmatpush1.msra.mxu0 %v89
    %1617 = vmatprep.subr.mxu0 0.0
    %1618 = vmatpush1.msra.mxu0 %v90
    %1619 = vmatprep.subr.mxu0 0.0
    %1620 = vmatpush1.msra.mxu0 %v91
    %1621 = vmatprep.subr.mxu0 0.0
    %1622 = vmatpush1.msra.mxu0 %v92
    %1623 = vmatprep.subr.mxu0 0.0
    %1624 = vmatpush1.msra.mxu0 %v93
    %1625 = vmatprep.subr.mxu0 0.0
    %1626 = vmatpush1.msra.mxu0 %v94
    %1627 = vmatprep.subr.mxu0 0.0
    %1628 = vmatpush1.msra.mxu0 %v95
    %1629 = vmatprep.subr.mxu0 0.0
    %1630 = vmatpush1.msra.mxu0 %v96
    %1631 = vmatprep.subr.mxu0 0.0
    %1632 = vmatpush1.msra.mxu0 %v97
    %1633 = vmatprep.subr.mxu0 0.0
    %1634 = vmatpush1.msra.mxu0 %v98
    %1635 = vmatprep.subr.mxu0 0.0
    %1636 = vmatpush1.msra.mxu0 %v99
    %1637 = vmatprep.subr.mxu0 0.0
    %1638 = vmatpush1.msra.mxu0 %v100
    %1639 = vmatprep.subr.mxu0 0.0
    %1640 = vmatpush1.msra.mxu0 %v101
    %1641 = vmatprep.subr.mxu0 0.0
    %1642 = vmatpush1.msra.mxu0 %v102
    %1643 = vmatprep.subr.mxu0 0.0
    %1644 = vmatpush1.msra.mxu0 0.0
    %1645 = vmatprep.subr.mxu0 0.0
    %1646 = vmatpush1.msra.mxu0 0.0
    %1647 = vmatprep.subr.mxu0 0.0
    %1648 = vmatpush1.msra.mxu0 0.0
    %1649 = vmatprep.subr.mxu0 0.0
    %1650 = vmatpush1.msra.mxu0 0.0
    %1651 = vmatprep.subr.mxu0 0.0
    %1652 = vmatpush1.msra.mxu0 0.0
    %1653 = vmatprep.subr.mxu0 0.0
    %1654 = vmatpush1.msra.mxu0 0.0
    %1655 = vmatprep.subr.mxu0 0.0
    %1656 = vmatpush1.msra.mxu0 0.0
    %1657 = vmatprep.subr.mxu0 0.0
    %1658 = vmatpush1.msra.mxu0 0.0
    %1659 = vmatprep.subr.mxu0 0.0
    %1660 = vmatpush1.msra.mxu0 0.0
    %1661 = vmatprep.subr.mxu0 0.0
    %1662 = vmatpush1.msra.mxu0 0.0
    %1663 = vmatprep.subr.mxu0 0.0
    %1664 = vmatpush1.msra.mxu0 0.0
    %1665 = vmatprep.subr.mxu0 0.0
    %1666 = vmatpush1.msra.mxu0 0.0
    %1667 = vmatprep.subr.mxu0 0.0
    %1668 = vmatpush1.msra.mxu0 0.0
    %1669 = vmatprep.subr.mxu0 0.0
    %1670 = vmatpush1.msra.mxu0 0.0
    %1671 = vmatprep.subr.mxu0 0.0
    %1672 = vmatpush1.msra.mxu0 0.0
    %1673 = vmatprep.subr.mxu0 0.0
    %1674 = vmatpush1.msra.mxu0 0.0
    %1675 = vmatprep.mubr.f32.mxu0 0.0
    %1676 = vmatmul.mubr.f32.gmra.mrb[0].mxu0 %v884
    %v1677 = vpop.f32.mrb[0].mxu0
    %v1678 = vadd.f32 %v297, %v1677
    %v1679 = vpop.f32.mrb[0].mxu0
    %1680 = vdwg.mxu0
    %v1681 = vtanh.pop %v1678
    %1682 = vmatprep.subr.mxu0 0.0
    %1683 = vmatpush1.msra.mxu0 %v104
    %1684 = vmatprep.subr.mxu0 0.0
    %1685 = vmatpush1.msra.mxu0 %v105
    %1686 = vmatprep.subr.mxu0 0.0
    %1687 = vmatpush1.msra.mxu0 %v106
    %1688 = vmatprep.subr.mxu0 0.0
    %1689 = vmatpush1.msra.mxu0 %v107
    %1690 = vmatprep.subr.mxu0 0.0
    %1691 = vmatpush1.msra.mxu0 %v108
    %1692 = vmatprep.subr.mxu0 0.0
    %1693 = vmatpush1.msra.mxu0 %v109
    %1694 = vmatprep.subr.mxu0 0.0
    %1695 = vmatpush1.msra.mxu0 %v110
    %1696 = vmatprep.subr.mxu0 0.0
    %1697 = vmatpush1.msra.mxu0 %v111
    %1698 = vmatprep.subr.mxu0 0.0
    %1699 = vmatpush1.msra.mxu0 %v112
    %1700 = vmatprep.subr.mxu0 0.0
    %1701 = vmatpush1.msra.mxu0 %v113
    %1702 = vmatprep.subr.mxu0 0.0
    %1703 = vmatpush1.msra.mxu0 %v114
    %1704 = vmatprep.subr.mxu0 0.0
    %1705 = vmatpush1.msra.mxu0 %v115
    %1706 = vmatprep.subr.mxu0 0.0
    %1707 = vmatpush1.msra.mxu0 %v116
    %1708 = vmatprep.subr.mxu0 0.0
    %1709 = vmatpush1.msra.mxu0 %v117
    %1710 = vmatprep.subr.mxu0 0.0
    %1711 = vmatpush1.msra.mxu0 %v118
    %1712 = vmatprep.subr.mxu0 0.0
    %1713 = vmatpush1.msra.mxu0 %v119
    %1714 = vmatprep.subr.mxu0 0.0
    %1715 = vmatpush1.msra.mxu0 0.0
    %1716 = vmatprep.subr.mxu0 0.0
    %1717 = vmatpush1.msra.mxu0 0.0
    %1718 = vmatprep.subr.mxu0 0.0
    %1719 = vmatpush1.msra.mxu0 0.0
    %1720 = vmatprep.subr.mxu0 0.0
    %1721 = vmatpush1.msra.mxu0 0.0
    %1722 = vmatprep.subr.mxu0 0.0
    %1723 = vmatpush1.msra.mxu0 0.0
    %1724 = vmatprep.subr.mxu0 0.0
    %1725 = vmatpush1.msra.mxu0 0.0
    %1726 = vmatprep.subr.mxu0 0.0
    %1727 = vmatpush1.msra.mxu0 0.0
    %1728 = vmatprep.subr.mxu0 0.0
    %1729 = vmatpush1.msra.mxu0 0.0
    %1730 = vmatprep.subr.mxu0 0.0
    %1731 = vmatpush1.msra.mxu0 0.0
    %1732 = vmatprep.subr.mxu0 0.0
    %1733 = vmatpush1.msra.mxu0 0.0
    %1734 = vmatprep.subr.mxu0 0.0
    %1735 = vmatpush1.msra.mxu0 0.0
    %1736 = vmatprep.subr.mxu0 0.0
    %1737 = vmatpush1.msra.mxu0 0.0
    %1738 = vmatprep.subr.mxu0 0.0
    %1739 = vmatpush1.msra.mxu0 0.0
    %1740 = vmatprep.subr.mxu0 0.0
    %1741 = vmatpush1.msra.mxu0 0.0
    %1742 = vmatprep.subr.mxu0 0.0
    %1743 = vmatpush1.msra.mxu0 0.0
    %1744 = vmatprep.subr.mxu0 0.0
    %1745 = vmatpush1.msra.mxu0 0.0
    %1746 = vmatprep.mubr.f32.mxu0 0.0
    %1747 = vmatmul.mubr.f32.gmra.mrb[0].mxu0 %v1681
    %v1748 = vpop.f32.mrb[0].mxu0
    %v1749 = vadd.f32 %v374, %v1748
    %v1750 = vpop.f32.mrb[0].mxu0
    %1751 = vdwg.mxu0
    %v1752 = vstv %s1607
    %v1753 = vmul.f32 %v1752, %v1749
    %v1754 = vadd.f32 %v884, %v1753
    %1755 = vmatprep.subr.mxu0 0.0
    %1756 = vmatpush1.msra.mxu0 %v87
    %1757 = vmatprep.subr.mxu0 0.0
    %1758 = vmatpush1.msra.mxu0 %v88
    %1759 = vmatprep.subr.mxu0 0.0
    %1760 = vmatpush1.msra.mxu0 %v89
    %1761 = vmatprep.subr.mxu0 0.0
    %1762 = vmatpush1.msra.mxu0 %v90
    %1763 = vmatprep.subr.mxu0 0.0
    %1764 = vmatpush1.msra.mxu0 %v91
    %1765 = vmatprep.subr.mxu0 0.0
    %1766 = vmatpush1.msra.mxu0 %v92
    %1767 = vmatprep.subr.mxu0 0.0
    %1768 = vmatpush1.msra.mxu0 %v93
    %1769 = vmatprep.subr.mxu0 0.0
    %1770 = vmatpush1.msra.mxu0 %v94
    %1771 = vmatprep.subr.mxu0 0.0
    %1772 = vmatpush1.msra.mxu0 %v95
    %1773 = vmatprep.subr.mxu0 0.0
    %1774 = vmatpush1.msra.mxu0 %v96
    %1775 = vmatprep.subr.mxu0 0.0
    %1776 = vmatpush1.msra.mxu0 %v97
    %1777 = vmatprep.subr.mxu0 0.0
    %1778 = vmatpush1.msra.mxu0 %v98
    %1779 = vmatprep.subr.mxu0 0.0
    %1780 = vmatpush1.msra.mxu0 %v99
    %1781 = vmatprep.subr.mxu0 0.0
    %1782 = vmatpush1.msra.mxu0 %v100
    %1783 = vmatprep.subr.mxu0 0.0
    %1784 = vmatpush1.msra.mxu0 %v101
    %1785 = vmatprep.subr.mxu0 0.0
    %1786 = vmatpush1.msra.mxu0 %v102
    %1787 = vmatprep.subr.mxu0 0.0
    %1788 = vmatpush1.msra.mxu0 0.0
    %1789 = vmatprep.subr.mxu0 0.0
    %1790 = vmatpush1.msra.mxu0 0.0
    %1791 = vmatprep.subr.mxu0 0.0
    %1792 = vmatpush1.msra.mxu0 0.0
    %1793 = vmatprep.subr.mxu0 0.0
    %1794 = vmatpush1.msra.mxu0 0.0
    %1795 = vmatprep.subr.mxu0 0.0
    %1796 = vmatpush1.msra.mxu0 0.0
    %1797 = vmatprep.subr.mxu0 0.0
    %1798 = vmatpush1.msra.mxu0 0.0
    %1799 = vmatprep.subr.mxu0 0.0
    %1800 = vmatpush1.msra.mxu0 0.0
    %1801 = vmatprep.subr.mxu0 0.0
    %1802 = vmatpush1.msra.mxu0 0.0
    %1803 = vmatprep.subr.mxu0 0.0
    %1804 = vmatpush1.msra.mxu0 0.0
    %1805 = vmatprep.subr.mxu0 0.0
    %1806 = vmatpush1.msra.mxu0 0.0
    %1807 = vmatprep.subr.mxu0 0.0
    %1808 = vmatpush1.msra.mxu0 0.0
    %1809 = vmatprep.subr.mxu0 0.0
    %1810 = vmatpush1.msra.mxu0 0.0
    %1811 = vmatprep.subr.mxu0 0.0
    %1812 = vmatpush1.msra.mxu0 0.0
    %1813 = vmatprep.subr.mxu0 0.0
    %1814 = vmatpush1.msra.mxu0 0.0
    %1815 = vmatprep.subr.mxu0 0.0
    %1816 = vmatpush1.msra.mxu0 0.0
    %1817 = vmatprep.subr.mxu0 0.0
    %1818 = vmatpush1.msra.mxu0 0.0
    %1819 = vmatprep.mubr.f32.mxu0 0.0
    %1820 = vmatmul.mubr.f32.gmra.mrb[0].mxu0 %v1754
    %v1821 = vpop.f32.mrb[0].mxu0
    %v1822 = vadd.f32 %v297, %v1821
    %v1823 = vpop.f32.mrb[0].mxu0
    %1824 = vdwg.mxu0
    %v1825 = vtanh.pop %v1822
    %1826 = vmatprep.subr.mxu0 0.0
    %1827 = vmatpush1.msra.mxu0 %v104
    %1828 = vmatprep.subr.mxu0 0.0
    %1829 = vmatpush1.msra.mxu0 %v105
    %1830 = vmatprep.subr.mxu0 0.0
    %1831 = vmatpush1.msra.mxu0 %v106
    %1832 = vmatprep.subr.mxu0 0.0
    %1833 = vmatpush1.msra.mxu0 %v107
    %1834 = vmatprep.subr.mxu0 0.0
    %1835 = vmatpush1.msra.mxu0 %v108
    %1836 = vmatprep.subr.mxu0 0.0
    %1837 = vmatpush1.msra.mxu0 %v109
    %1838 = vmatprep.subr.mxu0 0.0
    %1839 = vmatpush1.msra.mxu0 %v110
    %1840 = vmatprep.subr.mxu0 0.0
    %1841 = vmatpush1.msra.mxu0 %v111
    %1842 = vmatprep.subr.mxu0 0.0
    %1843 = vmatpush1.msra.mxu0 %v112
    %1844 = vmatprep.subr.mxu0 0.0
    %1845 = vmatpush1.msra.mxu0 %v113
    %1846 = vmatprep.subr.mxu0 0.0
    %1847 = vmatpush1.msra.mxu0 %v114
    %1848 = vmatprep.subr.mxu0 0.0
    %1849 = vmatpush1.msra.mxu0 %v115
    %1850 = vmatprep.subr.mxu0 0.0
    %1851 = vmatpush1.msra.mxu0 %v116
    %1852 = vmatprep.subr.mxu0 0.0
    %1853 = vmatpush1.msra.mxu0 %v117
    %1854 = vmatprep.subr.mxu0 0.0
    %1855 = vmatpush1.msra.mxu0 %v118
    %1856 = vmatprep.subr.mxu0 0.0
    %1857 = vmatpush1.msra.mxu0 %v119
    %1858 = vmatprep.subr.mxu0 0.0
    %1859 = vmatpush1.msra.mxu0 0.0
    %1860 = vmatprep.subr.mxu0 0.0
    %1861 = vmatpush1.msra.mxu0 0.0
    %1862 = vmatprep.subr.mxu0 0.0
    %1863 = vmatpush1.msra.mxu0 0.0
    %1864 = vmatprep.subr.mxu0 0.0
    %1865 = vmatpush1.msra.mxu0 0.0
    %1866 = vmatprep.subr.mxu0 0.0
    %1867 = vmatpush1.msra.mxu0 0.0
    %1868 = vmatprep.subr.mxu0 0.0
    %1869 = vmatpush1.msra.mxu0 0.0
    %1870 = vmatprep.subr.mxu0 0.0
    %1871 = vmatpush1.msra.mxu0 0.0
    %1872 = vmatprep.subr.mxu0 0.0
    %1873 = vmatpush1.msra.mxu0 0.0
    %1874 = vmatprep.subr.mxu0 0.0
    %1875 = vmatpush1.msra.mxu0 0.0
    %1876 = vmatprep.subr.mxu0 0.0
    %1877 = vmatpush1.msra.mxu0 0.0
    %1878 = vmatprep.subr.mxu0 0.0
    %1879 = vmatpush1.msra.mxu0 0.0
    %1880 = vmatprep.subr.mxu0 0.0
    %1881 = vmatpush1.msra.mxu0 0.0
    %1882 = vmatprep.subr.mxu0 0.0
    %1883 = vmatpush1.msra.mxu0 0.0
    %1884 = vmatprep.subr.mxu0 0.0
    %1885 = vmatpush1.msra.mxu0 0.0
    %1886 = vmatprep.subr.mxu0 0.0
    %1887 = vmatpush1.msra.mxu0 0.0
    %1888 = vmatprep.subr.mxu0 0.0
    %1889 = vmatpush1.msra.mxu0 0.0
    %1890 = vmatprep.mubr.f32.mxu0 0.0
    %1891 = vmatmul.mubr.f32.gmra.mrb[0].mxu0 %v1825
    %v1892 = vpop.f32.mrb[0].mxu0
    %v1893 = vadd.f32 %v374, %v1892
    %v1894 = vpop.f32.mrb[0].mxu0
    %1895 = vdwg.mxu0
    %v1896 = vmul.f32 %v1893, 2.0
    %v1897 = vadd.f32 %v1749, %v1896
    %v1898 = vmul.f32 %v1752, %v1893
    %v1899 = vadd.f32 %v884, %v1898
    %1900 = vmatprep.subr.mxu0 0.0
    %1901 = vmatpush1.msra.mxu0 %v87
    %1902 = vmatprep.subr.mxu0 0.0
    %1903 = vmatpush1.msra.mxu0 %v88
    %1904 = vmatprep.subr.mxu0 0.0
    %1905 = vmatpush1.msra.mxu0 %v89
    %1906 = vmatprep.subr.mxu0 0.0
    %1907 = vmatpush1.msra.mxu0 %v90
    %1908 = vmatprep.subr.mxu0 0.0
    %1909 = vmatpush1.msra.mxu0 %v91
    %1910 = vmatprep.subr.mxu0 0.0
    %1911 = vmatpush1.msra.mxu0 %v92
    %1912 = vmatprep.subr.mxu0 0.0
    %1913 = vmatpush1.msra.mxu0 %v93
    %1914 = vmatprep.subr.mxu0 0.0
    %1915 = vmatpush1.msra.mxu0 %v94
    %1916 = vmatprep.subr.mxu0 0.0
    %1917 = vmatpush1.msra.mxu0 %v95
    %1918 = vmatprep.subr.mxu0 0.0
    %1919 = vmatpush1.msra.mxu0 %v96
    %1920 = vmatprep.subr.mxu0 0.0
    %1921 = vmatpush1.msra.mxu0 %v97
    %1922 = vmatprep.subr.mxu0 0.0
    %1923 = vmatpush1.msra.mxu0 %v98
    %1924 = vmatprep.subr.mxu0 0.0
    %1925 = vmatpush1.msra.mxu0 %v99
    %1926 = vmatprep.subr.mxu0 0.0
    %1927 = vmatpush1.msra.mxu0 %v100
    %1928 = vmatprep.subr.mxu0 0.0
    %1929 = vmatpush1.msra.mxu0 %v101
    %1930 = vmatprep.subr.mxu0 0.0
    %1931 = vmatpush1.msra.mxu0 %v102
    %1932 = vmatprep.subr.mxu0 0.0
    %1933 = vmatpush1.msra.mxu0 0.0
    %1934 = vmatprep.subr.mxu0 0.0
    %1935 = vmatpush1.msra.mxu0 0.0
    %1936 = vmatprep.subr.mxu0 0.0
    %1937 = vmatpush1.msra.mxu0 0.0
    %1938 = vmatprep.subr.mxu0 0.0
    %1939 = vmatpush1.msra.mxu0 0.0
    %1940 = vmatprep.subr.mxu0 0.0
    %1941 = vmatpush1.msra.mxu0 0.0
    %1942 = vmatprep.subr.mxu0 0.0
    %1943 = vmatpush1.msra.mxu0 0.0
    %1944 = vmatprep.subr.mxu0 0.0
    %1945 = vmatpush1.msra.mxu0 0.0
    %1946 = vmatprep.subr.mxu0 0.0
    %1947 = vmatpush1.msra.mxu0 0.0
    %1948 = vmatprep.subr.mxu0 0.0
    %1949 = vmatpush1.msra.mxu0 0.0
    %1950 = vmatprep.subr.mxu0 0.0
    %1951 = vmatpush1.msra.mxu0 0.0
    %1952 = vmatprep.subr.mxu0 0.0
    %1953 = vmatpush1.msra.mxu0 0.0
    %1954 = vmatprep.subr.mxu0 0.0
    %1955 = vmatpush1.msra.mxu0 0.0
    %1956 = vmatprep.subr.mxu0 0.0
    %1957 = vmatpush1.msra.mxu0 0.0
    %1958 = vmatprep.subr.mxu0 0.0
    %1959 = vmatpush1.msra.mxu0 0.0
    %1960 = vmatprep.subr.mxu0 0.0
    %1961 = vmatpush1.msra.mxu0 0.0
    %1962 = vmatprep.subr.mxu0 0.0
    %1963 = vmatpush1.msra.mxu0 0.0
    %1964 = vmatprep.mubr.f32.mxu0 0.0
    %1965 = vmatmul.mubr.f32.gmra.mrb[0].mxu0 %v1899
    %v1966 = vpop.f32.mrb[0].mxu0
    %v1967 = vadd.f32 %v297, %v1966
    %v1968 = vpop.f32.mrb[0].mxu0
    %1969 = vdwg.mxu0
    %v1970 = vtanh.pop %v1967
    %1971 = vmatprep.subr.mxu0 0.0
    %1972 = vmatpush1.msra.mxu0 %v104
    %1973 = vmatprep.subr.mxu0 0.0
    %1974 = vmatpush1.msra.mxu0 %v105
    %1975 = vmatprep.subr.mxu0 0.0
    %1976 = vmatpush1.msra.mxu0 %v106
    %1977 = vmatprep.subr.mxu0 0.0
    %1978 = vmatpush1.msra.mxu0 %v107
    %1979 = vmatprep.subr.mxu0 0.0
    %1980 = vmatpush1.msra.mxu0 %v108
    %1981 = vmatprep.subr.mxu0 0.0
    %1982 = vmatpush1.msra.mxu0 %v109
    %1983 = vmatprep.subr.mxu0 0.0
    %1984 = vmatpush1.msra.mxu0 %v110
    %1985 = vmatprep.subr.mxu0 0.0
    %1986 = vmatpush1.msra.mxu0 %v111
    %1987 = vmatprep.subr.mxu0 0.0
    %1988 = vmatpush1.msra.mxu0 %v112
    %1989 = vmatprep.subr.mxu0 0.0
    %1990 = vmatpush1.msra.mxu0 %v113
    %1991 = vmatprep.subr.mxu0 0.0
    %1992 = vmatpush1.msra.mxu0 %v114
    %1993 = vmatprep.subr.mxu0 0.0
    %1994 = vmatpush1.msra.mxu0 %v115
    %1995 = vmatprep.subr.mxu0 0.0
    %1996 = vmatpush1.msra.mxu0 %v116
    %1997 = vmatprep.subr.mxu0 0.0
    %1998 = vmatpush1.msra.mxu0 %v117
    %1999 = vmatprep.subr.mxu0 0.0
    %2000 = vmatpush1.msra.mxu0 %v118
    %2001 = vmatprep.subr.mxu0 0.0
    %2002 = vmatpush1.msra.mxu0 %v119
    %2003 = vmatprep.subr.mxu0 0.0
    %2004 = vmatpush1.msra.mxu0 0.0
    %2005 = vmatprep.subr.mxu0 0.0
    %2006 = vmatpush1.msra.mxu0 0.0
    %2007 = vmatprep.subr.mxu0 0.0
    %2008 = vmatpush1.msra.mxu0 0.0
    %2009 = vmatprep.subr.mxu0 0.0
    %2010 = vmatpush1.msra.mxu0 0.0
    %2011 = vmatprep.subr.mxu0 0.0
    %2012 = vmatpush1.msra.mxu0 0.0
    %2013 = vmatprep.subr.mxu0 0.0
    %2014 = vmatpush1.msra.mxu0 0.0
    %2015 = vmatprep.subr.mxu0 0.0
    %2016 = vmatpush1.msra.mxu0 0.0
    %2017 = vmatprep.subr.mxu0 0.0
    %2018 = vmatpush1.msra.mxu0 0.0
    %2019 = vmatprep.subr.mxu0 0.0
    %2020 = vmatpush1.msra.mxu0 0.0
    %2021 = vmatprep.subr.mxu0 0.0
    %2022 = vmatpush1.msra.mxu0 0.0
    %2023 = vmatprep.subr.mxu0 0.0
    %2024 = vmatpush1.msra.mxu0 0.0
    %2025 = vmatprep.subr.mxu0 0.0
    %2026 = vmatpush1.msra.mxu0 0.0
    %2027 = vmatprep.subr.mxu0 0.0
    %2028 = vmatpush1.msra.mxu0 0.0
    %2029 = vmatprep.subr.mxu0 0.0
    %2030 = vmatpush1.msra.mxu0 0.0
    %2031 = vmatprep.subr.mxu0 0.0
    %2032 = vmatpush1.msra.mxu0 0.0
    %2033 = vmatprep.subr.mxu0 0.0
    %2034 = vmatpush1.msra.mxu0 0.0
    %2035 = vmatprep.mubr.f32.mxu0 0.0
    %2036 = vmatmul.mubr.f32.gmra.mrb[0].mxu0 %v1970
    %v2037 = vpop.f32.mrb[0].mxu0
    %v2038 = vadd.f32 %v374, %v2037
    %v2039 = vpop.f32.mrb[0].mxu0
    %2040 = vdwg.mxu0
    %v2041 = vmul.f32 %v2038, 2.0
    %v2042 = vadd.f32 %v1897, %v2041
    %v2043 = vstv %s1606
    %v2044 = vmul.f32 %v2043, %v2038
    %v2045 = vadd.f32 %v884, %v2044
    %2046 = vmatprep.subr.mxu0 0.0
    %2047 = vmatpush1.msra.mxu0 %v87
    %2048 = vmatprep.subr.mxu0 0.0
    %2049 = vmatpush1.msra.mxu0 %v88
    %2050 = vmatprep.subr.mxu0 0.0
    %2051 = vmatpush1.msra.mxu0 %v89
    %2052 = vmatprep.subr.mxu0 0.0
    %2053 = vmatpush1.msra.mxu0 %v90
    %2054 = vmatprep.subr.mxu0 0.0
    %2055 = vmatpush1.msra.mxu0 %v91
    %2056 = vmatprep.subr.mxu0 0.0
    %2057 = vmatpush1.msra.mxu0 %v92
    %2058 = vmatprep.subr.mxu0 0.0
    %2059 = vmatpush1.msra.mxu0 %v93
    %2060 = vmatprep.subr.mxu0 0.0
    %2061 = vmatpush1.msra.mxu0 %v94
    %2062 = vmatprep.subr.mxu0 0.0
    %2063 = vmatpush1.msra.mxu0 %v95
    %2064 = vmatprep.subr.mxu0 0.0
    %2065 = vmatpush1.msra.mxu0 %v96
    %2066 = vmatprep.subr.mxu0 0.0
    %2067 = vmatpush1.msra.mxu0 %v97
    %2068 = vmatprep.subr.mxu0 0.0
    %2069 = vmatpush1.msra.mxu0 %v98
    %2070 = vmatprep.subr.mxu0 0.0
    %2071 = vmatpush1.msra.mxu0 %v99
    %2072 = vmatprep.subr.mxu0 0.0
    %2073 = vmatpush1.msra.mxu0 %v100
    %2074 = vmatprep.subr.mxu0 0.0
    %2075 = vmatpush1.msra.mxu0 %v101
    %2076 = vmatprep.subr.mxu0 0.0
    %2077 = vmatpush1.msra.mxu0 %v102
    %2078 = vmatprep.subr.mxu0 0.0
    %2079 = vmatpush1.msra.mxu0 0.0
    %2080 = vmatprep.subr.mxu0 0.0
    %2081 = vmatpush1.msra.mxu0 0.0
    %2082 = vmatprep.subr.mxu0 0.0
    %2083 = vmatpush1.msra.mxu0 0.0
    %2084 = vmatprep.subr.mxu0 0.0
    %2085 = vmatpush1.msra.mxu0 0.0
    %2086 = vmatprep.subr.mxu0 0.0
    %2087 = vmatpush1.msra.mxu0 0.0
    %2088 = vmatprep.subr.mxu0 0.0
    %2089 = vmatpush1.msra.mxu0 0.0
    %2090 = vmatprep.subr.mxu0 0.0
    %2091 = vmatpush1.msra.mxu0 0.0
    %2092 = vmatprep.subr.mxu0 0.0
    %2093 = vmatpush1.msra.mxu0 0.0
    %2094 = vmatprep.subr.mxu0 0.0
    %2095 = vmatpush1.msra.mxu0 0.0
    %2096 = vmatprep.subr.mxu0 0.0
    %2097 = vmatpush1.msra.mxu0 0.0
    %2098 = vmatprep.subr.mxu0 0.0
    %2099 = vmatpush1.msra.mxu0 0.0
    %2100 = vmatprep.subr.mxu0 0.0
    %2101 = vmatpush1.msra.mxu0 0.0
    %2102 = vmatprep.subr.mxu0 0.0
    %2103 = vmatpush1.msra.mxu0 0.0
    %2104 = vmatprep.subr.mxu0 0.0
    %2105 = vmatpush1.msra.mxu0 0.0
    %2106 = vmatprep.subr.mxu0 0.0
    %2107 = vmatpush1.msra.mxu0 0.0
    %2108 = vmatprep.subr.mxu0 0.0
    %2109 = vmatpush1.msra.mxu0 0.0
    %2110 = vmatprep.mubr.f32.mxu0 0.0
    %2111 = vmatmul.mubr.f32.gmra.mrb[0].mxu0 %v2045
    %v2112 = vpop.f32.mrb[0].mxu0
    %v2113 = vadd.f32 %v297, %v2112
    %v2114 = vpop.f32.mrb[0].mxu0
    %2115 = vdwg.mxu0
    %v2116 = vtanh.pop %v2113
    %2117 = vmatprep.subr.mxu0 0.0
    %2118 = vmatpush1.msra.mxu0 %v104
    %2119 = vmatprep.subr.mxu0 0.0
    %2120 = vmatpush1.msra.mxu0 %v105
    %2121 = vmatprep.subr.mxu0 0.0
    %2122 = vmatpush1.msra.mxu0 %v106
    %2123 = vmatprep.subr.mxu0 0.0
    %2124 = vmatpush1.msra.mxu0 %v107
    %2125 = vmatprep.subr.mxu0 0.0
    %2126 = vmatpush1.msra.mxu0 %v108
    %2127 = vmatprep.subr.mxu0 0.0
    %2128 = vmatpush1.msra.mxu0 %v109
    %2129 = vmatprep.subr.mxu0 0.0
    %2130 = vmatpush1.msra.mxu0 %v110
    %2131 = vmatprep.subr.mxu0 0.0
    %2132 = vmatpush1.msra.mxu0 %v111
    %2133 = vmatprep.subr.mxu0 0.0
    %2134 = vmatpush1.msra.mxu0 %v112
    %2135 = vmatprep.subr.mxu0 0.0
    %2136 = vmatpush1.msra.mxu0 %v113
    %2137 = vmatprep.subr.mxu0 0.0
    %2138 = vmatpush1.msra.mxu0 %v114
    %2139 = vmatprep.subr.mxu0 0.0
    %2140 = vmatpush1.msra.mxu0 %v115
    %2141 = vmatprep.subr.mxu0 0.0
    %2142 = vmatpush1.msra.mxu0 %v116
    %2143 = vmatprep.subr.mxu0 0.0
    %2144 = vmatpush1.msra.mxu0 %v117
    %2145 = vmatprep.subr.mxu0 0.0
    %2146 = vmatpush1.msra.mxu0 %v118
    %2147 = vmatprep.subr.mxu0 0.0
    %2148 = vmatpush1.msra.mxu0 %v119
    %2149 = vmatprep.subr.mxu0 0.0
    %2150 = vmatpush1.msra.mxu0 0.0
    %2151 = vmatprep.subr.mxu0 0.0
    %2152 = vmatpush1.msra.mxu0 0.0
    %2153 = vmatprep.subr.mxu0 0.0
    %2154 = vmatpush1.msra.mxu0 0.0
    %2155 = vmatprep.subr.mxu0 0.0
    %2156 = vmatpush1.msra.mxu0 0.0
    %2157 = vmatprep.subr.mxu0 0.0
    %2158 = vmatpush1.msra.mxu0 0.0
    %2159 = vmatprep.subr.mxu0 0.0
    %2160 = vmatpush1.msra.mxu0 0.0
    %2161 = vmatprep.subr.mxu0 0.0
    %2162 = vmatpush1.msra.mxu0 0.0
    %2163 = vmatprep.subr.mxu0 0.0
    %2164 = vmatpush1.msra.mxu0 0.0
    %2165 = vmatprep.subr.mxu0 0.0
    %2166 = vmatpush1.msra.mxu0 0.0
    %2167 = vmatprep.subr.mxu0 0.0
    %2168 = vmatpush1.msra.mxu0 0.0
    %2169 = vmatprep.subr.mxu0 0.0
    %2170 = vmatpush1.msra.mxu0 0.0
    %2171 = vmatprep.subr.mxu0 0.0
    %2172 = vmatpush1.msra.mxu0 0.0
    %2173 = vmatprep.subr.mxu0 0.0
    %2174 = vmatpush1.msra.mxu0 0.0
    %2175 = vmatprep.subr.mxu0 0.0
    %2176 = vmatpush1.msra.mxu0 0.0
    %2177 = vmatprep.subr.mxu0 0.0
    %2178 = vmatpush1.msra.mxu0 0.0
    %2179 = vmatprep.subr.mxu0 0.0
    %2180 = vmatpush1.msra.mxu0 0.0
    %2181 = vmatprep.mubr.f32.mxu0 0.0
    %2182 = vmatmul.mubr.f32.gmra.mrb[0].mxu0 %v2116
    %v2183 = vpop.f32.mrb[0].mxu0
    %v2184 = vadd.f32 %v374, %v2183
    %v2185 = vpop.f32.mrb[0].mxu0
    %2186 = vdwg.mxu0
    %v2187 = vadd.f32 %v2042, %v2184
    %v2188 = vstv %s1610
    %v2189 = vmul.f32 %v2188, %v2187
    %v2190 = vadd.f32 %v884, %v2189
    %2191 = vmatprep.subr.mxu0 0.0
    %2192 = vmatpush1.msra.mxu0 %v87
    %2193 = vmatprep.subr.mxu0 0.0
    %2194 = vmatpush1.msra.mxu0 %v88
    %2195 = vmatprep.subr.mxu0 0.0
    %2196 = vmatpush1.msra.mxu0 %v89
    %2197 = vmatprep.subr.mxu0 0.0
    %2198 = vmatpush1.msra.mxu0 %v90
    %2199 = vmatprep.subr.mxu0 0.0
    %2200 = vmatpush1.msra.mxu0 %v91
    %2201 = vmatprep.subr.mxu0 0.0
    %2202 = vmatpush1.msra.mxu0 %v92
    %2203 = vmatprep.subr.mxu0 0.0
    %2204 = vmatpush1.msra.mxu0 %v93
    %2205 = vmatprep.subr.mxu0 0.0
    %2206 = vmatpush1.msra.mxu0 %v94
    %2207 = vmatprep.subr.mxu0 0.0
    %2208 = vmatpush1.msra.mxu0 %v95
    %2209 = vmatprep.subr.mxu0 0.0
    %2210 = vmatpush1.msra.mxu0 %v96
    %2211 = vmatprep.subr.mxu0 0.0
    %2212 = vmatpush1.msra.mxu0 %v97
    %2213 = vmatprep.subr.mxu0 0.0
    %2214 = vmatpush1.msra.mxu0 %v98
    %2215 = vmatprep.subr.mxu0 0.0
    %2216 = vmatpush1.msra.mxu0 %v99
    %2217 = vmatprep.subr.mxu0 0.0
    %2218 = vmatpush1.msra.mxu0 %v100
    %2219 = vmatprep.subr.mxu0 0.0
    %2220 = vmatpush1.msra.mxu0 %v101
    %2221 = vmatprep.subr.mxu0 0.0
    %2222 = vmatpush1.msra.mxu0 %v102
    %2223 = vmatprep.subr.mxu0 0.0
    %2224 = vmatpush1.msra.mxu0 0.0
    %2225 = vmatprep.subr.mxu0 0.0
    %2226 = vmatpush1.msra.mxu0 0.0
    %2227 = vmatprep.subr.mxu0 0.0
    %2228 = vmatpush1.msra.mxu0 0.0
    %2229 = vmatprep.subr.mxu0 0.0
    %2230 = vmatpush1.msra.mxu0 0.0
    %2231 = vmatprep.subr.mxu0 0.0
    %2232 = vmatpush1.msra.mxu0 0.0
    %2233 = vmatprep.subr.mxu0 0.0
    %2234 = vmatpush1.msra.mxu0 0.0
    %2235 = vmatprep.subr.mxu0 0.0
    %2236 = vmatpush1.msra.mxu0 0.0
    %2237 = vmatprep.subr.mxu0 0.0
    %2238 = vmatpush1.msra.mxu0 0.0
    %2239 = vmatprep.subr.mxu0 0.0
    %2240 = vmatpush1.msra.mxu0 0.0
    %2241 = vmatprep.subr.mxu0 0.0
    %2242 = vmatpush1.msra.mxu0 0.0
    %2243 = vmatprep.subr.mxu0 0.0
    %2244 = vmatpush1.msra.mxu0 0.0
    %2245 = vmatprep.subr.mxu0 0.0
    %2246 = vmatpush1.msra.mxu0 0.0
    %2247 = vmatprep.subr.mxu0 0.0
    %2248 = vmatpush1.msra.mxu0 0.0
    %2249 = vmatprep.subr.mxu0 0.0
    %2250 = vmatpush1.msra.mxu0 0.0
    %2251 = vmatprep.subr.mxu0 0.0
    %2252 = vmatpush1.msra.mxu0 0.0
    %2253 = vmatprep.subr.mxu0 0.0
    %2254 = vmatpush1.msra.mxu0 0.0
    %2255 = vmatprep.mubr.f32.mxu0 0.0
    %2256 = vmatmul.mubr.f32.gmra.mrb[0].mxu0 %v1461
    %v2257 = vpop.f32.mrb[0].mxu0
    %v2258 = vadd.f32 %v297, %v2257
    %v2259 = vpop.f32.mrb[0].mxu0
    %2260 = vdwg.mxu0
    %v2261 = vtanh.pop %v2258
    %2262 = vmatprep.subr.mxu0 0.0
    %2263 = vmatpush1.msra.mxu0 %v104
    %2264 = vmatprep.subr.mxu0 0.0
    %2265 = vmatpush1.msra.mxu0 %v105
    %2266 = vmatprep.subr.mxu0 0.0
    %2267 = vmatpush1.msra.mxu0 %v106
    %2268 = vmatprep.subr.mxu0 0.0
    %2269 = vmatpush1.msra.mxu0 %v107
    %2270 = vmatprep.subr.mxu0 0.0
    %2271 = vmatpush1.msra.mxu0 %v108
    %2272 = vmatprep.subr.mxu0 0.0
    %2273 = vmatpush1.msra.mxu0 %v109
    %2274 = vmatprep.subr.mxu0 0.0
    %2275 = vmatpush1.msra.mxu0 %v110
    %2276 = vmatprep.subr.mxu0 0.0
    %2277 = vmatpush1.msra.mxu0 %v111
    %2278 = vmatprep.subr.mxu0 0.0
    %2279 = vmatpush1.msra.mxu0 %v112
    %2280 = vmatprep.subr.mxu0 0.0
    %2281 = vmatpush1.msra.mxu0 %v113
    %2282 = vmatprep.subr.mxu0 0.0
    %2283 = vmatpush1.msra.mxu0 %v114
    %2284 = vmatprep.subr.mxu0 0.0
    %2285 = vmatpush1.msra.mxu0 %v115
    %2286 = vmatprep.subr.mxu0 0.0
    %2287 = vmatpush1.msra.mxu0 %v116
    %2288 = vmatprep.subr.mxu0 0.0
    %2289 = vmatpush1.msra.mxu0 %v117
    %2290 = vmatprep.subr.mxu0 0.0
    %2291 = vmatpush1.msra.mxu0 %v118
    %2292 = vmatprep.subr.mxu0 0.0
    %2293 = vmatpush1.msra.mxu0 %v119
    %2294 = vmatprep.subr.mxu0 0.0
    %2295 = vmatpush1.msra.mxu0 0.0
    %2296 = vmatprep.subr.mxu0 0.0
    %2297 = vmatpush1.msra.mxu0 0.0
    %2298 = vmatprep.subr.mxu0 0.0
    %2299 = vmatpush1.msra.mxu0 0.0
    %2300 = vmatprep.subr.mxu0 0.0
    %2301 = vmatpush1.msra.mxu0 0.0
    %2302 = vmatprep.subr.mxu0 0.0
    %2303 = vmatpush1.msra.mxu0 0.0
    %2304 = vmatprep.subr.mxu0 0.0
    %2305 = vmatpush1.msra.mxu0 0.0
    %2306 = vmatprep.subr.mxu0 0.0
    %2307 = vmatpush1.msra.mxu0 0.0
    %2308 = vmatprep.subr.mxu0 0.0
    %2309 = vmatpush1.msra.mxu0 0.0
    %2310 = vmatprep.subr.mxu0 0.0
    %2311 = vmatpush1.msra.mxu0 0.0
    %2312 = vmatprep.subr.mxu0 0.0
    %2313 = vmatpush1.msra.mxu0 0.0
    %2314 = vmatprep.subr.mxu0 0.0
    %2315 = vmatpush1.msra.mxu0 0.0
    %2316 = vmatprep.subr.mxu0 0.0
    %2317 = vmatpush1.msra.mxu0 0.0
    %2318 = vmatprep.subr.mxu0 0.0
    %2319 = vmatpush1.msra.mxu0 0.0
    %2320 = vmatprep.subr.mxu0 0.0
    %2321 = vmatpush1.msra.mxu0 0.0
    %2322 = vmatprep.subr.mxu0 0.0
    %2323 = vmatpush1.msra.mxu0 0.0
    %2324 = vmatprep.subr.mxu0 0.0
    %2325 = vmatpush1.msra.mxu0 0.0
    %2326 = vmatprep.mubr.f32.mxu0 0.0
    %2327 = vmatmul.mubr.f32.gmra.mrb[0].mxu0 %v2261
    %v2328 = vpop.f32.mrb[0].mxu0
    %v2329 = vadd.f32 %v374, %v2328
    %v2330 = vpop.f32.mrb[0].mxu0
    %2331 = vdwg.mxu0
    %v2332 = vmul.f32 %v1752, %v2329
    %v2333 = vadd.f32 %v1461, %v2332
    %2334 = vmatprep.subr.mxu0 0.0
    %2335 = vmatpush1.msra.mxu0 %v87
    %2336 = vmatprep.subr.mxu0 0.0
    %2337 = vmatpush1.msra.mxu0 %v88
    %2338 = vmatprep.subr.mxu0 0.0
    %2339 = vmatpush1.msra.mxu0 %v89
    %2340 = vmatprep.subr.mxu0 0.0
    %2341 = vmatpush1.msra.mxu0 %v90
    %2342 = vmatprep.subr.mxu0 0.0
    %2343 = vmatpush1.msra.mxu0 %v91
    %2344 = vmatprep.subr.mxu0 0.0
    %2345 = vmatpush1.msra.mxu0 %v92
    %2346 = vmatprep.subr.mxu0 0.0
    %2347 = vmatpush1.msra.mxu0 %v93
    %2348 = vmatprep.subr.mxu0 0.0
    %2349 = vmatpush1.msra.mxu0 %v94
    %2350 = vmatprep.subr.mxu0 0.0
    %2351 = vmatpush1.msra.mxu0 %v95
    %2352 = vmatprep.subr.mxu0 0.0
    %2353 = vmatpush1.msra.mxu0 %v96
    %2354 = vmatprep.subr.mxu0 0.0
    %2355 = vmatpush1.msra.mxu0 %v97
    %2356 = vmatprep.subr.mxu0 0.0
    %2357 = vmatpush1.msra.mxu0 %v98
    %2358 = vmatprep.subr.mxu0 0.0
    %2359 = vmatpush1.msra.mxu0 %v99
    %2360 = vmatprep.subr.mxu0 0.0
    %2361 = vmatpush1.msra.mxu0 %v100
    %2362 = vmatprep.subr.mxu0 0.0
    %2363 = vmatpush1.msra.mxu0 %v101
    %2364 = vmatprep.subr.mxu0 0.0
    %2365 = vmatpush1.msra.mxu0 %v102
    %2366 = vmatprep.subr.mxu0 0.0
    %2367 = vmatpush1.msra.mxu0 0.0
    %2368 = vmatprep.subr.mxu0 0.0
    %2369 = vmatpush1.msra.mxu0 0.0
    %2370 = vmatprep.subr.mxu0 0.0
    %2371 = vmatpush1.msra.mxu0 0.0
    %2372 = vmatprep.subr.mxu0 0.0
    %2373 = vmatpush1.msra.mxu0 0.0
    %2374 = vmatprep.subr.mxu0 0.0
    %2375 = vmatpush1.msra.mxu0 0.0
    %2376 = vmatprep.subr.mxu0 0.0
    %2377 = vmatpush1.msra.mxu0 0.0
    %2378 = vmatprep.subr.mxu0 0.0
    %2379 = vmatpush1.msra.mxu0 0.0
    %2380 = vmatprep.subr.mxu0 0.0
    %2381 = vmatpush1.msra.mxu0 0.0
    %2382 = vmatprep.subr.mxu0 0.0
    %2383 = vmatpush1.msra.mxu0 0.0
    %2384 = vmatprep.subr.mxu0 0.0
    %2385 = vmatpush1.msra.mxu0 0.0
    %2386 = vmatprep.subr.mxu0 0.0
    %2387 = vmatpush1.msra.mxu0 0.0
    %2388 = vmatprep.subr.mxu0 0.0
    %2389 = vmatpush1.msra.mxu0 0.0
    %2390 = vmatprep.subr.mxu0 0.0
    %2391 = vmatpush1.msra.mxu0 0.0
    %2392 = vmatprep.subr.mxu0 0.0
    %2393 = vmatpush1.msra.mxu0 0.0
    %2394 = vmatprep.subr.mxu0 0.0
    %2395 = vmatpush1.msra.mxu0 0.0
    %2396 = vmatprep.subr.mxu0 0.0
    %2397 = vmatpush1.msra.mxu0 0.0
    %2398 = vmatprep.mubr.f32.mxu0 0.0
    %2399 = vmatmul.mubr.f32.gmra.mrb[0].mxu0 %v2333
    %v2400 = vpop.f32.mrb[0].mxu0
    %v2401 = vadd.f32 %v297, %v2400
    %v2402 = vpop.f32.mrb[0].mxu0
    %2403 = vdwg.mxu0
    %v2404 = vtanh.pop %v2401
    %2405 = vmatprep.subr.mxu0 0.0
    %2406 = vmatpush1.msra.mxu0 %v104
    %2407 = vmatprep.subr.mxu0 0.0
    %2408 = vmatpush1.msra.mxu0 %v105
    %2409 = vmatprep.subr.mxu0 0.0
    %2410 = vmatpush1.msra.mxu0 %v106
    %2411 = vmatprep.subr.mxu0 0.0
    %2412 = vmatpush1.msra.mxu0 %v107
    %2413 = vmatprep.subr.mxu0 0.0
    %2414 = vmatpush1.msra.mxu0 %v108
    %2415 = vmatprep.subr.mxu0 0.0
    %2416 = vmatpush1.msra.mxu0 %v109
    %2417 = vmatprep.subr.mxu0 0.0
    %2418 = vmatpush1.msra.mxu0 %v110
    %2419 = vmatprep.subr.mxu0 0.0
    %2420 = vmatpush1.msra.mxu0 %v111
    %2421 = vmatprep.subr.mxu0 0.0
    %2422 = vmatpush1.msra.mxu0 %v112
    %2423 = vmatprep.subr.mxu0 0.0
    %2424 = vmatpush1.msra.mxu0 %v113
    %2425 = vmatprep.subr.mxu0 0.0
    %2426 = vmatpush1.msra.mxu0 %v114
    %2427 = vmatprep.subr.mxu0 0.0
    %2428 = vmatpush1.msra.mxu0 %v115
    %2429 = vmatprep.subr.mxu0 0.0
    %2430 = vmatpush1.msra.mxu0 %v116
    %2431 = vmatprep.subr.mxu0 0.0
    %2432 = vmatpush1.msra.mxu0 %v117
    %2433 = vmatprep.subr.mxu0 0.0
    %2434 = vmatpush1.msra.mxu0 %v118
    %2435 = vmatprep.subr.mxu0 0.0
    %2436 = vmatpush1.msra.mxu0 %v119
    %2437 = vmatprep.subr.mxu0 0.0
    %2438 = vmatpush1.msra.mxu0 0.0
    %2439 = vmatprep.subr.mxu0 0.0
    %2440 = vmatpush1.msra.mxu0 0.0
    %2441 = vmatprep.subr.mxu0 0.0
    %2442 = vmatpush1.msra.mxu0 0.0
    %2443 = vmatprep.subr.mxu0 0.0
    %2444 = vmatpush1.msra.mxu0 0.0
    %2445 = vmatprep.subr.mxu0 0.0
    %2446 = vmatpush1.msra.mxu0 0.0
    %2447 = vmatprep.subr.mxu0 0.0
    %2448 = vmatpush1.msra.mxu0 0.0
    %2449 = vmatprep.subr.mxu0 0.0
    %2450 = vmatpush1.msra.mxu0 0.0
    %2451 = vmatprep.subr.mxu0 0.0
    %2452 = vmatpush1.msra.mxu0 0.0
    %2453 = vmatprep.subr.mxu0 0.0
    %2454 = vmatpush1.msra.mxu0 0.0
    %2455 = vmatprep.subr.mxu0 0.0
    %2456 = vmatpush1.msra.mxu0 0.0
    %2457 = vmatprep.subr.mxu0 0.0
    %2458 = vmatpush1.msra.mxu0 0.0
    %2459 = vmatprep.subr.mxu0 0.0
    %2460 = vmatpush1.msra.mxu0 0.0
    %2461 = vmatprep.subr.mxu0 0.0
    %2462 = vmatpush1.msra.mxu0 0.0
    %2463 = vmatprep.subr.mxu0 0.0
    %2464 = vmatpush1.msra.mxu0 0.0
    %2465 = vmatprep.subr.mxu0 0.0
    %2466 = vmatpush1.msra.mxu0 0.0
    %2467 = vmatprep.subr.mxu0 0.0
    %2468 = vmatpush1.msra.mxu0 0.0
    %2469 = vmatprep.mubr.f32.mxu0 0.0
    %2470 = vmatmul.mubr.f32.gmra.mrb[0].mxu0 %v2404
    %v2471 = vpop.f32.mrb[0].mxu0
    %v2472 = vadd.f32 %v374, %v2471
    %v2473 = vpop.f32.mrb[0].mxu0
    %2474 = vdwg.mxu0
    %v2475 = vmul.f32 %v2472, 2.0
    %v2476 = vadd.f32 %v2329, %v2475
    %v2477 = vmul.f32 %v1752, %v2472
    %v2478 = vadd.f32 %v1461, %v2477
    %2479 = vmatprep.subr.mxu0 0.0
    %2480 = vmatpush1.msra.mxu0 %v87
    %2481 = vmatprep.subr.mxu0 0.0
    %2482 = vmatpush1.msra.mxu0 %v88
    %2483 = vmatprep.subr.mxu0 0.0
    %2484 = vmatpush1.msra.mxu0 %v89
    %2485 = vmatprep.subr.mxu0 0.0
    %2486 = vmatpush1.msra.mxu0 %v90
    %2487 = vmatprep.subr.mxu0 0.0
    %2488 = vmatpush1.msra.mxu0 %v91
    %2489 = vmatprep.subr.mxu0 0.0
    %2490 = vmatpush1.msra.mxu0 %v92
    %2491 = vmatprep.subr.mxu0 0.0
    %2492 = vmatpush1.msra.mxu0 %v93
    %2493 = vmatprep.subr.mxu0 0.0
    %2494 = vmatpush1.msra.mxu0 %v94
    %2495 = vmatprep.subr.mxu0 0.0
    %2496 = vmatpush1.msra.mxu0 %v95
    %2497 = vmatprep.subr.mxu0 0.0
    %2498 = vmatpush1.msra.mxu0 %v96
    %2499 = vmatprep.subr.mxu0 0.0
    %2500 = vmatpush1.msra.mxu0 %v97
    %2501 = vmatprep.subr.mxu0 0.0
    %2502 = vmatpush1.msra.mxu0 %v98
    %2503 = vmatprep.subr.mxu0 0.0
    %2504 = vmatpush1.msra.mxu0 %v99
    %2505 = vmatprep.subr.mxu0 0.0
    %2506 = vmatpush1.msra.mxu0 %v100
    %2507 = vmatprep.subr.mxu0 0.0
    %2508 = vmatpush1.msra.mxu0 %v101
    %2509 = vmatprep.subr.mxu0 0.0
    %2510 = vmatpush1.msra.mxu0 %v102
    %2511 = vmatprep.subr.mxu0 0.0
    %2512 = vmatpush1.msra.mxu0 0.0
    %2513 = vmatprep.subr.mxu0 0.0
    %2514 = vmatpush1.msra.mxu0 0.0
    %2515 = vmatprep.subr.mxu0 0.0
    %2516 = vmatpush1.msra.mxu0 0.0
    %2517 = vmatprep.subr.mxu0 0.0
    %2518 = vmatpush1.msra.mxu0 0.0
    %2519 = vmatprep.subr.mxu0 0.0
    %2520 = vmatpush1.msra.mxu0 0.0
    %2521 = vmatprep.subr.mxu0 0.0
    %2522 = vmatpush1.msra.mxu0 0.0
    %2523 = vmatprep.subr.mxu0 0.0
    %2524 = vmatpush1.msra.mxu0 0.0
    %2525 = vmatprep.subr.mxu0 0.0
    %2526 = vmatpush1.msra.mxu0 0.0
    %2527 = vmatprep.subr.mxu0 0.0
    %2528 = vmatpush1.msra.mxu0 0.0
    %2529 = vmatprep.subr.mxu0 0.0
    %2530 = vmatpush1.msra.mxu0 0.0
    %2531 = vmatprep.subr.mxu0 0.0
    %2532 = vmatpush1.msra.mxu0 0.0
    %2533 = vmatprep.subr.mxu0 0.0
    %2534 = vmatpush1.msra.mxu0 0.0
    %2535 = vmatprep.subr.mxu0 0.0
    %2536 = vmatpush1.msra.mxu0 0.0
    %2537 = vmatprep.subr.mxu0 0.0
    %2538 = vmatpush1.msra.mxu0 0.0
    %2539 = vmatprep.subr.mxu0 0.0
    %2540 = vmatpush1.msra.mxu0 0.0
    %2541 = vmatprep.subr.mxu0 0.0
    %2542 = vmatpush1.msra.mxu0 0.0
    %2543 = vmatprep.mubr.f32.mxu0 0.0
    %2544 = vmatmul.mubr.f32.gmra.mrb[0].mxu0 %v2478
    %v2545 = vpop.f32.mrb[0].mxu0
    %v2546 = vadd.f32 %v297, %v2545
    %v2547 = vpop.f32.mrb[0].mxu0
    %2548 = vdwg.mxu0
    %v2549 = vtanh.pop %v2546
    %2550 = vmatprep.subr.mxu0 0.0
    %2551 = vmatpush1.msra.mxu0 %v104
    %2552 = vmatprep.subr.mxu0 0.0
    %2553 = vmatpush1.msra.mxu0 %v105
    %2554 = vmatprep.subr.mxu0 0.0
    %2555 = vmatpush1.msra.mxu0 %v106
    %2556 = vmatprep.subr.mxu0 0.0
    %2557 = vmatpush1.msra.mxu0 %v107
    %2558 = vmatprep.subr.mxu0 0.0
    %2559 = vmatpush1.msra.mxu0 %v108
    %2560 = vmatprep.subr.mxu0 0.0
    %2561 = vmatpush1.msra.mxu0 %v109
    %2562 = vmatprep.subr.mxu0 0.0
    %2563 = vmatpush1.msra.mxu0 %v110
    %2564 = vmatprep.subr.mxu0 0.0
    %2565 = vmatpush1.msra.mxu0 %v111
    %2566 = vmatprep.subr.mxu0 0.0
    %2567 = vmatpush1.msra.mxu0 %v112
    %2568 = vmatprep.subr.mxu0 0.0
    %2569 = vmatpush1.msra.mxu0 %v113
    %2570 = vmatprep.subr.mxu0 0.0
    %2571 = vmatpush1.msra.mxu0 %v114
    %2572 = vmatprep.subr.mxu0 0.0
    %2573 = vmatpush1.msra.mxu0 %v115
    %2574 = vmatprep.subr.mxu0 0.0
    %2575 = vmatpush1.msra.mxu0 %v116
    %2576 = vmatprep.subr.mxu0 0.0
    %2577 = vmatpush1.msra.mxu0 %v117
    %2578 = vmatprep.subr.mxu0 0.0
    %2579 = vmatpush1.msra.mxu0 %v118
    %2580 = vmatprep.subr.mxu0 0.0
    %2581 = vmatpush1.msra.mxu0 %v119
    %2582 = vmatprep.subr.mxu0 0.0
    %2583 = vmatpush1.msra.mxu0 0.0
    %2584 = vmatprep.subr.mxu0 0.0
    %2585 = vmatpush1.msra.mxu0 0.0
    %2586 = vmatprep.subr.mxu0 0.0
    %2587 = vmatpush1.msra.mxu0 0.0
    %2588 = vmatprep.subr.mxu0 0.0
    %2589 = vmatpush1.msra.mxu0 0.0
    %2590 = vmatprep.subr.mxu0 0.0
    %2591 = vmatpush1.msra.mxu0 0.0
    %2592 = vmatprep.subr.mxu0 0.0
    %2593 = vmatpush1.msra.mxu0 0.0
    %2594 = vmatprep.subr.mxu0 0.0
    %2595 = vmatpush1.msra.mxu0 0.0
    %2596 = vmatprep.subr.mxu0 0.0
    %2597 = vmatpush1.msra.mxu0 0.0
    %2598 = vmatprep.subr.mxu0 0.0
    %2599 = vmatpush1.msra.mxu0 0.0
    %2600 = vmatprep.subr.mxu0 0.0
    %2601 = vmatpush1.msra.mxu0 0.0
    %2602 = vmatprep.subr.mxu0 0.0
    %2603 = vmatpush1.msra.mxu0 0.0
    %2604 = vmatprep.subr.mxu0 0.0
    %2605 = vmatpush1.msra.mxu0 0.0
    %2606 = vmatprep.subr.mxu0 0.0
    %2607 = vmatpush1.msra.mxu0 0.0
    %2608 = vmatprep.subr.mxu0 0.0
    %2609 = vmatpush1.msra.mxu0 0.0
    %2610 = vmatprep.subr.mxu0 0.0
    %2611 = vmatpush1.msra.mxu0 0.0
    %2612 = vmatprep.subr.mxu0 0.0
    %2613 = vmatpush1.msra.mxu0 0.0
    %2614 = vmatprep.mubr.f32.mxu0 0.0
    %2615 = vmatmul.mubr.f32.gmra.mrb[0].mxu0 %v2549
    %v2616 = vpop.f32.mrb[0].mxu0
    %v2617 = vadd.f32 %v374, %v2616
    %v2618 = vpop.f32.mrb[0].mxu0
    %2619 = vdwg.mxu0
    %v2620 = vmul.f32 %v2617, 2.0
    %v2621 = vadd.f32 %v2476, %v2620
    %v2622 = vmul.f32 %v2043, %v2617
    %v2623 = vadd.f32 %v1461, %v2622
    %2624 = vmatprep.subr.mxu0 0.0
    %2625 = vmatpush1.msra.mxu0 %v87
    %2626 = vmatprep.subr.mxu0 0.0
    %2627 = vmatpush1.msra.mxu0 %v88
    %2628 = vmatprep.subr.mxu0 0.0
    %2629 = vmatpush1.msra.mxu0 %v89
    %2630 = vmatprep.subr.mxu0 0.0
    %2631 = vmatpush1.msra.mxu0 %v90
    %2632 = vmatprep.subr.mxu0 0.0
    %2633 = vmatpush1.msra.mxu0 %v91
    %2634 = vmatprep.subr.mxu0 0.0
    %2635 = vmatpush1.msra.mxu0 %v92
    %2636 = vmatprep.subr.mxu0 0.0
    %2637 = vmatpush1.msra.mxu0 %v93
    %2638 = vmatprep.subr.mxu0 0.0
    %2639 = vmatpush1.msra.mxu0 %v94
    %2640 = vmatprep.subr.mxu0 0.0
    %2641 = vmatpush1.msra.mxu0 %v95
    %2642 = vmatprep.subr.mxu0 0.0
    %2643 = vmatpush1.msra.mxu0 %v96
    %2644 = vmatprep.subr.mxu0 0.0
    %2645 = vmatpush1.msra.mxu0 %v97
    %2646 = vmatprep.subr.mxu0 0.0
    %2647 = vmatpush1.msra.mxu0 %v98
    %2648 = vmatprep.subr.mxu0 0.0
    %2649 = vmatpush1.msra.mxu0 %v99
    %2650 = vmatprep.subr.mxu0 0.0
    %2651 = vmatpush1.msra.mxu0 %v100
    %2652 = vmatprep.subr.mxu0 0.0
    %2653 = vmatpush1.msra.mxu0 %v101
    %2654 = vmatprep.subr.mxu0 0.0
    %2655 = vmatpush1.msra.mxu0 %v102
    %2656 = vmatprep.subr.mxu0 0.0
    %2657 = vmatpush1.msra.mxu0 0.0
    %2658 = vmatprep.subr.mxu0 0.0
    %2659 = vmatpush1.msra.mxu0 0.0
    %2660 = vmatprep.subr.mxu0 0.0
    %2661 = vmatpush1.msra.mxu0 0.0
    %2662 = vmatprep.subr.mxu0 0.0
    %2663 = vmatpush1.msra.mxu0 0.0
    %2664 = vmatprep.subr.mxu0 0.0
    %2665 = vmatpush1.msra.mxu0 0.0
    %2666 = vmatprep.subr.mxu0 0.0
    %2667 = vmatpush1.msra.mxu0 0.0
    %2668 = vmatprep.subr.mxu0 0.0
    %2669 = vmatpush1.msra.mxu0 0.0
    %2670 = vmatprep.subr.mxu0 0.0
    %2671 = vmatpush1.msra.mxu0 0.0
    %2672 = vmatprep.subr.mxu0 0.0
    %2673 = vmatpush1.msra.mxu0 0.0
    %2674 = vmatprep.subr.mxu0 0.0
    %2675 = vmatpush1.msra.mxu0 0.0
    %2676 = vmatprep.subr.mxu0 0.0
    %2677 = vmatpush1.msra.mxu0 0.0
    %2678 = vmatprep.subr.mxu0 0.0
    %2679 = vmatpush1.msra.mxu0 0.0
    %2680 = vmatprep.subr.mxu0 0.0
    %2681 = vmatpush1.msra.mxu0 0.0
    %2682 = vmatprep.subr.mxu0 0.0
    %2683 = vmatpush1.msra.mxu0 0.0
    %2684 = vmatprep.subr.mxu0 0.0
    %2685 = vmatpush1.msra.mxu0 0.0
    %2686 = vmatprep.subr.mxu0 0.0
    %2687 = vmatpush1.msra.mxu0 0.0
    %2688 = vmatprep.mubr.f32.mxu0 0.0
    %2689 = vmatmul.mubr.f32.gmra.mrb[0].mxu0 %v2623
    %v2690 = vpop.f32.mrb[0].mxu0
    %v2691 = vadd.f32 %v297, %v2690
    %v2692 = vpop.f32.mrb[0].mxu0
    %2693 = vdwg.mxu0
    %v2694 = vtanh.pop %v2691
    %2695 = vmatprep.subr.mxu0 0.0
    %2696 = vmatpush1.msra.mxu0 %v104
    %2697 = vmatprep.subr.mxu0 0.0
    %2698 = vmatpush1.msra.mxu0 %v105
    %2699 = vmatprep.subr.mxu0 0.0
    %2700 = vmatpush1.msra.mxu0 %v106
    %2701 = vmatprep.subr.mxu0 0.0
    %2702 = vmatpush1.msra.mxu0 %v107
    %2703 = vmatprep.subr.mxu0 0.0
    %2704 = vmatpush1.msra.mxu0 %v108
    %2705 = vmatprep.subr.mxu0 0.0
    %2706 = vmatpush1.msra.mxu0 %v109
    %2707 = vmatprep.subr.mxu0 0.0
    %2708 = vmatpush1.msra.mxu0 %v110
    %2709 = vmatprep.subr.mxu0 0.0
    %2710 = vmatpush1.msra.mxu0 %v111
    %2711 = vmatprep.subr.mxu0 0.0
    %2712 = vmatpush1.msra.mxu0 %v112
    %2713 = vmatprep.subr.mxu0 0.0
    %2714 = vmatpush1.msra.mxu0 %v113
    %2715 = vmatprep.subr.mxu0 0.0
    %2716 = vmatpush1.msra.mxu0 %v114
    %2717 = vmatprep.subr.mxu0 0.0
    %2718 = vmatpush1.msra.mxu0 %v115
    %2719 = vmatprep.subr.mxu0 0.0
    %2720 = vmatpush1.msra.mxu0 %v116
    %2721 = vmatprep.subr.mxu0 0.0
    %2722 = vmatpush1.msra.mxu0 %v117
    %2723 = vmatprep.subr.mxu0 0.0
    %2724 = vmatpush1.msra.mxu0 %v118
    %2725 = vmatprep.subr.mxu0 0.0
    %2726 = vmatpush1.msra.mxu0 %v119
    %2727 = vmatprep.subr.mxu0 0.0
    %2728 = vmatpush1.msra.mxu0 0.0
    %2729 = vmatprep.subr.mxu0 0.0
    %2730 = vmatpush1.msra.mxu0 0.0
    %2731 = vmatprep.subr.mxu0 0.0
    %2732 = vmatpush1.msra.mxu0 0.0
    %2733 = vmatprep.subr.mxu0 0.0
    %2734 = vmatpush1.msra.mxu0 0.0
    %2735 = vmatprep.subr.mxu0 0.0
    %2736 = vmatpush1.msra.mxu0 0.0
    %2737 = vmatprep.subr.mxu0 0.0
    %2738 = vmatpush1.msra.mxu0 0.0
    %2739 = vmatprep.subr.mxu0 0.0
    %2740 = vmatpush1.msra.mxu0 0.0
    %2741 = vmatprep.subr.mxu0 0.0
    %2742 = vmatpush1.msra.mxu0 0.0
    %2743 = vmatprep.subr.mxu0 0.0
    %2744 = vmatpush1.msra.mxu0 0.0
    %2745 = vmatprep.subr.mxu0 0.0
    %2746 = vmatpush1.msra.mxu0 0.0
    %2747 = vmatprep.subr.mxu0 0.0
    %2748 = vmatpush1.msra.mxu0 0.0
    %2749 = vmatprep.subr.mxu0 0.0
    %2750 = vmatpush1.msra.mxu0 0.0
    %2751 = vmatprep.subr.mxu0 0.0
    %2752 = vmatpush1.msra.mxu0 0.0
    %2753 = vmatprep.subr.mxu0 0.0
    %2754 = vmatpush1.msra.mxu0 0.0
    %2755 = vmatprep.subr.mxu0 0.0
    %2756 = vmatpush1.msra.mxu0 0.0
    %2757 = vmatprep.subr.mxu0 0.0
    %2758 = vmatpush1.msra.mxu0 0.0
    %2759 = vmatprep.mubr.f32.mxu0 0.0
    %2760 = vmatmul.mubr.f32.gmra.mrb[0].mxu0 %v2694
    %v2761 = vpop.f32.mrb[0].mxu0
    %v2762 = vadd.f32 %v374, %v2761
    %v2763 = vpop.f32.mrb[0].mxu0
    %2764 = vdwg.mxu0
    %v2765 = vadd.f32 %v2621, %v2762
    %v2766 = vmul.f32 %v2188, %v2765
    %v2767 = vadd.f32 %v1461, %v2766
    %2768 = vmatprep.subr.mxu0 0.0
    %2769 = vmatpush1.msra.mxu0 %v122
    %2770 = vmatprep.subr.mxu0 0.0
    %2771 = vmatpush1.msra.mxu0 %v123
    %2772 = vmatprep.subr.mxu0 0.0
    %2773 = vmatpush1.msra.mxu0 %v124
    %2774 = vmatprep.subr.mxu0 0.0
    %2775 = vmatpush1.msra.mxu0 %v125
    %2776 = vmatprep.subr.mxu0 0.0
    %2777 = vmatpush1.msra.mxu0 %v126
    %2778 = vmatprep.subr.mxu0 0.0
    %2779 = vmatpush1.msra.mxu0 %v127
    %2780 = vmatprep.subr.mxu0 0.0
    %2781 = vmatpush1.msra.mxu0 %v128
    %2782 = vmatprep.subr.mxu0 0.0
    %2783 = vmatpush1.msra.mxu0 %v129
    %2784 = vmatprep.subr.mxu0 0.0
    %2785 = vmatpush1.msra.mxu0 %v130
    %2786 = vmatprep.subr.mxu0 0.0
    %2787 = vmatpush1.msra.mxu0 %v131
    %2788 = vmatprep.subr.mxu0 0.0
    %2789 = vmatpush1.msra.mxu0 %v132
    %2790 = vmatprep.subr.mxu0 0.0
    %2791 = vmatpush1.msra.mxu0 %v133
    %2792 = vmatprep.subr.mxu0 0.0
    %2793 = vmatpush1.msra.mxu0 %v134
    %2794 = vmatprep.subr.mxu0 0.0
    %2795 = vmatpush1.msra.mxu0 %v135
    %2796 = vmatprep.subr.mxu0 0.0
    %2797 = vmatpush1.msra.mxu0 %v136
    %2798 = vmatprep.subr.mxu0 0.0
    %2799 = vmatpush1.msra.mxu0 %v137
    %2800 = vmatprep.subr.mxu0 0.0
    %2801 = vmatpush1.msra.mxu0 0.0
    %2802 = vmatprep.subr.mxu0 0.0
    %2803 = vmatpush1.msra.mxu0 0.0
    %2804 = vmatprep.subr.mxu0 0.0
    %2805 = vmatpush1.msra.mxu0 0.0
    %2806 = vmatprep.subr.mxu0 0.0
    %2807 = vmatpush1.msra.mxu0 0.0
    %2808 = vmatprep.subr.mxu0 0.0
    %2809 = vmatpush1.msra.mxu0 0.0
    %2810 = vmatprep.subr.mxu0 0.0
    %2811 = vmatpush1.msra.mxu0 0.0
    %2812 = vmatprep.subr.mxu0 0.0
    %2813 = vmatpush1.msra.mxu0 0.0
    %2814 = vmatprep.subr.mxu0 0.0
    %2815 = vmatpush1.msra.mxu0 0.0
    %2816 = vmatprep.subr.mxu0 0.0
    %2817 = vmatpush1.msra.mxu0 0.0
    %2818 = vmatprep.subr.mxu0 0.0
    %2819 = vmatpush1.msra.mxu0 0.0
    %2820 = vmatprep.subr.mxu0 0.0
    %2821 = vmatpush1.msra.mxu0 0.0
    %2822 = vmatprep.subr.mxu0 0.0
    %2823 = vmatpush1.msra.mxu0 0.0
    %2824 = vmatprep.subr.mxu0 0.0
    %2825 = vmatpush1.msra.mxu0 0.0
    %2826 = vmatprep.subr.mxu0 0.0
    %2827 = vmatpush1.msra.mxu0 0.0
    %2828 = vmatprep.subr.mxu0 0.0
    %2829 = vmatpush1.msra.mxu0 0.0
    %2830 = vmatprep.subr.mxu0 0.0
    %2831 = vmatpush1.msra.mxu0 0.0
    %2832 = vmatprep.mubr.f32.mxu0 0.0
    %2833 = vmatmul.mubr.f32.gmra.mrb[0].mxu0 %v2190
    %v2834 = vpop.f32.mrb[0].mxu0
    %v2835 = vadd.f32 %v143, %v2834
    %v2836 = vpop.f32.mrb[0].mxu0
    %2837 = vdwg.mxu0
    %s2838 = scalar_lea.vmem [#allocation12], 32
    %2839 = vst [vmem:[%s2838] sm:$0xff] %v2835
    %2840 = vmatprep.subr.mxu0 0.0
    %2841 = vmatpush1.msra.mxu0 %v122
    %2842 = vmatprep.subr.mxu0 0.0
    %2843 = vmatpush1.msra.mxu0 %v123
    %2844 = vmatprep.subr.mxu0 0.0
    %2845 = vmatpush1.msra.mxu0 %v124
    %2846 = vmatprep.subr.mxu0 0.0
    %2847 = vmatpush1.msra.mxu0 %v125
    %2848 = vmatprep.subr.mxu0 0.0
    %2849 = vmatpush1.msra.mxu0 %v126
    %2850 = vmatprep.subr.mxu0 0.0
    %2851 = vmatpush1.msra.mxu0 %v127
    %2852 = vmatprep.subr.mxu0 0.0
    %2853 = vmatpush1.msra.mxu0 %v128
    %2854 = vmatprep.subr.mxu0 0.0
    %2855 = vmatpush1.msra.mxu0 %v129
    %2856 = vmatprep.subr.mxu0 0.0
    %2857 = vmatpush1.msra.mxu0 %v130
    %2858 = vmatprep.subr.mxu0 0.0
    %2859 = vmatpush1.msra.mxu0 %v131
    %2860 = vmatprep.subr.mxu0 0.0
    %2861 = vmatpush1.msra.mxu0 %v132
    %2862 = vmatprep.subr.mxu0 0.0
    %2863 = vmatpush1.msra.mxu0 %v133
    %2864 = vmatprep.subr.mxu0 0.0
    %2865 = vmatpush1.msra.mxu0 %v134
    %2866 = vmatprep.subr.mxu0 0.0
    %2867 = vmatpush1.msra.mxu0 %v135
    %2868 = vmatprep.subr.mxu0 0.0
    %2869 = vmatpush1.msra.mxu0 %v136
    %2870 = vmatprep.subr.mxu0 0.0
    %2871 = vmatpush1.msra.mxu0 %v137
    %2872 = vmatprep.subr.mxu0 0.0
    %2873 = vmatpush1.msra.mxu0 0.0
    %2874 = vmatprep.subr.mxu0 0.0
    %2875 = vmatpush1.msra.mxu0 0.0
    %2876 = vmatprep.subr.mxu0 0.0
    %2877 = vmatpush1.msra.mxu0 0.0
    %2878 = vmatprep.subr.mxu0 0.0
    %2879 = vmatpush1.msra.mxu0 0.0
    %2880 = vmatprep.subr.mxu0 0.0
    %2881 = vmatpush1.msra.mxu0 0.0
    %2882 = vmatprep.subr.mxu0 0.0
    %2883 = vmatpush1.msra.mxu0 0.0
    %2884 = vmatprep.subr.mxu0 0.0
    %2885 = vmatpush1.msra.mxu0 0.0
    %2886 = vmatprep.subr.mxu0 0.0
    %2887 = vmatpush1.msra.mxu0 0.0
    %2888 = vmatprep.subr.mxu0 0.0
    %2889 = vmatpush1.msra.mxu0 0.0
    %2890 = vmatprep.subr.mxu0 0.0
    %2891 = vmatpush1.msra.mxu0 0.0
    %2892 = vmatprep.subr.mxu0 0.0
    %2893 = vmatpush1.msra.mxu0 0.0
    %2894 = vmatprep.subr.mxu0 0.0
    %2895 = vmatpush1.msra.mxu0 0.0
    %2896 = vmatprep.subr.mxu0 0.0
    %2897 = vmatpush1.msra.mxu0 0.0
    %2898 = vmatprep.subr.mxu0 0.0
    %2899 = vmatpush1.msra.mxu0 0.0
    %2900 = vmatprep.subr.mxu0 0.0
    %2901 = vmatpush1.msra.mxu0 0.0
    %2902 = vmatprep.subr.mxu0 0.0
    %2903 = vmatpush1.msra.mxu0 0.0
    %2904 = vmatprep.mubr.f32.mxu0 0.0
    %2905 = vmatmul.mubr.f32.gmra.mrb[0].mxu0 %v2767
    %v2906 = vpop.f32.mrb[0].mxu0
    %v2907 = vadd.f32 %v143, %v2906
    %v2908 = vpop.f32.mrb[0].mxu0
    %2909 = vdwg.mxu0
    %s2910 = scalar_lea.vmem [#allocation12], 40
    %2911 = vst [vmem:[%s2910] sm:$0xff] %v2907
    %s2912 = sld [smem:[#allocation3 + $0x2]]
    %s2913 = smul.f32 %s2912, 0.5
    %v2914 = vrcp.pop 6.0
    %s2915 = vtos %v2914
    %s2916 = smul.f32 %s2912, %s2915
    %2917 = vmatprep.subr.mxu0 0.0
    %2918 = vmatpush1.msra.mxu0 %v87
    %2919 = vmatprep.subr.mxu0 0.0
    %2920 = vmatpush1.msra.mxu0 %v88
    %2921 = vmatprep.subr.mxu0 0.0
    %2922 = vmatpush1.msra.mxu0 %v89
    %2923 = vmatprep.subr.mxu0 0.0
    %2924 = vmatpush1.msra.mxu0 %v90
    %2925 = vmatprep.subr.mxu0 0.0
    %2926 = vmatpush1.msra.mxu0 %v91
    %2927 = vmatprep.subr.mxu0 0.0
    %2928 = vmatpush1.msra.mxu0 %v92
    %2929 = vmatprep.subr.mxu0 0.0
    %2930 = vmatpush1.msra.mxu0 %v93
    %2931 = vmatprep.subr.mxu0 0.0
    %2932 = vmatpush1.msra.mxu0 %v94
    %2933 = vmatprep.subr.mxu0 0.0
    %2934 = vmatpush1.msra.mxu0 %v95
    %2935 = vmatprep.subr.mxu0 0.0
    %2936 = vmatpush1.msra.mxu0 %v96
    %2937 = vmatprep.subr.mxu0 0.0
    %2938 = vmatpush1.msra.mxu0 %v97
    %2939 = vmatprep.subr.mxu0 0.0
    %2940 = vmatpush1.msra.mxu0 %v98
    %2941 = vmatprep.subr.mxu0 0.0
    %2942 = vmatpush1.msra.mxu0 %v99
    %2943 = vmatprep.subr.mxu0 0.0
    %2944 = vmatpush1.msra.mxu0 %v100
    %2945 = vmatprep.subr.mxu0 0.0
    %2946 = vmatpush1.msra.mxu0 %v101
    %2947 = vmatprep.subr.mxu0 0.0
    %2948 = vmatpush1.msra.mxu0 %v102
    %2949 = vmatprep.subr.mxu0 0.0
    %2950 = vmatpush1.msra.mxu0 0.0
    %2951 = vmatprep.subr.mxu0 0.0
    %2952 = vmatpush1.msra.mxu0 0.0
    %2953 = vmatprep.subr.mxu0 0.0
    %2954 = vmatpush1.msra.mxu0 0.0
    %2955 = vmatprep.subr.mxu0 0.0
    %2956 = vmatpush1.msra.mxu0 0.0
    %2957 = vmatprep.subr.mxu0 0.0
    %2958 = vmatpush1.msra.mxu0 0.0
    %2959 = vmatprep.subr.mxu0 0.0
    %2960 = vmatpush1.msra.mxu0 0.0
    %2961 = vmatprep.subr.mxu0 0.0
    %2962 = vmatpush1.msra.mxu0 0.0
    %2963 = vmatprep.subr.mxu0 0.0
    %2964 = vmatpush1.msra.mxu0 0.0
    %2965 = vmatprep.subr.mxu0 0.0
    %2966 = vmatpush1.msra.mxu0 0.0
    %2967 = vmatprep.subr.mxu0 0.0
    %2968 = vmatpush1.msra.mxu0 0.0
    %2969 = vmatprep.subr.mxu0 0.0
    %2970 = vmatpush1.msra.mxu0 0.0
    %2971 = vmatprep.subr.mxu0 0.0
    %2972 = vmatpush1.msra.mxu0 0.0
    %2973 = vmatprep.subr.mxu0 0.0
    %2974 = vmatpush1.msra.mxu0 0.0
    %2975 = vmatprep.subr.mxu0 0.0
    %2976 = vmatpush1.msra.mxu0 0.0
    %2977 = vmatprep.subr.mxu0 0.0
    %2978 = vmatpush1.msra.mxu0 0.0
    %2979 = vmatprep.subr.mxu0 0.0
    %2980 = vmatpush1.msra.mxu0 0.0
    %2981 = vmatprep.mubr.f32.mxu0 0.0
    %2982 = vmatmul.mubr.f32.gmra.mrb[0].mxu0 %v2190
    %v2983 = vpop.f32.mrb[0].mxu0
    %v2984 = vadd.f32 %v297, %v2983
    %v2985 = vpop.f32.mrb[0].mxu0
    %2986 = vdwg.mxu0
    %v2987 = vtanh.pop %v2984
    %2988 = vmatprep.subr.mxu0 0.0
    %2989 = vmatpush1.msra.mxu0 %v104
    %2990 = vmatprep.subr.mxu0 0.0
    %2991 = vmatpush1.msra.mxu0 %v105
    %2992 = vmatprep.subr.mxu0 0.0
    %2993 = vmatpush1.msra.mxu0 %v106
    %2994 = vmatprep.subr.mxu0 0.0
    %2995 = vmatpush1.msra.mxu0 %v107
    %2996 = vmatprep.subr.mxu0 0.0
    %2997 = vmatpush1.msra.mxu0 %v108
    %2998 = vmatprep.subr.mxu0 0.0
    %2999 = vmatpush1.msra.mxu0 %v109
    %3000 = vmatprep.subr.mxu0 0.0
    %3001 = vmatpush1.msra.mxu0 %v110
    %3002 = vmatprep.subr.mxu0 0.0
    %3003 = vmatpush1.msra.mxu0 %v111
    %3004 = vmatprep.subr.mxu0 0.0
    %3005 = vmatpush1.msra.mxu0 %v112
    %3006 = vmatprep.subr.mxu0 0.0
    %3007 = vmatpush1.msra.mxu0 %v113
    %3008 = vmatprep.subr.mxu0 0.0
    %3009 = vmatpush1.msra.mxu0 %v114
    %3010 = vmatprep.subr.mxu0 0.0
    %3011 = vmatpush1.msra.mxu0 %v115
    %3012 = vmatprep.subr.mxu0 0.0
    %3013 = vmatpush1.msra.mxu0 %v116
    %3014 = vmatprep.subr.mxu0 0.0
    %3015 = vmatpush1.msra.mxu0 %v117
    %3016 = vmatprep.subr.mxu0 0.0
    %3017 = vmatpush1.msra.mxu0 %v118
    %3018 = vmatprep.subr.mxu0 0.0
    %3019 = vmatpush1.msra.mxu0 %v119
    %3020 = vmatprep.subr.mxu0 0.0
    %3021 = vmatpush1.msra.mxu0 0.0
    %3022 = vmatprep.subr.mxu0 0.0
    %3023 = vmatpush1.msra.mxu0 0.0
    %3024 = vmatprep.subr.mxu0 0.0
    %3025 = vmatpush1.msra.mxu0 0.0
    %3026 = vmatprep.subr.mxu0 0.0
    %3027 = vmatpush1.msra.mxu0 0.0
    %3028 = vmatprep.subr.mxu0 0.0
    %3029 = vmatpush1.msra.mxu0 0.0
    %3030 = vmatprep.subr.mxu0 0.0
    %3031 = vmatpush1.msra.mxu0 0.0
    %3032 = vmatprep.subr.mxu0 0.0
    %3033 = vmatpush1.msra.mxu0 0.0
    %3034 = vmatprep.subr.mxu0 0.0
    %3035 = vmatpush1.msra.mxu0 0.0
    %3036 = vmatprep.subr.mxu0 0.0
    %3037 = vmatpush1.msra.mxu0 0.0
    %3038 = vmatprep.subr.mxu0 0.0
    %3039 = vmatpush1.msra.mxu0 0.0
    %3040 = vmatprep.subr.mxu0 0.0
    %3041 = vmatpush1.msra.mxu0 0.0
    %3042 = vmatprep.subr.mxu0 0.0
    %3043 = vmatpush1.msra.mxu0 0.0
    %3044 = vmatprep.subr.mxu0 0.0
    %3045 = vmatpush1.msra.mxu0 0.0
    %3046 = vmatprep.subr.mxu0 0.0
    %3047 = vmatpush1.msra.mxu0 0.0
    %3048 = vmatprep.subr.mxu0 0.0
    %3049 = vmatpush1.msra.mxu0 0.0
    %3050 = vmatprep.subr.mxu0 0.0
    %3051 = vmatpush1.msra.mxu0 0.0
    %3052 = vmatprep.mubr.f32.mxu0 0.0
    %3053 = vmatmul.mubr.f32.gmra.mrb[0].mxu0 %v2987
    %v3054 = vpop.f32.mrb[0].mxu0
    %v3055 = vadd.f32 %v374, %v3054
    %v3056 = vpop.f32.mrb[0].mxu0
    %3057 = vdwg.mxu0
    %v3058 = vstv %s2913
    %v3059 = vmul.f32 %v3058, %v3055
    %v3060 = vadd.f32 %v2190, %v3059
    %3061 = vmatprep.subr.mxu0 0.0
    %3062 = vmatpush1.msra.mxu0 %v87
    %3063 = vmatprep.subr.mxu0 0.0
    %3064 = vmatpush1.msra.mxu0 %v88
    %3065 = vmatprep.subr.mxu0 0.0
    %3066 = vmatpush1.msra.mxu0 %v89
    %3067 = vmatprep.subr.mxu0 0.0
    %3068 = vmatpush1.msra.mxu0 %v90
    %3069 = vmatprep.subr.mxu0 0.0
    %3070 = vmatpush1.msra.mxu0 %v91
    %3071 = vmatprep.subr.mxu0 0.0
    %3072 = vmatpush1.msra.mxu0 %v92
    %3073 = vmatprep.subr.mxu0 0.0
    %3074 = vmatpush1.msra.mxu0 %v93
    %3075 = vmatprep.subr.mxu0 0.0
    %3076 = vmatpush1.msra.mxu0 %v94
    %3077 = vmatprep.subr.mxu0 0.0
    %3078 = vmatpush1.msra.mxu0 %v95
    %3079 = vmatprep.subr.mxu0 0.0
    %3080 = vmatpush1.msra.mxu0 %v96
    %3081 = vmatprep.subr.mxu0 0.0
    %3082 = vmatpush1.msra.mxu0 %v97
    %3083 = vmatprep.subr.mxu0 0.0
    %3084 = vmatpush1.msra.mxu0 %v98
    %3085 = vmatprep.subr.mxu0 0.0
    %3086 = vmatpush1.msra.mxu0 %v99
    %3087 = vmatprep.subr.mxu0 0.0
    %3088 = vmatpush1.msra.mxu0 %v100
    %3089 = vmatprep.subr.mxu0 0.0
    %3090 = vmatpush1.msra.mxu0 %v101
    %3091 = vmatprep.subr.mxu0 0.0
    %3092 = vmatpush1.msra.mxu0 %v102
    %3093 = vmatprep.subr.mxu0 0.0
    %3094 = vmatpush1.msra.mxu0 0.0
    %3095 = vmatprep.subr.mxu0 0.0
    %3096 = vmatpush1.msra.mxu0 0.0
    %3097 = vmatprep.subr.mxu0 0.0
    %3098 = vmatpush1.msra.mxu0 0.0
    %3099 = vmatprep.subr.mxu0 0.0
    %3100 = vmatpush1.msra.mxu0 0.0
    %3101 = vmatprep.subr.mxu0 0.0
    %3102 = vmatpush1.msra.mxu0 0.0
    %3103 = vmatprep.subr.mxu0 0.0
    %3104 = vmatpush1.msra.mxu0 0.0
    %3105 = vmatprep.subr.mxu0 0.0
    %3106 = vmatpush1.msra.mxu0 0.0
    %3107 = vmatprep.subr.mxu0 0.0
    %3108 = vmatpush1.msra.mxu0 0.0
    %3109 = vmatprep.subr.mxu0 0.0
    %3110 = vmatpush1.msra.mxu0 0.0
    %3111 = vmatprep.subr.mxu0 0.0
    %3112 = vmatpush1.msra.mxu0 0.0
    %3113 = vmatprep.subr.mxu0 0.0
    %3114 = vmatpush1.msra.mxu0 0.0
    %3115 = vmatprep.subr.mxu0 0.0
    %3116 = vmatpush1.msra.mxu0 0.0
    %3117 = vmatprep.subr.mxu0 0.0
    %3118 = vmatpush1.msra.mxu0 0.0
    %3119 = vmatprep.subr.mxu0 0.0
    %3120 = vmatpush1.msra.mxu0 0.0
    %3121 = vmatprep.subr.mxu0 0.0
    %3122 = vmatpush1.msra.mxu0 0.0
    %3123 = vmatprep.subr.mxu0 0.0
    %3124 = vmatpush1.msra.mxu0 0.0
    %3125 = vmatprep.mubr.f32.mxu0 0.0
    %3126 = vmatmul.mubr.f32.gmra.mrb[0].mxu0 %v3060
    %v3127 = vpop.f32.mrb[0].mxu0
    %v3128 = vadd.f32 %v297, %v3127
    %v3129 = vpop.f32.mrb[0].mxu0
    %3130 = vdwg.mxu0
    %v3131 = vtanh.pop %v3128
    %3132 = vmatprep.subr.mxu0 0.0
    %3133 = vmatpush1.msra.mxu0 %v104
    %3134 = vmatprep.subr.mxu0 0.0
    %3135 = vmatpush1.msra.mxu0 %v105
    %3136 = vmatprep.subr.mxu0 0.0
    %3137 = vmatpush1.msra.mxu0 %v106
    %3138 = vmatprep.subr.mxu0 0.0
    %3139 = vmatpush1.msra.mxu0 %v107
    %3140 = vmatprep.subr.mxu0 0.0
    %3141 = vmatpush1.msra.mxu0 %v108
    %3142 = vmatprep.subr.mxu0 0.0
    %3143 = vmatpush1.msra.mxu0 %v109
    %3144 = vmatprep.subr.mxu0 0.0
    %3145 = vmatpush1.msra.mxu0 %v110
    %3146 = vmatprep.subr.mxu0 0.0
    %3147 = vmatpush1.msra.mxu0 %v111
    %3148 = vmatprep.subr.mxu0 0.0
    %3149 = vmatpush1.msra.mxu0 %v112
    %3150 = vmatprep.subr.mxu0 0.0
    %3151 = vmatpush1.msra.mxu0 %v113
    %3152 = vmatprep.subr.mxu0 0.0
    %3153 = vmatpush1.msra.mxu0 %v114
    %3154 = vmatprep.subr.mxu0 0.0
    %3155 = vmatpush1.msra.mxu0 %v115
    %3156 = vmatprep.subr.mxu0 0.0
    %3157 = vmatpush1.msra.mxu0 %v116
    %3158 = vmatprep.subr.mxu0 0.0
    %3159 = vmatpush1.msra.mxu0 %v117
    %3160 = vmatprep.subr.mxu0 0.0
    %3161 = vmatpush1.msra.mxu0 %v118
    %3162 = vmatprep.subr.mxu0 0.0
    %3163 = vmatpush1.msra.mxu0 %v119
    %3164 = vmatprep.subr.mxu0 0.0
    %3165 = vmatpush1.msra.mxu0 0.0
    %3166 = vmatprep.subr.mxu0 0.0
    %3167 = vmatpush1.msra.mxu0 0.0
    %3168 = vmatprep.subr.mxu0 0.0
    %3169 = vmatpush1.msra.mxu0 0.0
    %3170 = vmatprep.subr.mxu0 0.0
    %3171 = vmatpush1.msra.mxu0 0.0
    %3172 = vmatprep.subr.mxu0 0.0
    %3173 = vmatpush1.msra.mxu0 0.0
    %3174 = vmatprep.subr.mxu0 0.0
    %3175 = vmatpush1.msra.mxu0 0.0
    %3176 = vmatprep.subr.mxu0 0.0
    %3177 = vmatpush1.msra.mxu0 0.0
    %3178 = vmatprep.subr.mxu0 0.0
    %3179 = vmatpush1.msra.mxu0 0.0
    %3180 = vmatprep.subr.mxu0 0.0
    %3181 = vmatpush1.msra.mxu0 0.0
    %3182 = vmatprep.subr.mxu0 0.0
    %3183 = vmatpush1.msra.mxu0 0.0
    %3184 = vmatprep.subr.mxu0 0.0
    %3185 = vmatpush1.msra.mxu0 0.0
    %3186 = vmatprep.subr.mxu0 0.0
    %3187 = vmatpush1.msra.mxu0 0.0
    %3188 = vmatprep.subr.mxu0 0.0
    %3189 = vmatpush1.msra.mxu0 0.0
    %3190 = vmatprep.subr.mxu0 0.0
    %3191 = vmatpush1.msra.mxu0 0.0
    %3192 = vmatprep.subr.mxu0 0.0
    %3193 = vmatpush1.msra.mxu0 0.0
    %3194 = vmatprep.subr.mxu0 0.0
    %3195 = vmatpush1.msra.mxu0 0.0
    %3196 = vmatprep.mubr.f32.mxu0 0.0
    %3197 = vmatmul.mubr.f32.gmra.mrb[0].mxu0 %v3131
    %v3198 = vpop.f32.mrb[0].mxu0
    %v3199 = vadd.f32 %v374, %v3198
    %v3200 = vpop.f32.mrb[0].mxu0
    %3201 = vdwg.mxu0
    %v3202 = vmul.f32 %v3199, 2.0
    %v3203 = vadd.f32 %v3055, %v3202
    %v3204 = vmul.f32 %v3058, %v3199
    %v3205 = vadd.f32 %v2190, %v3204
    %3206 = vmatprep.subr.mxu0 0.0
    %3207 = vmatpush1.msra.mxu0 %v87
    %3208 = vmatprep.subr.mxu0 0.0
    %3209 = vmatpush1.msra.mxu0 %v88
    %3210 = vmatprep.subr.mxu0 0.0
    %3211 = vmatpush1.msra.mxu0 %v89
    %3212 = vmatprep.subr.mxu0 0.0
    %3213 = vmatpush1.msra.mxu0 %v90
    %3214 = vmatprep.subr.mxu0 0.0
    %3215 = vmatpush1.msra.mxu0 %v91
    %3216 = vmatprep.subr.mxu0 0.0
    %3217 = vmatpush1.msra.mxu0 %v92
    %3218 = vmatprep.subr.mxu0 0.0
    %3219 = vmatpush1.msra.mxu0 %v93
    %3220 = vmatprep.subr.mxu0 0.0
    %3221 = vmatpush1.msra.mxu0 %v94
    %3222 = vmatprep.subr.mxu0 0.0
    %3223 = vmatpush1.msra.mxu0 %v95
    %3224 = vmatprep.subr.mxu0 0.0
    %3225 = vmatpush1.msra.mxu0 %v96
    %3226 = vmatprep.subr.mxu0 0.0
    %3227 = vmatpush1.msra.mxu0 %v97
    %3228 = vmatprep.subr.mxu0 0.0
    %3229 = vmatpush1.msra.mxu0 %v98
    %3230 = vmatprep.subr.mxu0 0.0
    %3231 = vmatpush1.msra.mxu0 %v99
    %3232 = vmatprep.subr.mxu0 0.0
    %3233 = vmatpush1.msra.mxu0 %v100
    %3234 = vmatprep.subr.mxu0 0.0
    %3235 = vmatpush1.msra.mxu0 %v101
    %3236 = vmatprep.subr.mxu0 0.0
    %3237 = vmatpush1.msra.mxu0 %v102
    %3238 = vmatprep.subr.mxu0 0.0
    %3239 = vmatpush1.msra.mxu0 0.0
    %3240 = vmatprep.subr.mxu0 0.0
    %3241 = vmatpush1.msra.mxu0 0.0
    %3242 = vmatprep.subr.mxu0 0.0
    %3243 = vmatpush1.msra.mxu0 0.0
    %3244 = vmatprep.subr.mxu0 0.0
    %3245 = vmatpush1.msra.mxu0 0.0
    %3246 = vmatprep.subr.mxu0 0.0
    %3247 = vmatpush1.msra.mxu0 0.0
    %3248 = vmatprep.subr.mxu0 0.0
    %3249 = vmatpush1.msra.mxu0 0.0
    %3250 = vmatprep.subr.mxu0 0.0
    %3251 = vmatpush1.msra.mxu0 0.0
    %3252 = vmatprep.subr.mxu0 0.0
    %3253 = vmatpush1.msra.mxu0 0.0
    %3254 = vmatprep.subr.mxu0 0.0
    %3255 = vmatpush1.msra.mxu0 0.0
    %3256 = vmatprep.subr.mxu0 0.0
    %3257 = vmatpush1.msra.mxu0 0.0
    %3258 = vmatprep.subr.mxu0 0.0
    %3259 = vmatpush1.msra.mxu0 0.0
    %3260 = vmatprep.subr.mxu0 0.0
    %3261 = vmatpush1.msra.mxu0 0.0
    %3262 = vmatprep.subr.mxu0 0.0
    %3263 = vmatpush1.msra.mxu0 0.0
    %3264 = vmatprep.subr.mxu0 0.0
    %3265 = vmatpush1.msra.mxu0 0.0
    %3266 = vmatprep.subr.mxu0 0.0
    %3267 = vmatpush1.msra.mxu0 0.0
    %3268 = vmatprep.subr.mxu0 0.0
    %3269 = vmatpush1.msra.mxu0 0.0
    %3270 = vmatprep.mubr.f32.mxu0 0.0
    %3271 = vmatmul.mubr.f32.gmra.mrb[0].mxu0 %v3205
    %v3272 = vpop.f32.mrb[0].mxu0
    %v3273 = vadd.f32 %v297, %v3272
    %v3274 = vpop.f32.mrb[0].mxu0
    %3275 = vdwg.mxu0
    %v3276 = vtanh.pop %v3273
    %3277 = vmatprep.subr.mxu0 0.0
    %3278 = vmatpush1.msra.mxu0 %v104
    %3279 = vmatprep.subr.mxu0 0.0
    %3280 = vmatpush1.msra.mxu0 %v105
    %3281 = vmatprep.subr.mxu0 0.0
    %3282 = vmatpush1.msra.mxu0 %v106
    %3283 = vmatprep.subr.mxu0 0.0
    %3284 = vmatpush1.msra.mxu0 %v107
    %3285 = vmatprep.subr.mxu0 0.0
    %3286 = vmatpush1.msra.mxu0 %v108
    %3287 = vmatprep.subr.mxu0 0.0
    %3288 = vmatpush1.msra.mxu0 %v109
    %3289 = vmatprep.subr.mxu0 0.0
    %3290 = vmatpush1.msra.mxu0 %v110
    %3291 = vmatprep.subr.mxu0 0.0
    %3292 = vmatpush1.msra.mxu0 %v111
    %3293 = vmatprep.subr.mxu0 0.0
    %3294 = vmatpush1.msra.mxu0 %v112
    %3295 = vmatprep.subr.mxu0 0.0
    %3296 = vmatpush1.msra.mxu0 %v113
    %3297 = vmatprep.subr.mxu0 0.0
    %3298 = vmatpush1.msra.mxu0 %v114
    %3299 = vmatprep.subr.mxu0 0.0
    %3300 = vmatpush1.msra.mxu0 %v115
    %3301 = vmatprep.subr.mxu0 0.0
    %3302 = vmatpush1.msra.mxu0 %v116
    %3303 = vmatprep.subr.mxu0 0.0
    %3304 = vmatpush1.msra.mxu0 %v117
    %3305 = vmatprep.subr.mxu0 0.0
    %3306 = vmatpush1.msra.mxu0 %v118
    %3307 = vmatprep.subr.mxu0 0.0
    %3308 = vmatpush1.msra.mxu0 %v119
    %3309 = vmatprep.subr.mxu0 0.0
    %3310 = vmatpush1.msra.mxu0 0.0
    %3311 = vmatprep.subr.mxu0 0.0
    %3312 = vmatpush1.msra.mxu0 0.0
    %3313 = vmatprep.subr.mxu0 0.0
    %3314 = vmatpush1.msra.mxu0 0.0
    %3315 = vmatprep.subr.mxu0 0.0
    %3316 = vmatpush1.msra.mxu0 0.0
    %3317 = vmatprep.subr.mxu0 0.0
    %3318 = vmatpush1.msra.mxu0 0.0
    %3319 = vmatprep.subr.mxu0 0.0
    %3320 = vmatpush1.msra.mxu0 0.0
    %3321 = vmatprep.subr.mxu0 0.0
    %3322 = vmatpush1.msra.mxu0 0.0
    %3323 = vmatprep.subr.mxu0 0.0
    %3324 = vmatpush1.msra.mxu0 0.0
    %3325 = vmatprep.subr.mxu0 0.0
    %3326 = vmatpush1.msra.mxu0 0.0
    %3327 = vmatprep.subr.mxu0 0.0
    %3328 = vmatpush1.msra.mxu0 0.0
    %3329 = vmatprep.subr.mxu0 0.0
    %3330 = vmatpush1.msra.mxu0 0.0
    %3331 = vmatprep.subr.mxu0 0.0
    %3332 = vmatpush1.msra.mxu0 0.0
    %3333 = vmatprep.subr.mxu0 0.0
    %3334 = vmatpush1.msra.mxu0 0.0
    %3335 = vmatprep.subr.mxu0 0.0
    %3336 = vmatpush1.msra.mxu0 0.0
    %3337 = vmatprep.subr.mxu0 0.0
    %3338 = vmatpush1.msra.mxu0 0.0
    %3339 = vmatprep.subr.mxu0 0.0
    %3340 = vmatpush1.msra.mxu0 0.0
    %3341 = vmatprep.mubr.f32.mxu0 0.0
    %3342 = vmatmul.mubr.f32.gmra.mrb[0].mxu0 %v3276
    %v3343 = vpop.f32.mrb[0].mxu0
    %v3344 = vadd.f32 %v374, %v3343
    %v3345 = vpop.f32.mrb[0].mxu0
    %3346 = vdwg.mxu0
    %v3347 = vmul.f32 %v3344, 2.0
    %v3348 = vadd.f32 %v3203, %v3347
    %v3349 = vstv %s2912
    %v3350 = vmul.f32 %v3349, %v3344
    %v3351 = vadd.f32 %v2190, %v3350
    %3352 = vmatprep.subr.mxu0 0.0
    %3353 = vmatpush1.msra.mxu0 %v87
    %3354 = vmatprep.subr.mxu0 0.0
    %3355 = vmatpush1.msra.mxu0 %v88
    %3356 = vmatprep.subr.mxu0 0.0
    %3357 = vmatpush1.msra.mxu0 %v89
    %3358 = vmatprep.subr.mxu0 0.0
    %3359 = vmatpush1.msra.mxu0 %v90
    %3360 = vmatprep.subr.mxu0 0.0
    %3361 = vmatpush1.msra.mxu0 %v91
    %3362 = vmatprep.subr.mxu0 0.0
    %3363 = vmatpush1.msra.mxu0 %v92
    %3364 = vmatprep.subr.mxu0 0.0
    %3365 = vmatpush1.msra.mxu0 %v93
    %3366 = vmatprep.subr.mxu0 0.0
    %3367 = vmatpush1.msra.mxu0 %v94
    %3368 = vmatprep.subr.mxu0 0.0
    %3369 = vmatpush1.msra.mxu0 %v95
    %3370 = vmatprep.subr.mxu0 0.0
    %3371 = vmatpush1.msra.mxu0 %v96
    %3372 = vmatprep.subr.mxu0 0.0
    %3373 = vmatpush1.msra.mxu0 %v97
    %3374 = vmatprep.subr.mxu0 0.0
    %3375 = vmatpush1.msra.mxu0 %v98
    %3376 = vmatprep.subr.mxu0 0.0
    %3377 = vmatpush1.msra.mxu0 %v99
    %3378 = vmatprep.subr.mxu0 0.0
    %3379 = vmatpush1.msra.mxu0 %v100
    %3380 = vmatprep.subr.mxu0 0.0
    %3381 = vmatpush1.msra.mxu0 %v101
    %3382 = vmatprep.subr.mxu0 0.0
    %3383 = vmatpush1.msra.mxu0 %v102
    %3384 = vmatprep.subr.mxu0 0.0
    %3385 = vmatpush1.msra.mxu0 0.0
    %3386 = vmatprep.subr.mxu0 0.0
    %3387 = vmatpush1.msra.mxu0 0.0
    %3388 = vmatprep.subr.mxu0 0.0
    %3389 = vmatpush1.msra.mxu0 0.0
    %3390 = vmatprep.subr.mxu0 0.0
    %3391 = vmatpush1.msra.mxu0 0.0
    %3392 = vmatprep.subr.mxu0 0.0
    %3393 = vmatpush1.msra.mxu0 0.0
    %3394 = vmatprep.subr.mxu0 0.0
    %3395 = vmatpush1.msra.mxu0 0.0
    %3396 = vmatprep.subr.mxu0 0.0
    %3397 = vmatpush1.msra.mxu0 0.0
    %3398 = vmatprep.subr.mxu0 0.0
    %3399 = vmatpush1.msra.mxu0 0.0
    %3400 = vmatprep.subr.mxu0 0.0
    %3401 = vmatpush1.msra.mxu0 0.0
    %3402 = vmatprep.subr.mxu0 0.0
    %3403 = vmatpush1.msra.mxu0 0.0
    %3404 = vmatprep.subr.mxu0 0.0
    %3405 = vmatpush1.msra.mxu0 0.0
    %3406 = vmatprep.subr.mxu0 0.0
    %3407 = vmatpush1.msra.mxu0 0.0
    %3408 = vmatprep.subr.mxu0 0.0
    %3409 = vmatpush1.msra.mxu0 0.0
    %3410 = vmatprep.subr.mxu0 0.0
    %3411 = vmatpush1.msra.mxu0 0.0
    %3412 = vmatprep.subr.mxu0 0.0
    %3413 = vmatpush1.msra.mxu0 0.0
    %3414 = vmatprep.subr.mxu0 0.0
    %3415 = vmatpush1.msra.mxu0 0.0
    %3416 = vmatprep.mubr.f32.mxu0 0.0
    %3417 = vmatmul.mubr.f32.gmra.mrb[0].mxu0 %v3351
    %v3418 = vpop.f32.mrb[0].mxu0
    %v3419 = vadd.f32 %v297, %v3418
    %v3420 = vpop.f32.mrb[0].mxu0
    %3421 = vdwg.mxu0
    %v3422 = vtanh.pop %v3419
    %3423 = vmatprep.subr.mxu0 0.0
    %3424 = vmatpush1.msra.mxu0 %v104
    %3425 = vmatprep.subr.mxu0 0.0
    %3426 = vmatpush1.msra.mxu0 %v105
    %3427 = vmatprep.subr.mxu0 0.0
    %3428 = vmatpush1.msra.mxu0 %v106
    %3429 = vmatprep.subr.mxu0 0.0
    %3430 = vmatpush1.msra.mxu0 %v107
    %3431 = vmatprep.subr.mxu0 0.0
    %3432 = vmatpush1.msra.mxu0 %v108
    %3433 = vmatprep.subr.mxu0 0.0
    %3434 = vmatpush1.msra.mxu0 %v109
    %3435 = vmatprep.subr.mxu0 0.0
    %3436 = vmatpush1.msra.mxu0 %v110
    %3437 = vmatprep.subr.mxu0 0.0
    %3438 = vmatpush1.msra.mxu0 %v111
    %3439 = vmatprep.subr.mxu0 0.0
    %3440 = vmatpush1.msra.mxu0 %v112
    %3441 = vmatprep.subr.mxu0 0.0
    %3442 = vmatpush1.msra.mxu0 %v113
    %3443 = vmatprep.subr.mxu0 0.0
    %3444 = vmatpush1.msra.mxu0 %v114
    %3445 = vmatprep.subr.mxu0 0.0
    %3446 = vmatpush1.msra.mxu0 %v115
    %3447 = vmatprep.subr.mxu0 0.0
    %3448 = vmatpush1.msra.mxu0 %v116
    %3449 = vmatprep.subr.mxu0 0.0
    %3450 = vmatpush1.msra.mxu0 %v117
    %3451 = vmatprep.subr.mxu0 0.0
    %3452 = vmatpush1.msra.mxu0 %v118
    %3453 = vmatprep.subr.mxu0 0.0
    %3454 = vmatpush1.msra.mxu0 %v119
    %3455 = vmatprep.subr.mxu0 0.0
    %3456 = vmatpush1.msra.mxu0 0.0
    %3457 = vmatprep.subr.mxu0 0.0
    %3458 = vmatpush1.msra.mxu0 0.0
    %3459 = vmatprep.subr.mxu0 0.0
    %3460 = vmatpush1.msra.mxu0 0.0
    %3461 = vmatprep.subr.mxu0 0.0
    %3462 = vmatpush1.msra.mxu0 0.0
    %3463 = vmatprep.subr.mxu0 0.0
    %3464 = vmatpush1.msra.mxu0 0.0
    %3465 = vmatprep.subr.mxu0 0.0
    %3466 = vmatpush1.msra.mxu0 0.0
    %3467 = vmatprep.subr.mxu0 0.0
    %3468 = vmatpush1.msra.mxu0 0.0
    %3469 = vmatprep.subr.mxu0 0.0
    %3470 = vmatpush1.msra.mxu0 0.0
    %3471 = vmatprep.subr.mxu0 0.0
    %3472 = vmatpush1.msra.mxu0 0.0
    %3473 = vmatprep.subr.mxu0 0.0
    %3474 = vmatpush1.msra.mxu0 0.0
    %3475 = vmatprep.subr.mxu0 0.0
    %3476 = vmatpush1.msra.mxu0 0.0
    %3477 = vmatprep.subr.mxu0 0.0
    %3478 = vmatpush1.msra.mxu0 0.0
    %3479 = vmatprep.subr.mxu0 0.0
    %3480 = vmatpush1.msra.mxu0 0.0
    %3481 = vmatprep.subr.mxu0 0.0
    %3482 = vmatpush1.msra.mxu0 0.0
    %3483 = vmatprep.subr.mxu0 0.0
    %3484 = vmatpush1.msra.mxu0 0.0
    %3485 = vmatprep.subr.mxu0 0.0
    %3486 = vmatpush1.msra.mxu0 0.0
    %3487 = vmatprep.mubr.f32.mxu0 0.0
    %3488 = vmatmul.mubr.f32.gmra.mrb[0].mxu0 %v3422
    %v3489 = vpop.f32.mrb[0].mxu0
    %v3490 = vadd.f32 %v374, %v3489
    %v3491 = vpop.f32.mrb[0].mxu0
    %3492 = vdwg.mxu0
    %v3493 = vadd.f32 %v3348, %v3490
    %v3494 = vstv %s2916
    %v3495 = vmul.f32 %v3494, %v3493
    %v3496 = vadd.f32 %v2190, %v3495
    %3497 = vmatprep.subr.mxu0 0.0
    %3498 = vmatpush1.msra.mxu0 %v87
    %3499 = vmatprep.subr.mxu0 0.0
    %3500 = vmatpush1.msra.mxu0 %v88
    %3501 = vmatprep.subr.mxu0 0.0
    %3502 = vmatpush1.msra.mxu0 %v89
    %3503 = vmatprep.subr.mxu0 0.0
    %3504 = vmatpush1.msra.mxu0 %v90
    %3505 = vmatprep.subr.mxu0 0.0
    %3506 = vmatpush1.msra.mxu0 %v91
    %3507 = vmatprep.subr.mxu0 0.0
    %3508 = vmatpush1.msra.mxu0 %v92
    %3509 = vmatprep.subr.mxu0 0.0
    %3510 = vmatpush1.msra.mxu0 %v93
    %3511 = vmatprep.subr.mxu0 0.0
    %3512 = vmatpush1.msra.mxu0 %v94
    %3513 = vmatprep.subr.mxu0 0.0
    %3514 = vmatpush1.msra.mxu0 %v95
    %3515 = vmatprep.subr.mxu0 0.0
    %3516 = vmatpush1.msra.mxu0 %v96
    %3517 = vmatprep.subr.mxu0 0.0
    %3518 = vmatpush1.msra.mxu0 %v97
    %3519 = vmatprep.subr.mxu0 0.0
    %3520 = vmatpush1.msra.mxu0 %v98
    %3521 = vmatprep.subr.mxu0 0.0
    %3522 = vmatpush1.msra.mxu0 %v99
    %3523 = vmatprep.subr.mxu0 0.0
    %3524 = vmatpush1.msra.mxu0 %v100
    %3525 = vmatprep.subr.mxu0 0.0
    %3526 = vmatpush1.msra.mxu0 %v101
    %3527 = vmatprep.subr.mxu0 0.0
    %3528 = vmatpush1.msra.mxu0 %v102
    %3529 = vmatprep.subr.mxu0 0.0
    %3530 = vmatpush1.msra.mxu0 0.0
    %3531 = vmatprep.subr.mxu0 0.0
    %3532 = vmatpush1.msra.mxu0 0.0
    %3533 = vmatprep.subr.mxu0 0.0
    %3534 = vmatpush1.msra.mxu0 0.0
    %3535 = vmatprep.subr.mxu0 0.0
    %3536 = vmatpush1.msra.mxu0 0.0
    %3537 = vmatprep.subr.mxu0 0.0
    %3538 = vmatpush1.msra.mxu0 0.0
    %3539 = vmatprep.subr.mxu0 0.0
    %3540 = vmatpush1.msra.mxu0 0.0
    %3541 = vmatprep.subr.mxu0 0.0
    %3542 = vmatpush1.msra.mxu0 0.0
    %3543 = vmatprep.subr.mxu0 0.0
    %3544 = vmatpush1.msra.mxu0 0.0
    %3545 = vmatprep.subr.mxu0 0.0
    %3546 = vmatpush1.msra.mxu0 0.0
    %3547 = vmatprep.subr.mxu0 0.0
    %3548 = vmatpush1.msra.mxu0 0.0
    %3549 = vmatprep.subr.mxu0 0.0
    %3550 = vmatpush1.msra.mxu0 0.0
    %3551 = vmatprep.subr.mxu0 0.0
    %3552 = vmatpush1.msra.mxu0 0.0
    %3553 = vmatprep.subr.mxu0 0.0
    %3554 = vmatpush1.msra.mxu0 0.0
    %3555 = vmatprep.subr.mxu0 0.0
    %3556 = vmatpush1.msra.mxu0 0.0
    %3557 = vmatprep.subr.mxu0 0.0
    %3558 = vmatpush1.msra.mxu0 0.0
    %3559 = vmatprep.subr.mxu0 0.0
    %3560 = vmatpush1.msra.mxu0 0.0
    %3561 = vmatprep.mubr.f32.mxu0 0.0
    %3562 = vmatmul.mubr.f32.gmra.mrb[0].mxu0 %v2767
    %v3563 = vpop.f32.mrb[0].mxu0
    %v3564 = vadd.f32 %v297, %v3563
    %v3565 = vpop.f32.mrb[0].mxu0
    %3566 = vdwg.mxu0
    %v3567 = vtanh.pop %v3564
    %3568 = vmatprep.subr.mxu0 0.0
    %3569 = vmatpush1.msra.mxu0 %v104
    %3570 = vmatprep.subr.mxu0 0.0
    %3571 = vmatpush1.msra.mxu0 %v105
    %3572 = vmatprep.subr.mxu0 0.0
    %3573 = vmatpush1.msra.mxu0 %v106
    %3574 = vmatprep.subr.mxu0 0.0
    %3575 = vmatpush1.msra.mxu0 %v107
    %3576 = vmatprep.subr.mxu0 0.0
    %3577 = vmatpush1.msra.mxu0 %v108
    %3578 = vmatprep.subr.mxu0 0.0
    %3579 = vmatpush1.msra.mxu0 %v109
    %3580 = vmatprep.subr.mxu0 0.0
    %3581 = vmatpush1.msra.mxu0 %v110
    %3582 = vmatprep.subr.mxu0 0.0
    %3583 = vmatpush1.msra.mxu0 %v111
    %3584 = vmatprep.subr.mxu0 0.0
    %3585 = vmatpush1.msra.mxu0 %v112
    %3586 = vmatprep.subr.mxu0 0.0
    %3587 = vmatpush1.msra.mxu0 %v113
    %3588 = vmatprep.subr.mxu0 0.0
    %3589 = vmatpush1.msra.mxu0 %v114
    %3590 = vmatprep.subr.mxu0 0.0
    %3591 = vmatpush1.msra.mxu0 %v115
    %3592 = vmatprep.subr.mxu0 0.0
    %3593 = vmatpush1.msra.mxu0 %v116
    %3594 = vmatprep.subr.mxu0 0.0
    %3595 = vmatpush1.msra.mxu0 %v117
    %3596 = vmatprep.subr.mxu0 0.0
    %3597 = vmatpush1.msra.mxu0 %v118
    %3598 = vmatprep.subr.mxu0 0.0
    %3599 = vmatpush1.msra.mxu0 %v119
    %3600 = vmatprep.subr.mxu0 0.0
    %3601 = vmatpush1.msra.mxu0 0.0
    %3602 = vmatprep.subr.mxu0 0.0
    %3603 = vmatpush1.msra.mxu0 0.0
    %3604 = vmatprep.subr.mxu0 0.0
    %3605 = vmatpush1.msra.mxu0 0.0
    %3606 = vmatprep.subr.mxu0 0.0
    %3607 = vmatpush1.msra.mxu0 0.0
    %3608 = vmatprep.subr.mxu0 0.0
    %3609 = vmatpush1.msra.mxu0 0.0
    %3610 = vmatprep.subr.mxu0 0.0
    %3611 = vmatpush1.msra.mxu0 0.0
    %3612 = vmatprep.subr.mxu0 0.0
    %3613 = vmatpush1.msra.mxu0 0.0
    %3614 = vmatprep.subr.mxu0 0.0
    %3615 = vmatpush1.msra.mxu0 0.0
    %3616 = vmatprep.subr.mxu0 0.0
    %3617 = vmatpush1.msra.mxu0 0.0
    %3618 = vmatprep.subr.mxu0 0.0
    %3619 = vmatpush1.msra.mxu0 0.0
    %3620 = vmatprep.subr.mxu0 0.0
    %3621 = vmatpush1.msra.mxu0 0.0
    %3622 = vmatprep.subr.mxu0 0.0
    %3623 = vmatpush1.msra.mxu0 0.0
    %3624 = vmatprep.subr.mxu0 0.0
    %3625 = vmatpush1.msra.mxu0 0.0
    %3626 = vmatprep.subr.mxu0 0.0
    %3627 = vmatpush1.msra.mxu0 0.0
    %3628 = vmatprep.subr.mxu0 0.0
    %3629 = vmatpush1.msra.mxu0 0.0
    %3630 = vmatprep.subr.mxu0 0.0
    %3631 = vmatpush1.msra.mxu0 0.0
    %3632 = vmatprep.mubr.f32.mxu0 0.0
    %3633 = vmatmul.mubr.f32.gmra.mrb[0].mxu0 %v3567
    %v3634 = vpop.f32.mrb[0].mxu0
    %v3635 = vadd.f32 %v374, %v3634
    %v3636 = vpop.f32.mrb[0].mxu0
    %3637 = vdwg.mxu0
    %v3638 = vmul.f32 %v3058, %v3635
    %v3639 = vadd.f32 %v2767, %v3638
    %3640 = vmatprep.subr.mxu0 0.0
    %3641 = vmatpush1.msra.mxu0 %v87
    %3642 = vmatprep.subr.mxu0 0.0
    %3643 = vmatpush1.msra.mxu0 %v88
    %3644 = vmatprep.subr.mxu0 0.0
    %3645 = vmatpush1.msra.mxu0 %v89
    %3646 = vmatprep.subr.mxu0 0.0
    %3647 = vmatpush1.msra.mxu0 %v90
    %3648 = vmatprep.subr.mxu0 0.0
    %3649 = vmatpush1.msra.mxu0 %v91
    %3650 = vmatprep.subr.mxu0 0.0
    %3651 = vmatpush1.msra.mxu0 %v92
    %3652 = vmatprep.subr.mxu0 0.0
    %3653 = vmatpush1.msra.mxu0 %v93
    %3654 = vmatprep.subr.mxu0 0.0
    %3655 = vmatpush1.msra.mxu0 %v94
    %3656 = vmatprep.subr.mxu0 0.0
    %3657 = vmatpush1.msra.mxu0 %v95
    %3658 = vmatprep.subr.mxu0 0.0
    %3659 = vmatpush1.msra.mxu0 %v96
    %3660 = vmatprep.subr.mxu0 0.0
    %3661 = vmatpush1.msra.mxu0 %v97
    %3662 = vmatprep.subr.mxu0 0.0
    %3663 = vmatpush1.msra.mxu0 %v98
    %3664 = vmatprep.subr.mxu0 0.0
    %3665 = vmatpush1.msra.mxu0 %v99
    %3666 = vmatprep.subr.mxu0 0.0
    %3667 = vmatpush1.msra.mxu0 %v100
    %3668 = vmatprep.subr.mxu0 0.0
    %3669 = vmatpush1.msra.mxu0 %v101
    %3670 = vmatprep.subr.mxu0 0.0
    %3671 = vmatpush1.msra.mxu0 %v102
    %3672 = vmatprep.subr.mxu0 0.0
    %3673 = vmatpush1.msra.mxu0 0.0
    %3674 = vmatprep.subr.mxu0 0.0
    %3675 = vmatpush1.msra.mxu0 0.0
    %3676 = vmatprep.subr.mxu0 0.0
    %3677 = vmatpush1.msra.mxu0 0.0
    %3678 = vmatprep.subr.mxu0 0.0
    %3679 = vmatpush1.msra.mxu0 0.0
    %3680 = vmatprep.subr.mxu0 0.0
    %3681 = vmatpush1.msra.mxu0 0.0
    %3682 = vmatprep.subr.mxu0 0.0
    %3683 = vmatpush1.msra.mxu0 0.0
    %3684 = vmatprep.subr.mxu0 0.0
    %3685 = vmatpush1.msra.mxu0 0.0
    %3686 = vmatprep.subr.mxu0 0.0
    %3687 = vmatpush1.msra.mxu0 0.0
    %3688 = vmatprep.subr.mxu0 0.0
    %3689 = vmatpush1.msra.mxu0 0.0
    %3690 = vmatprep.subr.mxu0 0.0
    %3691 = vmatpush1.msra.mxu0 0.0
    %3692 = vmatprep.subr.mxu0 0.0
    %3693 = vmatpush1.msra.mxu0 0.0
    %3694 = vmatprep.subr.mxu0 0.0
    %3695 = vmatpush1.msra.mxu0 0.0
    %3696 = vmatprep.subr.mxu0 0.0
    %3697 = vmatpush1.msra.mxu0 0.0
    %3698 = vmatprep.subr.mxu0 0.0
    %3699 = vmatpush1.msra.mxu0 0.0
    %3700 = vmatprep.subr.mxu0 0.0
    %3701 = vmatpush1.msra.mxu0 0.0
    %3702 = vmatprep.subr.mxu0 0.0
    %3703 = vmatpush1.msra.mxu0 0.0
    %3704 = vmatprep.mubr.f32.mxu0 0.0
    %3705 = vmatmul.mubr.f32.gmra.mrb[0].mxu0 %v3639
    %v3706 = vpop.f32.mrb[0].mxu0
    %v3707 = vadd.f32 %v297, %v3706
    %v3708 = vpop.f32.mrb[0].mxu0
    %3709 = vdwg.mxu0
    %v3710 = vtanh.pop %v3707
    %3711 = vmatprep.subr.mxu0 0.0
    %3712 = vmatpush1.msra.mxu0 %v104
    %3713 = vmatprep.subr.mxu0 0.0
    %3714 = vmatpush1.msra.mxu0 %v105
    %3715 = vmatprep.subr.mxu0 0.0
    %3716 = vmatpush1.msra.mxu0 %v106
    %3717 = vmatprep.subr.mxu0 0.0
    %3718 = vmatpush1.msra.mxu0 %v107
    %3719 = vmatprep.subr.mxu0 0.0
    %3720 = vmatpush1.msra.mxu0 %v108
    %3721 = vmatprep.subr.mxu0 0.0
    %3722 = vmatpush1.msra.mxu0 %v109
    %3723 = vmatprep.subr.mxu0 0.0
    %3724 = vmatpush1.msra.mxu0 %v110
    %3725 = vmatprep.subr.mxu0 0.0
    %3726 = vmatpush1.msra.mxu0 %v111
    %3727 = vmatprep.subr.mxu0 0.0
    %3728 = vmatpush1.msra.mxu0 %v112
    %3729 = vmatprep.subr.mxu0 0.0
    %3730 = vmatpush1.msra.mxu0 %v113
    %3731 = vmatprep.subr.mxu0 0.0
    %3732 = vmatpush1.msra.mxu0 %v114
    %3733 = vmatprep.subr.mxu0 0.0
    %3734 = vmatpush1.msra.mxu0 %v115
    %3735 = vmatprep.subr.mxu0 0.0
    %3736 = vmatpush1.msra.mxu0 %v116
    %3737 = vmatprep.subr.mxu0 0.0
    %3738 = vmatpush1.msra.mxu0 %v117
    %3739 = vmatprep.subr.mxu0 0.0
    %3740 = vmatpush1.msra.mxu0 %v118
    %3741 = vmatprep.subr.mxu0 0.0
    %3742 = vmatpush1.msra.mxu0 %v119
    %3743 = vmatprep.subr.mxu0 0.0
    %3744 = vmatpush1.msra.mxu0 0.0
    %3745 = vmatprep.subr.mxu0 0.0
    %3746 = vmatpush1.msra.mxu0 0.0
    %3747 = vmatprep.subr.mxu0 0.0
    %3748 = vmatpush1.msra.mxu0 0.0
    %3749 = vmatprep.subr.mxu0 0.0
    %3750 = vmatpush1.msra.mxu0 0.0
    %3751 = vmatprep.subr.mxu0 0.0
    %3752 = vmatpush1.msra.mxu0 0.0
    %3753 = vmatprep.subr.mxu0 0.0
    %3754 = vmatpush1.msra.mxu0 0.0
    %3755 = vmatprep.subr.mxu0 0.0
    %3756 = vmatpush1.msra.mxu0 0.0
    %3757 = vmatprep.subr.mxu0 0.0
    %3758 = vmatpush1.msra.mxu0 0.0
    %3759 = vmatprep.subr.mxu0 0.0
    %3760 = vmatpush1.msra.mxu0 0.0
    %3761 = vmatprep.subr.mxu0 0.0
    %3762 = vmatpush1.msra.mxu0 0.0
    %3763 = vmatprep.subr.mxu0 0.0
    %3764 = vmatpush1.msra.mxu0 0.0
    %3765 = vmatprep.subr.mxu0 0.0
    %3766 = vmatpush1.msra.mxu0 0.0
    %3767 = vmatprep.subr.mxu0 0.0
    %3768 = vmatpush1.msra.mxu0 0.0
    %3769 = vmatprep.subr.mxu0 0.0
    %3770 = vmatpush1.msra.mxu0 0.0
    %3771 = vmatprep.subr.mxu0 0.0
    %3772 = vmatpush1.msra.mxu0 0.0
    %3773 = vmatprep.subr.mxu0 0.0
    %3774 = vmatpush1.msra.mxu0 0.0
    %3775 = vmatprep.mubr.f32.mxu0 0.0
    %3776 = vmatmul.mubr.f32.gmra.mrb[0].mxu0 %v3710
    %v3777 = vpop.f32.mrb[0].mxu0
    %v3778 = vadd.f32 %v374, %v3777
    %v3779 = vpop.f32.mrb[0].mxu0
    %3780 = vdwg.mxu0
    %v3781 = vmul.f32 %v3778, 2.0
    %v3782 = vadd.f32 %v3635, %v3781
    %v3783 = vmul.f32 %v3058, %v3778
    %v3784 = vadd.f32 %v2767, %v3783
    %3785 = vmatprep.subr.mxu0 0.0
    %3786 = vmatpush1.msra.mxu0 %v87
    %3787 = vmatprep.subr.mxu0 0.0
    %3788 = vmatpush1.msra.mxu0 %v88
    %3789 = vmatprep.subr.mxu0 0.0
    %3790 = vmatpush1.msra.mxu0 %v89
    %3791 = vmatprep.subr.mxu0 0.0
    %3792 = vmatpush1.msra.mxu0 %v90
    %3793 = vmatprep.subr.mxu0 0.0
    %3794 = vmatpush1.msra.mxu0 %v91
    %3795 = vmatprep.subr.mxu0 0.0
    %3796 = vmatpush1.msra.mxu0 %v92
    %3797 = vmatprep.subr.mxu0 0.0
    %3798 = vmatpush1.msra.mxu0 %v93
    %3799 = vmatprep.subr.mxu0 0.0
    %3800 = vmatpush1.msra.mxu0 %v94
    %3801 = vmatprep.subr.mxu0 0.0
    %3802 = vmatpush1.msra.mxu0 %v95
    %3803 = vmatprep.subr.mxu0 0.0
    %3804 = vmatpush1.msra.mxu0 %v96
    %3805 = vmatprep.subr.mxu0 0.0
    %3806 = vmatpush1.msra.mxu0 %v97
    %3807 = vmatprep.subr.mxu0 0.0
    %3808 = vmatpush1.msra.mxu0 %v98
    %3809 = vmatprep.subr.mxu0 0.0
    %3810 = vmatpush1.msra.mxu0 %v99
    %3811 = vmatprep.subr.mxu0 0.0
    %3812 = vmatpush1.msra.mxu0 %v100
    %3813 = vmatprep.subr.mxu0 0.0
    %3814 = vmatpush1.msra.mxu0 %v101
    %3815 = vmatprep.subr.mxu0 0.0
    %3816 = vmatpush1.msra.mxu0 %v102
    %3817 = vmatprep.subr.mxu0 0.0
    %3818 = vmatpush1.msra.mxu0 0.0
    %3819 = vmatprep.subr.mxu0 0.0
    %3820 = vmatpush1.msra.mxu0 0.0
    %3821 = vmatprep.subr.mxu0 0.0
    %3822 = vmatpush1.msra.mxu0 0.0
    %3823 = vmatprep.subr.mxu0 0.0
    %3824 = vmatpush1.msra.mxu0 0.0
    %3825 = vmatprep.subr.mxu0 0.0
    %3826 = vmatpush1.msra.mxu0 0.0
    %3827 = vmatprep.subr.mxu0 0.0
    %3828 = vmatpush1.msra.mxu0 0.0
    %3829 = vmatprep.subr.mxu0 0.0
    %3830 = vmatpush1.msra.mxu0 0.0
    %3831 = vmatprep.subr.mxu0 0.0
    %3832 = vmatpush1.msra.mxu0 0.0
    %3833 = vmatprep.subr.mxu0 0.0
    %3834 = vmatpush1.msra.mxu0 0.0
    %3835 = vmatprep.subr.mxu0 0.0
    %3836 = vmatpush1.msra.mxu0 0.0
    %3837 = vmatprep.subr.mxu0 0.0
    %3838 = vmatpush1.msra.mxu0 0.0
    %3839 = vmatprep.subr.mxu0 0.0
    %3840 = vmatpush1.msra.mxu0 0.0
    %3841 = vmatprep.subr.mxu0 0.0
    %3842 = vmatpush1.msra.mxu0 0.0
    %3843 = vmatprep.subr.mxu0 0.0
    %3844 = vmatpush1.msra.mxu0 0.0
    %3845 = vmatprep.subr.mxu0 0.0
    %3846 = vmatpush1.msra.mxu0 0.0
    %3847 = vmatprep.subr.mxu0 0.0
    %3848 = vmatpush1.msra.mxu0 0.0
    %3849 = vmatprep.mubr.f32.mxu0 0.0
    %3850 = vmatmul.mubr.f32.gmra.mrb[0].mxu0 %v3784
    %v3851 = vpop.f32.mrb[0].mxu0
    %v3852 = vadd.f32 %v297, %v3851
    %v3853 = vpop.f32.mrb[0].mxu0
    %3854 = vdwg.mxu0
    %v3855 = vtanh.pop %v3852
    %3856 = vmatprep.subr.mxu0 0.0
    %3857 = vmatpush1.msra.mxu0 %v104
    %3858 = vmatprep.subr.mxu0 0.0
    %3859 = vmatpush1.msra.mxu0 %v105
    %3860 = vmatprep.subr.mxu0 0.0
    %3861 = vmatpush1.msra.mxu0 %v106
    %3862 = vmatprep.subr.mxu0 0.0
    %3863 = vmatpush1.msra.mxu0 %v107
    %3864 = vmatprep.subr.mxu0 0.0
    %3865 = vmatpush1.msra.mxu0 %v108
    %3866 = vmatprep.subr.mxu0 0.0
    %3867 = vmatpush1.msra.mxu0 %v109
    %3868 = vmatprep.subr.mxu0 0.0
    %3869 = vmatpush1.msra.mxu0 %v110
    %3870 = vmatprep.subr.mxu0 0.0
    %3871 = vmatpush1.msra.mxu0 %v111
    %3872 = vmatprep.subr.mxu0 0.0
    %3873 = vmatpush1.msra.mxu0 %v112
    %3874 = vmatprep.subr.mxu0 0.0
    %3875 = vmatpush1.msra.mxu0 %v113
    %3876 = vmatprep.subr.mxu0 0.0
    %3877 = vmatpush1.msra.mxu0 %v114
    %3878 = vmatprep.subr.mxu0 0.0
    %3879 = vmatpush1.msra.mxu0 %v115
    %3880 = vmatprep.subr.mxu0 0.0
    %3881 = vmatpush1.msra.mxu0 %v116
    %3882 = vmatprep.subr.mxu0 0.0
    %3883 = vmatpush1.msra.mxu0 %v117
    %3884 = vmatprep.subr.mxu0 0.0
    %3885 = vmatpush1.msra.mxu0 %v118
    %3886 = vmatprep.subr.mxu0 0.0
    %3887 = vmatpush1.msra.mxu0 %v119
    %3888 = vmatprep.subr.mxu0 0.0
    %3889 = vmatpush1.msra.mxu0 0.0
    %3890 = vmatprep.subr.mxu0 0.0
    %3891 = vmatpush1.msra.mxu0 0.0
    %3892 = vmatprep.subr.mxu0 0.0
    %3893 = vmatpush1.msra.mxu0 0.0
    %3894 = vmatprep.subr.mxu0 0.0
    %3895 = vmatpush1.msra.mxu0 0.0
    %3896 = vmatprep.subr.mxu0 0.0
    %3897 = vmatpush1.msra.mxu0 0.0
    %3898 = vmatprep.subr.mxu0 0.0
    %3899 = vmatpush1.msra.mxu0 0.0
    %3900 = vmatprep.subr.mxu0 0.0
    %3901 = vmatpush1.msra.mxu0 0.0
    %3902 = vmatprep.subr.mxu0 0.0
    %3903 = vmatpush1.msra.mxu0 0.0
    %3904 = vmatprep.subr.mxu0 0.0
    %3905 = vmatpush1.msra.mxu0 0.0
    %3906 = vmatprep.subr.mxu0 0.0
    %3907 = vmatpush1.msra.mxu0 0.0
    %3908 = vmatprep.subr.mxu0 0.0
    %3909 = vmatpush1.msra.mxu0 0.0
    %3910 = vmatprep.subr.mxu0 0.0
    %3911 = vmatpush1.msra.mxu0 0.0
    %3912 = vmatprep.subr.mxu0 0.0
    %3913 = vmatpush1.msra.mxu0 0.0
    %3914 = vmatprep.subr.mxu0 0.0
    %3915 = vmatpush1.msra.mxu0 0.0
    %3916 = vmatprep.subr.mxu0 0.0
    %3917 = vmatpush1.msra.mxu0 0.0
    %3918 = vmatprep.subr.mxu0 0.0
    %3919 = vmatpush1.msra.mxu0 0.0
    %3920 = vmatprep.mubr.f32.mxu0 0.0
    %3921 = vmatmul.mubr.f32.gmra.mrb[0].mxu0 %v3855
    %v3922 = vpop.f32.mrb[0].mxu0
    %v3923 = vadd.f32 %v374, %v3922
    %v3924 = vpop.f32.mrb[0].mxu0
    %3925 = vdwg.mxu0
    %v3926 = vmul.f32 %v3923, 2.0
    %v3927 = vadd.f32 %v3782, %v3926
    %v3928 = vmul.f32 %v3349, %v3923
    %v3929 = vadd.f32 %v2767, %v3928
    %3930 = vmatprep.subr.mxu0 0.0
    %3931 = vmatpush1.msra.mxu0 %v87
    %3932 = vmatprep.subr.mxu0 0.0
    %3933 = vmatpush1.msra.mxu0 %v88
    %3934 = vmatprep.subr.mxu0 0.0
    %3935 = vmatpush1.msra.mxu0 %v89
    %3936 = vmatprep.subr.mxu0 0.0
    %3937 = vmatpush1.msra.mxu0 %v90
    %3938 = vmatprep.subr.mxu0 0.0
    %3939 = vmatpush1.msra.mxu0 %v91
    %3940 = vmatprep.subr.mxu0 0.0
    %3941 = vmatpush1.msra.mxu0 %v92
    %3942 = vmatprep.subr.mxu0 0.0
    %3943 = vmatpush1.msra.mxu0 %v93
    %3944 = vmatprep.subr.mxu0 0.0
    %3945 = vmatpush1.msra.mxu0 %v94
    %3946 = vmatprep.subr.mxu0 0.0
    %3947 = vmatpush1.msra.mxu0 %v95
    %3948 = vmatprep.subr.mxu0 0.0
    %3949 = vmatpush1.msra.mxu0 %v96
    %3950 = vmatprep.subr.mxu0 0.0
    %3951 = vmatpush1.msra.mxu0 %v97
    %3952 = vmatprep.subr.mxu0 0.0
    %3953 = vmatpush1.msra.mxu0 %v98
    %3954 = vmatprep.subr.mxu0 0.0
    %3955 = vmatpush1.msra.mxu0 %v99
    %3956 = vmatprep.subr.mxu0 0.0
    %3957 = vmatpush1.msra.mxu0 %v100
    %3958 = vmatprep.subr.mxu0 0.0
    %3959 = vmatpush1.msra.mxu0 %v101
    %3960 = vmatprep.subr.mxu0 0.0
    %3961 = vmatpush1.msra.mxu0 %v102
    %3962 = vmatprep.subr.mxu0 0.0
    %3963 = vmatpush1.msra.mxu0 0.0
    %3964 = vmatprep.subr.mxu0 0.0
    %3965 = vmatpush1.msra.mxu0 0.0
    %3966 = vmatprep.subr.mxu0 0.0
    %3967 = vmatpush1.msra.mxu0 0.0
    %3968 = vmatprep.subr.mxu0 0.0
    %3969 = vmatpush1.msra.mxu0 0.0
    %3970 = vmatprep.subr.mxu0 0.0
    %3971 = vmatpush1.msra.mxu0 0.0
    %3972 = vmatprep.subr.mxu0 0.0
    %3973 = vmatpush1.msra.mxu0 0.0
    %3974 = vmatprep.subr.mxu0 0.0
    %3975 = vmatpush1.msra.mxu0 0.0
    %3976 = vmatprep.subr.mxu0 0.0
    %3977 = vmatpush1.msra.mxu0 0.0
    %3978 = vmatprep.subr.mxu0 0.0
    %3979 = vmatpush1.msra.mxu0 0.0
    %3980 = vmatprep.subr.mxu0 0.0
    %3981 = vmatpush1.msra.mxu0 0.0
    %3982 = vmatprep.subr.mxu0 0.0
    %3983 = vmatpush1.msra.mxu0 0.0
    %3984 = vmatprep.subr.mxu0 0.0
    %3985 = vmatpush1.msra.mxu0 0.0
    %3986 = vmatprep.subr.mxu0 0.0
    %3987 = vmatpush1.msra.mxu0 0.0
    %3988 = vmatprep.subr.mxu0 0.0
    %3989 = vmatpush1.msra.mxu0 0.0
    %3990 = vmatprep.subr.mxu0 0.0
    %3991 = vmatpush1.msra.mxu0 0.0
    %3992 = vmatprep.subr.mxu0 0.0
    %3993 = vmatpush1.msra.mxu0 0.0
    %3994 = vmatprep.mubr.f32.mxu0 0.0
    %3995 = vmatmul.mubr.f32.gmra.mrb[0].mxu0 %v3929
    %v3996 = vpop.f32.mrb[0].mxu0
    %v3997 = vadd.f32 %v297, %v3996
    %v3998 = vpop.f32.mrb[0].mxu0
    %3999 = vdwg.mxu0
    %v4000 = vtanh.pop %v3997
    %4001 = vmatprep.subr.mxu0 0.0
    %4002 = vmatpush1.msra.mxu0 %v104
    %4003 = vmatprep.subr.mxu0 0.0
    %4004 = vmatpush1.msra.mxu0 %v105
    %4005 = vmatprep.subr.mxu0 0.0
    %4006 = vmatpush1.msra.mxu0 %v106
    %4007 = vmatprep.subr.mxu0 0.0
    %4008 = vmatpush1.msra.mxu0 %v107
    %4009 = vmatprep.subr.mxu0 0.0
    %4010 = vmatpush1.msra.mxu0 %v108
    %4011 = vmatprep.subr.mxu0 0.0
    %4012 = vmatpush1.msra.mxu0 %v109
    %4013 = vmatprep.subr.mxu0 0.0
    %4014 = vmatpush1.msra.mxu0 %v110
    %4015 = vmatprep.subr.mxu0 0.0
    %4016 = vmatpush1.msra.mxu0 %v111
    %4017 = vmatprep.subr.mxu0 0.0
    %4018 = vmatpush1.msra.mxu0 %v112
    %4019 = vmatprep.subr.mxu0 0.0
    %4020 = vmatpush1.msra.mxu0 %v113
    %4021 = vmatprep.subr.mxu0 0.0
    %4022 = vmatpush1.msra.mxu0 %v114
    %4023 = vmatprep.subr.mxu0 0.0
    %4024 = vmatpush1.msra.mxu0 %v115
    %4025 = vmatprep.subr.mxu0 0.0
    %4026 = vmatpush1.msra.mxu0 %v116
    %4027 = vmatprep.subr.mxu0 0.0
    %4028 = vmatpush1.msra.mxu0 %v117
    %4029 = vmatprep.subr.mxu0 0.0
    %4030 = vmatpush1.msra.mxu0 %v118
    %4031 = vmatprep.subr.mxu0 0.0
    %4032 = vmatpush1.msra.mxu0 %v119
    %4033 = vmatprep.subr.mxu0 0.0
    %4034 = vmatpush1.msra.mxu0 0.0
    %4035 = vmatprep.subr.mxu0 0.0
    %4036 = vmatpush1.msra.mxu0 0.0
    %4037 = vmatprep.subr.mxu0 0.0
    %4038 = vmatpush1.msra.mxu0 0.0
    %4039 = vmatprep.subr.mxu0 0.0
    %4040 = vmatpush1.msra.mxu0 0.0
    %4041 = vmatprep.subr.mxu0 0.0
    %4042 = vmatpush1.msra.mxu0 0.0
    %4043 = vmatprep.subr.mxu0 0.0
    %4044 = vmatpush1.msra.mxu0 0.0
    %4045 = vmatprep.subr.mxu0 0.0
    %4046 = vmatpush1.msra.mxu0 0.0
    %4047 = vmatprep.subr.mxu0 0.0
    %4048 = vmatpush1.msra.mxu0 0.0
    %4049 = vmatprep.subr.mxu0 0.0
    %4050 = vmatpush1.msra.mxu0 0.0
    %4051 = vmatprep.subr.mxu0 0.0
    %4052 = vmatpush1.msra.mxu0 0.0
    %4053 = vmatprep.subr.mxu0 0.0
    %4054 = vmatpush1.msra.mxu0 0.0
    %4055 = vmatprep.subr.mxu0 0.0
    %4056 = vmatpush1.msra.mxu0 0.0
    %4057 = vmatprep.subr.mxu0 0.0
    %4058 = vmatpush1.msra.mxu0 0.0
    %4059 = vmatprep.subr.mxu0 0.0
    %4060 = vmatpush1.msra.mxu0 0.0
    %4061 = vmatprep.subr.mxu0 0.0
    %4062 = vmatpush1.msra.mxu0 0.0
    %4063 = vmatprep.subr.mxu0 0.0
    %4064 = vmatpush1.msra.mxu0 0.0
    %4065 = vmatprep.mubr.f32.mxu0 0.0
    %4066 = vmatmul.mubr.f32.gmra.mrb[0].mxu0 %v4000
    %v4067 = vpop.f32.mrb[0].mxu0
    %v4068 = vadd.f32 %v374, %v4067
    %v4069 = vpop.f32.mrb[0].mxu0
    %4070 = vdwg.mxu0
    %v4071 = vadd.f32 %v3927, %v4068
    %v4072 = vmul.f32 %v3494, %v4071
    %v4073 = vadd.f32 %v2767, %v4072
    %4074 = vmatprep.subr.mxu0 0.0
    %4075 = vmatpush1.msra.mxu0 %v122
    %4076 = vmatprep.subr.mxu0 0.0
    %4077 = vmatpush1.msra.mxu0 %v123
    %4078 = vmatprep.subr.mxu0 0.0
    %4079 = vmatpush1.msra.mxu0 %v124
    %4080 = vmatprep.subr.mxu0 0.0
    %4081 = vmatpush1.msra.mxu0 %v125
    %4082 = vmatprep.subr.mxu0 0.0
    %4083 = vmatpush1.msra.mxu0 %v126
    %4084 = vmatprep.subr.mxu0 0.0
    %4085 = vmatpush1.msra.mxu0 %v127
    %4086 = vmatprep.subr.mxu0 0.0
    %4087 = vmatpush1.msra.mxu0 %v128
    %4088 = vmatprep.subr.mxu0 0.0
    %4089 = vmatpush1.msra.mxu0 %v129
    %4090 = vmatprep.subr.mxu0 0.0
    %4091 = vmatpush1.msra.mxu0 %v130
    %4092 = vmatprep.subr.mxu0 0.0
    %4093 = vmatpush1.msra.mxu0 %v131
    %4094 = vmatprep.subr.mxu0 0.0
    %4095 = vmatpush1.msra.mxu0 %v132
    %4096 = vmatprep.subr.mxu0 0.0
    %4097 = vmatpush1.msra.mxu0 %v133
    %4098 = vmatprep.subr.mxu0 0.0
    %4099 = vmatpush1.msra.mxu0 %v134
    %4100 = vmatprep.subr.mxu0 0.0
    %4101 = vmatpush1.msra.mxu0 %v135
    %4102 = vmatprep.subr.mxu0 0.0
    %4103 = vmatpush1.msra.mxu0 %v136
    %4104 = vmatprep.subr.mxu0 0.0
    %4105 = vmatpush1.msra.mxu0 %v137
    %4106 = vmatprep.subr.mxu0 0.0
    %4107 = vmatpush1.msra.mxu0 0.0
    %4108 = vmatprep.subr.mxu0 0.0
    %4109 = vmatpush1.msra.mxu0 0.0
    %4110 = vmatprep.subr.mxu0 0.0
    %4111 = vmatpush1.msra.mxu0 0.0
    %4112 = vmatprep.subr.mxu0 0.0
    %4113 = vmatpush1.msra.mxu0 0.0
    %4114 = vmatprep.subr.mxu0 0.0
    %4115 = vmatpush1.msra.mxu0 0.0
    %4116 = vmatprep.subr.mxu0 0.0
    %4117 = vmatpush1.msra.mxu0 0.0
    %4118 = vmatprep.subr.mxu0 0.0
    %4119 = vmatpush1.msra.mxu0 0.0
    %4120 = vmatprep.subr.mxu0 0.0
    %4121 = vmatpush1.msra.mxu0 0.0
    %4122 = vmatprep.subr.mxu0 0.0
    %4123 = vmatpush1.msra.mxu0 0.0
    %4124 = vmatprep.subr.mxu0 0.0
    %4125 = vmatpush1.msra.mxu0 0.0
    %4126 = vmatprep.subr.mxu0 0.0
    %4127 = vmatpush1.msra.mxu0 0.0
    %4128 = vmatprep.subr.mxu0 0.0
    %4129 = vmatpush1.msra.mxu0 0.0
    %4130 = vmatprep.subr.mxu0 0.0
    %4131 = vmatpush1.msra.mxu0 0.0
    %4132 = vmatprep.subr.mxu0 0.0
    %4133 = vmatpush1.msra.mxu0 0.0
    %4134 = vmatprep.subr.mxu0 0.0
    %4135 = vmatpush1.msra.mxu0 0.0
    %4136 = vmatprep.subr.mxu0 0.0
    %4137 = vmatpush1.msra.mxu0 0.0
    %4138 = vmatprep.mubr.f32.mxu0 0.0
    %4139 = vmatmul.mubr.f32.gmra.mrb[0].mxu0 %v3496
    %v4140 = vpop.f32.mrb[0].mxu0
    %v4141 = vadd.f32 %v143, %v4140
    %v4142 = vpop.f32.mrb[0].mxu0
    %4143 = vdwg.mxu0
    %s4144 = scalar_lea.vmem [#allocation12], 48
    %4145 = vst [vmem:[%s4144] sm:$0xff] %v4141
    %4146 = vmatprep.subr.mxu0 0.0
    %4147 = vmatpush1.msra.mxu0 %v122
    %4148 = vmatprep.subr.mxu0 0.0
    %4149 = vmatpush1.msra.mxu0 %v123
    %4150 = vmatprep.subr.mxu0 0.0
    %4151 = vmatpush1.msra.mxu0 %v124
    %4152 = vmatprep.subr.mxu0 0.0
    %4153 = vmatpush1.msra.mxu0 %v125
    %4154 = vmatprep.subr.mxu0 0.0
    %4155 = vmatpush1.msra.mxu0 %v126
    %4156 = vmatprep.subr.mxu0 0.0
    %4157 = vmatpush1.msra.mxu0 %v127
    %4158 = vmatprep.subr.mxu0 0.0
    %4159 = vmatpush1.msra.mxu0 %v128
    %4160 = vmatprep.subr.mxu0 0.0
    %4161 = vmatpush1.msra.mxu0 %v129
    %4162 = vmatprep.subr.mxu0 0.0
    %4163 = vmatpush1.msra.mxu0 %v130
    %4164 = vmatprep.subr.mxu0 0.0
    %4165 = vmatpush1.msra.mxu0 %v131
    %4166 = vmatprep.subr.mxu0 0.0
    %4167 = vmatpush1.msra.mxu0 %v132
    %4168 = vmatprep.subr.mxu0 0.0
    %4169 = vmatpush1.msra.mxu0 %v133
    %4170 = vmatprep.subr.mxu0 0.0
    %4171 = vmatpush1.msra.mxu0 %v134
    %4172 = vmatprep.subr.mxu0 0.0
    %4173 = vmatpush1.msra.mxu0 %v135
    %4174 = vmatprep.subr.mxu0 0.0
    %4175 = vmatpush1.msra.mxu0 %v136
    %4176 = vmatprep.subr.mxu0 0.0
    %4177 = vmatpush1.msra.mxu0 %v137
    %4178 = vmatprep.subr.mxu0 0.0
    %4179 = vmatpush1.msra.mxu0 0.0
    %4180 = vmatprep.subr.mxu0 0.0
    %4181 = vmatpush1.msra.mxu0 0.0
    %4182 = vmatprep.subr.mxu0 0.0
    %4183 = vmatpush1.msra.mxu0 0.0
    %4184 = vmatprep.subr.mxu0 0.0
    %4185 = vmatpush1.msra.mxu0 0.0
    %4186 = vmatprep.subr.mxu0 0.0
    %4187 = vmatpush1.msra.mxu0 0.0
    %4188 = vmatprep.subr.mxu0 0.0
    %4189 = vmatpush1.msra.mxu0 0.0
    %4190 = vmatprep.subr.mxu0 0.0
    %4191 = vmatpush1.msra.mxu0 0.0
    %4192 = vmatprep.subr.mxu0 0.0
    %4193 = vmatpush1.msra.mxu0 0.0
    %4194 = vmatprep.subr.mxu0 0.0
    %4195 = vmatpush1.msra.mxu0 0.0
    %4196 = vmatprep.subr.mxu0 0.0
    %4197 = vmatpush1.msra.mxu0 0.0
    %4198 = vmatprep.subr.mxu0 0.0
    %4199 = vmatpush1.msra.mxu0 0.0
    %4200 = vmatprep.subr.mxu0 0.0
    %4201 = vmatpush1.msra.mxu0 0.0
    %4202 = vmatprep.subr.mxu0 0.0
    %4203 = vmatpush1.msra.mxu0 0.0
    %4204 = vmatprep.subr.mxu0 0.0
    %4205 = vmatpush1.msra.mxu0 0.0
    %4206 = vmatprep.subr.mxu0 0.0
    %4207 = vmatpush1.msra.mxu0 0.0
    %4208 = vmatprep.subr.mxu0 0.0
    %4209 = vmatpush1.msra.mxu0 0.0
    %4210 = vmatprep.mubr.f32.mxu0 0.0
    %4211 = vmatmul.mubr.f32.gmra.mrb[0].mxu0 %v4073
    %v4212 = vpop.f32.mrb[0].mxu0
    %v4213 = vadd.f32 %v143, %v4212
    %v4214 = vpop.f32.mrb[0].mxu0
    %4215 = vdwg.mxu0
    %s4216 = scalar_lea.vmem [#allocation12], 56
    %4217 = vst [vmem:[%s4216] sm:$0xff] %v4213
    %s4218 = sld [smem:[#allocation3 + $0x3]]
    %s4219 = smul.f32 %s4218, 0.5
    %v4220 = vrcp.pop 6.0
    %s4221 = vtos %v4220
    %s4222 = smul.f32 %s4218, %s4221
    %4223 = vmatprep.subr.mxu0 0.0
    %4224 = vmatpush1.msra.mxu0 %v87
    %4225 = vmatprep.subr.mxu0 0.0
    %4226 = vmatpush1.msra.mxu0 %v88
    %4227 = vmatprep.subr.mxu0 0.0
    %4228 = vmatpush1.msra.mxu0 %v89
    %4229 = vmatprep.subr.mxu0 0.0
    %4230 = vmatpush1.msra.mxu0 %v90
    %4231 = vmatprep.subr.mxu0 0.0
    %4232 = vmatpush1.msra.mxu0 %v91
    %4233 = vmatprep.subr.mxu0 0.0
    %4234 = vmatpush1.msra.mxu0 %v92
    %4235 = vmatprep.subr.mxu0 0.0
    %4236 = vmatpush1.msra.mxu0 %v93
    %4237 = vmatprep.subr.mxu0 0.0
    %4238 = vmatpush1.msra.mxu0 %v94
    %4239 = vmatprep.subr.mxu0 0.0
    %4240 = vmatpush1.msra.mxu0 %v95
    %4241 = vmatprep.subr.mxu0 0.0
    %4242 = vmatpush1.msra.mxu0 %v96
    %4243 = vmatprep.subr.mxu0 0.0
    %4244 = vmatpush1.msra.mxu0 %v97
    %4245 = vmatprep.subr.mxu0 0.0
    %4246 = vmatpush1.msra.mxu0 %v98
    %4247 = vmatprep.subr.mxu0 0.0
    %4248 = vmatpush1.msra.mxu0 %v99
    %4249 = vmatprep.subr.mxu0 0.0
    %4250 = vmatpush1.msra.mxu0 %v100
    %4251 = vmatprep.subr.mxu0 0.0
    %4252 = vmatpush1.msra.mxu0 %v101
    %4253 = vmatprep.subr.mxu0 0.0
    %4254 = vmatpush1.msra.mxu0 %v102
    %4255 = vmatprep.subr.mxu0 0.0
    %4256 = vmatpush1.msra.mxu0 0.0
    %4257 = vmatprep.subr.mxu0 0.0
    %4258 = vmatpush1.msra.mxu0 0.0
    %4259 = vmatprep.subr.mxu0 0.0
    %4260 = vmatpush1.msra.mxu0 0.0
    %4261 = vmatprep.subr.mxu0 0.0
    %4262 = vmatpush1.msra.mxu0 0.0
    %4263 = vmatprep.subr.mxu0 0.0
    %4264 = vmatpush1.msra.mxu0 0.0
    %4265 = vmatprep.subr.mxu0 0.0
    %4266 = vmatpush1.msra.mxu0 0.0
    %4267 = vmatprep.subr.mxu0 0.0
    %4268 = vmatpush1.msra.mxu0 0.0
    %4269 = vmatprep.subr.mxu0 0.0
    %4270 = vmatpush1.msra.mxu0 0.0
    %4271 = vmatprep.subr.mxu0 0.0
    %4272 = vmatpush1.msra.mxu0 0.0
    %4273 = vmatprep.subr.mxu0 0.0
    %4274 = vmatpush1.msra.mxu0 0.0
    %4275 = vmatprep.subr.mxu0 0.0
    %4276 = vmatpush1.msra.mxu0 0.0
    %4277 = vmatprep.subr.mxu0 0.0
    %4278 = vmatpush1.msra.mxu0 0.0
    %4279 = vmatprep.subr.mxu0 0.0
    %4280 = vmatpush1.msra.mxu0 0.0
    %4281 = vmatprep.subr.mxu0 0.0
    %4282 = vmatpush1.msra.mxu0 0.0
    %4283 = vmatprep.subr.mxu0 0.0
    %4284 = vmatpush1.msra.mxu0 0.0
    %4285 = vmatprep.subr.mxu0 0.0
    %4286 = vmatpush1.msra.mxu0 0.0
    %4287 = vmatprep.mubr.f32.mxu0 0.0
    %4288 = vmatmul.mubr.f32.gmra.mrb[0].mxu0 %v3496
    %v4289 = vpop.f32.mrb[0].mxu0
    %v4290 = vadd.f32 %v297, %v4289
    %v4291 = vpop.f32.mrb[0].mxu0
    %4292 = vdwg.mxu0
    %v4293 = vtanh.pop %v4290
    %4294 = vmatprep.subr.mxu0 0.0
    %4295 = vmatpush1.msra.mxu0 %v104
    %4296 = vmatprep.subr.mxu0 0.0
    %4297 = vmatpush1.msra.mxu0 %v105
    %4298 = vmatprep.subr.mxu0 0.0
    %4299 = vmatpush1.msra.mxu0 %v106
    %4300 = vmatprep.subr.mxu0 0.0
    %4301 = vmatpush1.msra.mxu0 %v107
    %4302 = vmatprep.subr.mxu0 0.0
    %4303 = vmatpush1.msra.mxu0 %v108
    %4304 = vmatprep.subr.mxu0 0.0
    %4305 = vmatpush1.msra.mxu0 %v109
    %4306 = vmatprep.subr.mxu0 0.0
    %4307 = vmatpush1.msra.mxu0 %v110
    %4308 = vmatprep.subr.mxu0 0.0
    %4309 = vmatpush1.msra.mxu0 %v111
    %4310 = vmatprep.subr.mxu0 0.0
    %4311 = vmatpush1.msra.mxu0 %v112
    %4312 = vmatprep.subr.mxu0 0.0
    %4313 = vmatpush1.msra.mxu0 %v113
    %4314 = vmatprep.subr.mxu0 0.0
    %4315 = vmatpush1.msra.mxu0 %v114
    %4316 = vmatprep.subr.mxu0 0.0
    %4317 = vmatpush1.msra.mxu0 %v115
    %4318 = vmatprep.subr.mxu0 0.0
    %4319 = vmatpush1.msra.mxu0 %v116
    %4320 = vmatprep.subr.mxu0 0.0
    %4321 = vmatpush1.msra.mxu0 %v117
    %4322 = vmatprep.subr.mxu0 0.0
    %4323 = vmatpush1.msra.mxu0 %v118
    %4324 = vmatprep.subr.mxu0 0.0
    %4325 = vmatpush1.msra.mxu0 %v119
    %4326 = vmatprep.subr.mxu0 0.0
    %4327 = vmatpush1.msra.mxu0 0.0
    %4328 = vmatprep.subr.mxu0 0.0
    %4329 = vmatpush1.msra.mxu0 0.0
    %4330 = vmatprep.subr.mxu0 0.0
    %4331 = vmatpush1.msra.mxu0 0.0
    %4332 = vmatprep.subr.mxu0 0.0
    %4333 = vmatpush1.msra.mxu0 0.0
    %4334 = vmatprep.subr.mxu0 0.0
    %4335 = vmatpush1.msra.mxu0 0.0
    %4336 = vmatprep.subr.mxu0 0.0
    %4337 = vmatpush1.msra.mxu0 0.0
    %4338 = vmatprep.subr.mxu0 0.0
    %4339 = vmatpush1.msra.mxu0 0.0
    %4340 = vmatprep.subr.mxu0 0.0
    %4341 = vmatpush1.msra.mxu0 0.0
    %4342 = vmatprep.subr.mxu0 0.0
    %4343 = vmatpush1.msra.mxu0 0.0
    %4344 = vmatprep.subr.mxu0 0.0
    %4345 = vmatpush1.msra.mxu0 0.0
    %4346 = vmatprep.subr.mxu0 0.0
    %4347 = vmatpush1.msra.mxu0 0.0
    %4348 = vmatprep.subr.mxu0 0.0
    %4349 = vmatpush1.msra.mxu0 0.0
    %4350 = vmatprep.subr.mxu0 0.0
    %4351 = vmatpush1.msra.mxu0 0.0
    %4352 = vmatprep.subr.mxu0 0.0
    %4353 = vmatpush1.msra.mxu0 0.0
    %4354 = vmatprep.subr.mxu0 0.0
    %4355 = vmatpush1.msra.mxu0 0.0
    %4356 = vmatprep.subr.mxu0 0.0
    %4357 = vmatpush1.msra.mxu0 0.0
    %4358 = vmatprep.mubr.f32.mxu0 0.0
    %4359 = vmatmul.mubr.f32.gmra.mrb[0].mxu0 %v4293
    %v4360 = vpop.f32.mrb[0].mxu0
    %v4361 = vadd.f32 %v374, %v4360
    %v4362 = vpop.f32.mrb[0].mxu0
    %4363 = vdwg.mxu0
    %v4364 = vstv %s4219
    %v4365 = vmul.f32 %v4364, %v4361
    %v4366 = vadd.f32 %v3496, %v4365
    %4367 = vmatprep.subr.mxu0 0.0
    %4368 = vmatpush1.msra.mxu0 %v87
    %4369 = vmatprep.subr.mxu0 0.0
    %4370 = vmatpush1.msra.mxu0 %v88
    %4371 = vmatprep.subr.mxu0 0.0
    %4372 = vmatpush1.msra.mxu0 %v89
    %4373 = vmatprep.subr.mxu0 0.0
    %4374 = vmatpush1.msra.mxu0 %v90
    %4375 = vmatprep.subr.mxu0 0.0
    %4376 = vmatpush1.msra.mxu0 %v91
    %4377 = vmatprep.subr.mxu0 0.0
    %4378 = vmatpush1.msra.mxu0 %v92
    %4379 = vmatprep.subr.mxu0 0.0
    %4380 = vmatpush1.msra.mxu0 %v93
    %4381 = vmatprep.subr.mxu0 0.0
    %4382 = vmatpush1.msra.mxu0 %v94
    %4383 = vmatprep.subr.mxu0 0.0
    %4384 = vmatpush1.msra.mxu0 %v95
    %4385 = vmatprep.subr.mxu0 0.0
    %4386 = vmatpush1.msra.mxu0 %v96
    %4387 = vmatprep.subr.mxu0 0.0
    %4388 = vmatpush1.msra.mxu0 %v97
    %4389 = vmatprep.subr.mxu0 0.0
    %4390 = vmatpush1.msra.mxu0 %v98
    %4391 = vmatprep.subr.mxu0 0.0
    %4392 = vmatpush1.msra.mxu0 %v99
    %4393 = vmatprep.subr.mxu0 0.0
    %4394 = vmatpush1.msra.mxu0 %v100
    %4395 = vmatprep.subr.mxu0 0.0
    %4396 = vmatpush1.msra.mxu0 %v101
    %4397 = vmatprep.subr.mxu0 0.0
    %4398 = vmatpush1.msra.mxu0 %v102
    %4399 = vmatprep.subr.mxu0 0.0
    %4400 = vmatpush1.msra.mxu0 0.0
    %4401 = vmatprep.subr.mxu0 0.0
    %4402 = vmatpush1.msra.mxu0 0.0
    %4403 = vmatprep.subr.mxu0 0.0
    %4404 = vmatpush1.msra.mxu0 0.0
    %4405 = vmatprep.subr.mxu0 0.0
    %4406 = vmatpush1.msra.mxu0 0.0
    %4407 = vmatprep.subr.mxu0 0.0
    %4408 = vmatpush1.msra.mxu0 0.0
    %4409 = vmatprep.subr.mxu0 0.0
    %4410 = vmatpush1.msra.mxu0 0.0
    %4411 = vmatprep.subr.mxu0 0.0
    %4412 = vmatpush1.msra.mxu0 0.0
    %4413 = vmatprep.subr.mxu0 0.0
    %4414 = vmatpush1.msra.mxu0 0.0
    %4415 = vmatprep.subr.mxu0 0.0
    %4416 = vmatpush1.msra.mxu0 0.0
    %4417 = vmatprep.subr.mxu0 0.0
    %4418 = vmatpush1.msra.mxu0 0.0
    %4419 = vmatprep.subr.mxu0 0.0
    %4420 = vmatpush1.msra.mxu0 0.0
    %4421 = vmatprep.subr.mxu0 0.0
    %4422 = vmatpush1.msra.mxu0 0.0
    %4423 = vmatprep.subr.mxu0 0.0
    %4424 = vmatpush1.msra.mxu0 0.0
    %4425 = vmatprep.subr.mxu0 0.0
    %4426 = vmatpush1.msra.mxu0 0.0
    %4427 = vmatprep.subr.mxu0 0.0
    %4428 = vmatpush1.msra.mxu0 0.0
    %4429 = vmatprep.subr.mxu0 0.0
    %4430 = vmatpush1.msra.mxu0 0.0
    %4431 = vmatprep.mubr.f32.mxu0 0.0
    %4432 = vmatmul.mubr.f32.gmra.mrb[0].mxu0 %v4366
    %v4433 = vpop.f32.mrb[0].mxu0
    %v4434 = vadd.f32 %v297, %v4433
    %v4435 = vpop.f32.mrb[0].mxu0
    %4436 = vdwg.mxu0
    %v4437 = vtanh.pop %v4434
    %4438 = vmatprep.subr.mxu0 0.0
    %4439 = vmatpush1.msra.mxu0 %v104
    %4440 = vmatprep.subr.mxu0 0.0
    %4441 = vmatpush1.msra.mxu0 %v105
    %4442 = vmatprep.subr.mxu0 0.0
    %4443 = vmatpush1.msra.mxu0 %v106
    %4444 = vmatprep.subr.mxu0 0.0
    %4445 = vmatpush1.msra.mxu0 %v107
    %4446 = vmatprep.subr.mxu0 0.0
    %4447 = vmatpush1.msra.mxu0 %v108
    %4448 = vmatprep.subr.mxu0 0.0
    %4449 = vmatpush1.msra.mxu0 %v109
    %4450 = vmatprep.subr.mxu0 0.0
    %4451 = vmatpush1.msra.mxu0 %v110
    %4452 = vmatprep.subr.mxu0 0.0
    %4453 = vmatpush1.msra.mxu0 %v111
    %4454 = vmatprep.subr.mxu0 0.0
    %4455 = vmatpush1.msra.mxu0 %v112
    %4456 = vmatprep.subr.mxu0 0.0
    %4457 = vmatpush1.msra.mxu0 %v113
    %4458 = vmatprep.subr.mxu0 0.0
    %4459 = vmatpush1.msra.mxu0 %v114
    %4460 = vmatprep.subr.mxu0 0.0
    %4461 = vmatpush1.msra.mxu0 %v115
    %4462 = vmatprep.subr.mxu0 0.0
    %4463 = vmatpush1.msra.mxu0 %v116
    %4464 = vmatprep.subr.mxu0 0.0
    %4465 = vmatpush1.msra.mxu0 %v117
    %4466 = vmatprep.subr.mxu0 0.0
    %4467 = vmatpush1.msra.mxu0 %v118
    %4468 = vmatprep.subr.mxu0 0.0
    %4469 = vmatpush1.msra.mxu0 %v119
    %4470 = vmatprep.subr.mxu0 0.0
    %4471 = vmatpush1.msra.mxu0 0.0
    %4472 = vmatprep.subr.mxu0 0.0
    %4473 = vmatpush1.msra.mxu0 0.0
    %4474 = vmatprep.subr.mxu0 0.0
    %4475 = vmatpush1.msra.mxu0 0.0
    %4476 = vmatprep.subr.mxu0 0.0
    %4477 = vmatpush1.msra.mxu0 0.0
    %4478 = vmatprep.subr.mxu0 0.0
    %4479 = vmatpush1.msra.mxu0 0.0
    %4480 = vmatprep.subr.mxu0 0.0
    %4481 = vmatpush1.msra.mxu0 0.0
    %4482 = vmatprep.subr.mxu0 0.0
    %4483 = vmatpush1.msra.mxu0 0.0
    %4484 = vmatprep.subr.mxu0 0.0
    %4485 = vmatpush1.msra.mxu0 0.0
    %4486 = vmatprep.subr.mxu0 0.0
    %4487 = vmatpush1.msra.mxu0 0.0
    %4488 = vmatprep.subr.mxu0 0.0
    %4489 = vmatpush1.msra.mxu0 0.0
    %4490 = vmatprep.subr.mxu0 0.0
    %4491 = vmatpush1.msra.mxu0 0.0
    %4492 = vmatprep.subr.mxu0 0.0
    %4493 = vmatpush1.msra.mxu0 0.0
    %4494 = vmatprep.subr.mxu0 0.0
    %4495 = vmatpush1.msra.mxu0 0.0
    %4496 = vmatprep.subr.mxu0 0.0
    %4497 = vmatpush1.msra.mxu0 0.0
    %4498 = vmatprep.subr.mxu0 0.0
    %4499 = vmatpush1.msra.mxu0 0.0
    %4500 = vmatprep.subr.mxu0 0.0
    %4501 = vmatpush1.msra.mxu0 0.0
    %4502 = vmatprep.mubr.f32.mxu0 0.0
    %4503 = vmatmul.mubr.f32.gmra.mrb[0].mxu0 %v4437
    %v4504 = vpop.f32.mrb[0].mxu0
    %v4505 = vadd.f32 %v374, %v4504
    %v4506 = vpop.f32.mrb[0].mxu0
    %4507 = vdwg.mxu0
    %v4508 = vmul.f32 %v4505, 2.0
    %v4509 = vadd.f32 %v4361, %v4508
    %v4510 = vmul.f32 %v4364, %v4505
    %v4511 = vadd.f32 %v3496, %v4510
    %4512 = vmatprep.subr.mxu0 0.0
    %4513 = vmatpush1.msra.mxu0 %v87
    %4514 = vmatprep.subr.mxu0 0.0
    %4515 = vmatpush1.msra.mxu0 %v88
    %4516 = vmatprep.subr.mxu0 0.0
    %4517 = vmatpush1.msra.mxu0 %v89
    %4518 = vmatprep.subr.mxu0 0.0
    %4519 = vmatpush1.msra.mxu0 %v90
    %4520 = vmatprep.subr.mxu0 0.0
    %4521 = vmatpush1.msra.mxu0 %v91
    %4522 = vmatprep.subr.mxu0 0.0
    %4523 = vmatpush1.msra.mxu0 %v92
    %4524 = vmatprep.subr.mxu0 0.0
    %4525 = vmatpush1.msra.mxu0 %v93
    %4526 = vmatprep.subr.mxu0 0.0
    %4527 = vmatpush1.msra.mxu0 %v94
    %4528 = vmatprep.subr.mxu0 0.0
    %4529 = vmatpush1.msra.mxu0 %v95
    %4530 = vmatprep.subr.mxu0 0.0
    %4531 = vmatpush1.msra.mxu0 %v96
    %4532 = vmatprep.subr.mxu0 0.0
    %4533 = vmatpush1.msra.mxu0 %v97
    %4534 = vmatprep.subr.mxu0 0.0
    %4535 = vmatpush1.msra.mxu0 %v98
    %4536 = vmatprep.subr.mxu0 0.0
    %4537 = vmatpush1.msra.mxu0 %v99
    %4538 = vmatprep.subr.mxu0 0.0
    %4539 = vmatpush1.msra.mxu0 %v100
    %4540 = vmatprep.subr.mxu0 0.0
    %4541 = vmatpush1.msra.mxu0 %v101
    %4542 = vmatprep.subr.mxu0 0.0
    %4543 = vmatpush1.msra.mxu0 %v102
    %4544 = vmatprep.subr.mxu0 0.0
    %4545 = vmatpush1.msra.mxu0 0.0
    %4546 = vmatprep.subr.mxu0 0.0
    %4547 = vmatpush1.msra.mxu0 0.0
    %4548 = vmatprep.subr.mxu0 0.0
    %4549 = vmatpush1.msra.mxu0 0.0
    %4550 = vmatprep.subr.mxu0 0.0
    %4551 = vmatpush1.msra.mxu0 0.0
    %4552 = vmatprep.subr.mxu0 0.0
    %4553 = vmatpush1.msra.mxu0 0.0
    %4554 = vmatprep.subr.mxu0 0.0
    %4555 = vmatpush1.msra.mxu0 0.0
    %4556 = vmatprep.subr.mxu0 0.0
    %4557 = vmatpush1.msra.mxu0 0.0
    %4558 = vmatprep.subr.mxu0 0.0
    %4559 = vmatpush1.msra.mxu0 0.0
    %4560 = vmatprep.subr.mxu0 0.0
    %4561 = vmatpush1.msra.mxu0 0.0
    %4562 = vmatprep.subr.mxu0 0.0
    %4563 = vmatpush1.msra.mxu0 0.0
    %4564 = vmatprep.subr.mxu0 0.0
    %4565 = vmatpush1.msra.mxu0 0.0
    %4566 = vmatprep.subr.mxu0 0.0
    %4567 = vmatpush1.msra.mxu0 0.0
    %4568 = vmatprep.subr.mxu0 0.0
    %4569 = vmatpush1.msra.mxu0 0.0
    %4570 = vmatprep.subr.mxu0 0.0
    %4571 = vmatpush1.msra.mxu0 0.0
    %4572 = vmatprep.subr.mxu0 0.0
    %4573 = vmatpush1.msra.mxu0 0.0
    %4574 = vmatprep.subr.mxu0 0.0
    %4575 = vmatpush1.msra.mxu0 0.0
    %4576 = vmatprep.mubr.f32.mxu0 0.0
    %4577 = vmatmul.mubr.f32.gmra.mrb[0].mxu0 %v4511
    %v4578 = vpop.f32.mrb[0].mxu0
    %v4579 = vadd.f32 %v297, %v4578
    %v4580 = vpop.f32.mrb[0].mxu0
    %4581 = vdwg.mxu0
    %v4582 = vtanh.pop %v4579
    %4583 = vmatprep.subr.mxu0 0.0
    %4584 = vmatpush1.msra.mxu0 %v104
    %4585 = vmatprep.subr.mxu0 0.0
    %4586 = vmatpush1.msra.mxu0 %v105
    %4587 = vmatprep.subr.mxu0 0.0
    %4588 = vmatpush1.msra.mxu0 %v106
    %4589 = vmatprep.subr.mxu0 0.0
    %4590 = vmatpush1.msra.mxu0 %v107
    %4591 = vmatprep.subr.mxu0 0.0
    %4592 = vmatpush1.msra.mxu0 %v108
    %4593 = vmatprep.subr.mxu0 0.0
    %4594 = vmatpush1.msra.mxu0 %v109
    %4595 = vmatprep.subr.mxu0 0.0
    %4596 = vmatpush1.msra.mxu0 %v110
    %4597 = vmatprep.subr.mxu0 0.0
    %4598 = vmatpush1.msra.mxu0 %v111
    %4599 = vmatprep.subr.mxu0 0.0
    %4600 = vmatpush1.msra.mxu0 %v112
    %4601 = vmatprep.subr.mxu0 0.0
    %4602 = vmatpush1.msra.mxu0 %v113
    %4603 = vmatprep.subr.mxu0 0.0
    %4604 = vmatpush1.msra.mxu0 %v114
    %4605 = vmatprep.subr.mxu0 0.0
    %4606 = vmatpush1.msra.mxu0 %v115
    %4607 = vmatprep.subr.mxu0 0.0
    %4608 = vmatpush1.msra.mxu0 %v116
    %4609 = vmatprep.subr.mxu0 0.0
    %4610 = vmatpush1.msra.mxu0 %v117
    %4611 = vmatprep.subr.mxu0 0.0
    %4612 = vmatpush1.msra.mxu0 %v118
    %4613 = vmatprep.subr.mxu0 0.0
    %4614 = vmatpush1.msra.mxu0 %v119
    %4615 = vmatprep.subr.mxu0 0.0
    %4616 = vmatpush1.msra.mxu0 0.0
    %4617 = vmatprep.subr.mxu0 0.0
    %4618 = vmatpush1.msra.mxu0 0.0
    %4619 = vmatprep.subr.mxu0 0.0
    %4620 = vmatpush1.msra.mxu0 0.0
    %4621 = vmatprep.subr.mxu0 0.0
    %4622 = vmatpush1.msra.mxu0 0.0
    %4623 = vmatprep.subr.mxu0 0.0
    %4624 = vmatpush1.msra.mxu0 0.0
    %4625 = vmatprep.subr.mxu0 0.0
    %4626 = vmatpush1.msra.mxu0 0.0
    %4627 = vmatprep.subr.mxu0 0.0
    %4628 = vmatpush1.msra.mxu0 0.0
    %4629 = vmatprep.subr.mxu0 0.0
    %4630 = vmatpush1.msra.mxu0 0.0
    %4631 = vmatprep.subr.mxu0 0.0
    %4632 = vmatpush1.msra.mxu0 0.0
    %4633 = vmatprep.subr.mxu0 0.0
    %4634 = vmatpush1.msra.mxu0 0.0
    %4635 = vmatprep.subr.mxu0 0.0
    %4636 = vmatpush1.msra.mxu0 0.0
    %4637 = vmatprep.subr.mxu0 0.0
    %4638 = vmatpush1.msra.mxu0 0.0
    %4639 = vmatprep.subr.mxu0 0.0
    %4640 = vmatpush1.msra.mxu0 0.0
    %4641 = vmatprep.subr.mxu0 0.0
    %4642 = vmatpush1.msra.mxu0 0.0
    %4643 = vmatprep.subr.mxu0 0.0
    %4644 = vmatpush1.msra.mxu0 0.0
    %4645 = vmatprep.subr.mxu0 0.0
    %4646 = vmatpush1.msra.mxu0 0.0
    %4647 = vmatprep.mubr.f32.mxu0 0.0
    %4648 = vmatmul.mubr.f32.gmra.mrb[0].mxu0 %v4582
    %v4649 = vpop.f32.mrb[0].mxu0
    %v4650 = vadd.f32 %v374, %v4649
    %v4651 = vpop.f32.mrb[0].mxu0
    %4652 = vdwg.mxu0
    %v4653 = vmul.f32 %v4650, 2.0
    %v4654 = vadd.f32 %v4509, %v4653
    %v4655 = vstv %s4218
    %v4656 = vmul.f32 %v4655, %v4650
    %v4657 = vadd.f32 %v3496, %v4656
    %4658 = vmatprep.subr.mxu0 0.0
    %4659 = vmatpush1.msra.mxu0 %v87
    %4660 = vmatprep.subr.mxu0 0.0
    %4661 = vmatpush1.msra.mxu0 %v88
    %4662 = vmatprep.subr.mxu0 0.0
    %4663 = vmatpush1.msra.mxu0 %v89
    %4664 = vmatprep.subr.mxu0 0.0
    %4665 = vmatpush1.msra.mxu0 %v90
    %4666 = vmatprep.subr.mxu0 0.0
    %4667 = vmatpush1.msra.mxu0 %v91
    %4668 = vmatprep.subr.mxu0 0.0
    %4669 = vmatpush1.msra.mxu0 %v92
    %4670 = vmatprep.subr.mxu0 0.0
    %4671 = vmatpush1.msra.mxu0 %v93
    %4672 = vmatprep.subr.mxu0 0.0
    %4673 = vmatpush1.msra.mxu0 %v94
    %4674 = vmatprep.subr.mxu0 0.0
    %4675 = vmatpush1.msra.mxu0 %v95
    %4676 = vmatprep.subr.mxu0 0.0
    %4677 = vmatpush1.msra.mxu0 %v96
    %4678 = vmatprep.subr.mxu0 0.0
    %4679 = vmatpush1.msra.mxu0 %v97
    %4680 = vmatprep.subr.mxu0 0.0
    %4681 = vmatpush1.msra.mxu0 %v98
    %4682 = vmatprep.subr.mxu0 0.0
    %4683 = vmatpush1.msra.mxu0 %v99
    %4684 = vmatprep.subr.mxu0 0.0
    %4685 = vmatpush1.msra.mxu0 %v100
    %4686 = vmatprep.subr.mxu0 0.0
    %4687 = vmatpush1.msra.mxu0 %v101
    %4688 = vmatprep.subr.mxu0 0.0
    %4689 = vmatpush1.msra.mxu0 %v102
    %4690 = vmatprep.subr.mxu0 0.0
    %4691 = vmatpush1.msra.mxu0 0.0
    %4692 = vmatprep.subr.mxu0 0.0
    %4693 = vmatpush1.msra.mxu0 0.0
    %4694 = vmatprep.subr.mxu0 0.0
    %4695 = vmatpush1.msra.mxu0 0.0
    %4696 = vmatprep.subr.mxu0 0.0
    %4697 = vmatpush1.msra.mxu0 0.0
    %4698 = vmatprep.subr.mxu0 0.0
    %4699 = vmatpush1.msra.mxu0 0.0
    %4700 = vmatprep.subr.mxu0 0.0
    %4701 = vmatpush1.msra.mxu0 0.0
    %4702 = vmatprep.subr.mxu0 0.0
    %4703 = vmatpush1.msra.mxu0 0.0
    %4704 = vmatprep.subr.mxu0 0.0
    %4705 = vmatpush1.msra.mxu0 0.0
    %4706 = vmatprep.subr.mxu0 0.0
    %4707 = vmatpush1.msra.mxu0 0.0
    %4708 = vmatprep.subr.mxu0 0.0
    %4709 = vmatpush1.msra.mxu0 0.0
    %4710 = vmatprep.subr.mxu0 0.0
    %4711 = vmatpush1.msra.mxu0 0.0
    %4712 = vmatprep.subr.mxu0 0.0
    %4713 = vmatpush1.msra.mxu0 0.0
    %4714 = vmatprep.subr.mxu0 0.0
    %4715 = vmatpush1.msra.mxu0 0.0
    %4716 = vmatprep.subr.mxu0 0.0
    %4717 = vmatpush1.msra.mxu0 0.0
    %4718 = vmatprep.subr.mxu0 0.0
    %4719 = vmatpush1.msra.mxu0 0.0
    %4720 = vmatprep.subr.mxu0 0.0
    %4721 = vmatpush1.msra.mxu0 0.0
    %4722 = vmatprep.mubr.f32.mxu0 0.0
    %4723 = vmatmul.mubr.f32.gmra.mrb[0].mxu0 %v4657
    %v4724 = vpop.f32.mrb[0].mxu0
    %v4725 = vadd.f32 %v297, %v4724
    %v4726 = vpop.f32.mrb[0].mxu0
    %4727 = vdwg.mxu0
    %v4728 = vtanh.pop %v4725
    %4729 = vmatprep.subr.mxu0 0.0
    %4730 = vmatpush1.msra.mxu0 %v104
    %4731 = vmatprep.subr.mxu0 0.0
    %4732 = vmatpush1.msra.mxu0 %v105
    %4733 = vmatprep.subr.mxu0 0.0
    %4734 = vmatpush1.msra.mxu0 %v106
    %4735 = vmatprep.subr.mxu0 0.0
    %4736 = vmatpush1.msra.mxu0 %v107
    %4737 = vmatprep.subr.mxu0 0.0
    %4738 = vmatpush1.msra.mxu0 %v108
    %4739 = vmatprep.subr.mxu0 0.0
    %4740 = vmatpush1.msra.mxu0 %v109
    %4741 = vmatprep.subr.mxu0 0.0
    %4742 = vmatpush1.msra.mxu0 %v110
    %4743 = vmatprep.subr.mxu0 0.0
    %4744 = vmatpush1.msra.mxu0 %v111
    %4745 = vmatprep.subr.mxu0 0.0
    %4746 = vmatpush1.msra.mxu0 %v112
    %4747 = vmatprep.subr.mxu0 0.0
    %4748 = vmatpush1.msra.mxu0 %v113
    %4749 = vmatprep.subr.mxu0 0.0
    %4750 = vmatpush1.msra.mxu0 %v114
    %4751 = vmatprep.subr.mxu0 0.0
    %4752 = vmatpush1.msra.mxu0 %v115
    %4753 = vmatprep.subr.mxu0 0.0
    %4754 = vmatpush1.msra.mxu0 %v116
    %4755 = vmatprep.subr.mxu0 0.0
    %4756 = vmatpush1.msra.mxu0 %v117
    %4757 = vmatprep.subr.mxu0 0.0
    %4758 = vmatpush1.msra.mxu0 %v118
    %4759 = vmatprep.subr.mxu0 0.0
    %4760 = vmatpush1.msra.mxu0 %v119
    %4761 = vmatprep.subr.mxu0 0.0
    %4762 = vmatpush1.msra.mxu0 0.0
    %4763 = vmatprep.subr.mxu0 0.0
    %4764 = vmatpush1.msra.mxu0 0.0
    %4765 = vmatprep.subr.mxu0 0.0
    %4766 = vmatpush1.msra.mxu0 0.0
    %4767 = vmatprep.subr.mxu0 0.0
    %4768 = vmatpush1.msra.mxu0 0.0
    %4769 = vmatprep.subr.mxu0 0.0
    %4770 = vmatpush1.msra.mxu0 0.0
    %4771 = vmatprep.subr.mxu0 0.0
    %4772 = vmatpush1.msra.mxu0 0.0
    %4773 = vmatprep.subr.mxu0 0.0
    %4774 = vmatpush1.msra.mxu0 0.0
    %4775 = vmatprep.subr.mxu0 0.0
    %4776 = vmatpush1.msra.mxu0 0.0
    %4777 = vmatprep.subr.mxu0 0.0
    %4778 = vmatpush1.msra.mxu0 0.0
    %4779 = vmatprep.subr.mxu0 0.0
    %4780 = vmatpush1.msra.mxu0 0.0
    %4781 = vmatprep.subr.mxu0 0.0
    %4782 = vmatpush1.msra.mxu0 0.0
    %4783 = vmatprep.subr.mxu0 0.0
    %4784 = vmatpush1.msra.mxu0 0.0
    %4785 = vmatprep.subr.mxu0 0.0
    %4786 = vmatpush1.msra.mxu0 0.0
    %4787 = vmatprep.subr.mxu0 0.0
    %4788 = vmatpush1.msra.mxu0 0.0
    %4789 = vmatprep.subr.mxu0 0.0
    %4790 = vmatpush1.msra.mxu0 0.0
    %4791 = vmatprep.subr.mxu0 0.0
    %4792 = vmatpush1.msra.mxu0 0.0
    %4793 = vmatprep.mubr.f32.mxu0 0.0
    %4794 = vmatmul.mubr.f32.gmra.mrb[0].mxu0 %v4728
    %v4795 = vpop.f32.mrb[0].mxu0
    %v4796 = vadd.f32 %v374, %v4795
    %v4797 = vpop.f32.mrb[0].mxu0
    %4798 = vdwg.mxu0
    %v4799 = vadd.f32 %v4654, %v4796
    %v4800 = vstv %s4222
    %v4801 = vmul.f32 %v4800, %v4799
    %v4802 = vadd.f32 %v3496, %v4801
    %4803 = vmatprep.subr.mxu0 0.0
    %4804 = vmatpush1.msra.mxu0 %v87
    %4805 = vmatprep.subr.mxu0 0.0
    %4806 = vmatpush1.msra.mxu0 %v88
    %4807 = vmatprep.subr.mxu0 0.0
    %4808 = vmatpush1.msra.mxu0 %v89
    %4809 = vmatprep.subr.mxu0 0.0
    %4810 = vmatpush1.msra.mxu0 %v90
    %4811 = vmatprep.subr.mxu0 0.0
    %4812 = vmatpush1.msra.mxu0 %v91
    %4813 = vmatprep.subr.mxu0 0.0
    %4814 = vmatpush1.msra.mxu0 %v92
    %4815 = vmatprep.subr.mxu0 0.0
    %4816 = vmatpush1.msra.mxu0 %v93
    %4817 = vmatprep.subr.mxu0 0.0
    %4818 = vmatpush1.msra.mxu0 %v94
    %4819 = vmatprep.subr.mxu0 0.0
    %4820 = vmatpush1.msra.mxu0 %v95
    %4821 = vmatprep.subr.mxu0 0.0
    %4822 = vmatpush1.msra.mxu0 %v96
    %4823 = vmatprep.subr.mxu0 0.0
    %4824 = vmatpush1.msra.mxu0 %v97
    %4825 = vmatprep.subr.mxu0 0.0
    %4826 = vmatpush1.msra.mxu0 %v98
    %4827 = vmatprep.subr.mxu0 0.0
    %4828 = vmatpush1.msra.mxu0 %v99
    %4829 = vmatprep.subr.mxu0 0.0
    %4830 = vmatpush1.msra.mxu0 %v100
    %4831 = vmatprep.subr.mxu0 0.0
    %4832 = vmatpush1.msra.mxu0 %v101
    %4833 = vmatprep.subr.mxu0 0.0
    %4834 = vmatpush1.msra.mxu0 %v102
    %4835 = vmatprep.subr.mxu0 0.0
    %4836 = vmatpush1.msra.mxu0 0.0
    %4837 = vmatprep.subr.mxu0 0.0
    %4838 = vmatpush1.msra.mxu0 0.0
    %4839 = vmatprep.subr.mxu0 0.0
    %4840 = vmatpush1.msra.mxu0 0.0
    %4841 = vmatprep.subr.mxu0 0.0
    %4842 = vmatpush1.msra.mxu0 0.0
    %4843 = vmatprep.subr.mxu0 0.0
    %4844 = vmatpush1.msra.mxu0 0.0
    %4845 = vmatprep.subr.mxu0 0.0
    %4846 = vmatpush1.msra.mxu0 0.0
    %4847 = vmatprep.subr.mxu0 0.0
    %4848 = vmatpush1.msra.mxu0 0.0
    %4849 = vmatprep.subr.mxu0 0.0
    %4850 = vmatpush1.msra.mxu0 0.0
    %4851 = vmatprep.subr.mxu0 0.0
    %4852 = vmatpush1.msra.mxu0 0.0
    %4853 = vmatprep.subr.mxu0 0.0
    %4854 = vmatpush1.msra.mxu0 0.0
    %4855 = vmatprep.subr.mxu0 0.0
    %4856 = vmatpush1.msra.mxu0 0.0
    %4857 = vmatprep.subr.mxu0 0.0
    %4858 = vmatpush1.msra.mxu0 0.0
    %4859 = vmatprep.subr.mxu0 0.0
    %4860 = vmatpush1.msra.mxu0 0.0
    %4861 = vmatprep.subr.mxu0 0.0
    %4862 = vmatpush1.msra.mxu0 0.0
    %4863 = vmatprep.subr.mxu0 0.0
    %4864 = vmatpush1.msra.mxu0 0.0
    %4865 = vmatprep.subr.mxu0 0.0
    %4866 = vmatpush1.msra.mxu0 0.0
    %4867 = vmatprep.mubr.f32.mxu0 0.0
    %4868 = vmatmul.mubr.f32.gmra.mrb[0].mxu0 %v4073
    %v4869 = vpop.f32.mrb[0].mxu0
    %v4870 = vadd.f32 %v297, %v4869
    %v4871 = vpop.f32.mrb[0].mxu0
    %4872 = vdwg.mxu0
    %v4873 = vtanh.pop %v4870
    %4874 = vmatprep.subr.mxu0 0.0
    %4875 = vmatpush1.msra.mxu0 %v104
    %4876 = vmatprep.subr.mxu0 0.0
    %4877 = vmatpush1.msra.mxu0 %v105
    %4878 = vmatprep.subr.mxu0 0.0
    %4879 = vmatpush1.msra.mxu0 %v106
    %4880 = vmatprep.subr.mxu0 0.0
    %4881 = vmatpush1.msra.mxu0 %v107
    %4882 = vmatprep.subr.mxu0 0.0
    %4883 = vmatpush1.msra.mxu0 %v108
    %4884 = vmatprep.subr.mxu0 0.0
    %4885 = vmatpush1.msra.mxu0 %v109
    %4886 = vmatprep.subr.mxu0 0.0
    %4887 = vmatpush1.msra.mxu0 %v110
    %4888 = vmatprep.subr.mxu0 0.0
    %4889 = vmatpush1.msra.mxu0 %v111
    %4890 = vmatprep.subr.mxu0 0.0
    %4891 = vmatpush1.msra.mxu0 %v112
    %4892 = vmatprep.subr.mxu0 0.0
    %4893 = vmatpush1.msra.mxu0 %v113
    %4894 = vmatprep.subr.mxu0 0.0
    %4895 = vmatpush1.msra.mxu0 %v114
    %4896 = vmatprep.subr.mxu0 0.0
    %4897 = vmatpush1.msra.mxu0 %v115
    %4898 = vmatprep.subr.mxu0 0.0
    %4899 = vmatpush1.msra.mxu0 %v116
    %4900 = vmatprep.subr.mxu0 0.0
    %4901 = vmatpush1.msra.mxu0 %v117
    %4902 = vmatprep.subr.mxu0 0.0
    %4903 = vmatpush1.msra.mxu0 %v118
    %4904 = vmatprep.subr.mxu0 0.0
    %4905 = vmatpush1.msra.mxu0 %v119
    %4906 = vmatprep.subr.mxu0 0.0
    %4907 = vmatpush1.msra.mxu0 0.0
    %4908 = vmatprep.subr.mxu0 0.0
    %4909 = vmatpush1.msra.mxu0 0.0
    %4910 = vmatprep.subr.mxu0 0.0
    %4911 = vmatpush1.msra.mxu0 0.0
    %4912 = vmatprep.subr.mxu0 0.0
    %4913 = vmatpush1.msra.mxu0 0.0
    %4914 = vmatprep.subr.mxu0 0.0
    %4915 = vmatpush1.msra.mxu0 0.0
    %4916 = vmatprep.subr.mxu0 0.0
    %4917 = vmatpush1.msra.mxu0 0.0
    %4918 = vmatprep.subr.mxu0 0.0
    %4919 = vmatpush1.msra.mxu0 0.0
    %4920 = vmatprep.subr.mxu0 0.0
    %4921 = vmatpush1.msra.mxu0 0.0
    %4922 = vmatprep.subr.mxu0 0.0
    %4923 = vmatpush1.msra.mxu0 0.0
    %4924 = vmatprep.subr.mxu0 0.0
    %4925 = vmatpush1.msra.mxu0 0.0
    %4926 = vmatprep.subr.mxu0 0.0
    %4927 = vmatpush1.msra.mxu0 0.0
    %4928 = vmatprep.subr.mxu0 0.0
    %4929 = vmatpush1.msra.mxu0 0.0
    %4930 = vmatprep.subr.mxu0 0.0
    %4931 = vmatpush1.msra.mxu0 0.0
    %4932 = vmatprep.subr.mxu0 0.0
    %4933 = vmatpush1.msra.mxu0 0.0
    %4934 = vmatprep.subr.mxu0 0.0
    %4935 = vmatpush1.msra.mxu0 0.0
    %4936 = vmatprep.subr.mxu0 0.0
    %4937 = vmatpush1.msra.mxu0 0.0
    %4938 = vmatprep.mubr.f32.mxu0 0.0
    %4939 = vmatmul.mubr.f32.gmra.mrb[0].mxu0 %v4873
    %v4940 = vpop.f32.mrb[0].mxu0
    %v4941 = vadd.f32 %v374, %v4940
    %v4942 = vpop.f32.mrb[0].mxu0
    %4943 = vdwg.mxu0
    %v4944 = vmul.f32 %v4364, %v4941
    %v4945 = vadd.f32 %v4073, %v4944
    %4946 = vmatprep.subr.mxu0 0.0
    %4947 = vmatpush1.msra.mxu0 %v87
    %4948 = vmatprep.subr.mxu0 0.0
    %4949 = vmatpush1.msra.mxu0 %v88
    %4950 = vmatprep.subr.mxu0 0.0
    %4951 = vmatpush1.msra.mxu0 %v89
    %4952 = vmatprep.subr.mxu0 0.0
    %4953 = vmatpush1.msra.mxu0 %v90
    %4954 = vmatprep.subr.mxu0 0.0
    %4955 = vmatpush1.msra.mxu0 %v91
    %4956 = vmatprep.subr.mxu0 0.0
    %4957 = vmatpush1.msra.mxu0 %v92
    %4958 = vmatprep.subr.mxu0 0.0
    %4959 = vmatpush1.msra.mxu0 %v93
    %4960 = vmatprep.subr.mxu0 0.0
    %4961 = vmatpush1.msra.mxu0 %v94
    %4962 = vmatprep.subr.mxu0 0.0
    %4963 = vmatpush1.msra.mxu0 %v95
    %4964 = vmatprep.subr.mxu0 0.0
    %4965 = vmatpush1.msra.mxu0 %v96
    %4966 = vmatprep.subr.mxu0 0.0
    %4967 = vmatpush1.msra.mxu0 %v97
    %4968 = vmatprep.subr.mxu0 0.0
    %4969 = vmatpush1.msra.mxu0 %v98
    %4970 = vmatprep.subr.mxu0 0.0
    %4971 = vmatpush1.msra.mxu0 %v99
    %4972 = vmatprep.subr.mxu0 0.0
    %4973 = vmatpush1.msra.mxu0 %v100
    %4974 = vmatprep.subr.mxu0 0.0
    %4975 = vmatpush1.msra.mxu0 %v101
    %4976 = vmatprep.subr.mxu0 0.0
    %4977 = vmatpush1.msra.mxu0 %v102
    %4978 = vmatprep.subr.mxu0 0.0
    %4979 = vmatpush1.msra.mxu0 0.0
    %4980 = vmatprep.subr.mxu0 0.0
    %4981 = vmatpush1.msra.mxu0 0.0
    %4982 = vmatprep.subr.mxu0 0.0
    %4983 = vmatpush1.msra.mxu0 0.0
    %4984 = vmatprep.subr.mxu0 0.0
    %4985 = vmatpush1.msra.mxu0 0.0
    %4986 = vmatprep.subr.mxu0 0.0
    %4987 = vmatpush1.msra.mxu0 0.0
    %4988 = vmatprep.subr.mxu0 0.0
    %4989 = vmatpush1.msra.mxu0 0.0
    %4990 = vmatprep.subr.mxu0 0.0
    %4991 = vmatpush1.msra.mxu0 0.0
    %4992 = vmatprep.subr.mxu0 0.0
    %4993 = vmatpush1.msra.mxu0 0.0
    %4994 = vmatprep.subr.mxu0 0.0
    %4995 = vmatpush1.msra.mxu0 0.0
    %4996 = vmatprep.subr.mxu0 0.0
    %4997 = vmatpush1.msra.mxu0 0.0
    %4998 = vmatprep.subr.mxu0 0.0
    %4999 = vmatpush1.msra.mxu0 0.0
    %5000 = vmatprep.subr.mxu0 0.0
    %5001 = vmatpush1.msra.mxu0 0.0
    %5002 = vmatprep.subr.mxu0 0.0
    %5003 = vmatpush1.msra.mxu0 0.0
    %5004 = vmatprep.subr.mxu0 0.0
    %5005 = vmatpush1.msra.mxu0 0.0
    %5006 = vmatprep.subr.mxu0 0.0
    %5007 = vmatpush1.msra.mxu0 0.0
    %5008 = vmatprep.subr.mxu0 0.0
    %5009 = vmatpush1.msra.mxu0 0.0
    %5010 = vmatprep.mubr.f32.mxu0 0.0
    %5011 = vmatmul.mubr.f32.gmra.mrb[0].mxu0 %v4945
    %v5012 = vpop.f32.mrb[0].mxu0
    %v5013 = vadd.f32 %v297, %v5012
    %v5014 = vpop.f32.mrb[0].mxu0
    %5015 = vdwg.mxu0
    %v5016 = vtanh.pop %v5013
    %5017 = vmatprep.subr.mxu0 0.0
    %5018 = vmatpush1.msra.mxu0 %v104
    %5019 = vmatprep.subr.mxu0 0.0
    %5020 = vmatpush1.msra.mxu0 %v105
    %5021 = vmatprep.subr.mxu0 0.0
    %5022 = vmatpush1.msra.mxu0 %v106
    %5023 = vmatprep.subr.mxu0 0.0
    %5024 = vmatpush1.msra.mxu0 %v107
    %5025 = vmatprep.subr.mxu0 0.0
    %5026 = vmatpush1.msra.mxu0 %v108
    %5027 = vmatprep.subr.mxu0 0.0
    %5028 = vmatpush1.msra.mxu0 %v109
    %5029 = vmatprep.subr.mxu0 0.0
    %5030 = vmatpush1.msra.mxu0 %v110
    %5031 = vmatprep.subr.mxu0 0.0
    %5032 = vmatpush1.msra.mxu0 %v111
    %5033 = vmatprep.subr.mxu0 0.0
    %5034 = vmatpush1.msra.mxu0 %v112
    %5035 = vmatprep.subr.mxu0 0.0
    %5036 = vmatpush1.msra.mxu0 %v113
    %5037 = vmatprep.subr.mxu0 0.0
    %5038 = vmatpush1.msra.mxu0 %v114
    %5039 = vmatprep.subr.mxu0 0.0
    %5040 = vmatpush1.msra.mxu0 %v115
    %5041 = vmatprep.subr.mxu0 0.0
    %5042 = vmatpush1.msra.mxu0 %v116
    %5043 = vmatprep.subr.mxu0 0.0
    %5044 = vmatpush1.msra.mxu0 %v117
    %5045 = vmatprep.subr.mxu0 0.0
    %5046 = vmatpush1.msra.mxu0 %v118
    %5047 = vmatprep.subr.mxu0 0.0
    %5048 = vmatpush1.msra.mxu0 %v119
    %5049 = vmatprep.subr.mxu0 0.0
    %5050 = vmatpush1.msra.mxu0 0.0
    %5051 = vmatprep.subr.mxu0 0.0
    %5052 = vmatpush1.msra.mxu0 0.0
    %5053 = vmatprep.subr.mxu0 0.0
    %5054 = vmatpush1.msra.mxu0 0.0
    %5055 = vmatprep.subr.mxu0 0.0
    %5056 = vmatpush1.msra.mxu0 0.0
    %5057 = vmatprep.subr.mxu0 0.0
    %5058 = vmatpush1.msra.mxu0 0.0
    %5059 = vmatprep.subr.mxu0 0.0
    %5060 = vmatpush1.msra.mxu0 0.0
    %5061 = vmatprep.subr.mxu0 0.0
    %5062 = vmatpush1.msra.mxu0 0.0
    %5063 = vmatprep.subr.mxu0 0.0
    %5064 = vmatpush1.msra.mxu0 0.0
    %5065 = vmatprep.subr.mxu0 0.0
    %5066 = vmatpush1.msra.mxu0 0.0
    %5067 = vmatprep.subr.mxu0 0.0
    %5068 = vmatpush1.msra.mxu0 0.0
    %5069 = vmatprep.subr.mxu0 0.0
    %5070 = vmatpush1.msra.mxu0 0.0
    %5071 = vmatprep.subr.mxu0 0.0
    %5072 = vmatpush1.msra.mxu0 0.0
    %5073 = vmatprep.subr.mxu0 0.0
    %5074 = vmatpush1.msra.mxu0 0.0
    %5075 = vmatprep.subr.mxu0 0.0
    %5076 = vmatpush1.msra.mxu0 0.0
    %5077 = vmatprep.subr.mxu0 0.0
    %5078 = vmatpush1.msra.mxu0 0.0
    %5079 = vmatprep.subr.mxu0 0.0
    %5080 = vmatpush1.msra.mxu0 0.0
    %5081 = vmatprep.mubr.f32.mxu0 0.0
    %5082 = vmatmul.mubr.f32.gmra.mrb[0].mxu0 %v5016
    %v5083 = vpop.f32.mrb[0].mxu0
    %v5084 = vadd.f32 %v374, %v5083
    %v5085 = vpop.f32.mrb[0].mxu0
    %5086 = vdwg.mxu0
    %v5087 = vmul.f32 %v5084, 2.0
    %v5088 = vadd.f32 %v4941, %v5087
    %v5089 = vmul.f32 %v4364, %v5084
    %v5090 = vadd.f32 %v4073, %v5089
    %5091 = vmatprep.subr.mxu0 0.0
    %5092 = vmatpush1.msra.mxu0 %v87
    %5093 = vmatprep.subr.mxu0 0.0
    %5094 = vmatpush1.msra.mxu0 %v88
    %5095 = vmatprep.subr.mxu0 0.0
    %5096 = vmatpush1.msra.mxu0 %v89
    %5097 = vmatprep.subr.mxu0 0.0
    %5098 = vmatpush1.msra.mxu0 %v90
    %5099 = vmatprep.subr.mxu0 0.0
    %5100 = vmatpush1.msra.mxu0 %v91
    %5101 = vmatprep.subr.mxu0 0.0
    %5102 = vmatpush1.msra.mxu0 %v92
    %5103 = vmatprep.subr.mxu0 0.0
    %5104 = vmatpush1.msra.mxu0 %v93
    %5105 = vmatprep.subr.mxu0 0.0
    %5106 = vmatpush1.msra.mxu0 %v94
    %5107 = vmatprep.subr.mxu0 0.0
    %5108 = vmatpush1.msra.mxu0 %v95
    %5109 = vmatprep.subr.mxu0 0.0
    %5110 = vmatpush1.msra.mxu0 %v96
    %5111 = vmatprep.subr.mxu0 0.0
    %5112 = vmatpush1.msra.mxu0 %v97
    %5113 = vmatprep.subr.mxu0 0.0
    %5114 = vmatpush1.msra.mxu0 %v98
    %5115 = vmatprep.subr.mxu0 0.0
    %5116 = vmatpush1.msra.mxu0 %v99
    %5117 = vmatprep.subr.mxu0 0.0
    %5118 = vmatpush1.msra.mxu0 %v100
    %5119 = vmatprep.subr.mxu0 0.0
    %5120 = vmatpush1.msra.mxu0 %v101
    %5121 = vmatprep.subr.mxu0 0.0
    %5122 = vmatpush1.msra.mxu0 %v102
    %5123 = vmatprep.subr.mxu0 0.0
    %5124 = vmatpush1.msra.mxu0 0.0
    %5125 = vmatprep.subr.mxu0 0.0
    %5126 = vmatpush1.msra.mxu0 0.0
    %5127 = vmatprep.subr.mxu0 0.0
    %5128 = vmatpush1.msra.mxu0 0.0
    %5129 = vmatprep.subr.mxu0 0.0
    %5130 = vmatpush1.msra.mxu0 0.0
    %5131 = vmatprep.subr.mxu0 0.0
    %5132 = vmatpush1.msra.mxu0 0.0
    %5133 = vmatprep.subr.mxu0 0.0
    %5134 = vmatpush1.msra.mxu0 0.0
    %5135 = vmatprep.subr.mxu0 0.0
    %5136 = vmatpush1.msra.mxu0 0.0
    %5137 = vmatprep.subr.mxu0 0.0
    %5138 = vmatpush1.msra.mxu0 0.0
    %5139 = vmatprep.subr.mxu0 0.0
    %5140 = vmatpush1.msra.mxu0 0.0
    %5141 = vmatprep.subr.mxu0 0.0
    %5142 = vmatpush1.msra.mxu0 0.0
    %5143 = vmatprep.subr.mxu0 0.0
    %5144 = vmatpush1.msra.mxu0 0.0
    %5145 = vmatprep.subr.mxu0 0.0
    %5146 = vmatpush1.msra.mxu0 0.0
    %5147 = vmatprep.subr.mxu0 0.0
    %5148 = vmatpush1.msra.mxu0 0.0
    %5149 = vmatprep.subr.mxu0 0.0
    %5150 = vmatpush1.msra.mxu0 0.0
    %5151 = vmatprep.subr.mxu0 0.0
    %5152 = vmatpush1.msra.mxu0 0.0
    %5153 = vmatprep.subr.mxu0 0.0
    %5154 = vmatpush1.msra.mxu0 0.0
    %5155 = vmatprep.mubr.f32.mxu0 0.0
    %5156 = vmatmul.mubr.f32.gmra.mrb[0].mxu0 %v5090
    %v5157 = vpop.f32.mrb[0].mxu0
    %v5158 = vadd.f32 %v297, %v5157
    %v5159 = vpop.f32.mrb[0].mxu0
    %5160 = vdwg.mxu0
    %v5161 = vtanh.pop %v5158
    %5162 = vmatprep.subr.mxu0 0.0
    %5163 = vmatpush1.msra.mxu0 %v104
    %5164 = vmatprep.subr.mxu0 0.0
    %5165 = vmatpush1.msra.mxu0 %v105
    %5166 = vmatprep.subr.mxu0 0.0
    %5167 = vmatpush1.msra.mxu0 %v106
    %5168 = vmatprep.subr.mxu0 0.0
    %5169 = vmatpush1.msra.mxu0 %v107
    %5170 = vmatprep.subr.mxu0 0.0
    %5171 = vmatpush1.msra.mxu0 %v108
    %5172 = vmatprep.subr.mxu0 0.0
    %5173 = vmatpush1.msra.mxu0 %v109
    %5174 = vmatprep.subr.mxu0 0.0
    %5175 = vmatpush1.msra.mxu0 %v110
    %5176 = vmatprep.subr.mxu0 0.0
    %5177 = vmatpush1.msra.mxu0 %v111
    %5178 = vmatprep.subr.mxu0 0.0
    %5179 = vmatpush1.msra.mxu0 %v112
    %5180 = vmatprep.subr.mxu0 0.0
    %5181 = vmatpush1.msra.mxu0 %v113
    %5182 = vmatprep.subr.mxu0 0.0
    %5183 = vmatpush1.msra.mxu0 %v114
    %5184 = vmatprep.subr.mxu0 0.0
    %5185 = vmatpush1.msra.mxu0 %v115
    %5186 = vmatprep.subr.mxu0 0.0
    %5187 = vmatpush1.msra.mxu0 %v116
    %5188 = vmatprep.subr.mxu0 0.0
    %5189 = vmatpush1.msra.mxu0 %v117
    %5190 = vmatprep.subr.mxu0 0.0
    %5191 = vmatpush1.msra.mxu0 %v118
    %5192 = vmatprep.subr.mxu0 0.0
    %5193 = vmatpush1.msra.mxu0 %v119
    %5194 = vmatprep.subr.mxu0 0.0
    %5195 = vmatpush1.msra.mxu0 0.0
    %5196 = vmatprep.subr.mxu0 0.0
    %5197 = vmatpush1.msra.mxu0 0.0
    %5198 = vmatprep.subr.mxu0 0.0
    %5199 = vmatpush1.msra.mxu0 0.0
    %5200 = vmatprep.subr.mxu0 0.0
    %5201 = vmatpush1.msra.mxu0 0.0
    %5202 = vmatprep.subr.mxu0 0.0
    %5203 = vmatpush1.msra.mxu0 0.0
    %5204 = vmatprep.subr.mxu0 0.0
    %5205 = vmatpush1.msra.mxu0 0.0
    %5206 = vmatprep.subr.mxu0 0.0
    %5207 = vmatpush1.msra.mxu0 0.0
    %5208 = vmatprep.subr.mxu0 0.0
    %5209 = vmatpush1.msra.mxu0 0.0
    %5210 = vmatprep.subr.mxu0 0.0
    %5211 = vmatpush1.msra.mxu0 0.0
    %5212 = vmatprep.subr.mxu0 0.0
    %5213 = vmatpush1.msra.mxu0 0.0
    %5214 = vmatprep.subr.mxu0 0.0
    %5215 = vmatpush1.msra.mxu0 0.0
    %5216 = vmatprep.subr.mxu0 0.0
    %5217 = vmatpush1.msra.mxu0 0.0
    %5218 = vmatprep.subr.mxu0 0.0
    %5219 = vmatpush1.msra.mxu0 0.0
    %5220 = vmatprep.subr.mxu0 0.0
    %5221 = vmatpush1.msra.mxu0 0.0
    %5222 = vmatprep.subr.mxu0 0.0
    %5223 = vmatpush1.msra.mxu0 0.0
    %5224 = vmatprep.subr.mxu0 0.0
    %5225 = vmatpush1.msra.mxu0 0.0
    %5226 = vmatprep.mubr.f32.mxu0 0.0
    %5227 = vmatmul.mubr.f32.gmra.mrb[0].mxu0 %v5161
    %v5228 = vpop.f32.mrb[0].mxu0
    %v5229 = vadd.f32 %v374, %v5228
    %v5230 = vpop.f32.mrb[0].mxu0
    %5231 = vdwg.mxu0
    %v5232 = vmul.f32 %v5229, 2.0
    %v5233 = vadd.f32 %v5088, %v5232
    %v5234 = vmul.f32 %v4655, %v5229
    %v5235 = vadd.f32 %v4073, %v5234
    %5236 = vmatprep.subr.mxu0 0.0
    %5237 = vmatpush1.msra.mxu0 %v87
    %5238 = vmatprep.subr.mxu0 0.0
    %5239 = vmatpush1.msra.mxu0 %v88
    %5240 = vmatprep.subr.mxu0 0.0
    %5241 = vmatpush1.msra.mxu0 %v89
    %5242 = vmatprep.subr.mxu0 0.0
    %5243 = vmatpush1.msra.mxu0 %v90
    %5244 = vmatprep.subr.mxu0 0.0
    %5245 = vmatpush1.msra.mxu0 %v91
    %5246 = vmatprep.subr.mxu0 0.0
    %5247 = vmatpush1.msra.mxu0 %v92
    %5248 = vmatprep.subr.mxu0 0.0
    %5249 = vmatpush1.msra.mxu0 %v93
    %5250 = vmatprep.subr.mxu0 0.0
    %5251 = vmatpush1.msra.mxu0 %v94
    %5252 = vmatprep.subr.mxu0 0.0
    %5253 = vmatpush1.msra.mxu0 %v95
    %5254 = vmatprep.subr.mxu0 0.0
    %5255 = vmatpush1.msra.mxu0 %v96
    %5256 = vmatprep.subr.mxu0 0.0
    %5257 = vmatpush1.msra.mxu0 %v97
    %5258 = vmatprep.subr.mxu0 0.0
    %5259 = vmatpush1.msra.mxu0 %v98
    %5260 = vmatprep.subr.mxu0 0.0
    %5261 = vmatpush1.msra.mxu0 %v99
    %5262 = vmatprep.subr.mxu0 0.0
    %5263 = vmatpush1.msra.mxu0 %v100
    %5264 = vmatprep.subr.mxu0 0.0
    %5265 = vmatpush1.msra.mxu0 %v101
    %5266 = vmatprep.subr.mxu0 0.0
    %5267 = vmatpush1.msra.mxu0 %v102
    %5268 = vmatprep.subr.mxu0 0.0
    %5269 = vmatpush1.msra.mxu0 0.0
    %5270 = vmatprep.subr.mxu0 0.0
    %5271 = vmatpush1.msra.mxu0 0.0
    %5272 = vmatprep.subr.mxu0 0.0
    %5273 = vmatpush1.msra.mxu0 0.0
    %5274 = vmatprep.subr.mxu0 0.0
    %5275 = vmatpush1.msra.mxu0 0.0
    %5276 = vmatprep.subr.mxu0 0.0
    %5277 = vmatpush1.msra.mxu0 0.0
    %5278 = vmatprep.subr.mxu0 0.0
    %5279 = vmatpush1.msra.mxu0 0.0
    %5280 = vmatprep.subr.mxu0 0.0
    %5281 = vmatpush1.msra.mxu0 0.0
    %5282 = vmatprep.subr.mxu0 0.0
    %5283 = vmatpush1.msra.mxu0 0.0
    %5284 = vmatprep.subr.mxu0 0.0
    %5285 = vmatpush1.msra.mxu0 0.0
    %5286 = vmatprep.subr.mxu0 0.0
    %5287 = vmatpush1.msra.mxu0 0.0
    %5288 = vmatprep.subr.mxu0 0.0
    %5289 = vmatpush1.msra.mxu0 0.0
    %5290 = vmatprep.subr.mxu0 0.0
    %5291 = vmatpush1.msra.mxu0 0.0
    %5292 = vmatprep.subr.mxu0 0.0
    %5293 = vmatpush1.msra.mxu0 0.0
    %5294 = vmatprep.subr.mxu0 0.0
    %5295 = vmatpush1.msra.mxu0 0.0
    %5296 = vmatprep.subr.mxu0 0.0
    %5297 = vmatpush1.msra.mxu0 0.0
    %5298 = vmatprep.subr.mxu0 0.0
    %5299 = vmatpush1.msra.mxu0 0.0
    %5300 = vmatprep.mubr.f32.mxu0 0.0
    %5301 = vmatmul.mubr.f32.gmra.mrb[0].mxu0 %v5235
    %v5302 = vpop.f32.mrb[0].mxu0
    %v5303 = vadd.f32 %v297, %v5302
    %v5304 = vpop.f32.mrb[0].mxu0
    %5305 = vdwg.mxu0
    %v5306 = vtanh.pop %v5303
    %5307 = vmatprep.subr.mxu0 0.0
    %5308 = vmatpush1.msra.mxu0 %v104
    %5309 = vmatprep.subr.mxu0 0.0
    %5310 = vmatpush1.msra.mxu0 %v105
    %5311 = vmatprep.subr.mxu0 0.0
    %5312 = vmatpush1.msra.mxu0 %v106
    %5313 = vmatprep.subr.mxu0 0.0
    %5314 = vmatpush1.msra.mxu0 %v107
    %5315 = vmatprep.subr.mxu0 0.0
    %5316 = vmatpush1.msra.mxu0 %v108
    %5317 = vmatprep.subr.mxu0 0.0
    %5318 = vmatpush1.msra.mxu0 %v109
    %5319 = vmatprep.subr.mxu0 0.0
    %5320 = vmatpush1.msra.mxu0 %v110
    %5321 = vmatprep.subr.mxu0 0.0
    %5322 = vmatpush1.msra.mxu0 %v111
    %5323 = vmatprep.subr.mxu0 0.0
    %5324 = vmatpush1.msra.mxu0 %v112
    %5325 = vmatprep.subr.mxu0 0.0
    %5326 = vmatpush1.msra.mxu0 %v113
    %5327 = vmatprep.subr.mxu0 0.0
    %5328 = vmatpush1.msra.mxu0 %v114
    %5329 = vmatprep.subr.mxu0 0.0
    %5330 = vmatpush1.msra.mxu0 %v115
    %5331 = vmatprep.subr.mxu0 0.0
    %5332 = vmatpush1.msra.mxu0 %v116
    %5333 = vmatprep.subr.mxu0 0.0
    %5334 = vmatpush1.msra.mxu0 %v117
    %5335 = vmatprep.subr.mxu0 0.0
    %5336 = vmatpush1.msra.mxu0 %v118
    %5337 = vmatprep.subr.mxu0 0.0
    %5338 = vmatpush1.msra.mxu0 %v119
    %5339 = vmatprep.subr.mxu0 0.0
    %5340 = vmatpush1.msra.mxu0 0.0
    %5341 = vmatprep.subr.mxu0 0.0
    %5342 = vmatpush1.msra.mxu0 0.0
    %5343 = vmatprep.subr.mxu0 0.0
    %5344 = vmatpush1.msra.mxu0 0.0
    %5345 = vmatprep.subr.mxu0 0.0
    %5346 = vmatpush1.msra.mxu0 0.0
    %5347 = vmatprep.subr.mxu0 0.0
    %5348 = vmatpush1.msra.mxu0 0.0
    %5349 = vmatprep.subr.mxu0 0.0
    %5350 = vmatpush1.msra.mxu0 0.0
    %5351 = vmatprep.subr.mxu0 0.0
    %5352 = vmatpush1.msra.mxu0 0.0
    %5353 = vmatprep.subr.mxu0 0.0
    %5354 = vmatpush1.msra.mxu0 0.0
    %5355 = vmatprep.subr.mxu0 0.0
    %5356 = vmatpush1.msra.mxu0 0.0
    %5357 = vmatprep.subr.mxu0 0.0
    %5358 = vmatpush1.msra.mxu0 0.0
    %5359 = vmatprep.subr.mxu0 0.0
    %5360 = vmatpush1.msra.mxu0 0.0
    %5361 = vmatprep.subr.mxu0 0.0
    %5362 = vmatpush1.msra.mxu0 0.0
    %5363 = vmatprep.subr.mxu0 0.0
    %5364 = vmatpush1.msra.mxu0 0.0
    %5365 = vmatprep.subr.mxu0 0.0
    %5366 = vmatpush1.msra.mxu0 0.0
    %5367 = vmatprep.subr.mxu0 0.0
    %5368 = vmatpush1.msra.mxu0 0.0
    %5369 = vmatprep.subr.mxu0 0.0
    %5370 = vmatpush1.msra.mxu0 0.0
    %5371 = vmatprep.mubr.f32.mxu0 0.0
    %5372 = vmatmul.mubr.f32.gmra.mrb[0].mxu0 %v5306
    %v5373 = vpop.f32.mrb[0].mxu0
    %v5374 = vadd.f32 %v374, %v5373
    %v5375 = vpop.f32.mrb[0].mxu0
    %5376 = vdwg.mxu0
    %v5377 = vadd.f32 %v5233, %v5374
    %v5378 = vmul.f32 %v4800, %v5377
    %v5379 = vadd.f32 %v4073, %v5378
    %5380 = vmatprep.subr.mxu0 0.0
    %5381 = vmatpush1.msra.mxu0 %v122
    %5382 = vmatprep.subr.mxu0 0.0
    %5383 = vmatpush1.msra.mxu0 %v123
    %5384 = vmatprep.subr.mxu0 0.0
    %5385 = vmatpush1.msra.mxu0 %v124
    %5386 = vmatprep.subr.mxu0 0.0
    %5387 = vmatpush1.msra.mxu0 %v125
    %5388 = vmatprep.subr.mxu0 0.0
    %5389 = vmatpush1.msra.mxu0 %v126
    %5390 = vmatprep.subr.mxu0 0.0
    %5391 = vmatpush1.msra.mxu0 %v127
    %5392 = vmatprep.subr.mxu0 0.0
    %5393 = vmatpush1.msra.mxu0 %v128
    %5394 = vmatprep.subr.mxu0 0.0
    %5395 = vmatpush1.msra.mxu0 %v129
    %5396 = vmatprep.subr.mxu0 0.0
    %5397 = vmatpush1.msra.mxu0 %v130
    %5398 = vmatprep.subr.mxu0 0.0
    %5399 = vmatpush1.msra.mxu0 %v131
    %5400 = vmatprep.subr.mxu0 0.0
    %5401 = vmatpush1.msra.mxu0 %v132
    %5402 = vmatprep.subr.mxu0 0.0
    %5403 = vmatpush1.msra.mxu0 %v133
    %5404 = vmatprep.subr.mxu0 0.0
    %5405 = vmatpush1.msra.mxu0 %v134
    %5406 = vmatprep.subr.mxu0 0.0
    %5407 = vmatpush1.msra.mxu0 %v135
    %5408 = vmatprep.subr.mxu0 0.0
    %5409 = vmatpush1.msra.mxu0 %v136
    %5410 = vmatprep.subr.mxu0 0.0
    %5411 = vmatpush1.msra.mxu0 %v137
    %5412 = vmatprep.subr.mxu0 0.0
    %5413 = vmatpush1.msra.mxu0 0.0
    %5414 = vmatprep.subr.mxu0 0.0
    %5415 = vmatpush1.msra.mxu0 0.0
    %5416 = vmatprep.subr.mxu0 0.0
    %5417 = vmatpush1.msra.mxu0 0.0
    %5418 = vmatprep.subr.mxu0 0.0
    %5419 = vmatpush1.msra.mxu0 0.0
    %5420 = vmatprep.subr.mxu0 0.0
    %5421 = vmatpush1.msra.mxu0 0.0
    %5422 = vmatprep.subr.mxu0 0.0
    %5423 = vmatpush1.msra.mxu0 0.0
    %5424 = vmatprep.subr.mxu0 0.0
    %5425 = vmatpush1.msra.mxu0 0.0
    %5426 = vmatprep.subr.mxu0 0.0
    %5427 = vmatpush1.msra.mxu0 0.0
    %5428 = vmatprep.subr.mxu0 0.0
    %5429 = vmatpush1.msra.mxu0 0.0
    %5430 = vmatprep.subr.mxu0 0.0
    %5431 = vmatpush1.msra.mxu0 0.0
    %5432 = vmatprep.subr.mxu0 0.0
    %5433 = vmatpush1.msra.mxu0 0.0
    %5434 = vmatprep.subr.mxu0 0.0
    %5435 = vmatpush1.msra.mxu0 0.0
    %5436 = vmatprep.subr.mxu0 0.0
    %5437 = vmatpush1.msra.mxu0 0.0
    %5438 = vmatprep.subr.mxu0 0.0
    %5439 = vmatpush1.msra.mxu0 0.0
    %5440 = vmatprep.subr.mxu0 0.0
    %5441 = vmatpush1.msra.mxu0 0.0
    %5442 = vmatprep.subr.mxu0 0.0
    %5443 = vmatpush1.msra.mxu0 0.0
    %5444 = vmatprep.mubr.f32.mxu0 0.0
    %5445 = vmatmul.mubr.f32.gmra.mrb[0].mxu0 %v4802
    %v5446 = vpop.f32.mrb[0].mxu0
    %v5447 = vadd.f32 %v143, %v5446
    %v5448 = vpop.f32.mrb[0].mxu0
    %5449 = vdwg.mxu0
    %s5450 = scalar_lea.vmem [#allocation12], 64
    %5451 = vst [vmem:[%s5450] sm:$0xff] %v5447
    %5452 = vmatprep.subr.mxu0 0.0
    %5453 = vmatpush1.msra.mxu0 %v122
    %5454 = vmatprep.subr.mxu0 0.0
    %5455 = vmatpush1.msra.mxu0 %v123
    %5456 = vmatprep.subr.mxu0 0.0
    %5457 = vmatpush1.msra.mxu0 %v124
    %5458 = vmatprep.subr.mxu0 0.0
    %5459 = vmatpush1.msra.mxu0 %v125
    %5460 = vmatprep.subr.mxu0 0.0
    %5461 = vmatpush1.msra.mxu0 %v126
    %5462 = vmatprep.subr.mxu0 0.0
    %5463 = vmatpush1.msra.mxu0 %v127
    %5464 = vmatprep.subr.mxu0 0.0
    %5465 = vmatpush1.msra.mxu0 %v128
    %5466 = vmatprep.subr.mxu0 0.0
    %5467 = vmatpush1.msra.mxu0 %v129
    %5468 = vmatprep.subr.mxu0 0.0
    %5469 = vmatpush1.msra.mxu0 %v130
    %5470 = vmatprep.subr.mxu0 0.0
    %5471 = vmatpush1.msra.mxu0 %v131
    %5472 = vmatprep.subr.mxu0 0.0
    %5473 = vmatpush1.msra.mxu0 %v132
    %5474 = vmatprep.subr.mxu0 0.0
    %5475 = vmatpush1.msra.mxu0 %v133
    %5476 = vmatprep.subr.mxu0 0.0
    %5477 = vmatpush1.msra.mxu0 %v134
    %5478 = vmatprep.subr.mxu0 0.0
    %5479 = vmatpush1.msra.mxu0 %v135
    %5480 = vmatprep.subr.mxu0 0.0
    %5481 = vmatpush1.msra.mxu0 %v136
    %5482 = vmatprep.subr.mxu0 0.0
    %5483 = vmatpush1.msra.mxu0 %v137
    %5484 = vmatprep.subr.mxu0 0.0
    %5485 = vmatpush1.msra.mxu0 0.0
    %5486 = vmatprep.subr.mxu0 0.0
    %5487 = vmatpush1.msra.mxu0 0.0
    %5488 = vmatprep.subr.mxu0 0.0
    %5489 = vmatpush1.msra.mxu0 0.0
    %5490 = vmatprep.subr.mxu0 0.0
    %5491 = vmatpush1.msra.mxu0 0.0
    %5492 = vmatprep.subr.mxu0 0.0
    %5493 = vmatpush1.msra.mxu0 0.0
    %5494 = vmatprep.subr.mxu0 0.0
    %5495 = vmatpush1.msra.mxu0 0.0
    %5496 = vmatprep.subr.mxu0 0.0
    %5497 = vmatpush1.msra.mxu0 0.0
    %5498 = vmatprep.subr.mxu0 0.0
    %5499 = vmatpush1.msra.mxu0 0.0
    %5500 = vmatprep.subr.mxu0 0.0
    %5501 = vmatpush1.msra.mxu0 0.0
    %5502 = vmatprep.subr.mxu0 0.0
    %5503 = vmatpush1.msra.mxu0 0.0
    %5504 = vmatprep.subr.mxu0 0.0
    %5505 = vmatpush1.msra.mxu0 0.0
    %5506 = vmatprep.subr.mxu0 0.0
    %5507 = vmatpush1.msra.mxu0 0.0
    %5508 = vmatprep.subr.mxu0 0.0
    %5509 = vmatpush1.msra.mxu0 0.0
    %5510 = vmatprep.subr.mxu0 0.0
    %5511 = vmatpush1.msra.mxu0 0.0
    %5512 = vmatprep.subr.mxu0 0.0
    %5513 = vmatpush1.msra.mxu0 0.0
    %5514 = vmatprep.subr.mxu0 0.0
    %5515 = vmatpush1.msra.mxu0 0.0
    %5516 = vmatprep.mubr.f32.mxu0 0.0
    %5517 = vmatmul.mubr.f32.gmra.mrb[0].mxu0 %v5379
    %v5518 = vpop.f32.mrb[0].mxu0
    %v5519 = vadd.f32 %v143, %v5518
    %v5520 = vpop.f32.mrb[0].mxu0
    %5521 = vdwg.mxu0
    %s5522 = scalar_lea.vmem [#allocation12], 72
    %5523 = vst [vmem:[%s5522] sm:$0xff] %v5519
    %s5524 = sld [smem:[#allocation3 + $0x4]]
    %s5525 = smul.f32 %s5524, 0.5
    %v5526 = vrcp.pop 6.0
    %s5527 = vtos %v5526
    %s5528 = smul.f32 %s5524, %s5527
    %5529 = vmatprep.subr.mxu0 0.0
    %5530 = vmatpush1.msra.mxu0 %v87
    %5531 = vmatprep.subr.mxu0 0.0
    %5532 = vmatpush1.msra.mxu0 %v88
    %5533 = vmatprep.subr.mxu0 0.0
    %5534 = vmatpush1.msra.mxu0 %v89
    %5535 = vmatprep.subr.mxu0 0.0
    %5536 = vmatpush1.msra.mxu0 %v90
    %5537 = vmatprep.subr.mxu0 0.0
    %5538 = vmatpush1.msra.mxu0 %v91
    %5539 = vmatprep.subr.mxu0 0.0
    %5540 = vmatpush1.msra.mxu0 %v92
    %5541 = vmatprep.subr.mxu0 0.0
    %5542 = vmatpush1.msra.mxu0 %v93
    %5543 = vmatprep.subr.mxu0 0.0
    %5544 = vmatpush1.msra.mxu0 %v94
    %5545 = vmatprep.subr.mxu0 0.0
    %5546 = vmatpush1.msra.mxu0 %v95
    %5547 = vmatprep.subr.mxu0 0.0
    %5548 = vmatpush1.msra.mxu0 %v96
    %5549 = vmatprep.subr.mxu0 0.0
    %5550 = vmatpush1.msra.mxu0 %v97
    %5551 = vmatprep.subr.mxu0 0.0
    %5552 = vmatpush1.msra.mxu0 %v98
    %5553 = vmatprep.subr.mxu0 0.0
    %5554 = vmatpush1.msra.mxu0 %v99
    %5555 = vmatprep.subr.mxu0 0.0
    %5556 = vmatpush1.msra.mxu0 %v100
    %5557 = vmatprep.subr.mxu0 0.0
    %5558 = vmatpush1.msra.mxu0 %v101
    %5559 = vmatprep.subr.mxu0 0.0
    %5560 = vmatpush1.msra.mxu0 %v102
    %5561 = vmatprep.subr.mxu0 0.0
    %5562 = vmatpush1.msra.mxu0 0.0
    %5563 = vmatprep.subr.mxu0 0.0
    %5564 = vmatpush1.msra.mxu0 0.0
    %5565 = vmatprep.subr.mxu0 0.0
    %5566 = vmatpush1.msra.mxu0 0.0
    %5567 = vmatprep.subr.mxu0 0.0
    %5568 = vmatpush1.msra.mxu0 0.0
    %5569 = vmatprep.subr.mxu0 0.0
    %5570 = vmatpush1.msra.mxu0 0.0
    %5571 = vmatprep.subr.mxu0 0.0
    %5572 = vmatpush1.msra.mxu0 0.0
    %5573 = vmatprep.subr.mxu0 0.0
    %5574 = vmatpush1.msra.mxu0 0.0
    %5575 = vmatprep.subr.mxu0 0.0
    %5576 = vmatpush1.msra.mxu0 0.0
    %5577 = vmatprep.subr.mxu0 0.0
    %5578 = vmatpush1.msra.mxu0 0.0
    %5579 = vmatprep.subr.mxu0 0.0
    %5580 = vmatpush1.msra.mxu0 0.0
    %5581 = vmatprep.subr.mxu0 0.0
    %5582 = vmatpush1.msra.mxu0 0.0
    %5583 = vmatprep.subr.mxu0 0.0
    %5584 = vmatpush1.msra.mxu0 0.0
    %5585 = vmatprep.subr.mxu0 0.0
    %5586 = vmatpush1.msra.mxu0 0.0
    %5587 = vmatprep.subr.mxu0 0.0
    %5588 = vmatpush1.msra.mxu0 0.0
    %5589 = vmatprep.subr.mxu0 0.0
    %5590 = vmatpush1.msra.mxu0 0.0
    %5591 = vmatprep.subr.mxu0 0.0
    %5592 = vmatpush1.msra.mxu0 0.0
    %5593 = vmatprep.mubr.f32.mxu0 0.0
    %5594 = vmatmul.mubr.f32.gmra.mrb[0].mxu0 %v4802
    %v5595 = vpop.f32.mrb[0].mxu0
    %v5596 = vadd.f32 %v297, %v5595
    %v5597 = vpop.f32.mrb[0].mxu0
    %5598 = vdwg.mxu0
    %v5599 = vtanh.pop %v5596
    %5600 = vmatprep.subr.mxu0 0.0
    %5601 = vmatpush1.msra.mxu0 %v104
    %5602 = vmatprep.subr.mxu0 0.0
    %5603 = vmatpush1.msra.mxu0 %v105
    %5604 = vmatprep.subr.mxu0 0.0
    %5605 = vmatpush1.msra.mxu0 %v106
    %5606 = vmatprep.subr.mxu0 0.0
    %5607 = vmatpush1.msra.mxu0 %v107
    %5608 = vmatprep.subr.mxu0 0.0
    %5609 = vmatpush1.msra.mxu0 %v108
    %5610 = vmatprep.subr.mxu0 0.0
    %5611 = vmatpush1.msra.mxu0 %v109
    %5612 = vmatprep.subr.mxu0 0.0
    %5613 = vmatpush1.msra.mxu0 %v110
    %5614 = vmatprep.subr.mxu0 0.0
    %5615 = vmatpush1.msra.mxu0 %v111
    %5616 = vmatprep.subr.mxu0 0.0
    %5617 = vmatpush1.msra.mxu0 %v112
    %5618 = vmatprep.subr.mxu0 0.0
    %5619 = vmatpush1.msra.mxu0 %v113
    %5620 = vmatprep.subr.mxu0 0.0
    %5621 = vmatpush1.msra.mxu0 %v114
    %5622 = vmatprep.subr.mxu0 0.0
    %5623 = vmatpush1.msra.mxu0 %v115
    %5624 = vmatprep.subr.mxu0 0.0
    %5625 = vmatpush1.msra.mxu0 %v116
    %5626 = vmatprep.subr.mxu0 0.0
    %5627 = vmatpush1.msra.mxu0 %v117
    %5628 = vmatprep.subr.mxu0 0.0
    %5629 = vmatpush1.msra.mxu0 %v118
    %5630 = vmatprep.subr.mxu0 0.0
    %5631 = vmatpush1.msra.mxu0 %v119
    %5632 = vmatprep.subr.mxu0 0.0
    %5633 = vmatpush1.msra.mxu0 0.0
    %5634 = vmatprep.subr.mxu0 0.0
    %5635 = vmatpush1.msra.mxu0 0.0
    %5636 = vmatprep.subr.mxu0 0.0
    %5637 = vmatpush1.msra.mxu0 0.0
    %5638 = vmatprep.subr.mxu0 0.0
    %5639 = vmatpush1.msra.mxu0 0.0
    %5640 = vmatprep.subr.mxu0 0.0
    %5641 = vmatpush1.msra.mxu0 0.0
    %5642 = vmatprep.subr.mxu0 0.0
    %5643 = vmatpush1.msra.mxu0 0.0
    %5644 = vmatprep.subr.mxu0 0.0
    %5645 = vmatpush1.msra.mxu0 0.0
    %5646 = vmatprep.subr.mxu0 0.0
    %5647 = vmatpush1.msra.mxu0 0.0
    %5648 = vmatprep.subr.mxu0 0.0
    %5649 = vmatpush1.msra.mxu0 0.0
    %5650 = vmatprep.subr.mxu0 0.0
    %5651 = vmatpush1.msra.mxu0 0.0
    %5652 = vmatprep.subr.mxu0 0.0
    %5653 = vmatpush1.msra.mxu0 0.0
    %5654 = vmatprep.subr.mxu0 0.0
    %5655 = vmatpush1.msra.mxu0 0.0
    %5656 = vmatprep.subr.mxu0 0.0
    %5657 = vmatpush1.msra.mxu0 0.0
    %5658 = vmatprep.subr.mxu0 0.0
    %5659 = vmatpush1.msra.mxu0 0.0
    %5660 = vmatprep.subr.mxu0 0.0
    %5661 = vmatpush1.msra.mxu0 0.0
    %5662 = vmatprep.subr.mxu0 0.0
    %5663 = vmatpush1.msra.mxu0 0.0
    %5664 = vmatprep.mubr.f32.mxu0 0.0
    %5665 = vmatmul.mubr.f32.gmra.mrb[0].mxu0 %v5599
    %v5666 = vpop.f32.mrb[0].mxu0
    %v5667 = vadd.f32 %v374, %v5666
    %v5668 = vpop.f32.mrb[0].mxu0
    %5669 = vdwg.mxu0
    %v5670 = vstv %s5525
    %v5671 = vmul.f32 %v5670, %v5667
    %v5672 = vadd.f32 %v4802, %v5671
    %5673 = vmatprep.subr.mxu0 0.0
    %5674 = vmatpush1.msra.mxu0 %v87
    %5675 = vmatprep.subr.mxu0 0.0
    %5676 = vmatpush1.msra.mxu0 %v88
    %5677 = vmatprep.subr.mxu0 0.0
    %5678 = vmatpush1.msra.mxu0 %v89
    %5679 = vmatprep.subr.mxu0 0.0
    %5680 = vmatpush1.msra.mxu0 %v90
    %5681 = vmatprep.subr.mxu0 0.0
    %5682 = vmatpush1.msra.mxu0 %v91
    %5683 = vmatprep.subr.mxu0 0.0
    %5684 = vmatpush1.msra.mxu0 %v92
    %5685 = vmatprep.subr.mxu0 0.0
    %5686 = vmatpush1.msra.mxu0 %v93
    %5687 = vmatprep.subr.mxu0 0.0
    %5688 = vmatpush1.msra.mxu0 %v94
    %5689 = vmatprep.subr.mxu0 0.0
    %5690 = vmatpush1.msra.mxu0 %v95
    %5691 = vmatprep.subr.mxu0 0.0
    %5692 = vmatpush1.msra.mxu0 %v96
    %5693 = vmatprep.subr.mxu0 0.0
    %5694 = vmatpush1.msra.mxu0 %v97
    %5695 = vmatprep.subr.mxu0 0.0
    %5696 = vmatpush1.msra.mxu0 %v98
    %5697 = vmatprep.subr.mxu0 0.0
    %5698 = vmatpush1.msra.mxu0 %v99
    %5699 = vmatprep.subr.mxu0 0.0
    %5700 = vmatpush1.msra.mxu0 %v100
    %5701 = vmatprep.subr.mxu0 0.0
    %5702 = vmatpush1.msra.mxu0 %v101
    %5703 = vmatprep.subr.mxu0 0.0
    %5704 = vmatpush1.msra.mxu0 %v102
    %5705 = vmatprep.subr.mxu0 0.0
    %5706 = vmatpush1.msra.mxu0 0.0
    %5707 = vmatprep.subr.mxu0 0.0
    %5708 = vmatpush1.msra.mxu0 0.0
    %5709 = vmatprep.subr.mxu0 0.0
    %5710 = vmatpush1.msra.mxu0 0.0
    %5711 = vmatprep.subr.mxu0 0.0
    %5712 = vmatpush1.msra.mxu0 0.0
    %5713 = vmatprep.subr.mxu0 0.0
    %5714 = vmatpush1.msra.mxu0 0.0
    %5715 = vmatprep.subr.mxu0 0.0
    %5716 = vmatpush1.msra.mxu0 0.0
    %5717 = vmatprep.subr.mxu0 0.0
    %5718 = vmatpush1.msra.mxu0 0.0
    %5719 = vmatprep.subr.mxu0 0.0
    %5720 = vmatpush1.msra.mxu0 0.0
    %5721 = vmatprep.subr.mxu0 0.0
    %5722 = vmatpush1.msra.mxu0 0.0
    %5723 = vmatprep.subr.mxu0 0.0
    %5724 = vmatpush1.msra.mxu0 0.0
    %5725 = vmatprep.subr.mxu0 0.0
    %5726 = vmatpush1.msra.mxu0 0.0
    %5727 = vmatprep.subr.mxu0 0.0
    %5728 = vmatpush1.msra.mxu0 0.0
    %5729 = vmatprep.subr.mxu0 0.0
    %5730 = vmatpush1.msra.mxu0 0.0
    %5731 = vmatprep.subr.mxu0 0.0
    %5732 = vmatpush1.msra.mxu0 0.0
    %5733 = vmatprep.subr.mxu0 0.0
    %5734 = vmatpush1.msra.mxu0 0.0
    %5735 = vmatprep.subr.mxu0 0.0
    %5736 = vmatpush1.msra.mxu0 0.0
    %5737 = vmatprep.mubr.f32.mxu0 0.0
    %5738 = vmatmul.mubr.f32.gmra.mrb[0].mxu0 %v5672
    %v5739 = vpop.f32.mrb[0].mxu0
    %v5740 = vadd.f32 %v297, %v5739
    %v5741 = vpop.f32.mrb[0].mxu0
    %5742 = vdwg.mxu0
    %v5743 = vtanh.pop %v5740
    %5744 = vmatprep.subr.mxu0 0.0
    %5745 = vmatpush1.msra.mxu0 %v104
    %5746 = vmatprep.subr.mxu0 0.0
    %5747 = vmatpush1.msra.mxu0 %v105
    %5748 = vmatprep.subr.mxu0 0.0
    %5749 = vmatpush1.msra.mxu0 %v106
    %5750 = vmatprep.subr.mxu0 0.0
    %5751 = vmatpush1.msra.mxu0 %v107
    %5752 = vmatprep.subr.mxu0 0.0
    %5753 = vmatpush1.msra.mxu0 %v108
    %5754 = vmatprep.subr.mxu0 0.0
    %5755 = vmatpush1.msra.mxu0 %v109
    %5756 = vmatprep.subr.mxu0 0.0
    %5757 = vmatpush1.msra.mxu0 %v110
    %5758 = vmatprep.subr.mxu0 0.0
    %5759 = vmatpush1.msra.mxu0 %v111
    %5760 = vmatprep.subr.mxu0 0.0
    %5761 = vmatpush1.msra.mxu0 %v112
    %5762 = vmatprep.subr.mxu0 0.0
    %5763 = vmatpush1.msra.mxu0 %v113
    %5764 = vmatprep.subr.mxu0 0.0
    %5765 = vmatpush1.msra.mxu0 %v114
    %5766 = vmatprep.subr.mxu0 0.0
    %5767 = vmatpush1.msra.mxu0 %v115
    %5768 = vmatprep.subr.mxu0 0.0
    %5769 = vmatpush1.msra.mxu0 %v116
    %5770 = vmatprep.subr.mxu0 0.0
    %5771 = vmatpush1.msra.mxu0 %v117
    %5772 = vmatprep.subr.mxu0 0.0
    %5773 = vmatpush1.msra.mxu0 %v118
    %5774 = vmatprep.subr.mxu0 0.0
    %5775 = vmatpush1.msra.mxu0 %v119
    %5776 = vmatprep.subr.mxu0 0.0
    %5777 = vmatpush1.msra.mxu0 0.0
    %5778 = vmatprep.subr.mxu0 0.0
    %5779 = vmatpush1.msra.mxu0 0.0
    %5780 = vmatprep.subr.mxu0 0.0
    %5781 = vmatpush1.msra.mxu0 0.0
    %5782 = vmatprep.subr.mxu0 0.0
    %5783 = vmatpush1.msra.mxu0 0.0
    %5784 = vmatprep.subr.mxu0 0.0
    %5785 = vmatpush1.msra.mxu0 0.0
    %5786 = vmatprep.subr.mxu0 0.0
    %5787 = vmatpush1.msra.mxu0 0.0
    %5788 = vmatprep.subr.mxu0 0.0
    %5789 = vmatpush1.msra.mxu0 0.0
    %5790 = vmatprep.subr.mxu0 0.0
    %5791 = vmatpush1.msra.mxu0 0.0
    %5792 = vmatprep.subr.mxu0 0.0
    %5793 = vmatpush1.msra.mxu0 0.0
    %5794 = vmatprep.subr.mxu0 0.0
    %5795 = vmatpush1.msra.mxu0 0.0
    %5796 = vmatprep.subr.mxu0 0.0
    %5797 = vmatpush1.msra.mxu0 0.0
    %5798 = vmatprep.subr.mxu0 0.0
    %5799 = vmatpush1.msra.mxu0 0.0
    %5800 = vmatprep.subr.mxu0 0.0
    %5801 = vmatpush1.msra.mxu0 0.0
    %5802 = vmatprep.subr.mxu0 0.0
    %5803 = vmatpush1.msra.mxu0 0.0
    %5804 = vmatprep.subr.mxu0 0.0
    %5805 = vmatpush1.msra.mxu0 0.0
    %5806 = vmatprep.subr.mxu0 0.0
    %5807 = vmatpush1.msra.mxu0 0.0
    %5808 = vmatprep.mubr.f32.mxu0 0.0
    %5809 = vmatmul.mubr.f32.gmra.mrb[0].mxu0 %v5743
    %v5810 = vpop.f32.mrb[0].mxu0
    %v5811 = vadd.f32 %v374, %v5810
    %v5812 = vpop.f32.mrb[0].mxu0
    %5813 = vdwg.mxu0
    %v5814 = vmul.f32 %v5811, 2.0
    %v5815 = vadd.f32 %v5667, %v5814
    %v5816 = vmul.f32 %v5670, %v5811
    %v5817 = vadd.f32 %v4802, %v5816
    %5818 = vmatprep.subr.mxu0 0.0
    %5819 = vmatpush1.msra.mxu0 %v87
    %5820 = vmatprep.subr.mxu0 0.0
    %5821 = vmatpush1.msra.mxu0 %v88
    %5822 = vmatprep.subr.mxu0 0.0
    %5823 = vmatpush1.msra.mxu0 %v89
    %5824 = vmatprep.subr.mxu0 0.0
    %5825 = vmatpush1.msra.mxu0 %v90
    %5826 = vmatprep.subr.mxu0 0.0
    %5827 = vmatpush1.msra.mxu0 %v91
    %5828 = vmatprep.subr.mxu0 0.0
    %5829 = vmatpush1.msra.mxu0 %v92
    %5830 = vmatprep.subr.mxu0 0.0
    %5831 = vmatpush1.msra.mxu0 %v93
    %5832 = vmatprep.subr.mxu0 0.0
    %5833 = vmatpush1.msra.mxu0 %v94
    %5834 = vmatprep.subr.mxu0 0.0
    %5835 = vmatpush1.msra.mxu0 %v95
    %5836 = vmatprep.subr.mxu0 0.0
    %5837 = vmatpush1.msra.mxu0 %v96
    %5838 = vmatprep.subr.mxu0 0.0
    %5839 = vmatpush1.msra.mxu0 %v97
    %5840 = vmatprep.subr.mxu0 0.0
    %5841 = vmatpush1.msra.mxu0 %v98
    %5842 = vmatprep.subr.mxu0 0.0
    %5843 = vmatpush1.msra.mxu0 %v99
    %5844 = vmatprep.subr.mxu0 0.0
    %5845 = vmatpush1.msra.mxu0 %v100
    %5846 = vmatprep.subr.mxu0 0.0
    %5847 = vmatpush1.msra.mxu0 %v101
    %5848 = vmatprep.subr.mxu0 0.0
    %5849 = vmatpush1.msra.mxu0 %v102
    %5850 = vmatprep.subr.mxu0 0.0
    %5851 = vmatpush1.msra.mxu0 0.0
    %5852 = vmatprep.subr.mxu0 0.0
    %5853 = vmatpush1.msra.mxu0 0.0
    %5854 = vmatprep.subr.mxu0 0.0
    %5855 = vmatpush1.msra.mxu0 0.0
    %5856 = vmatprep.subr.mxu0 0.0
    %5857 = vmatpush1.msra.mxu0 0.0
    %5858 = vmatprep.subr.mxu0 0.0
    %5859 = vmatpush1.msra.mxu0 0.0
    %5860 = vmatprep.subr.mxu0 0.0
    %5861 = vmatpush1.msra.mxu0 0.0
    %5862 = vmatprep.subr.mxu0 0.0
    %5863 = vmatpush1.msra.mxu0 0.0
    %5864 = vmatprep.subr.mxu0 0.0
    %5865 = vmatpush1.msra.mxu0 0.0
    %5866 = vmatprep.subr.mxu0 0.0
    %5867 = vmatpush1.msra.mxu0 0.0
    %5868 = vmatprep.subr.mxu0 0.0
    %5869 = vmatpush1.msra.mxu0 0.0
    %5870 = vmatprep.subr.mxu0 0.0
    %5871 = vmatpush1.msra.mxu0 0.0
    %5872 = vmatprep.subr.mxu0 0.0
    %5873 = vmatpush1.msra.mxu0 0.0
    %5874 = vmatprep.subr.mxu0 0.0
    %5875 = vmatpush1.msra.mxu0 0.0
    %5876 = vmatprep.subr.mxu0 0.0
    %5877 = vmatpush1.msra.mxu0 0.0
    %5878 = vmatprep.subr.mxu0 0.0
    %5879 = vmatpush1.msra.mxu0 0.0
    %5880 = vmatprep.subr.mxu0 0.0
    %5881 = vmatpush1.msra.mxu0 0.0
    %5882 = vmatprep.mubr.f32.mxu0 0.0
    %5883 = vmatmul.mubr.f32.gmra.mrb[0].mxu0 %v5817
    %v5884 = vpop.f32.mrb[0].mxu0
    %v5885 = vadd.f32 %v297, %v5884
    %v5886 = vpop.f32.mrb[0].mxu0
    %5887 = vdwg.mxu0
    %v5888 = vtanh.pop %v5885
    %5889 = vmatprep.subr.mxu0 0.0
    %5890 = vmatpush1.msra.mxu0 %v104
    %5891 = vmatprep.subr.mxu0 0.0
    %5892 = vmatpush1.msra.mxu0 %v105
    %5893 = vmatprep.subr.mxu0 0.0
    %5894 = vmatpush1.msra.mxu0 %v106
    %5895 = vmatprep.subr.mxu0 0.0
    %5896 = vmatpush1.msra.mxu0 %v107
    %5897 = vmatprep.subr.mxu0 0.0
    %5898 = vmatpush1.msra.mxu0 %v108
    %5899 = vmatprep.subr.mxu0 0.0
    %5900 = vmatpush1.msra.mxu0 %v109
    %5901 = vmatprep.subr.mxu0 0.0
    %5902 = vmatpush1.msra.mxu0 %v110
    %5903 = vmatprep.subr.mxu0 0.0
    %5904 = vmatpush1.msra.mxu0 %v111
    %5905 = vmatprep.subr.mxu0 0.0
    %5906 = vmatpush1.msra.mxu0 %v112
    %5907 = vmatprep.subr.mxu0 0.0
    %5908 = vmatpush1.msra.mxu0 %v113
    %5909 = vmatprep.subr.mxu0 0.0
    %5910 = vmatpush1.msra.mxu0 %v114
    %5911 = vmatprep.subr.mxu0 0.0
    %5912 = vmatpush1.msra.mxu0 %v115
    %5913 = vmatprep.subr.mxu0 0.0
    %5914 = vmatpush1.msra.mxu0 %v116
    %5915 = vmatprep.subr.mxu0 0.0
    %5916 = vmatpush1.msra.mxu0 %v117
    %5917 = vmatprep.subr.mxu0 0.0
    %5918 = vmatpush1.msra.mxu0 %v118
    %5919 = vmatprep.subr.mxu0 0.0
    %5920 = vmatpush1.msra.mxu0 %v119
    %5921 = vmatprep.subr.mxu0 0.0
    %5922 = vmatpush1.msra.mxu0 0.0
    %5923 = vmatprep.subr.mxu0 0.0
    %5924 = vmatpush1.msra.mxu0 0.0
    %5925 = vmatprep.subr.mxu0 0.0
    %5926 = vmatpush1.msra.mxu0 0.0
    %5927 = vmatprep.subr.mxu0 0.0
    %5928 = vmatpush1.msra.mxu0 0.0
    %5929 = vmatprep.subr.mxu0 0.0
    %5930 = vmatpush1.msra.mxu0 0.0
    %5931 = vmatprep.subr.mxu0 0.0
    %5932 = vmatpush1.msra.mxu0 0.0
    %5933 = vmatprep.subr.mxu0 0.0
    %5934 = vmatpush1.msra.mxu0 0.0
    %5935 = vmatprep.subr.mxu0 0.0
    %5936 = vmatpush1.msra.mxu0 0.0
    %5937 = vmatprep.subr.mxu0 0.0
    %5938 = vmatpush1.msra.mxu0 0.0
    %5939 = vmatprep.subr.mxu0 0.0
    %5940 = vmatpush1.msra.mxu0 0.0
    %5941 = vmatprep.subr.mxu0 0.0
    %5942 = vmatpush1.msra.mxu0 0.0
    %5943 = vmatprep.subr.mxu0 0.0
    %5944 = vmatpush1.msra.mxu0 0.0
    %5945 = vmatprep.subr.mxu0 0.0
    %5946 = vmatpush1.msra.mxu0 0.0
    %5947 = vmatprep.subr.mxu0 0.0
    %5948 = vmatpush1.msra.mxu0 0.0
    %5949 = vmatprep.subr.mxu0 0.0
    %5950 = vmatpush1.msra.mxu0 0.0
    %5951 = vmatprep.subr.mxu0 0.0
    %5952 = vmatpush1.msra.mxu0 0.0
    %5953 = vmatprep.mubr.f32.mxu0 0.0
    %5954 = vmatmul.mubr.f32.gmra.mrb[0].mxu0 %v5888
    %v5955 = vpop.f32.mrb[0].mxu0
    %v5956 = vadd.f32 %v374, %v5955
    %v5957 = vpop.f32.mrb[0].mxu0
    %5958 = vdwg.mxu0
    %v5959 = vmul.f32 %v5956, 2.0
    %v5960 = vadd.f32 %v5815, %v5959
    %v5961 = vstv %s5524
    %v5962 = vmul.f32 %v5961, %v5956
    %v5963 = vadd.f32 %v4802, %v5962
    %5964 = vmatprep.subr.mxu0 0.0
    %5965 = vmatpush1.msra.mxu0 %v87
    %5966 = vmatprep.subr.mxu0 0.0
    %5967 = vmatpush1.msra.mxu0 %v88
    %5968 = vmatprep.subr.mxu0 0.0
    %5969 = vmatpush1.msra.mxu0 %v89
    %5970 = vmatprep.subr.mxu0 0.0
    %5971 = vmatpush1.msra.mxu0 %v90
    %5972 = vmatprep.subr.mxu0 0.0
    %5973 = vmatpush1.msra.mxu0 %v91
    %5974 = vmatprep.subr.mxu0 0.0
    %5975 = vmatpush1.msra.mxu0 %v92
    %5976 = vmatprep.subr.mxu0 0.0
    %5977 = vmatpush1.msra.mxu0 %v93
    %5978 = vmatprep.subr.mxu0 0.0
    %5979 = vmatpush1.msra.mxu0 %v94
    %5980 = vmatprep.subr.mxu0 0.0
    %5981 = vmatpush1.msra.mxu0 %v95
    %5982 = vmatprep.subr.mxu0 0.0
    %5983 = vmatpush1.msra.mxu0 %v96
    %5984 = vmatprep.subr.mxu0 0.0
    %5985 = vmatpush1.msra.mxu0 %v97
    %5986 = vmatprep.subr.mxu0 0.0
    %5987 = vmatpush1.msra.mxu0 %v98
    %5988 = vmatprep.subr.mxu0 0.0
    %5989 = vmatpush1.msra.mxu0 %v99
    %5990 = vmatprep.subr.mxu0 0.0
    %5991 = vmatpush1.msra.mxu0 %v100
    %5992 = vmatprep.subr.mxu0 0.0
    %5993 = vmatpush1.msra.mxu0 %v101
    %5994 = vmatprep.subr.mxu0 0.0
    %5995 = vmatpush1.msra.mxu0 %v102
    %5996 = vmatprep.subr.mxu0 0.0
    %5997 = vmatpush1.msra.mxu0 0.0
    %5998 = vmatprep.subr.mxu0 0.0
    %5999 = vmatpush1.msra.mxu0 0.0
    %6000 = vmatprep.subr.mxu0 0.0
    %6001 = vmatpush1.msra.mxu0 0.0
    %6002 = vmatprep.subr.mxu0 0.0
    %6003 = vmatpush1.msra.mxu0 0.0
    %6004 = vmatprep.subr.mxu0 0.0
    %6005 = vmatpush1.msra.mxu0 0.0
    %6006 = vmatprep.subr.mxu0 0.0
    %6007 = vmatpush1.msra.mxu0 0.0
    %6008 = vmatprep.subr.mxu0 0.0
    %6009 = vmatpush1.msra.mxu0 0.0
    %6010 = vmatprep.subr.mxu0 0.0
    %6011 = vmatpush1.msra.mxu0 0.0
    %6012 = vmatprep.subr.mxu0 0.0
    %6013 = vmatpush1.msra.mxu0 0.0
    %6014 = vmatprep.subr.mxu0 0.0
    %6015 = vmatpush1.msra.mxu0 0.0
    %6016 = vmatprep.subr.mxu0 0.0
    %6017 = vmatpush1.msra.mxu0 0.0
    %6018 = vmatprep.subr.mxu0 0.0
    %6019 = vmatpush1.msra.mxu0 0.0
    %6020 = vmatprep.subr.mxu0 0.0
    %6021 = vmatpush1.msra.mxu0 0.0
    %6022 = vmatprep.subr.mxu0 0.0
    %6023 = vmatpush1.msra.mxu0 0.0
    %6024 = vmatprep.subr.mxu0 0.0
    %6025 = vmatpush1.msra.mxu0 0.0
    %6026 = vmatprep.subr.mxu0 0.0
    %6027 = vmatpush1.msra.mxu0 0.0
    %6028 = vmatprep.mubr.f32.mxu0 0.0
    %6029 = vmatmul.mubr.f32.gmra.mrb[0].mxu0 %v5963
    %v6030 = vpop.f32.mrb[0].mxu0
    %v6031 = vadd.f32 %v297, %v6030
    %v6032 = vpop.f32.mrb[0].mxu0
    %6033 = vdwg.mxu0
    %v6034 = vtanh.pop %v6031
    %6035 = vmatprep.subr.mxu0 0.0
    %6036 = vmatpush1.msra.mxu0 %v104
    %6037 = vmatprep.subr.mxu0 0.0
    %6038 = vmatpush1.msra.mxu0 %v105
    %6039 = vmatprep.subr.mxu0 0.0
    %6040 = vmatpush1.msra.mxu0 %v106
    %6041 = vmatprep.subr.mxu0 0.0
    %6042 = vmatpush1.msra.mxu0 %v107
    %6043 = vmatprep.subr.mxu0 0.0
    %6044 = vmatpush1.msra.mxu0 %v108
    %6045 = vmatprep.subr.mxu0 0.0
    %6046 = vmatpush1.msra.mxu0 %v109
    %6047 = vmatprep.subr.mxu0 0.0
    %6048 = vmatpush1.msra.mxu0 %v110
    %6049 = vmatprep.subr.mxu0 0.0
    %6050 = vmatpush1.msra.mxu0 %v111
    %6051 = vmatprep.subr.mxu0 0.0
    %6052 = vmatpush1.msra.mxu0 %v112
    %6053 = vmatprep.subr.mxu0 0.0
    %6054 = vmatpush1.msra.mxu0 %v113
    %6055 = vmatprep.subr.mxu0 0.0
    %6056 = vmatpush1.msra.mxu0 %v114
    %6057 = vmatprep.subr.mxu0 0.0
    %6058 = vmatpush1.msra.mxu0 %v115
    %6059 = vmatprep.subr.mxu0 0.0
    %6060 = vmatpush1.msra.mxu0 %v116
    %6061 = vmatprep.subr.mxu0 0.0
    %6062 = vmatpush1.msra.mxu0 %v117
    %6063 = vmatprep.subr.mxu0 0.0
    %6064 = vmatpush1.msra.mxu0 %v118
    %6065 = vmatprep.subr.mxu0 0.0
    %6066 = vmatpush1.msra.mxu0 %v119
    %6067 = vmatprep.subr.mxu0 0.0
    %6068 = vmatpush1.msra.mxu0 0.0
    %6069 = vmatprep.subr.mxu0 0.0
    %6070 = vmatpush1.msra.mxu0 0.0
    %6071 = vmatprep.subr.mxu0 0.0
    %6072 = vmatpush1.msra.mxu0 0.0
    %6073 = vmatprep.subr.mxu0 0.0
    %6074 = vmatpush1.msra.mxu0 0.0
    %6075 = vmatprep.subr.mxu0 0.0
    %6076 = vmatpush1.msra.mxu0 0.0
    %6077 = vmatprep.subr.mxu0 0.0
    %6078 = vmatpush1.msra.mxu0 0.0
    %6079 = vmatprep.subr.mxu0 0.0
    %6080 = vmatpush1.msra.mxu0 0.0
    %6081 = vmatprep.subr.mxu0 0.0
    %6082 = vmatpush1.msra.mxu0 0.0
    %6083 = vmatprep.subr.mxu0 0.0
    %6084 = vmatpush1.msra.mxu0 0.0
    %6085 = vmatprep.subr.mxu0 0.0
    %6086 = vmatpush1.msra.mxu0 0.0
    %6087 = vmatprep.subr.mxu0 0.0
    %6088 = vmatpush1.msra.mxu0 0.0
    %6089 = vmatprep.subr.mxu0 0.0
    %6090 = vmatpush1.msra.mxu0 0.0
    %6091 = vmatprep.subr.mxu0 0.0
    %6092 = vmatpush1.msra.mxu0 0.0
    %6093 = vmatprep.subr.mxu0 0.0
    %6094 = vmatpush1.msra.mxu0 0.0
    %6095 = vmatprep.subr.mxu0 0.0
    %6096 = vmatpush1.msra.mxu0 0.0
    %6097 = vmatprep.subr.mxu0 0.0
    %6098 = vmatpush1.msra.mxu0 0.0
    %6099 = vmatprep.mubr.f32.mxu0 0.0
    %6100 = vmatmul.mubr.f32.gmra.mrb[0].mxu0 %v6034
    %v6101 = vpop.f32.mrb[0].mxu0
    %v6102 = vadd.f32 %v374, %v6101
    %v6103 = vpop.f32.mrb[0].mxu0
    %6104 = vdwg.mxu0
    %v6105 = vadd.f32 %v5960, %v6102
    %v6106 = vstv %s5528
    %v6107 = vmul.f32 %v6106, %v6105
    %v6108 = vadd.f32 %v4802, %v6107
    %6109 = vmatprep.subr.mxu0 0.0
    %6110 = vmatpush1.msra.mxu0 %v87
    %6111 = vmatprep.subr.mxu0 0.0
    %6112 = vmatpush1.msra.mxu0 %v88
    %6113 = vmatprep.subr.mxu0 0.0
    %6114 = vmatpush1.msra.mxu0 %v89
    %6115 = vmatprep.subr.mxu0 0.0
    %6116 = vmatpush1.msra.mxu0 %v90
    %6117 = vmatprep.subr.mxu0 0.0
    %6118 = vmatpush1.msra.mxu0 %v91
    %6119 = vmatprep.subr.mxu0 0.0
    %6120 = vmatpush1.msra.mxu0 %v92
    %6121 = vmatprep.subr.mxu0 0.0
    %6122 = vmatpush1.msra.mxu0 %v93
    %6123 = vmatprep.subr.mxu0 0.0
    %6124 = vmatpush1.msra.mxu0 %v94
    %6125 = vmatprep.subr.mxu0 0.0
    %6126 = vmatpush1.msra.mxu0 %v95
    %6127 = vmatprep.subr.mxu0 0.0
    %6128 = vmatpush1.msra.mxu0 %v96
    %6129 = vmatprep.subr.mxu0 0.0
    %6130 = vmatpush1.msra.mxu0 %v97
    %6131 = vmatprep.subr.mxu0 0.0
    %6132 = vmatpush1.msra.mxu0 %v98
    %6133 = vmatprep.subr.mxu0 0.0
    %6134 = vmatpush1.msra.mxu0 %v99
    %6135 = vmatprep.subr.mxu0 0.0
    %6136 = vmatpush1.msra.mxu0 %v100
    %6137 = vmatprep.subr.mxu0 0.0
    %6138 = vmatpush1.msra.mxu0 %v101
    %6139 = vmatprep.subr.mxu0 0.0
    %6140 = vmatpush1.msra.mxu0 %v102
    %6141 = vmatprep.subr.mxu0 0.0
    %6142 = vmatpush1.msra.mxu0 0.0
    %6143 = vmatprep.subr.mxu0 0.0
    %6144 = vmatpush1.msra.mxu0 0.0
    %6145 = vmatprep.subr.mxu0 0.0
    %6146 = vmatpush1.msra.mxu0 0.0
    %6147 = vmatprep.subr.mxu0 0.0
    %6148 = vmatpush1.msra.mxu0 0.0
    %6149 = vmatprep.subr.mxu0 0.0
    %6150 = vmatpush1.msra.mxu0 0.0
    %6151 = vmatprep.subr.mxu0 0.0
    %6152 = vmatpush1.msra.mxu0 0.0
    %6153 = vmatprep.subr.mxu0 0.0
    %6154 = vmatpush1.msra.mxu0 0.0
    %6155 = vmatprep.subr.mxu0 0.0
    %6156 = vmatpush1.msra.mxu0 0.0
    %6157 = vmatprep.subr.mxu0 0.0
    %6158 = vmatpush1.msra.mxu0 0.0
    %6159 = vmatprep.subr.mxu0 0.0
    %6160 = vmatpush1.msra.mxu0 0.0
    %6161 = vmatprep.subr.mxu0 0.0
    %6162 = vmatpush1.msra.mxu0 0.0
    %6163 = vmatprep.subr.mxu0 0.0
    %6164 = vmatpush1.msra.mxu0 0.0
    %6165 = vmatprep.subr.mxu0 0.0
    %6166 = vmatpush1.msra.mxu0 0.0
    %6167 = vmatprep.subr.mxu0 0.0
    %6168 = vmatpush1.msra.mxu0 0.0
    %6169 = vmatprep.subr.mxu0 0.0
    %6170 = vmatpush1.msra.mxu0 0.0
    %6171 = vmatprep.subr.mxu0 0.0
    %6172 = vmatpush1.msra.mxu0 0.0
    %6173 = vmatprep.mubr.f32.mxu0 0.0
    %6174 = vmatmul.mubr.f32.gmra.mrb[0].mxu0 %v5379
    %v6175 = vpop.f32.mrb[0].mxu0
    %v6176 = vadd.f32 %v297, %v6175
    %v6177 = vpop.f32.mrb[0].mxu0
    %6178 = vdwg.mxu0
    %v6179 = vtanh.pop %v6176
    %6180 = vmatprep.subr.mxu0 0.0
    %6181 = vmatpush1.msra.mxu0 %v104
    %6182 = vmatprep.subr.mxu0 0.0
    %6183 = vmatpush1.msra.mxu0 %v105
    %6184 = vmatprep.subr.mxu0 0.0
    %6185 = vmatpush1.msra.mxu0 %v106
    %6186 = vmatprep.subr.mxu0 0.0
    %6187 = vmatpush1.msra.mxu0 %v107
    %6188 = vmatprep.subr.mxu0 0.0
    %6189 = vmatpush1.msra.mxu0 %v108
    %6190 = vmatprep.subr.mxu0 0.0
    %6191 = vmatpush1.msra.mxu0 %v109
    %6192 = vmatprep.subr.mxu0 0.0
    %6193 = vmatpush1.msra.mxu0 %v110
    %6194 = vmatprep.subr.mxu0 0.0
    %6195 = vmatpush1.msra.mxu0 %v111
    %6196 = vmatprep.subr.mxu0 0.0
    %6197 = vmatpush1.msra.mxu0 %v112
    %6198 = vmatprep.subr.mxu0 0.0
    %6199 = vmatpush1.msra.mxu0 %v113
    %6200 = vmatprep.subr.mxu0 0.0
    %6201 = vmatpush1.msra.mxu0 %v114
    %6202 = vmatprep.subr.mxu0 0.0
    %6203 = vmatpush1.msra.mxu0 %v115
    %6204 = vmatprep.subr.mxu0 0.0
    %6205 = vmatpush1.msra.mxu0 %v116
    %6206 = vmatprep.subr.mxu0 0.0
    %6207 = vmatpush1.msra.mxu0 %v117
    %6208 = vmatprep.subr.mxu0 0.0
    %6209 = vmatpush1.msra.mxu0 %v118
    %6210 = vmatprep.subr.mxu0 0.0
    %6211 = vmatpush1.msra.mxu0 %v119
    %6212 = vmatprep.subr.mxu0 0.0
    %6213 = vmatpush1.msra.mxu0 0.0
    %6214 = vmatprep.subr.mxu0 0.0
    %6215 = vmatpush1.msra.mxu0 0.0
    %6216 = vmatprep.subr.mxu0 0.0
    %6217 = vmatpush1.msra.mxu0 0.0
    %6218 = vmatprep.subr.mxu0 0.0
    %6219 = vmatpush1.msra.mxu0 0.0
    %6220 = vmatprep.subr.mxu0 0.0
    %6221 = vmatpush1.msra.mxu0 0.0
    %6222 = vmatprep.subr.mxu0 0.0
    %6223 = vmatpush1.msra.mxu0 0.0
    %6224 = vmatprep.subr.mxu0 0.0
    %6225 = vmatpush1.msra.mxu0 0.0
    %6226 = vmatprep.subr.mxu0 0.0
    %6227 = vmatpush1.msra.mxu0 0.0
    %6228 = vmatprep.subr.mxu0 0.0
    %6229 = vmatpush1.msra.mxu0 0.0
    %6230 = vmatprep.subr.mxu0 0.0
    %6231 = vmatpush1.msra.mxu0 0.0
    %6232 = vmatprep.subr.mxu0 0.0
    %6233 = vmatpush1.msra.mxu0 0.0
    %6234 = vmatprep.subr.mxu0 0.0
    %6235 = vmatpush1.msra.mxu0 0.0
    %6236 = vmatprep.subr.mxu0 0.0
    %6237 = vmatpush1.msra.mxu0 0.0
    %6238 = vmatprep.subr.mxu0 0.0
    %6239 = vmatpush1.msra.mxu0 0.0
    %6240 = vmatprep.subr.mxu0 0.0
    %6241 = vmatpush1.msra.mxu0 0.0
    %6242 = vmatprep.subr.mxu0 0.0
    %6243 = vmatpush1.msra.mxu0 0.0
    %6244 = vmatprep.mubr.f32.mxu0 0.0
    %6245 = vmatmul.mubr.f32.gmra.mrb[0].mxu0 %v6179
    %v6246 = vpop.f32.mrb[0].mxu0
    %v6247 = vadd.f32 %v374, %v6246
    %v6248 = vpop.f32.mrb[0].mxu0
    %6249 = vdwg.mxu0
    %v6250 = vmul.f32 %v5670, %v6247
    %v6251 = vadd.f32 %v5379, %v6250
    %6252 = vmatprep.subr.mxu0 0.0
    %6253 = vmatpush1.msra.mxu0 %v87
    %6254 = vmatprep.subr.mxu0 0.0
    %6255 = vmatpush1.msra.mxu0 %v88
    %6256 = vmatprep.subr.mxu0 0.0
    %6257 = vmatpush1.msra.mxu0 %v89
    %6258 = vmatprep.subr.mxu0 0.0
    %6259 = vmatpush1.msra.mxu0 %v90
    %6260 = vmatprep.subr.mxu0 0.0
    %6261 = vmatpush1.msra.mxu0 %v91
    %6262 = vmatprep.subr.mxu0 0.0
    %6263 = vmatpush1.msra.mxu0 %v92
    %6264 = vmatprep.subr.mxu0 0.0
    %6265 = vmatpush1.msra.mxu0 %v93
    %6266 = vmatprep.subr.mxu0 0.0
    %6267 = vmatpush1.msra.mxu0 %v94
    %6268 = vmatprep.subr.mxu0 0.0
    %6269 = vmatpush1.msra.mxu0 %v95
    %6270 = vmatprep.subr.mxu0 0.0
    %6271 = vmatpush1.msra.mxu0 %v96
    %6272 = vmatprep.subr.mxu0 0.0
    %6273 = vmatpush1.msra.mxu0 %v97
    %6274 = vmatprep.subr.mxu0 0.0
    %6275 = vmatpush1.msra.mxu0 %v98
    %6276 = vmatprep.subr.mxu0 0.0
    %6277 = vmatpush1.msra.mxu0 %v99
    %6278 = vmatprep.subr.mxu0 0.0
    %6279 = vmatpush1.msra.mxu0 %v100
    %6280 = vmatprep.subr.mxu0 0.0
    %6281 = vmatpush1.msra.mxu0 %v101
    %6282 = vmatprep.subr.mxu0 0.0
    %6283 = vmatpush1.msra.mxu0 %v102
    %6284 = vmatprep.subr.mxu0 0.0
    %6285 = vmatpush1.msra.mxu0 0.0
    %6286 = vmatprep.subr.mxu0 0.0
    %6287 = vmatpush1.msra.mxu0 0.0
    %6288 = vmatprep.subr.mxu0 0.0
    %6289 = vmatpush1.msra.mxu0 0.0
    %6290 = vmatprep.subr.mxu0 0.0
    %6291 = vmatpush1.msra.mxu0 0.0
    %6292 = vmatprep.subr.mxu0 0.0
    %6293 = vmatpush1.msra.mxu0 0.0
    %6294 = vmatprep.subr.mxu0 0.0
    %6295 = vmatpush1.msra.mxu0 0.0
    %6296 = vmatprep.subr.mxu0 0.0
    %6297 = vmatpush1.msra.mxu0 0.0
    %6298 = vmatprep.subr.mxu0 0.0
    %6299 = vmatpush1.msra.mxu0 0.0
    %6300 = vmatprep.subr.mxu0 0.0
    %6301 = vmatpush1.msra.mxu0 0.0
    %6302 = vmatprep.subr.mxu0 0.0
    %6303 = vmatpush1.msra.mxu0 0.0
    %6304 = vmatprep.subr.mxu0 0.0
    %6305 = vmatpush1.msra.mxu0 0.0
    %6306 = vmatprep.subr.mxu0 0.0
    %6307 = vmatpush1.msra.mxu0 0.0
    %6308 = vmatprep.subr.mxu0 0.0
    %6309 = vmatpush1.msra.mxu0 0.0
    %6310 = vmatprep.subr.mxu0 0.0
    %6311 = vmatpush1.msra.mxu0 0.0
    %6312 = vmatprep.subr.mxu0 0.0
    %6313 = vmatpush1.msra.mxu0 0.0
    %6314 = vmatprep.subr.mxu0 0.0
    %6315 = vmatpush1.msra.mxu0 0.0
    %6316 = vmatprep.mubr.f32.mxu0 0.0
    %6317 = vmatmul.mubr.f32.gmra.mrb[0].mxu0 %v6251
    %v6318 = vpop.f32.mrb[0].mxu0
    %v6319 = vadd.f32 %v297, %v6318
    %v6320 = vpop.f32.mrb[0].mxu0
    %6321 = vdwg.mxu0
    %v6322 = vtanh.pop %v6319
    %6323 = vmatprep.subr.mxu0 0.0
    %6324 = vmatpush1.msra.mxu0 %v104
    %6325 = vmatprep.subr.mxu0 0.0
    %6326 = vmatpush1.msra.mxu0 %v105
    %6327 = vmatprep.subr.mxu0 0.0
    %6328 = vmatpush1.msra.mxu0 %v106
    %6329 = vmatprep.subr.mxu0 0.0
    %6330 = vmatpush1.msra.mxu0 %v107
    %6331 = vmatprep.subr.mxu0 0.0
    %6332 = vmatpush1.msra.mxu0 %v108
    %6333 = vmatprep.subr.mxu0 0.0
    %6334 = vmatpush1.msra.mxu0 %v109
    %6335 = vmatprep.subr.mxu0 0.0
    %6336 = vmatpush1.msra.mxu0 %v110
    %6337 = vmatprep.subr.mxu0 0.0
    %6338 = vmatpush1.msra.mxu0 %v111
    %6339 = vmatprep.subr.mxu0 0.0
    %6340 = vmatpush1.msra.mxu0 %v112
    %6341 = vmatprep.subr.mxu0 0.0
    %6342 = vmatpush1.msra.mxu0 %v113
    %6343 = vmatprep.subr.mxu0 0.0
    %6344 = vmatpush1.msra.mxu0 %v114
    %6345 = vmatprep.subr.mxu0 0.0
    %6346 = vmatpush1.msra.mxu0 %v115
    %6347 = vmatprep.subr.mxu0 0.0
    %6348 = vmatpush1.msra.mxu0 %v116
    %6349 = vmatprep.subr.mxu0 0.0
    %6350 = vmatpush1.msra.mxu0 %v117
    %6351 = vmatprep.subr.mxu0 0.0
    %6352 = vmatpush1.msra.mxu0 %v118
    %6353 = vmatprep.subr.mxu0 0.0
    %6354 = vmatpush1.msra.mxu0 %v119
    %6355 = vmatprep.subr.mxu0 0.0
    %6356 = vmatpush1.msra.mxu0 0.0
    %6357 = vmatprep.subr.mxu0 0.0
    %6358 = vmatpush1.msra.mxu0 0.0
    %6359 = vmatprep.subr.mxu0 0.0
    %6360 = vmatpush1.msra.mxu0 0.0
    %6361 = vmatprep.subr.mxu0 0.0
    %6362 = vmatpush1.msra.mxu0 0.0
    %6363 = vmatprep.subr.mxu0 0.0
    %6364 = vmatpush1.msra.mxu0 0.0
    %6365 = vmatprep.subr.mxu0 0.0
    %6366 = vmatpush1.msra.mxu0 0.0
    %6367 = vmatprep.subr.mxu0 0.0
    %6368 = vmatpush1.msra.mxu0 0.0
    %6369 = vmatprep.subr.mxu0 0.0
    %6370 = vmatpush1.msra.mxu0 0.0
    %6371 = vmatprep.subr.mxu0 0.0
    %6372 = vmatpush1.msra.mxu0 0.0
    %6373 = vmatprep.subr.mxu0 0.0
    %6374 = vmatpush1.msra.mxu0 0.0
    %6375 = vmatprep.subr.mxu0 0.0
    %6376 = vmatpush1.msra.mxu0 0.0
    %6377 = vmatprep.subr.mxu0 0.0
    %6378 = vmatpush1.msra.mxu0 0.0
    %6379 = vmatprep.subr.mxu0 0.0
    %6380 = vmatpush1.msra.mxu0 0.0
    %6381 = vmatprep.subr.mxu0 0.0
    %6382 = vmatpush1.msra.mxu0 0.0
    %6383 = vmatprep.subr.mxu0 0.0
    %6384 = vmatpush1.msra.mxu0 0.0
    %6385 = vmatprep.subr.mxu0 0.0
    %6386 = vmatpush1.msra.mxu0 0.0
    %6387 = vmatprep.mubr.f32.mxu0 0.0
    %6388 = vmatmul.mubr.f32.gmra.mrb[0].mxu0 %v6322
    %v6389 = vpop.f32.mrb[0].mxu0
    %v6390 = vadd.f32 %v374, %v6389
    %v6391 = vpop.f32.mrb[0].mxu0
    %6392 = vdwg.mxu0
    %v6393 = vmul.f32 %v6390, 2.0
    %v6394 = vadd.f32 %v6247, %v6393
    %v6395 = vmul.f32 %v5670, %v6390
    %v6396 = vadd.f32 %v5379, %v6395
    %6397 = vmatprep.subr.mxu0 0.0
    %6398 = vmatpush1.msra.mxu0 %v87
    %6399 = vmatprep.subr.mxu0 0.0
    %6400 = vmatpush1.msra.mxu0 %v88
    %6401 = vmatprep.subr.mxu0 0.0
    %6402 = vmatpush1.msra.mxu0 %v89
    %6403 = vmatprep.subr.mxu0 0.0
    %6404 = vmatpush1.msra.mxu0 %v90
    %6405 = vmatprep.subr.mxu0 0.0
    %6406 = vmatpush1.msra.mxu0 %v91
    %6407 = vmatprep.subr.mxu0 0.0
    %6408 = vmatpush1.msra.mxu0 %v92
    %6409 = vmatprep.subr.mxu0 0.0
    %6410 = vmatpush1.msra.mxu0 %v93
    %6411 = vmatprep.subr.mxu0 0.0
    %6412 = vmatpush1.msra.mxu0 %v94
    %6413 = vmatprep.subr.mxu0 0.0
    %6414 = vmatpush1.msra.mxu0 %v95
    %6415 = vmatprep.subr.mxu0 0.0
    %6416 = vmatpush1.msra.mxu0 %v96
    %6417 = vmatprep.subr.mxu0 0.0
    %6418 = vmatpush1.msra.mxu0 %v97
    %6419 = vmatprep.subr.mxu0 0.0
    %6420 = vmatpush1.msra.mxu0 %v98
    %6421 = vmatprep.subr.mxu0 0.0
    %6422 = vmatpush1.msra.mxu0 %v99
    %6423 = vmatprep.subr.mxu0 0.0
    %6424 = vmatpush1.msra.mxu0 %v100
    %6425 = vmatprep.subr.mxu0 0.0
    %6426 = vmatpush1.msra.mxu0 %v101
    %6427 = vmatprep.subr.mxu0 0.0
    %6428 = vmatpush1.msra.mxu0 %v102
    %6429 = vmatprep.subr.mxu0 0.0
    %6430 = vmatpush1.msra.mxu0 0.0
    %6431 = vmatprep.subr.mxu0 0.0
    %6432 = vmatpush1.msra.mxu0 0.0
    %6433 = vmatprep.subr.mxu0 0.0
    %6434 = vmatpush1.msra.mxu0 0.0
    %6435 = vmatprep.subr.mxu0 0.0
    %6436 = vmatpush1.msra.mxu0 0.0
    %6437 = vmatprep.subr.mxu0 0.0
    %6438 = vmatpush1.msra.mxu0 0.0
    %6439 = vmatprep.subr.mxu0 0.0
    %6440 = vmatpush1.msra.mxu0 0.0
    %6441 = vmatprep.subr.mxu0 0.0
    %6442 = vmatpush1.msra.mxu0 0.0
    %6443 = vmatprep.subr.mxu0 0.0
    %6444 = vmatpush1.msra.mxu0 0.0
    %6445 = vmatprep.subr.mxu0 0.0
    %6446 = vmatpush1.msra.mxu0 0.0
    %6447 = vmatprep.subr.mxu0 0.0
    %6448 = vmatpush1.msra.mxu0 0.0
    %6449 = vmatprep.subr.mxu0 0.0
    %6450 = vmatpush1.msra.mxu0 0.0
    %6451 = vmatprep.subr.mxu0 0.0
    %6452 = vmatpush1.msra.mxu0 0.0
    %6453 = vmatprep.subr.mxu0 0.0
    %6454 = vmatpush1.msra.mxu0 0.0
    %6455 = vmatprep.subr.mxu0 0.0
    %6456 = vmatpush1.msra.mxu0 0.0
    %6457 = vmatprep.subr.mxu0 0.0
    %6458 = vmatpush1.msra.mxu0 0.0
    %6459 = vmatprep.subr.mxu0 0.0
    %6460 = vmatpush1.msra.mxu0 0.0
    %6461 = vmatprep.mubr.f32.mxu0 0.0
    %6462 = vmatmul.mubr.f32.gmra.mrb[0].mxu0 %v6396
    %v6463 = vpop.f32.mrb[0].mxu0
    %v6464 = vadd.f32 %v297, %v6463
    %v6465 = vpop.f32.mrb[0].mxu0
    %6466 = vdwg.mxu0
    %v6467 = vtanh.pop %v6464
    %6468 = vmatprep.subr.mxu0 0.0
    %6469 = vmatpush1.msra.mxu0 %v104
    %6470 = vmatprep.subr.mxu0 0.0
    %6471 = vmatpush1.msra.mxu0 %v105
    %6472 = vmatprep.subr.mxu0 0.0
    %6473 = vmatpush1.msra.mxu0 %v106
    %6474 = vmatprep.subr.mxu0 0.0
    %6475 = vmatpush1.msra.mxu0 %v107
    %6476 = vmatprep.subr.mxu0 0.0
    %6477 = vmatpush1.msra.mxu0 %v108
    %6478 = vmatprep.subr.mxu0 0.0
    %6479 = vmatpush1.msra.mxu0 %v109
    %6480 = vmatprep.subr.mxu0 0.0
    %6481 = vmatpush1.msra.mxu0 %v110
    %6482 = vmatprep.subr.mxu0 0.0
    %6483 = vmatpush1.msra.mxu0 %v111
    %6484 = vmatprep.subr.mxu0 0.0
    %6485 = vmatpush1.msra.mxu0 %v112
    %6486 = vmatprep.subr.mxu0 0.0
    %6487 = vmatpush1.msra.mxu0 %v113
    %6488 = vmatprep.subr.mxu0 0.0
    %6489 = vmatpush1.msra.mxu0 %v114
    %6490 = vmatprep.subr.mxu0 0.0
    %6491 = vmatpush1.msra.mxu0 %v115
    %6492 = vmatprep.subr.mxu0 0.0
    %6493 = vmatpush1.msra.mxu0 %v116
    %6494 = vmatprep.subr.mxu0 0.0
    %6495 = vmatpush1.msra.mxu0 %v117
    %6496 = vmatprep.subr.mxu0 0.0
    %6497 = vmatpush1.msra.mxu0 %v118
    %6498 = vmatprep.subr.mxu0 0.0
    %6499 = vmatpush1.msra.mxu0 %v119
    %6500 = vmatprep.subr.mxu0 0.0
    %6501 = vmatpush1.msra.mxu0 0.0
    %6502 = vmatprep.subr.mxu0 0.0
    %6503 = vmatpush1.msra.mxu0 0.0
    %6504 = vmatprep.subr.mxu0 0.0
    %6505 = vmatpush1.msra.mxu0 0.0
    %6506 = vmatprep.subr.mxu0 0.0
    %6507 = vmatpush1.msra.mxu0 0.0
    %6508 = vmatprep.subr.mxu0 0.0
    %6509 = vmatpush1.msra.mxu0 0.0
    %6510 = vmatprep.subr.mxu0 0.0
    %6511 = vmatpush1.msra.mxu0 0.0
    %6512 = vmatprep.subr.mxu0 0.0
    %6513 = vmatpush1.msra.mxu0 0.0
    %6514 = vmatprep.subr.mxu0 0.0
    %6515 = vmatpush1.msra.mxu0 0.0
    %6516 = vmatprep.subr.mxu0 0.0
    %6517 = vmatpush1.msra.mxu0 0.0
    %6518 = vmatprep.subr.mxu0 0.0
    %6519 = vmatpush1.msra.mxu0 0.0
    %6520 = vmatprep.subr.mxu0 0.0
    %6521 = vmatpush1.msra.mxu0 0.0
    %6522 = vmatprep.subr.mxu0 0.0
    %6523 = vmatpush1.msra.mxu0 0.0
    %6524 = vmatprep.subr.mxu0 0.0
    %6525 = vmatpush1.msra.mxu0 0.0
    %6526 = vmatprep.subr.mxu0 0.0
    %6527 = vmatpush1.msra.mxu0 0.0
    %6528 = vmatprep.subr.mxu0 0.0
    %6529 = vmatpush1.msra.mxu0 0.0
    %6530 = vmatprep.subr.mxu0 0.0
    %6531 = vmatpush1.msra.mxu0 0.0
    %6532 = vmatprep.mubr.f32.mxu0 0.0
    %6533 = vmatmul.mubr.f32.gmra.mrb[0].mxu0 %v6467
    %v6534 = vpop.f32.mrb[0].mxu0
    %v6535 = vadd.f32 %v374, %v6534
    %v6536 = vpop.f32.mrb[0].mxu0
    %6537 = vdwg.mxu0
    %v6538 = vmul.f32 %v6535, 2.0
    %v6539 = vadd.f32 %v6394, %v6538
    %v6540 = vmul.f32 %v5961, %v6535
    %v6541 = vadd.f32 %v5379, %v6540
    %6542 = vmatprep.subr.mxu0 0.0
    %6543 = vmatpush1.msra.mxu0 %v87
    %6544 = vmatprep.subr.mxu0 0.0
    %6545 = vmatpush1.msra.mxu0 %v88
    %6546 = vmatprep.subr.mxu0 0.0
    %6547 = vmatpush1.msra.mxu0 %v89
    %6548 = vmatprep.subr.mxu0 0.0
    %6549 = vmatpush1.msra.mxu0 %v90
    %6550 = vmatprep.subr.mxu0 0.0
    %6551 = vmatpush1.msra.mxu0 %v91
    %6552 = vmatprep.subr.mxu0 0.0
    %6553 = vmatpush1.msra.mxu0 %v92
    %6554 = vmatprep.subr.mxu0 0.0
    %6555 = vmatpush1.msra.mxu0 %v93
    %6556 = vmatprep.subr.mxu0 0.0
    %6557 = vmatpush1.msra.mxu0 %v94
    %6558 = vmatprep.subr.mxu0 0.0
    %6559 = vmatpush1.msra.mxu0 %v95
    %6560 = vmatprep.subr.mxu0 0.0
    %6561 = vmatpush1.msra.mxu0 %v96
    %6562 = vmatprep.subr.mxu0 0.0
    %6563 = vmatpush1.msra.mxu0 %v97
    %6564 = vmatprep.subr.mxu0 0.0
    %6565 = vmatpush1.msra.mxu0 %v98
    %6566 = vmatprep.subr.mxu0 0.0
    %6567 = vmatpush1.msra.mxu0 %v99
    %6568 = vmatprep.subr.mxu0 0.0
    %6569 = vmatpush1.msra.mxu0 %v100
    %6570 = vmatprep.subr.mxu0 0.0
    %6571 = vmatpush1.msra.mxu0 %v101
    %6572 = vmatprep.subr.mxu0 0.0
    %6573 = vmatpush1.msra.mxu0 %v102
    %6574 = vmatprep.subr.mxu0 0.0
    %6575 = vmatpush1.msra.mxu0 0.0
    %6576 = vmatprep.subr.mxu0 0.0
    %6577 = vmatpush1.msra.mxu0 0.0
    %6578 = vmatprep.subr.mxu0 0.0
    %6579 = vmatpush1.msra.mxu0 0.0
    %6580 = vmatprep.subr.mxu0 0.0
    %6581 = vmatpush1.msra.mxu0 0.0
    %6582 = vmatprep.subr.mxu0 0.0
    %6583 = vmatpush1.msra.mxu0 0.0
    %6584 = vmatprep.subr.mxu0 0.0
    %6585 = vmatpush1.msra.mxu0 0.0
    %6586 = vmatprep.subr.mxu0 0.0
    %6587 = vmatpush1.msra.mxu0 0.0
    %6588 = vmatprep.subr.mxu0 0.0
    %6589 = vmatpush1.msra.mxu0 0.0
    %6590 = vmatprep.subr.mxu0 0.0
    %6591 = vmatpush1.msra.mxu0 0.0
    %6592 = vmatprep.subr.mxu0 0.0
    %6593 = vmatpush1.msra.mxu0 0.0
    %6594 = vmatprep.subr.mxu0 0.0
    %6595 = vmatpush1.msra.mxu0 0.0
    %6596 = vmatprep.subr.mxu0 0.0
    %6597 = vmatpush1.msra.mxu0 0.0
    %6598 = vmatprep.subr.mxu0 0.0
    %6599 = vmatpush1.msra.mxu0 0.0
    %6600 = vmatprep.subr.mxu0 0.0
    %6601 = vmatpush1.msra.mxu0 0.0
    %6602 = vmatprep.subr.mxu0 0.0
    %6603 = vmatpush1.msra.mxu0 0.0
    %6604 = vmatprep.subr.mxu0 0.0
    %6605 = vmatpush1.msra.mxu0 0.0
    %6606 = vmatprep.mubr.f32.mxu0 0.0
    %6607 = vmatmul.mubr.f32.gmra.mrb[0].mxu0 %v6541
    %v6608 = vpop.f32.mrb[0].mxu0
    %v6609 = vadd.f32 %v297, %v6608
    %v6610 = vpop.f32.mrb[0].mxu0
    %6611 = vdwg.mxu0
    %v6612 = vtanh.pop %v6609
    %6613 = vmatprep.subr.mxu0 0.0
    %6614 = vmatpush1.msra.mxu0 %v104
    %6615 = vmatprep.subr.mxu0 0.0
    %6616 = vmatpush1.msra.mxu0 %v105
    %6617 = vmatprep.subr.mxu0 0.0
    %6618 = vmatpush1.msra.mxu0 %v106
    %6619 = vmatprep.subr.mxu0 0.0
    %6620 = vmatpush1.msra.mxu0 %v107
    %6621 = vmatprep.subr.mxu0 0.0
    %6622 = vmatpush1.msra.mxu0 %v108
    %6623 = vmatprep.subr.mxu0 0.0
    %6624 = vmatpush1.msra.mxu0 %v109
    %6625 = vmatprep.subr.mxu0 0.0
    %6626 = vmatpush1.msra.mxu0 %v110
    %6627 = vmatprep.subr.mxu0 0.0
    %6628 = vmatpush1.msra.mxu0 %v111
    %6629 = vmatprep.subr.mxu0 0.0
    %6630 = vmatpush1.msra.mxu0 %v112
    %6631 = vmatprep.subr.mxu0 0.0
    %6632 = vmatpush1.msra.mxu0 %v113
    %6633 = vmatprep.subr.mxu0 0.0
    %6634 = vmatpush1.msra.mxu0 %v114
    %6635 = vmatprep.subr.mxu0 0.0
    %6636 = vmatpush1.msra.mxu0 %v115
    %6637 = vmatprep.subr.mxu0 0.0
    %6638 = vmatpush1.msra.mxu0 %v116
    %6639 = vmatprep.subr.mxu0 0.0
    %6640 = vmatpush1.msra.mxu0 %v117
    %6641 = vmatprep.subr.mxu0 0.0
    %6642 = vmatpush1.msra.mxu0 %v118
    %6643 = vmatprep.subr.mxu0 0.0
    %6644 = vmatpush1.msra.mxu0 %v119
    %6645 = vmatprep.subr.mxu0 0.0
    %6646 = vmatpush1.msra.mxu0 0.0
    %6647 = vmatprep.subr.mxu0 0.0
    %6648 = vmatpush1.msra.mxu0 0.0
    %6649 = vmatprep.subr.mxu0 0.0
    %6650 = vmatpush1.msra.mxu0 0.0
    %6651 = vmatprep.subr.mxu0 0.0
    %6652 = vmatpush1.msra.mxu0 0.0
    %6653 = vmatprep.subr.mxu0 0.0
    %6654 = vmatpush1.msra.mxu0 0.0
    %6655 = vmatprep.subr.mxu0 0.0
    %6656 = vmatpush1.msra.mxu0 0.0
    %6657 = vmatprep.subr.mxu0 0.0
    %6658 = vmatpush1.msra.mxu0 0.0
    %6659 = vmatprep.subr.mxu0 0.0
    %6660 = vmatpush1.msra.mxu0 0.0
    %6661 = vmatprep.subr.mxu0 0.0
    %6662 = vmatpush1.msra.mxu0 0.0
    %6663 = vmatprep.subr.mxu0 0.0
    %6664 = vmatpush1.msra.mxu0 0.0
    %6665 = vmatprep.subr.mxu0 0.0
    %6666 = vmatpush1.msra.mxu0 0.0
    %6667 = vmatprep.subr.mxu0 0.0
    %6668 = vmatpush1.msra.mxu0 0.0
    %6669 = vmatprep.subr.mxu0 0.0
    %6670 = vmatpush1.msra.mxu0 0.0
    %6671 = vmatprep.subr.mxu0 0.0
    %6672 = vmatpush1.msra.mxu0 0.0
    %6673 = vmatprep.subr.mxu0 0.0
    %6674 = vmatpush1.msra.mxu0 0.0
    %6675 = vmatprep.subr.mxu0 0.0
    %6676 = vmatpush1.msra.mxu0 0.0
    %6677 = vmatprep.mubr.f32.mxu0 0.0
    %6678 = vmatmul.mubr.f32.gmra.mrb[0].mxu0 %v6612
    %v6679 = vpop.f32.mrb[0].mxu0
    %v6680 = vadd.f32 %v374, %v6679
    %v6681 = vpop.f32.mrb[0].mxu0
    %6682 = vdwg.mxu0
    %v6683 = vadd.f32 %v6539, %v6680
    %v6684 = vmul.f32 %v6106, %v6683
    %v6685 = vadd.f32 %v5379, %v6684
    %6686 = vmatprep.subr.mxu0 0.0
    %6687 = vmatpush1.msra.mxu0 %v122
    %6688 = vmatprep.subr.mxu0 0.0
    %6689 = vmatpush1.msra.mxu0 %v123
    %6690 = vmatprep.subr.mxu0 0.0
    %6691 = vmatpush1.msra.mxu0 %v124
    %6692 = vmatprep.subr.mxu0 0.0
    %6693 = vmatpush1.msra.mxu0 %v125
    %6694 = vmatprep.subr.mxu0 0.0
    %6695 = vmatpush1.msra.mxu0 %v126
    %6696 = vmatprep.subr.mxu0 0.0
    %6697 = vmatpush1.msra.mxu0 %v127
    %6698 = vmatprep.subr.mxu0 0.0
    %6699 = vmatpush1.msra.mxu0 %v128
    %6700 = vmatprep.subr.mxu0 0.0
    %6701 = vmatpush1.msra.mxu0 %v129
    %6702 = vmatprep.subr.mxu0 0.0
    %6703 = vmatpush1.msra.mxu0 %v130
    %6704 = vmatprep.subr.mxu0 0.0
    %6705 = vmatpush1.msra.mxu0 %v131
    %6706 = vmatprep.subr.mxu0 0.0
    %6707 = vmatpush1.msra.mxu0 %v132
    %6708 = vmatprep.subr.mxu0 0.0
    %6709 = vmatpush1.msra.mxu0 %v133
    %6710 = vmatprep.subr.mxu0 0.0
    %6711 = vmatpush1.msra.mxu0 %v134
    %6712 = vmatprep.subr.mxu0 0.0
    %6713 = vmatpush1.msra.mxu0 %v135
    %6714 = vmatprep.subr.mxu0 0.0
    %6715 = vmatpush1.msra.mxu0 %v136
    %6716 = vmatprep.subr.mxu0 0.0
    %6717 = vmatpush1.msra.mxu0 %v137
    %6718 = vmatprep.subr.mxu0 0.0
    %6719 = vmatpush1.msra.mxu0 0.0
    %6720 = vmatprep.subr.mxu0 0.0
    %6721 = vmatpush1.msra.mxu0 0.0
    %6722 = vmatprep.subr.mxu0 0.0
    %6723 = vmatpush1.msra.mxu0 0.0
    %6724 = vmatprep.subr.mxu0 0.0
    %6725 = vmatpush1.msra.mxu0 0.0
    %6726 = vmatprep.subr.mxu0 0.0
    %6727 = vmatpush1.msra.mxu0 0.0
    %6728 = vmatprep.subr.mxu0 0.0
    %6729 = vmatpush1.msra.mxu0 0.0
    %6730 = vmatprep.subr.mxu0 0.0
    %6731 = vmatpush1.msra.mxu0 0.0
    %6732 = vmatprep.subr.mxu0 0.0
    %6733 = vmatpush1.msra.mxu0 0.0
    %6734 = vmatprep.subr.mxu0 0.0
    %6735 = vmatpush1.msra.mxu0 0.0
    %6736 = vmatprep.subr.mxu0 0.0
    %6737 = vmatpush1.msra.mxu0 0.0
    %6738 = vmatprep.subr.mxu0 0.0
    %6739 = vmatpush1.msra.mxu0 0.0
    %6740 = vmatprep.subr.mxu0 0.0
    %6741 = vmatpush1.msra.mxu0 0.0
    %6742 = vmatprep.subr.mxu0 0.0
    %6743 = vmatpush1.msra.mxu0 0.0
    %6744 = vmatprep.subr.mxu0 0.0
    %6745 = vmatpush1.msra.mxu0 0.0
    %6746 = vmatprep.subr.mxu0 0.0
    %6747 = vmatpush1.msra.mxu0 0.0
    %6748 = vmatprep.subr.mxu0 0.0
    %6749 = vmatpush1.msra.mxu0 0.0
    %6750 = vmatprep.mubr.f32.mxu0 0.0
    %6751 = vmatmul.mubr.f32.gmra.mrb[0].mxu0 %v6108
    %v6752 = vpop.f32.mrb[0].mxu0
    %v6753 = vadd.f32 %v143, %v6752
    %v6754 = vpop.f32.mrb[0].mxu0
    %6755 = vdwg.mxu0
    %s6756 = scalar_lea.vmem [#allocation12], 80
    %6757 = vst [vmem:[%s6756] sm:$0xff] %v6753
    %6758 = vmatprep.subr.mxu0 0.0
    %6759 = vmatpush1.msra.mxu0 %v122
    %6760 = vmatprep.subr.mxu0 0.0
    %6761 = vmatpush1.msra.mxu0 %v123
    %6762 = vmatprep.subr.mxu0 0.0
    %6763 = vmatpush1.msra.mxu0 %v124
    %6764 = vmatprep.subr.mxu0 0.0
    %6765 = vmatpush1.msra.mxu0 %v125
    %6766 = vmatprep.subr.mxu0 0.0
    %6767 = vmatpush1.msra.mxu0 %v126
    %6768 = vmatprep.subr.mxu0 0.0
    %6769 = vmatpush1.msra.mxu0 %v127
    %6770 = vmatprep.subr.mxu0 0.0
    %6771 = vmatpush1.msra.mxu0 %v128
    %6772 = vmatprep.subr.mxu0 0.0
    %6773 = vmatpush1.msra.mxu0 %v129
    %6774 = vmatprep.subr.mxu0 0.0
    %6775 = vmatpush1.msra.mxu0 %v130
    %6776 = vmatprep.subr.mxu0 0.0
    %6777 = vmatpush1.msra.mxu0 %v131
    %6778 = vmatprep.subr.mxu0 0.0
    %6779 = vmatpush1.msra.mxu0 %v132
    %6780 = vmatprep.subr.mxu0 0.0
    %6781 = vmatpush1.msra.mxu0 %v133
    %6782 = vmatprep.subr.mxu0 0.0
    %6783 = vmatpush1.msra.mxu0 %v134
    %6784 = vmatprep.subr.mxu0 0.0
    %6785 = vmatpush1.msra.mxu0 %v135
    %6786 = vmatprep.subr.mxu0 0.0
    %6787 = vmatpush1.msra.mxu0 %v136
    %6788 = vmatprep.subr.mxu0 0.0
    %6789 = vmatpush1.msra.mxu0 %v137
    %6790 = vmatprep.subr.mxu0 0.0
    %6791 = vmatpush1.msra.mxu0 0.0
    %6792 = vmatprep.subr.mxu0 0.0
    %6793 = vmatpush1.msra.mxu0 0.0
    %6794 = vmatprep.subr.mxu0 0.0
    %6795 = vmatpush1.msra.mxu0 0.0
    %6796 = vmatprep.subr.mxu0 0.0
    %6797 = vmatpush1.msra.mxu0 0.0
    %6798 = vmatprep.subr.mxu0 0.0
    %6799 = vmatpush1.msra.mxu0 0.0
    %6800 = vmatprep.subr.mxu0 0.0
    %6801 = vmatpush1.msra.mxu0 0.0
    %6802 = vmatprep.subr.mxu0 0.0
    %6803 = vmatpush1.msra.mxu0 0.0
    %6804 = vmatprep.subr.mxu0 0.0
    %6805 = vmatpush1.msra.mxu0 0.0
    %6806 = vmatprep.subr.mxu0 0.0
    %6807 = vmatpush1.msra.mxu0 0.0
    %6808 = vmatprep.subr.mxu0 0.0
    %6809 = vmatpush1.msra.mxu0 0.0
    %6810 = vmatprep.subr.mxu0 0.0
    %6811 = vmatpush1.msra.mxu0 0.0
    %6812 = vmatprep.subr.mxu0 0.0
    %6813 = vmatpush1.msra.mxu0 0.0
    %6814 = vmatprep.subr.mxu0 0.0
    %6815 = vmatpush1.msra.mxu0 0.0
    %6816 = vmatprep.subr.mxu0 0.0
    %6817 = vmatpush1.msra.mxu0 0.0
    %6818 = vmatprep.subr.mxu0 0.0
    %6819 = vmatpush1.msra.mxu0 0.0
    %6820 = vmatprep.subr.mxu0 0.0
    %6821 = vmatpush1.msra.mxu0 0.0
    %6822 = vmatprep.mubr.f32.mxu0 0.0
    %6823 = vmatmul.mubr.f32.gmra.mrb[0].mxu0 %v6685
    %v6824 = vpop.f32.mrb[0].mxu0
    %v6825 = vadd.f32 %v143, %v6824
    %v6826 = vpop.f32.mrb[0].mxu0
    %6827 = vdwg.mxu0
    %s6828 = scalar_lea.vmem [#allocation12], 88
    %6829 = vst [vmem:[%s6828] sm:$0xff] %v6825
    %s6830 = sld [smem:[#allocation3 + $0x5]]
    %s6831 = smul.f32 %s6830, 0.5
    %v6832 = vrcp.pop 6.0
    %s6833 = vtos %v6832
    %s6834 = smul.f32 %s6830, %s6833
    %6835 = vmatprep.subr.mxu0 0.0
    %6836 = vmatpush1.msra.mxu0 %v87
    %6837 = vmatprep.subr.mxu0 0.0
    %6838 = vmatpush1.msra.mxu0 %v88
    %6839 = vmatprep.subr.mxu0 0.0
    %6840 = vmatpush1.msra.mxu0 %v89
    %6841 = vmatprep.subr.mxu0 0.0
    %6842 = vmatpush1.msra.mxu0 %v90
    %6843 = vmatprep.subr.mxu0 0.0
    %6844 = vmatpush1.msra.mxu0 %v91
    %6845 = vmatprep.subr.mxu0 0.0
    %6846 = vmatpush1.msra.mxu0 %v92
    %6847 = vmatprep.subr.mxu0 0.0
    %6848 = vmatpush1.msra.mxu0 %v93
    %6849 = vmatprep.subr.mxu0 0.0
    %6850 = vmatpush1.msra.mxu0 %v94
    %6851 = vmatprep.subr.mxu0 0.0
    %6852 = vmatpush1.msra.mxu0 %v95
    %6853 = vmatprep.subr.mxu0 0.0
    %6854 = vmatpush1.msra.mxu0 %v96
    %6855 = vmatprep.subr.mxu0 0.0
    %6856 = vmatpush1.msra.mxu0 %v97
    %6857 = vmatprep.subr.mxu0 0.0
    %6858 = vmatpush1.msra.mxu0 %v98
    %6859 = vmatprep.subr.mxu0 0.0
    %6860 = vmatpush1.msra.mxu0 %v99
    %6861 = vmatprep.subr.mxu0 0.0
    %6862 = vmatpush1.msra.mxu0 %v100
    %6863 = vmatprep.subr.mxu0 0.0
    %6864 = vmatpush1.msra.mxu0 %v101
    %6865 = vmatprep.subr.mxu0 0.0
    %6866 = vmatpush1.msra.mxu0 %v102
    %6867 = vmatprep.subr.mxu0 0.0
    %6868 = vmatpush1.msra.mxu0 0.0
    %6869 = vmatprep.subr.mxu0 0.0
    %6870 = vmatpush1.msra.mxu0 0.0
    %6871 = vmatprep.subr.mxu0 0.0
    %6872 = vmatpush1.msra.mxu0 0.0
    %6873 = vmatprep.subr.mxu0 0.0
    %6874 = vmatpush1.msra.mxu0 0.0
    %6875 = vmatprep.subr.mxu0 0.0
    %6876 = vmatpush1.msra.mxu0 0.0
    %6877 = vmatprep.subr.mxu0 0.0
    %6878 = vmatpush1.msra.mxu0 0.0
    %6879 = vmatprep.subr.mxu0 0.0
    %6880 = vmatpush1.msra.mxu0 0.0
    %6881 = vmatprep.subr.mxu0 0.0
    %6882 = vmatpush1.msra.mxu0 0.0
    %6883 = vmatprep.subr.mxu0 0.0
    %6884 = vmatpush1.msra.mxu0 0.0
    %6885 = vmatprep.subr.mxu0 0.0
    %6886 = vmatpush1.msra.mxu0 0.0
    %6887 = vmatprep.subr.mxu0 0.0
    %6888 = vmatpush1.msra.mxu0 0.0
    %6889 = vmatprep.subr.mxu0 0.0
    %6890 = vmatpush1.msra.mxu0 0.0
    %6891 = vmatprep.subr.mxu0 0.0
    %6892 = vmatpush1.msra.mxu0 0.0
    %6893 = vmatprep.subr.mxu0 0.0
    %6894 = vmatpush1.msra.mxu0 0.0
    %6895 = vmatprep.subr.mxu0 0.0
    %6896 = vmatpush1.msra.mxu0 0.0
    %6897 = vmatprep.subr.mxu0 0.0
    %6898 = vmatpush1.msra.mxu0 0.0
    %6899 = vmatprep.mubr.f32.mxu0 0.0
    %6900 = vmatmul.mubr.f32.gmra.mrb[0].mxu0 %v6108
    %v6901 = vpop.f32.mrb[0].mxu0
    %v6902 = vadd.f32 %v297, %v6901
    %v6903 = vpop.f32.mrb[0].mxu0
    %6904 = vdwg.mxu0
    %v6905 = vtanh.pop %v6902
    %6906 = vmatprep.subr.mxu0 0.0
    %6907 = vmatpush1.msra.mxu0 %v104
    %6908 = vmatprep.subr.mxu0 0.0
    %6909 = vmatpush1.msra.mxu0 %v105
    %6910 = vmatprep.subr.mxu0 0.0
    %6911 = vmatpush1.msra.mxu0 %v106
    %6912 = vmatprep.subr.mxu0 0.0
    %6913 = vmatpush1.msra.mxu0 %v107
    %6914 = vmatprep.subr.mxu0 0.0
    %6915 = vmatpush1.msra.mxu0 %v108
    %6916 = vmatprep.subr.mxu0 0.0
    %6917 = vmatpush1.msra.mxu0 %v109
    %6918 = vmatprep.subr.mxu0 0.0
    %6919 = vmatpush1.msra.mxu0 %v110
    %6920 = vmatprep.subr.mxu0 0.0
    %6921 = vmatpush1.msra.mxu0 %v111
    %6922 = vmatprep.subr.mxu0 0.0
    %6923 = vmatpush1.msra.mxu0 %v112
    %6924 = vmatprep.subr.mxu0 0.0
    %6925 = vmatpush1.msra.mxu0 %v113
    %6926 = vmatprep.subr.mxu0 0.0
    %6927 = vmatpush1.msra.mxu0 %v114
    %6928 = vmatprep.subr.mxu0 0.0
    %6929 = vmatpush1.msra.mxu0 %v115
    %6930 = vmatprep.subr.mxu0 0.0
    %6931 = vmatpush1.msra.mxu0 %v116
    %6932 = vmatprep.subr.mxu0 0.0
    %6933 = vmatpush1.msra.mxu0 %v117
    %6934 = vmatprep.subr.mxu0 0.0
    %6935 = vmatpush1.msra.mxu0 %v118
    %6936 = vmatprep.subr.mxu0 0.0
    %6937 = vmatpush1.msra.mxu0 %v119
    %6938 = vmatprep.subr.mxu0 0.0
    %6939 = vmatpush1.msra.mxu0 0.0
    %6940 = vmatprep.subr.mxu0 0.0
    %6941 = vmatpush1.msra.mxu0 0.0
    %6942 = vmatprep.subr.mxu0 0.0
    %6943 = vmatpush1.msra.mxu0 0.0
    %6944 = vmatprep.subr.mxu0 0.0
    %6945 = vmatpush1.msra.mxu0 0.0
    %6946 = vmatprep.subr.mxu0 0.0
    %6947 = vmatpush1.msra.mxu0 0.0
    %6948 = vmatprep.subr.mxu0 0.0
    %6949 = vmatpush1.msra.mxu0 0.0
    %6950 = vmatprep.subr.mxu0 0.0
    %6951 = vmatpush1.msra.mxu0 0.0
    %6952 = vmatprep.subr.mxu0 0.0
    %6953 = vmatpush1.msra.mxu0 0.0
    %6954 = vmatprep.subr.mxu0 0.0
    %6955 = vmatpush1.msra.mxu0 0.0
    %6956 = vmatprep.subr.mxu0 0.0
    %6957 = vmatpush1.msra.mxu0 0.0
    %6958 = vmatprep.subr.mxu0 0.0
    %6959 = vmatpush1.msra.mxu0 0.0
    %6960 = vmatprep.subr.mxu0 0.0
    %6961 = vmatpush1.msra.mxu0 0.0
    %6962 = vmatprep.subr.mxu0 0.0
    %6963 = vmatpush1.msra.mxu0 0.0
    %6964 = vmatprep.subr.mxu0 0.0
    %6965 = vmatpush1.msra.mxu0 0.0
    %6966 = vmatprep.subr.mxu0 0.0
    %6967 = vmatpush1.msra.mxu0 0.0
    %6968 = vmatprep.subr.mxu0 0.0
    %6969 = vmatpush1.msra.mxu0 0.0
    %6970 = vmatprep.mubr.f32.mxu0 0.0
    %6971 = vmatmul.mubr.f32.gmra.mrb[0].mxu0 %v6905
    %v6972 = vpop.f32.mrb[0].mxu0
    %v6973 = vadd.f32 %v374, %v6972
    %v6974 = vpop.f32.mrb[0].mxu0
    %6975 = vdwg.mxu0
    %v6976 = vstv %s6831
    %v6977 = vmul.f32 %v6976, %v6973
    %v6978 = vadd.f32 %v6108, %v6977
    %6979 = vmatprep.subr.mxu0 0.0
    %6980 = vmatpush1.msra.mxu0 %v87
    %6981 = vmatprep.subr.mxu0 0.0
    %6982 = vmatpush1.msra.mxu0 %v88
    %6983 = vmatprep.subr.mxu0 0.0
    %6984 = vmatpush1.msra.mxu0 %v89
    %6985 = vmatprep.subr.mxu0 0.0
    %6986 = vmatpush1.msra.mxu0 %v90
    %6987 = vmatprep.subr.mxu0 0.0
    %6988 = vmatpush1.msra.mxu0 %v91
    %6989 = vmatprep.subr.mxu0 0.0
    %6990 = vmatpush1.msra.mxu0 %v92
    %6991 = vmatprep.subr.mxu0 0.0
    %6992 = vmatpush1.msra.mxu0 %v93
    %6993 = vmatprep.subr.mxu0 0.0
    %6994 = vmatpush1.msra.mxu0 %v94
    %6995 = vmatprep.subr.mxu0 0.0
    %6996 = vmatpush1.msra.mxu0 %v95
    %6997 = vmatprep.subr.mxu0 0.0
    %6998 = vmatpush1.msra.mxu0 %v96
    %6999 = vmatprep.subr.mxu0 0.0
    %7000 = vmatpush1.msra.mxu0 %v97
    %7001 = vmatprep.subr.mxu0 0.0
    %7002 = vmatpush1.msra.mxu0 %v98
    %7003 = vmatprep.subr.mxu0 0.0
    %7004 = vmatpush1.msra.mxu0 %v99
    %7005 = vmatprep.subr.mxu0 0.0
    %7006 = vmatpush1.msra.mxu0 %v100
    %7007 = vmatprep.subr.mxu0 0.0
    %7008 = vmatpush1.msra.mxu0 %v101
    %7009 = vmatprep.subr.mxu0 0.0
    %7010 = vmatpush1.msra.mxu0 %v102
    %7011 = vmatprep.subr.mxu0 0.0
    %7012 = vmatpush1.msra.mxu0 0.0
    %7013 = vmatprep.subr.mxu0 0.0
    %7014 = vmatpush1.msra.mxu0 0.0
    %7015 = vmatprep.subr.mxu0 0.0
    %7016 = vmatpush1.msra.mxu0 0.0
    %7017 = vmatprep.subr.mxu0 0.0
    %7018 = vmatpush1.msra.mxu0 0.0
    %7019 = vmatprep.subr.mxu0 0.0
    %7020 = vmatpush1.msra.mxu0 0.0
    %7021 = vmatprep.subr.mxu0 0.0
    %7022 = vmatpush1.msra.mxu0 0.0
    %7023 = vmatprep.subr.mxu0 0.0
    %7024 = vmatpush1.msra.mxu0 0.0
    %7025 = vmatprep.subr.mxu0 0.0
    %7026 = vmatpush1.msra.mxu0 0.0
    %7027 = vmatprep.subr.mxu0 0.0
    %7028 = vmatpush1.msra.mxu0 0.0
    %7029 = vmatprep.subr.mxu0 0.0
    %7030 = vmatpush1.msra.mxu0 0.0
    %7031 = vmatprep.subr.mxu0 0.0
    %7032 = vmatpush1.msra.mxu0 0.0
    %7033 = vmatprep.subr.mxu0 0.0
    %7034 = vmatpush1.msra.mxu0 0.0
    %7035 = vmatprep.subr.mxu0 0.0
    %7036 = vmatpush1.msra.mxu0 0.0
    %7037 = vmatprep.subr.mxu0 0.0
    %7038 = vmatpush1.msra.mxu0 0.0
    %7039 = vmatprep.subr.mxu0 0.0
    %7040 = vmatpush1.msra.mxu0 0.0
    %7041 = vmatprep.subr.mxu0 0.0
    %7042 = vmatpush1.msra.mxu0 0.0
    %7043 = vmatprep.mubr.f32.mxu0 0.0
    %7044 = vmatmul.mubr.f32.gmra.mrb[0].mxu0 %v6978
    %v7045 = vpop.f32.mrb[0].mxu0
    %v7046 = vadd.f32 %v297, %v7045
    %v7047 = vpop.f32.mrb[0].mxu0
    %7048 = vdwg.mxu0
    %v7049 = vtanh.pop %v7046
    %7050 = vmatprep.subr.mxu0 0.0
    %7051 = vmatpush1.msra.mxu0 %v104
    %7052 = vmatprep.subr.mxu0 0.0
    %7053 = vmatpush1.msra.mxu0 %v105
    %7054 = vmatprep.subr.mxu0 0.0
    %7055 = vmatpush1.msra.mxu0 %v106
    %7056 = vmatprep.subr.mxu0 0.0
    %7057 = vmatpush1.msra.mxu0 %v107
    %7058 = vmatprep.subr.mxu0 0.0
    %7059 = vmatpush1.msra.mxu0 %v108
    %7060 = vmatprep.subr.mxu0 0.0
    %7061 = vmatpush1.msra.mxu0 %v109
    %7062 = vmatprep.subr.mxu0 0.0
    %7063 = vmatpush1.msra.mxu0 %v110
    %7064 = vmatprep.subr.mxu0 0.0
    %7065 = vmatpush1.msra.mxu0 %v111
    %7066 = vmatprep.subr.mxu0 0.0
    %7067 = vmatpush1.msra.mxu0 %v112
    %7068 = vmatprep.subr.mxu0 0.0
    %7069 = vmatpush1.msra.mxu0 %v113
    %7070 = vmatprep.subr.mxu0 0.0
    %7071 = vmatpush1.msra.mxu0 %v114
    %7072 = vmatprep.subr.mxu0 0.0
    %7073 = vmatpush1.msra.mxu0 %v115
    %7074 = vmatprep.subr.mxu0 0.0
    %7075 = vmatpush1.msra.mxu0 %v116
    %7076 = vmatprep.subr.mxu0 0.0
    %7077 = vmatpush1.msra.mxu0 %v117
    %7078 = vmatprep.subr.mxu0 0.0
    %7079 = vmatpush1.msra.mxu0 %v118
    %7080 = vmatprep.subr.mxu0 0.0
    %7081 = vmatpush1.msra.mxu0 %v119
    %7082 = vmatprep.subr.mxu0 0.0
    %7083 = vmatpush1.msra.mxu0 0.0
    %7084 = vmatprep.subr.mxu0 0.0
    %7085 = vmatpush1.msra.mxu0 0.0
    %7086 = vmatprep.subr.mxu0 0.0
    %7087 = vmatpush1.msra.mxu0 0.0
    %7088 = vmatprep.subr.mxu0 0.0
    %7089 = vmatpush1.msra.mxu0 0.0
    %7090 = vmatprep.subr.mxu0 0.0
    %7091 = vmatpush1.msra.mxu0 0.0
    %7092 = vmatprep.subr.mxu0 0.0
    %7093 = vmatpush1.msra.mxu0 0.0
    %7094 = vmatprep.subr.mxu0 0.0
    %7095 = vmatpush1.msra.mxu0 0.0
    %7096 = vmatprep.subr.mxu0 0.0
    %7097 = vmatpush1.msra.mxu0 0.0
    %7098 = vmatprep.subr.mxu0 0.0
    %7099 = vmatpush1.msra.mxu0 0.0
    %7100 = vmatprep.subr.mxu0 0.0
    %7101 = vmatpush1.msra.mxu0 0.0
    %7102 = vmatprep.subr.mxu0 0.0
    %7103 = vmatpush1.msra.mxu0 0.0
    %7104 = vmatprep.subr.mxu0 0.0
    %7105 = vmatpush1.msra.mxu0 0.0
    %7106 = vmatprep.subr.mxu0 0.0
    %7107 = vmatpush1.msra.mxu0 0.0
    %7108 = vmatprep.subr.mxu0 0.0
    %7109 = vmatpush1.msra.mxu0 0.0
    %7110 = vmatprep.subr.mxu0 0.0
    %7111 = vmatpush1.msra.mxu0 0.0
    %7112 = vmatprep.subr.mxu0 0.0
    %7113 = vmatpush1.msra.mxu0 0.0
    %7114 = vmatprep.mubr.f32.mxu0 0.0
    %7115 = vmatmul.mubr.f32.gmra.mrb[0].mxu0 %v7049
    %v7116 = vpop.f32.mrb[0].mxu0
    %v7117 = vadd.f32 %v374, %v7116
    %v7118 = vpop.f32.mrb[0].mxu0
    %7119 = vdwg.mxu0
    %v7120 = vmul.f32 %v7117, 2.0
    %v7121 = vadd.f32 %v6973, %v7120
    %v7122 = vmul.f32 %v6976, %v7117
    %v7123 = vadd.f32 %v6108, %v7122
    %7124 = vmatprep.subr.mxu0 0.0
    %7125 = vmatpush1.msra.mxu0 %v87
    %7126 = vmatprep.subr.mxu0 0.0
    %7127 = vmatpush1.msra.mxu0 %v88
    %7128 = vmatprep.subr.mxu0 0.0
    %7129 = vmatpush1.msra.mxu0 %v89
    %7130 = vmatprep.subr.mxu0 0.0
    %7131 = vmatpush1.msra.mxu0 %v90
    %7132 = vmatprep.subr.mxu0 0.0
    %7133 = vmatpush1.msra.mxu0 %v91
    %7134 = vmatprep.subr.mxu0 0.0
    %7135 = vmatpush1.msra.mxu0 %v92
    %7136 = vmatprep.subr.mxu0 0.0
    %7137 = vmatpush1.msra.mxu0 %v93
    %7138 = vmatprep.subr.mxu0 0.0
    %7139 = vmatpush1.msra.mxu0 %v94
    %7140 = vmatprep.subr.mxu0 0.0
    %7141 = vmatpush1.msra.mxu0 %v95
    %7142 = vmatprep.subr.mxu0 0.0
    %7143 = vmatpush1.msra.mxu0 %v96
    %7144 = vmatprep.subr.mxu0 0.0
    %7145 = vmatpush1.msra.mxu0 %v97
    %7146 = vmatprep.subr.mxu0 0.0
    %7147 = vmatpush1.msra.mxu0 %v98
    %7148 = vmatprep.subr.mxu0 0.0
    %7149 = vmatpush1.msra.mxu0 %v99
    %7150 = vmatprep.subr.mxu0 0.0
    %7151 = vmatpush1.msra.mxu0 %v100
    %7152 = vmatprep.subr.mxu0 0.0
    %7153 = vmatpush1.msra.mxu0 %v101
    %7154 = vmatprep.subr.mxu0 0.0
    %7155 = vmatpush1.msra.mxu0 %v102
    %7156 = vmatprep.subr.mxu0 0.0
    %7157 = vmatpush1.msra.mxu0 0.0
    %7158 = vmatprep.subr.mxu0 0.0
    %7159 = vmatpush1.msra.mxu0 0.0
    %7160 = vmatprep.subr.mxu0 0.0
    %7161 = vmatpush1.msra.mxu0 0.0
    %7162 = vmatprep.subr.mxu0 0.0
    %7163 = vmatpush1.msra.mxu0 0.0
    %7164 = vmatprep.subr.mxu0 0.0
    %7165 = vmatpush1.msra.mxu0 0.0
    %7166 = vmatprep.subr.mxu0 0.0
    %7167 = vmatpush1.msra.mxu0 0.0
    %7168 = vmatprep.subr.mxu0 0.0
    %7169 = vmatpush1.msra.mxu0 0.0
    %7170 = vmatprep.subr.mxu0 0.0
    %7171 = vmatpush1.msra.mxu0 0.0
    %7172 = vmatprep.subr.mxu0 0.0
    %7173 = vmatpush1.msra.mxu0 0.0
    %7174 = vmatprep.subr.mxu0 0.0
    %7175 = vmatpush1.msra.mxu0 0.0
    %7176 = vmatprep.subr.mxu0 0.0
    %7177 = vmatpush1.msra.mxu0 0.0
    %7178 = vmatprep.subr.mxu0 0.0
    %7179 = vmatpush1.msra.mxu0 0.0
    %7180 = vmatprep.subr.mxu0 0.0
    %7181 = vmatpush1.msra.mxu0 0.0
    %7182 = vmatprep.subr.mxu0 0.0
    %7183 = vmatpush1.msra.mxu0 0.0
    %7184 = vmatprep.subr.mxu0 0.0
    %7185 = vmatpush1.msra.mxu0 0.0
    %7186 = vmatprep.subr.mxu0 0.0
    %7187 = vmatpush1.msra.mxu0 0.0
    %7188 = vmatprep.mubr.f32.mxu0 0.0
    %7189 = vmatmul.mubr.f32.gmra.mrb[0].mxu0 %v7123
    %v7190 = vpop.f32.mrb[0].mxu0
    %v7191 = vadd.f32 %v297, %v7190
    %v7192 = vpop.f32.mrb[0].mxu0
    %7193 = vdwg.mxu0
    %v7194 = vtanh.pop %v7191
    %7195 = vmatprep.subr.mxu0 0.0
    %7196 = vmatpush1.msra.mxu0 %v104
    %7197 = vmatprep.subr.mxu0 0.0
    %7198 = vmatpush1.msra.mxu0 %v105
    %7199 = vmatprep.subr.mxu0 0.0
    %7200 = vmatpush1.msra.mxu0 %v106
    %7201 = vmatprep.subr.mxu0 0.0
    %7202 = vmatpush1.msra.mxu0 %v107
    %7203 = vmatprep.subr.mxu0 0.0
    %7204 = vmatpush1.msra.mxu0 %v108
    %7205 = vmatprep.subr.mxu0 0.0
    %7206 = vmatpush1.msra.mxu0 %v109
    %7207 = vmatprep.subr.mxu0 0.0
    %7208 = vmatpush1.msra.mxu0 %v110
    %7209 = vmatprep.subr.mxu0 0.0
    %7210 = vmatpush1.msra.mxu0 %v111
    %7211 = vmatprep.subr.mxu0 0.0
    %7212 = vmatpush1.msra.mxu0 %v112
    %7213 = vmatprep.subr.mxu0 0.0
    %7214 = vmatpush1.msra.mxu0 %v113
    %7215 = vmatprep.subr.mxu0 0.0
    %7216 = vmatpush1.msra.mxu0 %v114
    %7217 = vmatprep.subr.mxu0 0.0
    %7218 = vmatpush1.msra.mxu0 %v115
    %7219 = vmatprep.subr.mxu0 0.0
    %7220 = vmatpush1.msra.mxu0 %v116
    %7221 = vmatprep.subr.mxu0 0.0
    %7222 = vmatpush1.msra.mxu0 %v117
    %7223 = vmatprep.subr.mxu0 0.0
    %7224 = vmatpush1.msra.mxu0 %v118
    %7225 = vmatprep.subr.mxu0 0.0
    %7226 = vmatpush1.msra.mxu0 %v119
    %7227 = vmatprep.subr.mxu0 0.0
    %7228 = vmatpush1.msra.mxu0 0.0
    %7229 = vmatprep.subr.mxu0 0.0
    %7230 = vmatpush1.msra.mxu0 0.0
    %7231 = vmatprep.subr.mxu0 0.0
    %7232 = vmatpush1.msra.mxu0 0.0
    %7233 = vmatprep.subr.mxu0 0.0
    %7234 = vmatpush1.msra.mxu0 0.0
    %7235 = vmatprep.subr.mxu0 0.0
    %7236 = vmatpush1.msra.mxu0 0.0
    %7237 = vmatprep.subr.mxu0 0.0
    %7238 = vmatpush1.msra.mxu0 0.0
    %7239 = vmatprep.subr.mxu0 0.0
    %7240 = vmatpush1.msra.mxu0 0.0
    %7241 = vmatprep.subr.mxu0 0.0
    %7242 = vmatpush1.msra.mxu0 0.0
    %7243 = vmatprep.subr.mxu0 0.0
    %7244 = vmatpush1.msra.mxu0 0.0
    %7245 = vmatprep.subr.mxu0 0.0
    %7246 = vmatpush1.msra.mxu0 0.0
    %7247 = vmatprep.subr.mxu0 0.0
    %7248 = vmatpush1.msra.mxu0 0.0
    %7249 = vmatprep.subr.mxu0 0.0
    %7250 = vmatpush1.msra.mxu0 0.0
    %7251 = vmatprep.subr.mxu0 0.0
    %7252 = vmatpush1.msra.mxu0 0.0
    %7253 = vmatprep.subr.mxu0 0.0
    %7254 = vmatpush1.msra.mxu0 0.0
    %7255 = vmatprep.subr.mxu0 0.0
    %7256 = vmatpush1.msra.mxu0 0.0
    %7257 = vmatprep.subr.mxu0 0.0
    %7258 = vmatpush1.msra.mxu0 0.0
    %7259 = vmatprep.mubr.f32.mxu0 0.0
    %7260 = vmatmul.mubr.f32.gmra.mrb[0].mxu0 %v7194
    %v7261 = vpop.f32.mrb[0].mxu0
    %v7262 = vadd.f32 %v374, %v7261
    %v7263 = vpop.f32.mrb[0].mxu0
    %7264 = vdwg.mxu0
    %v7265 = vmul.f32 %v7262, 2.0
    %v7266 = vadd.f32 %v7121, %v7265
    %v7267 = vstv %s6830
    %v7268 = vmul.f32 %v7267, %v7262
    %v7269 = vadd.f32 %v6108, %v7268
    %7270 = vmatprep.subr.mxu0 0.0
    %7271 = vmatpush1.msra.mxu0 %v87
    %7272 = vmatprep.subr.mxu0 0.0
    %7273 = vmatpush1.msra.mxu0 %v88
    %7274 = vmatprep.subr.mxu0 0.0
    %7275 = vmatpush1.msra.mxu0 %v89
    %7276 = vmatprep.subr.mxu0 0.0
    %7277 = vmatpush1.msra.mxu0 %v90
    %7278 = vmatprep.subr.mxu0 0.0
    %7279 = vmatpush1.msra.mxu0 %v91
    %7280 = vmatprep.subr.mxu0 0.0
    %7281 = vmatpush1.msra.mxu0 %v92
    %7282 = vmatprep.subr.mxu0 0.0
    %7283 = vmatpush1.msra.mxu0 %v93
    %7284 = vmatprep.subr.mxu0 0.0
    %7285 = vmatpush1.msra.mxu0 %v94
    %7286 = vmatprep.subr.mxu0 0.0
    %7287 = vmatpush1.msra.mxu0 %v95
    %7288 = vmatprep.subr.mxu0 0.0
    %7289 = vmatpush1.msra.mxu0 %v96
    %7290 = vmatprep.subr.mxu0 0.0
    %7291 = vmatpush1.msra.mxu0 %v97
    %7292 = vmatprep.subr.mxu0 0.0
    %7293 = vmatpush1.msra.mxu0 %v98
    %7294 = vmatprep.subr.mxu0 0.0
    %7295 = vmatpush1.msra.mxu0 %v99
    %7296 = vmatprep.subr.mxu0 0.0
    %7297 = vmatpush1.msra.mxu0 %v100
    %7298 = vmatprep.subr.mxu0 0.0
    %7299 = vmatpush1.msra.mxu0 %v101
    %7300 = vmatprep.subr.mxu0 0.0
    %7301 = vmatpush1.msra.mxu0 %v102
    %7302 = vmatprep.subr.mxu0 0.0
    %7303 = vmatpush1.msra.mxu0 0.0
    %7304 = vmatprep.subr.mxu0 0.0
    %7305 = vmatpush1.msra.mxu0 0.0
    %7306 = vmatprep.subr.mxu0 0.0
    %7307 = vmatpush1.msra.mxu0 0.0
    %7308 = vmatprep.subr.mxu0 0.0
    %7309 = vmatpush1.msra.mxu0 0.0
    %7310 = vmatprep.subr.mxu0 0.0
    %7311 = vmatpush1.msra.mxu0 0.0
    %7312 = vmatprep.subr.mxu0 0.0
    %7313 = vmatpush1.msra.mxu0 0.0
    %7314 = vmatprep.subr.mxu0 0.0
    %7315 = vmatpush1.msra.mxu0 0.0
    %7316 = vmatprep.subr.mxu0 0.0
    %7317 = vmatpush1.msra.mxu0 0.0
    %7318 = vmatprep.subr.mxu0 0.0
    %7319 = vmatpush1.msra.mxu0 0.0
    %7320 = vmatprep.subr.mxu0 0.0
    %7321 = vmatpush1.msra.mxu0 0.0
    %7322 = vmatprep.subr.mxu0 0.0
    %7323 = vmatpush1.msra.mxu0 0.0
    %7324 = vmatprep.subr.mxu0 0.0
    %7325 = vmatpush1.msra.mxu0 0.0
    %7326 = vmatprep.subr.mxu0 0.0
    %7327 = vmatpush1.msra.mxu0 0.0
    %7328 = vmatprep.subr.mxu0 0.0
    %7329 = vmatpush1.msra.mxu0 0.0
    %7330 = vmatprep.subr.mxu0 0.0
    %7331 = vmatpush1.msra.mxu0 0.0
    %7332 = vmatprep.subr.mxu0 0.0
    %7333 = vmatpush1.msra.mxu0 0.0
    %7334 = vmatprep.mubr.f32.mxu0 0.0
    %7335 = vmatmul.mubr.f32.gmra.mrb[0].mxu0 %v7269
    %v7336 = vpop.f32.mrb[0].mxu0
    %v7337 = vadd.f32 %v297, %v7336
    %v7338 = vpop.f32.mrb[0].mxu0
    %7339 = vdwg.mxu0
    %v7340 = vtanh.pop %v7337
    %7341 = vmatprep.subr.mxu0 0.0
    %7342 = vmatpush1.msra.mxu0 %v104
    %7343 = vmatprep.subr.mxu0 0.0
    %7344 = vmatpush1.msra.mxu0 %v105
    %7345 = vmatprep.subr.mxu0 0.0
    %7346 = vmatpush1.msra.mxu0 %v106
    %7347 = vmatprep.subr.mxu0 0.0
    %7348 = vmatpush1.msra.mxu0 %v107
    %7349 = vmatprep.subr.mxu0 0.0
    %7350 = vmatpush1.msra.mxu0 %v108
    %7351 = vmatprep.subr.mxu0 0.0
    %7352 = vmatpush1.msra.mxu0 %v109
    %7353 = vmatprep.subr.mxu0 0.0
    %7354 = vmatpush1.msra.mxu0 %v110
    %7355 = vmatprep.subr.mxu0 0.0
    %7356 = vmatpush1.msra.mxu0 %v111
    %7357 = vmatprep.subr.mxu0 0.0
    %7358 = vmatpush1.msra.mxu0 %v112
    %7359 = vmatprep.subr.mxu0 0.0
    %7360 = vmatpush1.msra.mxu0 %v113
    %7361 = vmatprep.subr.mxu0 0.0
    %7362 = vmatpush1.msra.mxu0 %v114
    %7363 = vmatprep.subr.mxu0 0.0
    %7364 = vmatpush1.msra.mxu0 %v115
    %7365 = vmatprep.subr.mxu0 0.0
    %7366 = vmatpush1.msra.mxu0 %v116
    %7367 = vmatprep.subr.mxu0 0.0
    %7368 = vmatpush1.msra.mxu0 %v117
    %7369 = vmatprep.subr.mxu0 0.0
    %7370 = vmatpush1.msra.mxu0 %v118
    %7371 = vmatprep.subr.mxu0 0.0
    %7372 = vmatpush1.msra.mxu0 %v119
    %7373 = vmatprep.subr.mxu0 0.0
    %7374 = vmatpush1.msra.mxu0 0.0
    %7375 = vmatprep.subr.mxu0 0.0
    %7376 = vmatpush1.msra.mxu0 0.0
    %7377 = vmatprep.subr.mxu0 0.0
    %7378 = vmatpush1.msra.mxu0 0.0
    %7379 = vmatprep.subr.mxu0 0.0
    %7380 = vmatpush1.msra.mxu0 0.0
    %7381 = vmatprep.subr.mxu0 0.0
    %7382 = vmatpush1.msra.mxu0 0.0
    %7383 = vmatprep.subr.mxu0 0.0
    %7384 = vmatpush1.msra.mxu0 0.0
    %7385 = vmatprep.subr.mxu0 0.0
    %7386 = vmatpush1.msra.mxu0 0.0
    %7387 = vmatprep.subr.mxu0 0.0
    %7388 = vmatpush1.msra.mxu0 0.0
    %7389 = vmatprep.subr.mxu0 0.0
    %7390 = vmatpush1.msra.mxu0 0.0
    %7391 = vmatprep.subr.mxu0 0.0
    %7392 = vmatpush1.msra.mxu0 0.0
    %7393 = vmatprep.subr.mxu0 0.0
    %7394 = vmatpush1.msra.mxu0 0.0
    %7395 = vmatprep.subr.mxu0 0.0
    %7396 = vmatpush1.msra.mxu0 0.0
    %7397 = vmatprep.subr.mxu0 0.0
    %7398 = vmatpush1.msra.mxu0 0.0
    %7399 = vmatprep.subr.mxu0 0.0
    %7400 = vmatpush1.msra.mxu0 0.0
    %7401 = vmatprep.subr.mxu0 0.0
    %7402 = vmatpush1.msra.mxu0 0.0
    %7403 = vmatprep.subr.mxu0 0.0
    %7404 = vmatpush1.msra.mxu0 0.0
    %7405 = vmatprep.mubr.f32.mxu0 0.0
    %7406 = vmatmul.mubr.f32.gmra.mrb[0].mxu0 %v7340
    %v7407 = vpop.f32.mrb[0].mxu0
    %v7408 = vadd.f32 %v374, %v7407
    %v7409 = vpop.f32.mrb[0].mxu0
    %7410 = vdwg.mxu0
    %v7411 = vadd.f32 %v7266, %v7408
    %v7412 = vstv %s6834
    %v7413 = vmul.f32 %v7412, %v7411
    %v7414 = vadd.f32 %v6108, %v7413
    %7415 = vmatprep.subr.mxu0 0.0
    %7416 = vmatpush1.msra.mxu0 %v87
    %7417 = vmatprep.subr.mxu0 0.0
    %7418 = vmatpush1.msra.mxu0 %v88
    %7419 = vmatprep.subr.mxu0 0.0
    %7420 = vmatpush1.msra.mxu0 %v89
    %7421 = vmatprep.subr.mxu0 0.0
    %7422 = vmatpush1.msra.mxu0 %v90
    %7423 = vmatprep.subr.mxu0 0.0
    %7424 = vmatpush1.msra.mxu0 %v91
    %7425 = vmatprep.subr.mxu0 0.0
    %7426 = vmatpush1.msra.mxu0 %v92
    %7427 = vmatprep.subr.mxu0 0.0
    %7428 = vmatpush1.msra.mxu0 %v93
    %7429 = vmatprep.subr.mxu0 0.0
    %7430 = vmatpush1.msra.mxu0 %v94
    %7431 = vmatprep.subr.mxu0 0.0
    %7432 = vmatpush1.msra.mxu0 %v95
    %7433 = vmatprep.subr.mxu0 0.0
    %7434 = vmatpush1.msra.mxu0 %v96
    %7435 = vmatprep.subr.mxu0 0.0
    %7436 = vmatpush1.msra.mxu0 %v97
    %7437 = vmatprep.subr.mxu0 0.0
    %7438 = vmatpush1.msra.mxu0 %v98
    %7439 = vmatprep.subr.mxu0 0.0
    %7440 = vmatpush1.msra.mxu0 %v99
    %7441 = vmatprep.subr.mxu0 0.0
    %7442 = vmatpush1.msra.mxu0 %v100
    %7443 = vmatprep.subr.mxu0 0.0
    %7444 = vmatpush1.msra.mxu0 %v101
    %7445 = vmatprep.subr.mxu0 0.0
    %7446 = vmatpush1.msra.mxu0 %v102
    %7447 = vmatprep.subr.mxu0 0.0
    %7448 = vmatpush1.msra.mxu0 0.0
    %7449 = vmatprep.subr.mxu0 0.0
    %7450 = vmatpush1.msra.mxu0 0.0
    %7451 = vmatprep.subr.mxu0 0.0
    %7452 = vmatpush1.msra.mxu0 0.0
    %7453 = vmatprep.subr.mxu0 0.0
    %7454 = vmatpush1.msra.mxu0 0.0
    %7455 = vmatprep.subr.mxu0 0.0
    %7456 = vmatpush1.msra.mxu0 0.0
    %7457 = vmatprep.subr.mxu0 0.0
    %7458 = vmatpush1.msra.mxu0 0.0
    %7459 = vmatprep.subr.mxu0 0.0
    %7460 = vmatpush1.msra.mxu0 0.0
    %7461 = vmatprep.subr.mxu0 0.0
    %7462 = vmatpush1.msra.mxu0 0.0
    %7463 = vmatprep.subr.mxu0 0.0
    %7464 = vmatpush1.msra.mxu0 0.0
    %7465 = vmatprep.subr.mxu0 0.0
    %7466 = vmatpush1.msra.mxu0 0.0
    %7467 = vmatprep.subr.mxu0 0.0
    %7468 = vmatpush1.msra.mxu0 0.0
    %7469 = vmatprep.subr.mxu0 0.0
    %7470 = vmatpush1.msra.mxu0 0.0
    %7471 = vmatprep.subr.mxu0 0.0
    %7472 = vmatpush1.msra.mxu0 0.0
    %7473 = vmatprep.subr.mxu0 0.0
    %7474 = vmatpush1.msra.mxu0 0.0
    %7475 = vmatprep.subr.mxu0 0.0
    %7476 = vmatpush1.msra.mxu0 0.0
    %7477 = vmatprep.subr.mxu0 0.0
    %7478 = vmatpush1.msra.mxu0 0.0
    %7479 = vmatprep.mubr.f32.mxu0 0.0
    %7480 = vmatmul.mubr.f32.gmra.mrb[0].mxu0 %v6685
    %v7481 = vpop.f32.mrb[0].mxu0
    %v7482 = vadd.f32 %v297, %v7481
    %v7483 = vpop.f32.mrb[0].mxu0
    %7484 = vdwg.mxu0
    %v7485 = vtanh.pop %v7482
    %7486 = vmatprep.subr.mxu0 0.0
    %7487 = vmatpush1.msra.mxu0 %v104
    %7488 = vmatprep.subr.mxu0 0.0
    %7489 = vmatpush1.msra.mxu0 %v105
    %7490 = vmatprep.subr.mxu0 0.0
    %7491 = vmatpush1.msra.mxu0 %v106
    %7492 = vmatprep.subr.mxu0 0.0
    %7493 = vmatpush1.msra.mxu0 %v107
    %7494 = vmatprep.subr.mxu0 0.0
    %7495 = vmatpush1.msra.mxu0 %v108
    %7496 = vmatprep.subr.mxu0 0.0
    %7497 = vmatpush1.msra.mxu0 %v109
    %7498 = vmatprep.subr.mxu0 0.0
    %7499 = vmatpush1.msra.mxu0 %v110
    %7500 = vmatprep.subr.mxu0 0.0
    %7501 = vmatpush1.msra.mxu0 %v111
    %7502 = vmatprep.subr.mxu0 0.0
    %7503 = vmatpush1.msra.mxu0 %v112
    %7504 = vmatprep.subr.mxu0 0.0
    %7505 = vmatpush1.msra.mxu0 %v113
    %7506 = vmatprep.subr.mxu0 0.0
    %7507 = vmatpush1.msra.mxu0 %v114
    %7508 = vmatprep.subr.mxu0 0.0
    %7509 = vmatpush1.msra.mxu0 %v115
    %7510 = vmatprep.subr.mxu0 0.0
    %7511 = vmatpush1.msra.mxu0 %v116
    %7512 = vmatprep.subr.mxu0 0.0
    %7513 = vmatpush1.msra.mxu0 %v117
    %7514 = vmatprep.subr.mxu0 0.0
    %7515 = vmatpush1.msra.mxu0 %v118
    %7516 = vmatprep.subr.mxu0 0.0
    %7517 = vmatpush1.msra.mxu0 %v119
    %7518 = vmatprep.subr.mxu0 0.0
    %7519 = vmatpush1.msra.mxu0 0.0
    %7520 = vmatprep.subr.mxu0 0.0
    %7521 = vmatpush1.msra.mxu0 0.0
    %7522 = vmatprep.subr.mxu0 0.0
    %7523 = vmatpush1.msra.mxu0 0.0
    %7524 = vmatprep.subr.mxu0 0.0
    %7525 = vmatpush1.msra.mxu0 0.0
    %7526 = vmatprep.subr.mxu0 0.0
    %7527 = vmatpush1.msra.mxu0 0.0
    %7528 = vmatprep.subr.mxu0 0.0
    %7529 = vmatpush1.msra.mxu0 0.0
    %7530 = vmatprep.subr.mxu0 0.0
    %7531 = vmatpush1.msra.mxu0 0.0
    %7532 = vmatprep.subr.mxu0 0.0
    %7533 = vmatpush1.msra.mxu0 0.0
    %7534 = vmatprep.subr.mxu0 0.0
    %7535 = vmatpush1.msra.mxu0 0.0
    %7536 = vmatprep.subr.mxu0 0.0
    %7537 = vmatpush1.msra.mxu0 0.0
    %7538 = vmatprep.subr.mxu0 0.0
    %7539 = vmatpush1.msra.mxu0 0.0
    %7540 = vmatprep.subr.mxu0 0.0
    %7541 = vmatpush1.msra.mxu0 0.0
    %7542 = vmatprep.subr.mxu0 0.0
    %7543 = vmatpush1.msra.mxu0 0.0
    %7544 = vmatprep.subr.mxu0 0.0
    %7545 = vmatpush1.msra.mxu0 0.0
    %7546 = vmatprep.subr.mxu0 0.0
    %7547 = vmatpush1.msra.mxu0 0.0
    %7548 = vmatprep.subr.mxu0 0.0
    %7549 = vmatpush1.msra.mxu0 0.0
    %7550 = vmatprep.mubr.f32.mxu0 0.0
    %7551 = vmatmul.mubr.f32.gmra.mrb[0].mxu0 %v7485
    %v7552 = vpop.f32.mrb[0].mxu0
    %v7553 = vadd.f32 %v374, %v7552
    %v7554 = vpop.f32.mrb[0].mxu0
    %7555 = vdwg.mxu0
    %v7556 = vmul.f32 %v6976, %v7553
    %v7557 = vadd.f32 %v6685, %v7556
    %7558 = vmatprep.subr.mxu0 0.0
    %7559 = vmatpush1.msra.mxu0 %v87
    %7560 = vmatprep.subr.mxu0 0.0
    %7561 = vmatpush1.msra.mxu0 %v88
    %7562 = vmatprep.subr.mxu0 0.0
    %7563 = vmatpush1.msra.mxu0 %v89
    %7564 = vmatprep.subr.mxu0 0.0
    %7565 = vmatpush1.msra.mxu0 %v90
    %7566 = vmatprep.subr.mxu0 0.0
    %7567 = vmatpush1.msra.mxu0 %v91
    %7568 = vmatprep.subr.mxu0 0.0
    %7569 = vmatpush1.msra.mxu0 %v92
    %7570 = vmatprep.subr.mxu0 0.0
    %7571 = vmatpush1.msra.mxu0 %v93
    %7572 = vmatprep.subr.mxu0 0.0
    %7573 = vmatpush1.msra.mxu0 %v94
    %7574 = vmatprep.subr.mxu0 0.0
    %7575 = vmatpush1.msra.mxu0 %v95
    %7576 = vmatprep.subr.mxu0 0.0
    %7577 = vmatpush1.msra.mxu0 %v96
    %7578 = vmatprep.subr.mxu0 0.0
    %7579 = vmatpush1.msra.mxu0 %v97
    %7580 = vmatprep.subr.mxu0 0.0
    %7581 = vmatpush1.msra.mxu0 %v98
    %7582 = vmatprep.subr.mxu0 0.0
    %7583 = vmatpush1.msra.mxu0 %v99
    %7584 = vmatprep.subr.mxu0 0.0
    %7585 = vmatpush1.msra.mxu0 %v100
    %7586 = vmatprep.subr.mxu0 0.0
    %7587 = vmatpush1.msra.mxu0 %v101
    %7588 = vmatprep.subr.mxu0 0.0
    %7589 = vmatpush1.msra.mxu0 %v102
    %7590 = vmatprep.subr.mxu0 0.0
    %7591 = vmatpush1.msra.mxu0 0.0
    %7592 = vmatprep.subr.mxu0 0.0
    %7593 = vmatpush1.msra.mxu0 0.0
    %7594 = vmatprep.subr.mxu0 0.0
    %7595 = vmatpush1.msra.mxu0 0.0
    %7596 = vmatprep.subr.mxu0 0.0
    %7597 = vmatpush1.msra.mxu0 0.0
    %7598 = vmatprep.subr.mxu0 0.0
    %7599 = vmatpush1.msra.mxu0 0.0
    %7600 = vmatprep.subr.mxu0 0.0
    %7601 = vmatpush1.msra.mxu0 0.0
    %7602 = vmatprep.subr.mxu0 0.0
    %7603 = vmatpush1.msra.mxu0 0.0
    %7604 = vmatprep.subr.mxu0 0.0
    %7605 = vmatpush1.msra.mxu0 0.0
    %7606 = vmatprep.subr.mxu0 0.0
    %7607 = vmatpush1.msra.mxu0 0.0
    %7608 = vmatprep.subr.mxu0 0.0
    %7609 = vmatpush1.msra.mxu0 0.0
    %7610 = vmatprep.subr.mxu0 0.0
    %7611 = vmatpush1.msra.mxu0 0.0
    %7612 = vmatprep.subr.mxu0 0.0
    %7613 = vmatpush1.msra.mxu0 0.0
    %7614 = vmatprep.subr.mxu0 0.0
    %7615 = vmatpush1.msra.mxu0 0.0
    %7616 = vmatprep.subr.mxu0 0.0
    %7617 = vmatpush1.msra.mxu0 0.0
    %7618 = vmatprep.subr.mxu0 0.0
    %7619 = vmatpush1.msra.mxu0 0.0
    %7620 = vmatprep.subr.mxu0 0.0
    %7621 = vmatpush1.msra.mxu0 0.0
    %7622 = vmatprep.mubr.f32.mxu0 0.0
    %7623 = vmatmul.mubr.f32.gmra.mrb[0].mxu0 %v7557
    %v7624 = vpop.f32.mrb[0].mxu0
    %v7625 = vadd.f32 %v297, %v7624
    %v7626 = vpop.f32.mrb[0].mxu0
    %7627 = vdwg.mxu0
    %v7628 = vtanh.pop %v7625
    %7629 = vmatprep.subr.mxu0 0.0
    %7630 = vmatpush1.msra.mxu0 %v104
    %7631 = vmatprep.subr.mxu0 0.0
    %7632 = vmatpush1.msra.mxu0 %v105
    %7633 = vmatprep.subr.mxu0 0.0
    %7634 = vmatpush1.msra.mxu0 %v106
    %7635 = vmatprep.subr.mxu0 0.0
    %7636 = vmatpush1.msra.mxu0 %v107
    %7637 = vmatprep.subr.mxu0 0.0
    %7638 = vmatpush1.msra.mxu0 %v108
    %7639 = vmatprep.subr.mxu0 0.0
    %7640 = vmatpush1.msra.mxu0 %v109
    %7641 = vmatprep.subr.mxu0 0.0
    %7642 = vmatpush1.msra.mxu0 %v110
    %7643 = vmatprep.subr.mxu0 0.0
    %7644 = vmatpush1.msra.mxu0 %v111
    %7645 = vmatprep.subr.mxu0 0.0
    %7646 = vmatpush1.msra.mxu0 %v112
    %7647 = vmatprep.subr.mxu0 0.0
    %7648 = vmatpush1.msra.mxu0 %v113
    %7649 = vmatprep.subr.mxu0 0.0
    %7650 = vmatpush1.msra.mxu0 %v114
    %7651 = vmatprep.subr.mxu0 0.0
    %7652 = vmatpush1.msra.mxu0 %v115
    %7653 = vmatprep.subr.mxu0 0.0
    %7654 = vmatpush1.msra.mxu0 %v116
    %7655 = vmatprep.subr.mxu0 0.0
    %7656 = vmatpush1.msra.mxu0 %v117
    %7657 = vmatprep.subr.mxu0 0.0
    %7658 = vmatpush1.msra.mxu0 %v118
    %7659 = vmatprep.subr.mxu0 0.0
    %7660 = vmatpush1.msra.mxu0 %v119
    %7661 = vmatprep.subr.mxu0 0.0
    %7662 = vmatpush1.msra.mxu0 0.0
    %7663 = vmatprep.subr.mxu0 0.0
    %7664 = vmatpush1.msra.mxu0 0.0
    %7665 = vmatprep.subr.mxu0 0.0
    %7666 = vmatpush1.msra.mxu0 0.0
    %7667 = vmatprep.subr.mxu0 0.0
    %7668 = vmatpush1.msra.mxu0 0.0
    %7669 = vmatprep.subr.mxu0 0.0
    %7670 = vmatpush1.msra.mxu0 0.0
    %7671 = vmatprep.subr.mxu0 0.0
    %7672 = vmatpush1.msra.mxu0 0.0
    %7673 = vmatprep.subr.mxu0 0.0
    %7674 = vmatpush1.msra.mxu0 0.0
    %7675 = vmatprep.subr.mxu0 0.0
    %7676 = vmatpush1.msra.mxu0 0.0
    %7677 = vmatprep.subr.mxu0 0.0
    %7678 = vmatpush1.msra.mxu0 0.0
    %7679 = vmatprep.subr.mxu0 0.0
    %7680 = vmatpush1.msra.mxu0 0.0
    %7681 = vmatprep.subr.mxu0 0.0
    %7682 = vmatpush1.msra.mxu0 0.0
    %7683 = vmatprep.subr.mxu0 0.0
    %7684 = vmatpush1.msra.mxu0 0.0
    %7685 = vmatprep.subr.mxu0 0.0
    %7686 = vmatpush1.msra.mxu0 0.0
    %7687 = vmatprep.subr.mxu0 0.0
    %7688 = vmatpush1.msra.mxu0 0.0
    %7689 = vmatprep.subr.mxu0 0.0
    %7690 = vmatpush1.msra.mxu0 0.0
    %7691 = vmatprep.subr.mxu0 0.0
    %7692 = vmatpush1.msra.mxu0 0.0
    %7693 = vmatprep.mubr.f32.mxu0 0.0
    %7694 = vmatmul.mubr.f32.gmra.mrb[0].mxu0 %v7628
    %v7695 = vpop.f32.mrb[0].mxu0
    %v7696 = vadd.f32 %v374, %v7695
    %v7697 = vpop.f32.mrb[0].mxu0
    %7698 = vdwg.mxu0
    %v7699 = vmul.f32 %v7696, 2.0
    %v7700 = vadd.f32 %v7553, %v7699
    %v7701 = vmul.f32 %v6976, %v7696
    %v7702 = vadd.f32 %v6685, %v7701
    %7703 = vmatprep.subr.mxu0 0.0
    %7704 = vmatpush1.msra.mxu0 %v87
    %7705 = vmatprep.subr.mxu0 0.0
    %7706 = vmatpush1.msra.mxu0 %v88
    %7707 = vmatprep.subr.mxu0 0.0
    %7708 = vmatpush1.msra.mxu0 %v89
    %7709 = vmatprep.subr.mxu0 0.0
    %7710 = vmatpush1.msra.mxu0 %v90
    %7711 = vmatprep.subr.mxu0 0.0
    %7712 = vmatpush1.msra.mxu0 %v91
    %7713 = vmatprep.subr.mxu0 0.0
    %7714 = vmatpush1.msra.mxu0 %v92
    %7715 = vmatprep.subr.mxu0 0.0
    %7716 = vmatpush1.msra.mxu0 %v93
    %7717 = vmatprep.subr.mxu0 0.0
    %7718 = vmatpush1.msra.mxu0 %v94
    %7719 = vmatprep.subr.mxu0 0.0
    %7720 = vmatpush1.msra.mxu0 %v95
    %7721 = vmatprep.subr.mxu0 0.0
    %7722 = vmatpush1.msra.mxu0 %v96
    %7723 = vmatprep.subr.mxu0 0.0
    %7724 = vmatpush1.msra.mxu0 %v97
    %7725 = vmatprep.subr.mxu0 0.0
    %7726 = vmatpush1.msra.mxu0 %v98
    %7727 = vmatprep.subr.mxu0 0.0
    %7728 = vmatpush1.msra.mxu0 %v99
    %7729 = vmatprep.subr.mxu0 0.0
    %7730 = vmatpush1.msra.mxu0 %v100
    %7731 = vmatprep.subr.mxu0 0.0
    %7732 = vmatpush1.msra.mxu0 %v101
    %7733 = vmatprep.subr.mxu0 0.0
    %7734 = vmatpush1.msra.mxu0 %v102
    %7735 = vmatprep.subr.mxu0 0.0
    %7736 = vmatpush1.msra.mxu0 0.0
    %7737 = vmatprep.subr.mxu0 0.0
    %7738 = vmatpush1.msra.mxu0 0.0
    %7739 = vmatprep.subr.mxu0 0.0
    %7740 = vmatpush1.msra.mxu0 0.0
    %7741 = vmatprep.subr.mxu0 0.0
    %7742 = vmatpush1.msra.mxu0 0.0
    %7743 = vmatprep.subr.mxu0 0.0
    %7744 = vmatpush1.msra.mxu0 0.0
    %7745 = vmatprep.subr.mxu0 0.0
    %7746 = vmatpush1.msra.mxu0 0.0
    %7747 = vmatprep.subr.mxu0 0.0
    %7748 = vmatpush1.msra.mxu0 0.0
    %7749 = vmatprep.subr.mxu0 0.0
    %7750 = vmatpush1.msra.mxu0 0.0
    %7751 = vmatprep.subr.mxu0 0.0
    %7752 = vmatpush1.msra.mxu0 0.0
    %7753 = vmatprep.subr.mxu0 0.0
    %7754 = vmatpush1.msra.mxu0 0.0
    %7755 = vmatprep.subr.mxu0 0.0
    %7756 = vmatpush1.msra.mxu0 0.0
    %7757 = vmatprep.subr.mxu0 0.0
    %7758 = vmatpush1.msra.mxu0 0.0
    %7759 = vmatprep.subr.mxu0 0.0
    %7760 = vmatpush1.msra.mxu0 0.0
    %7761 = vmatprep.subr.mxu0 0.0
    %7762 = vmatpush1.msra.mxu0 0.0
    %7763 = vmatprep.subr.mxu0 0.0
    %7764 = vmatpush1.msra.mxu0 0.0
    %7765 = vmatprep.subr.mxu0 0.0
    %7766 = vmatpush1.msra.mxu0 0.0
    %7767 = vmatprep.mubr.f32.mxu0 0.0
    %7768 = vmatmul.mubr.f32.gmra.mrb[0].mxu0 %v7702
    %v7769 = vpop.f32.mrb[0].mxu0
    %v7770 = vadd.f32 %v297, %v7769
    %v7771 = vpop.f32.mrb[0].mxu0
    %7772 = vdwg.mxu0
    %v7773 = vtanh.pop %v7770
    %7774 = vmatprep.subr.mxu0 0.0
    %7775 = vmatpush1.msra.mxu0 %v104
    %7776 = vmatprep.subr.mxu0 0.0
    %7777 = vmatpush1.msra.mxu0 %v105
    %7778 = vmatprep.subr.mxu0 0.0
    %7779 = vmatpush1.msra.mxu0 %v106
    %7780 = vmatprep.subr.mxu0 0.0
    %7781 = vmatpush1.msra.mxu0 %v107
    %7782 = vmatprep.subr.mxu0 0.0
    %7783 = vmatpush1.msra.mxu0 %v108
    %7784 = vmatprep.subr.mxu0 0.0
    %7785 = vmatpush1.msra.mxu0 %v109
    %7786 = vmatprep.subr.mxu0 0.0
    %7787 = vmatpush1.msra.mxu0 %v110
    %7788 = vmatprep.subr.mxu0 0.0
    %7789 = vmatpush1.msra.mxu0 %v111
    %7790 = vmatprep.subr.mxu0 0.0
    %7791 = vmatpush1.msra.mxu0 %v112
    %7792 = vmatprep.subr.mxu0 0.0
    %7793 = vmatpush1.msra.mxu0 %v113
    %7794 = vmatprep.subr.mxu0 0.0
    %7795 = vmatpush1.msra.mxu0 %v114
    %7796 = vmatprep.subr.mxu0 0.0
    %7797 = vmatpush1.msra.mxu0 %v115
    %7798 = vmatprep.subr.mxu0 0.0
    %7799 = vmatpush1.msra.mxu0 %v116
    %7800 = vmatprep.subr.mxu0 0.0
    %7801 = vmatpush1.msra.mxu0 %v117
    %7802 = vmatprep.subr.mxu0 0.0
    %7803 = vmatpush1.msra.mxu0 %v118
    %7804 = vmatprep.subr.mxu0 0.0
    %7805 = vmatpush1.msra.mxu0 %v119
    %7806 = vmatprep.subr.mxu0 0.0
    %7807 = vmatpush1.msra.mxu0 0.0
    %7808 = vmatprep.subr.mxu0 0.0
    %7809 = vmatpush1.msra.mxu0 0.0
    %7810 = vmatprep.subr.mxu0 0.0
    %7811 = vmatpush1.msra.mxu0 0.0
    %7812 = vmatprep.subr.mxu0 0.0
    %7813 = vmatpush1.msra.mxu0 0.0
    %7814 = vmatprep.subr.mxu0 0.0
    %7815 = vmatpush1.msra.mxu0 0.0
    %7816 = vmatprep.subr.mxu0 0.0
    %7817 = vmatpush1.msra.mxu0 0.0
    %7818 = vmatprep.subr.mxu0 0.0
    %7819 = vmatpush1.msra.mxu0 0.0
    %7820 = vmatprep.subr.mxu0 0.0
    %7821 = vmatpush1.msra.mxu0 0.0
    %7822 = vmatprep.subr.mxu0 0.0
    %7823 = vmatpush1.msra.mxu0 0.0
    %7824 = vmatprep.subr.mxu0 0.0
    %7825 = vmatpush1.msra.mxu0 0.0
    %7826 = vmatprep.subr.mxu0 0.0
    %7827 = vmatpush1.msra.mxu0 0.0
    %7828 = vmatprep.subr.mxu0 0.0
    %7829 = vmatpush1.msra.mxu0 0.0
    %7830 = vmatprep.subr.mxu0 0.0
    %7831 = vmatpush1.msra.mxu0 0.0
    %7832 = vmatprep.subr.mxu0 0.0
    %7833 = vmatpush1.msra.mxu0 0.0
    %7834 = vmatprep.subr.mxu0 0.0
    %7835 = vmatpush1.msra.mxu0 0.0
    %7836 = vmatprep.subr.mxu0 0.0
    %7837 = vmatpush1.msra.mxu0 0.0
    %7838 = vmatprep.mubr.f32.mxu0 0.0
    %7839 = vmatmul.mubr.f32.gmra.mrb[0].mxu0 %v7773
    %v7840 = vpop.f32.mrb[0].mxu0
    %v7841 = vadd.f32 %v374, %v7840
    %v7842 = vpop.f32.mrb[0].mxu0
    %7843 = vdwg.mxu0
    %v7844 = vmul.f32 %v7841, 2.0
    %v7845 = vadd.f32 %v7700, %v7844
    %v7846 = vmul.f32 %v7267, %v7841
    %v7847 = vadd.f32 %v6685, %v7846
    %7848 = vmatprep.subr.mxu0 0.0
    %7849 = vmatpush1.msra.mxu0 %v87
    %7850 = vmatprep.subr.mxu0 0.0
    %7851 = vmatpush1.msra.mxu0 %v88
    %7852 = vmatprep.subr.mxu0 0.0
    %7853 = vmatpush1.msra.mxu0 %v89
    %7854 = vmatprep.subr.mxu0 0.0
    %7855 = vmatpush1.msra.mxu0 %v90
    %7856 = vmatprep.subr.mxu0 0.0
    %7857 = vmatpush1.msra.mxu0 %v91
    %7858 = vmatprep.subr.mxu0 0.0
    %7859 = vmatpush1.msra.mxu0 %v92
    %7860 = vmatprep.subr.mxu0 0.0
    %7861 = vmatpush1.msra.mxu0 %v93
    %7862 = vmatprep.subr.mxu0 0.0
    %7863 = vmatpush1.msra.mxu0 %v94
    %7864 = vmatprep.subr.mxu0 0.0
    %7865 = vmatpush1.msra.mxu0 %v95
    %7866 = vmatprep.subr.mxu0 0.0
    %7867 = vmatpush1.msra.mxu0 %v96
    %7868 = vmatprep.subr.mxu0 0.0
    %7869 = vmatpush1.msra.mxu0 %v97
    %7870 = vmatprep.subr.mxu0 0.0
    %7871 = vmatpush1.msra.mxu0 %v98
    %7872 = vmatprep.subr.mxu0 0.0
    %7873 = vmatpush1.msra.mxu0 %v99
    %7874 = vmatprep.subr.mxu0 0.0
    %7875 = vmatpush1.msra.mxu0 %v100
    %7876 = vmatprep.subr.mxu0 0.0
    %7877 = vmatpush1.msra.mxu0 %v101
    %7878 = vmatprep.subr.mxu0 0.0
    %7879 = vmatpush1.msra.mxu0 %v102
    %7880 = vmatprep.subr.mxu0 0.0
    %7881 = vmatpush1.msra.mxu0 0.0
    %7882 = vmatprep.subr.mxu0 0.0
    %7883 = vmatpush1.msra.mxu0 0.0
    %7884 = vmatprep.subr.mxu0 0.0
    %7885 = vmatpush1.msra.mxu0 0.0
    %7886 = vmatprep.subr.mxu0 0.0
    %7887 = vmatpush1.msra.mxu0 0.0
    %7888 = vmatprep.subr.mxu0 0.0
    %7889 = vmatpush1.msra.mxu0 0.0
    %7890 = vmatprep.subr.mxu0 0.0
    %7891 = vmatpush1.msra.mxu0 0.0
    %7892 = vmatprep.subr.mxu0 0.0
    %7893 = vmatpush1.msra.mxu0 0.0
    %7894 = vmatprep.subr.mxu0 0.0
    %7895 = vmatpush1.msra.mxu0 0.0
    %7896 = vmatprep.subr.mxu0 0.0
    %7897 = vmatpush1.msra.mxu0 0.0
    %7898 = vmatprep.subr.mxu0 0.0
    %7899 = vmatpush1.msra.mxu0 0.0
    %7900 = vmatprep.subr.mxu0 0.0
    %7901 = vmatpush1.msra.mxu0 0.0
    %7902 = vmatprep.subr.mxu0 0.0
    %7903 = vmatpush1.msra.mxu0 0.0
    %7904 = vmatprep.subr.mxu0 0.0
    %7905 = vmatpush1.msra.mxu0 0.0
    %7906 = vmatprep.subr.mxu0 0.0
    %7907 = vmatpush1.msra.mxu0 0.0
    %7908 = vmatprep.subr.mxu0 0.0
    %7909 = vmatpush1.msra.mxu0 0.0
    %7910 = vmatprep.subr.mxu0 0.0
    %7911 = vmatpush1.msra.mxu0 0.0
    %7912 = vmatprep.mubr.f32.mxu0 0.0
    %7913 = vmatmul.mubr.f32.gmra.mrb[0].mxu0 %v7847
    %v7914 = vpop.f32.mrb[0].mxu0
    %v7915 = vadd.f32 %v297, %v7914
    %v7916 = vpop.f32.mrb[0].mxu0
    %7917 = vdwg.mxu0
    %v7918 = vtanh.pop %v7915
    %7919 = vmatprep.subr.mxu0 0.0
    %7920 = vmatpush1.msra.mxu0 %v104
    %7921 = vmatprep.subr.mxu0 0.0
    %7922 = vmatpush1.msra.mxu0 %v105
    %7923 = vmatprep.subr.mxu0 0.0
    %7924 = vmatpush1.msra.mxu0 %v106
    %7925 = vmatprep.subr.mxu0 0.0
    %7926 = vmatpush1.msra.mxu0 %v107
    %7927 = vmatprep.subr.mxu0 0.0
    %7928 = vmatpush1.msra.mxu0 %v108
    %7929 = vmatprep.subr.mxu0 0.0
    %7930 = vmatpush1.msra.mxu0 %v109
    %7931 = vmatprep.subr.mxu0 0.0
    %7932 = vmatpush1.msra.mxu0 %v110
    %7933 = vmatprep.subr.mxu0 0.0
    %7934 = vmatpush1.msra.mxu0 %v111
    %7935 = vmatprep.subr.mxu0 0.0
    %7936 = vmatpush1.msra.mxu0 %v112
    %7937 = vmatprep.subr.mxu0 0.0
    %7938 = vmatpush1.msra.mxu0 %v113
    %7939 = vmatprep.subr.mxu0 0.0
    %7940 = vmatpush1.msra.mxu0 %v114
    %7941 = vmatprep.subr.mxu0 0.0
    %7942 = vmatpush1.msra.mxu0 %v115
    %7943 = vmatprep.subr.mxu0 0.0
    %7944 = vmatpush1.msra.mxu0 %v116
    %7945 = vmatprep.subr.mxu0 0.0
    %7946 = vmatpush1.msra.mxu0 %v117
    %7947 = vmatprep.subr.mxu0 0.0
    %7948 = vmatpush1.msra.mxu0 %v118
    %7949 = vmatprep.subr.mxu0 0.0
    %7950 = vmatpush1.msra.mxu0 %v119
    %7951 = vmatprep.subr.mxu0 0.0
    %7952 = vmatpush1.msra.mxu0 0.0
    %7953 = vmatprep.subr.mxu0 0.0
    %7954 = vmatpush1.msra.mxu0 0.0
    %7955 = vmatprep.subr.mxu0 0.0
    %7956 = vmatpush1.msra.mxu0 0.0
    %7957 = vmatprep.subr.mxu0 0.0
    %7958 = vmatpush1.msra.mxu0 0.0
    %7959 = vmatprep.subr.mxu0 0.0
    %7960 = vmatpush1.msra.mxu0 0.0
    %7961 = vmatprep.subr.mxu0 0.0
    %7962 = vmatpush1.msra.mxu0 0.0
    %7963 = vmatprep.subr.mxu0 0.0
    %7964 = vmatpush1.msra.mxu0 0.0
    %7965 = vmatprep.subr.mxu0 0.0
    %7966 = vmatpush1.msra.mxu0 0.0
    %7967 = vmatprep.subr.mxu0 0.0
    %7968 = vmatpush1.msra.mxu0 0.0
    %7969 = vmatprep.subr.mxu0 0.0
    %7970 = vmatpush1.msra.mxu0 0.0
    %7971 = vmatprep.subr.mxu0 0.0
    %7972 = vmatpush1.msra.mxu0 0.0
    %7973 = vmatprep.subr.mxu0 0.0
    %7974 = vmatpush1.msra.mxu0 0.0
    %7975 = vmatprep.subr.mxu0 0.0
    %7976 = vmatpush1.msra.mxu0 0.0
    %7977 = vmatprep.subr.mxu0 0.0
    %7978 = vmatpush1.msra.mxu0 0.0
    %7979 = vmatprep.subr.mxu0 0.0
    %7980 = vmatpush1.msra.mxu0 0.0
    %7981 = vmatprep.subr.mxu0 0.0
    %7982 = vmatpush1.msra.mxu0 0.0
    %7983 = vmatprep.mubr.f32.mxu0 0.0
    %7984 = vmatmul.mubr.f32.gmra.mrb[0].mxu0 %v7918
    %v7985 = vpop.f32.mrb[0].mxu0
    %v7986 = vadd.f32 %v374, %v7985
    %v7987 = vpop.f32.mrb[0].mxu0
    %7988 = vdwg.mxu0
    %v7989 = vadd.f32 %v7845, %v7986
    %v7990 = vmul.f32 %v7412, %v7989
    %v7991 = vadd.f32 %v6685, %v7990
    %7992 = vmatprep.subr.mxu0 0.0
    %7993 = vmatpush1.msra.mxu0 %v122
    %7994 = vmatprep.subr.mxu0 0.0
    %7995 = vmatpush1.msra.mxu0 %v123
    %7996 = vmatprep.subr.mxu0 0.0
    %7997 = vmatpush1.msra.mxu0 %v124
    %7998 = vmatprep.subr.mxu0 0.0
    %7999 = vmatpush1.msra.mxu0 %v125
    %8000 = vmatprep.subr.mxu0 0.0
    %8001 = vmatpush1.msra.mxu0 %v126
    %8002 = vmatprep.subr.mxu0 0.0
    %8003 = vmatpush1.msra.mxu0 %v127
    %8004 = vmatprep.subr.mxu0 0.0
    %8005 = vmatpush1.msra.mxu0 %v128
    %8006 = vmatprep.subr.mxu0 0.0
    %8007 = vmatpush1.msra.mxu0 %v129
    %8008 = vmatprep.subr.mxu0 0.0
    %8009 = vmatpush1.msra.mxu0 %v130
    %8010 = vmatprep.subr.mxu0 0.0
    %8011 = vmatpush1.msra.mxu0 %v131
    %8012 = vmatprep.subr.mxu0 0.0
    %8013 = vmatpush1.msra.mxu0 %v132
    %8014 = vmatprep.subr.mxu0 0.0
    %8015 = vmatpush1.msra.mxu0 %v133
    %8016 = vmatprep.subr.mxu0 0.0
    %8017 = vmatpush1.msra.mxu0 %v134
    %8018 = vmatprep.subr.mxu0 0.0
    %8019 = vmatpush1.msra.mxu0 %v135
    %8020 = vmatprep.subr.mxu0 0.0
    %8021 = vmatpush1.msra.mxu0 %v136
    %8022 = vmatprep.subr.mxu0 0.0
    %8023 = vmatpush1.msra.mxu0 %v137
    %8024 = vmatprep.subr.mxu0 0.0
    %8025 = vmatpush1.msra.mxu0 0.0
    %8026 = vmatprep.subr.mxu0 0.0
    %8027 = vmatpush1.msra.mxu0 0.0
    %8028 = vmatprep.subr.mxu0 0.0
    %8029 = vmatpush1.msra.mxu0 0.0
    %8030 = vmatprep.subr.mxu0 0.0
    %8031 = vmatpush1.msra.mxu0 0.0
    %8032 = vmatprep.subr.mxu0 0.0
    %8033 = vmatpush1.msra.mxu0 0.0
    %8034 = vmatprep.subr.mxu0 0.0
    %8035 = vmatpush1.msra.mxu0 0.0
    %8036 = vmatprep.subr.mxu0 0.0
    %8037 = vmatpush1.msra.mxu0 0.0
    %8038 = vmatprep.subr.mxu0 0.0
    %8039 = vmatpush1.msra.mxu0 0.0
    %8040 = vmatprep.subr.mxu0 0.0
    %8041 = vmatpush1.msra.mxu0 0.0
    %8042 = vmatprep.subr.mxu0 0.0
    %8043 = vmatpush1.msra.mxu0 0.0
    %8044 = vmatprep.subr.mxu0 0.0
    %8045 = vmatpush1.msra.mxu0 0.0
    %8046 = vmatprep.subr.mxu0 0.0
    %8047 = vmatpush1.msra.mxu0 0.0
    %8048 = vmatprep.subr.mxu0 0.0
    %8049 = vmatpush1.msra.mxu0 0.0
    %8050 = vmatprep.subr.mxu0 0.0
    %8051 = vmatpush1.msra.mxu0 0.0
    %8052 = vmatprep.subr.mxu0 0.0
    %8053 = vmatpush1.msra.mxu0 0.0
    %8054 = vmatprep.subr.mxu0 0.0
    %8055 = vmatpush1.msra.mxu0 0.0
    %8056 = vmatprep.mubr.f32.mxu0 0.0
    %8057 = vmatmul.mubr.f32.gmra.mrb[0].mxu0 %v7414
    %v8058 = vpop.f32.mrb[0].mxu0
    %v8059 = vadd.f32 %v143, %v8058
    %v8060 = vpop.f32.mrb[0].mxu0
    %8061 = vdwg.mxu0
    %s8062 = scalar_lea.vmem [#allocation12], 96
    %8063 = vst [vmem:[%s8062] sm:$0xff] %v8059
    %8064 = vmatprep.subr.mxu0 0.0
    %8065 = vmatpush1.msra.mxu0 %v122
    %8066 = vmatprep.subr.mxu0 0.0
    %8067 = vmatpush1.msra.mxu0 %v123
    %8068 = vmatprep.subr.mxu0 0.0
    %8069 = vmatpush1.msra.mxu0 %v124
    %8070 = vmatprep.subr.mxu0 0.0
    %8071 = vmatpush1.msra.mxu0 %v125
    %8072 = vmatprep.subr.mxu0 0.0
    %8073 = vmatpush1.msra.mxu0 %v126
    %8074 = vmatprep.subr.mxu0 0.0
    %8075 = vmatpush1.msra.mxu0 %v127
    %8076 = vmatprep.subr.mxu0 0.0
    %8077 = vmatpush1.msra.mxu0 %v128
    %8078 = vmatprep.subr.mxu0 0.0
    %8079 = vmatpush1.msra.mxu0 %v129
    %8080 = vmatprep.subr.mxu0 0.0
    %8081 = vmatpush1.msra.mxu0 %v130
    %8082 = vmatprep.subr.mxu0 0.0
    %8083 = vmatpush1.msra.mxu0 %v131
    %8084 = vmatprep.subr.mxu0 0.0
    %8085 = vmatpush1.msra.mxu0 %v132
    %8086 = vmatprep.subr.mxu0 0.0
    %8087 = vmatpush1.msra.mxu0 %v133
    %8088 = vmatprep.subr.mxu0 0.0
    %8089 = vmatpush1.msra.mxu0 %v134
    %8090 = vmatprep.subr.mxu0 0.0
    %8091 = vmatpush1.msra.mxu0 %v135
    %8092 = vmatprep.subr.mxu0 0.0
    %8093 = vmatpush1.msra.mxu0 %v136
    %8094 = vmatprep.subr.mxu0 0.0
    %8095 = vmatpush1.msra.mxu0 %v137
    %8096 = vmatprep.subr.mxu0 0.0
    %8097 = vmatpush1.msra.mxu0 0.0
    %8098 = vmatprep.subr.mxu0 0.0
    %8099 = vmatpush1.msra.mxu0 0.0
    %8100 = vmatprep.subr.mxu0 0.0
    %8101 = vmatpush1.msra.mxu0 0.0
    %8102 = vmatprep.subr.mxu0 0.0
    %8103 = vmatpush1.msra.mxu0 0.0
    %8104 = vmatprep.subr.mxu0 0.0
    %8105 = vmatpush1.msra.mxu0 0.0
    %8106 = vmatprep.subr.mxu0 0.0
    %8107 = vmatpush1.msra.mxu0 0.0
    %8108 = vmatprep.subr.mxu0 0.0
    %8109 = vmatpush1.msra.mxu0 0.0
    %8110 = vmatprep.subr.mxu0 0.0
    %8111 = vmatpush1.msra.mxu0 0.0
    %8112 = vmatprep.subr.mxu0 0.0
    %8113 = vmatpush1.msra.mxu0 0.0
    %8114 = vmatprep.subr.mxu0 0.0
    %8115 = vmatpush1.msra.mxu0 0.0
    %8116 = vmatprep.subr.mxu0 0.0
    %8117 = vmatpush1.msra.mxu0 0.0
    %8118 = vmatprep.subr.mxu0 0.0
    %8119 = vmatpush1.msra.mxu0 0.0
    %8120 = vmatprep.subr.mxu0 0.0
    %8121 = vmatpush1.msra.mxu0 0.0
    %8122 = vmatprep.subr.mxu0 0.0
    %8123 = vmatpush1.msra.mxu0 0.0
    %8124 = vmatprep.subr.mxu0 0.0
    %8125 = vmatpush1.msra.mxu0 0.0
    %8126 = vmatprep.subr.mxu0 0.0
    %8127 = vmatpush1.msra.mxu0 0.0
    %8128 = vmatprep.mubr.f32.mxu0 0.0
    %8129 = vmatmul.mubr.f32.gmra.mrb[0].mxu0 %v7991
    %v8130 = vpop.f32.mrb[0].mxu0
    %v8131 = vadd.f32 %v143, %v8130
    %v8132 = vpop.f32.mrb[0].mxu0
    %8133 = vdwg.mxu0
    %s8134 = scalar_lea.vmem [#allocation12], 104
    %8135 = vst [vmem:[%s8134] sm:$0xff] %v8131
    %s8136 = sld [smem:[#allocation3 + $0x6]]
    %s8137 = smul.f32 %s8136, 0.5
    %v8138 = vrcp.pop 6.0
    %s8139 = vtos %v8138
    %s8140 = smul.f32 %s8136, %s8139
    %8141 = vmatprep.subr.mxu0 0.0
    %8142 = vmatpush1.msra.mxu0 %v87
    %8143 = vmatprep.subr.mxu0 0.0
    %8144 = vmatpush1.msra.mxu0 %v88
    %8145 = vmatprep.subr.mxu0 0.0
    %8146 = vmatpush1.msra.mxu0 %v89
    %8147 = vmatprep.subr.mxu0 0.0
    %8148 = vmatpush1.msra.mxu0 %v90
    %8149 = vmatprep.subr.mxu0 0.0
    %8150 = vmatpush1.msra.mxu0 %v91
    %8151 = vmatprep.subr.mxu0 0.0
    %8152 = vmatpush1.msra.mxu0 %v92
    %8153 = vmatprep.subr.mxu0 0.0
    %8154 = vmatpush1.msra.mxu0 %v93
    %8155 = vmatprep.subr.mxu0 0.0
    %8156 = vmatpush1.msra.mxu0 %v94
    %8157 = vmatprep.subr.mxu0 0.0
    %8158 = vmatpush1.msra.mxu0 %v95
    %8159 = vmatprep.subr.mxu0 0.0
    %8160 = vmatpush1.msra.mxu0 %v96
    %8161 = vmatprep.subr.mxu0 0.0
    %8162 = vmatpush1.msra.mxu0 %v97
    %8163 = vmatprep.subr.mxu0 0.0
    %8164 = vmatpush1.msra.mxu0 %v98
    %8165 = vmatprep.subr.mxu0 0.0
    %8166 = vmatpush1.msra.mxu0 %v99
    %8167 = vmatprep.subr.mxu0 0.0
    %8168 = vmatpush1.msra.mxu0 %v100
    %8169 = vmatprep.subr.mxu0 0.0
    %8170 = vmatpush1.msra.mxu0 %v101
    %8171 = vmatprep.subr.mxu0 0.0
    %8172 = vmatpush1.msra.mxu0 %v102
    %8173 = vmatprep.subr.mxu0 0.0
    %8174 = vmatpush1.msra.mxu0 0.0
    %8175 = vmatprep.subr.mxu0 0.0
    %8176 = vmatpush1.msra.mxu0 0.0
    %8177 = vmatprep.subr.mxu0 0.0
    %8178 = vmatpush1.msra.mxu0 0.0
    %8179 = vmatprep.subr.mxu0 0.0
    %8180 = vmatpush1.msra.mxu0 0.0
    %8181 = vmatprep.subr.mxu0 0.0
    %8182 = vmatpush1.msra.mxu0 0.0
    %8183 = vmatprep.subr.mxu0 0.0
    %8184 = vmatpush1.msra.mxu0 0.0
    %8185 = vmatprep.subr.mxu0 0.0
    %8186 = vmatpush1.msra.mxu0 0.0
    %8187 = vmatprep.subr.mxu0 0.0
    %8188 = vmatpush1.msra.mxu0 0.0
    %8189 = vmatprep.subr.mxu0 0.0
    %8190 = vmatpush1.msra.mxu0 0.0
    %8191 = vmatprep.subr.mxu0 0.0
    %8192 = vmatpush1.msra.mxu0 0.0
    %8193 = vmatprep.subr.mxu0 0.0
    %8194 = vmatpush1.msra.mxu0 0.0
    %8195 = vmatprep.subr.mxu0 0.0
    %8196 = vmatpush1.msra.mxu0 0.0
    %8197 = vmatprep.subr.mxu0 0.0
    %8198 = vmatpush1.msra.mxu0 0.0
    %8199 = vmatprep.subr.mxu0 0.0
    %8200 = vmatpush1.msra.mxu0 0.0
    %8201 = vmatprep.subr.mxu0 0.0
    %8202 = vmatpush1.msra.mxu0 0.0
    %8203 = vmatprep.subr.mxu0 0.0
    %8204 = vmatpush1.msra.mxu0 0.0
    %8205 = vmatprep.mubr.f32.mxu0 0.0
    %8206 = vmatmul.mubr.f32.gmra.mrb[0].mxu0 %v7414
    %v8207 = vpop.f32.mrb[0].mxu0
    %v8208 = vadd.f32 %v297, %v8207
    %v8209 = vpop.f32.mrb[0].mxu0
    %8210 = vdwg.mxu0
    %v8211 = vtanh.pop %v8208
    %8212 = vmatprep.subr.mxu0 0.0
    %8213 = vmatpush1.msra.mxu0 %v104
    %8214 = vmatprep.subr.mxu0 0.0
    %8215 = vmatpush1.msra.mxu0 %v105
    %8216 = vmatprep.subr.mxu0 0.0
    %8217 = vmatpush1.msra.mxu0 %v106
    %8218 = vmatprep.subr.mxu0 0.0
    %8219 = vmatpush1.msra.mxu0 %v107
    %8220 = vmatprep.subr.mxu0 0.0
    %8221 = vmatpush1.msra.mxu0 %v108
    %8222 = vmatprep.subr.mxu0 0.0
    %8223 = vmatpush1.msra.mxu0 %v109
    %8224 = vmatprep.subr.mxu0 0.0
    %8225 = vmatpush1.msra.mxu0 %v110
    %8226 = vmatprep.subr.mxu0 0.0
    %8227 = vmatpush1.msra.mxu0 %v111
    %8228 = vmatprep.subr.mxu0 0.0
    %8229 = vmatpush1.msra.mxu0 %v112
    %8230 = vmatprep.subr.mxu0 0.0
    %8231 = vmatpush1.msra.mxu0 %v113
    %8232 = vmatprep.subr.mxu0 0.0
    %8233 = vmatpush1.msra.mxu0 %v114
    %8234 = vmatprep.subr.mxu0 0.0
    %8235 = vmatpush1.msra.mxu0 %v115
    %8236 = vmatprep.subr.mxu0 0.0
    %8237 = vmatpush1.msra.mxu0 %v116
    %8238 = vmatprep.subr.mxu0 0.0
    %8239 = vmatpush1.msra.mxu0 %v117
    %8240 = vmatprep.subr.mxu0 0.0
    %8241 = vmatpush1.msra.mxu0 %v118
    %8242 = vmatprep.subr.mxu0 0.0
    %8243 = vmatpush1.msra.mxu0 %v119
    %8244 = vmatprep.subr.mxu0 0.0
    %8245 = vmatpush1.msra.mxu0 0.0
    %8246 = vmatprep.subr.mxu0 0.0
    %8247 = vmatpush1.msra.mxu0 0.0
    %8248 = vmatprep.subr.mxu0 0.0
    %8249 = vmatpush1.msra.mxu0 0.0
    %8250 = vmatprep.subr.mxu0 0.0
    %8251 = vmatpush1.msra.mxu0 0.0
    %8252 = vmatprep.subr.mxu0 0.0
    %8253 = vmatpush1.msra.mxu0 0.0
    %8254 = vmatprep.subr.mxu0 0.0
    %8255 = vmatpush1.msra.mxu0 0.0
    %8256 = vmatprep.subr.mxu0 0.0
    %8257 = vmatpush1.msra.mxu0 0.0
    %8258 = vmatprep.subr.mxu0 0.0
    %8259 = vmatpush1.msra.mxu0 0.0
    %8260 = vmatprep.subr.mxu0 0.0
    %8261 = vmatpush1.msra.mxu0 0.0
    %8262 = vmatprep.subr.mxu0 0.0
    %8263 = vmatpush1.msra.mxu0 0.0
    %8264 = vmatprep.subr.mxu0 0.0
    %8265 = vmatpush1.msra.mxu0 0.0
    %8266 = vmatprep.subr.mxu0 0.0
    %8267 = vmatpush1.msra.mxu0 0.0
    %8268 = vmatprep.subr.mxu0 0.0
    %8269 = vmatpush1.msra.mxu0 0.0
    %8270 = vmatprep.subr.mxu0 0.0
    %8271 = vmatpush1.msra.mxu0 0.0
    %8272 = vmatprep.subr.mxu0 0.0
    %8273 = vmatpush1.msra.mxu0 0.0
    %8274 = vmatprep.subr.mxu0 0.0
    %8275 = vmatpush1.msra.mxu0 0.0
    %8276 = vmatprep.mubr.f32.mxu0 0.0
    %8277 = vmatmul.mubr.f32.gmra.mrb[0].mxu0 %v8211
    %v8278 = vpop.f32.mrb[0].mxu0
    %v8279 = vadd.f32 %v374, %v8278
    %v8280 = vpop.f32.mrb[0].mxu0
    %8281 = vdwg.mxu0
    %v8282 = vstv %s8137
    %v8283 = vmul.f32 %v8282, %v8279
    %v8284 = vadd.f32 %v7414, %v8283
    %8285 = vmatprep.subr.mxu0 0.0
    %8286 = vmatpush1.msra.mxu0 %v87
    %8287 = vmatprep.subr.mxu0 0.0
    %8288 = vmatpush1.msra.mxu0 %v88
    %8289 = vmatprep.subr.mxu0 0.0
    %8290 = vmatpush1.msra.mxu0 %v89
    %8291 = vmatprep.subr.mxu0 0.0
    %8292 = vmatpush1.msra.mxu0 %v90
    %8293 = vmatprep.subr.mxu0 0.0
    %8294 = vmatpush1.msra.mxu0 %v91
    %8295 = vmatprep.subr.mxu0 0.0
    %8296 = vmatpush1.msra.mxu0 %v92
    %8297 = vmatprep.subr.mxu0 0.0
    %8298 = vmatpush1.msra.mxu0 %v93
    %8299 = vmatprep.subr.mxu0 0.0
    %8300 = vmatpush1.msra.mxu0 %v94
    %8301 = vmatprep.subr.mxu0 0.0
    %8302 = vmatpush1.msra.mxu0 %v95
    %8303 = vmatprep.subr.mxu0 0.0
    %8304 = vmatpush1.msra.mxu0 %v96
    %8305 = vmatprep.subr.mxu0 0.0
    %8306 = vmatpush1.msra.mxu0 %v97
    %8307 = vmatprep.subr.mxu0 0.0
    %8308 = vmatpush1.msra.mxu0 %v98
    %8309 = vmatprep.subr.mxu0 0.0
    %8310 = vmatpush1.msra.mxu0 %v99
    %8311 = vmatprep.subr.mxu0 0.0
    %8312 = vmatpush1.msra.mxu0 %v100
    %8313 = vmatprep.subr.mxu0 0.0
    %8314 = vmatpush1.msra.mxu0 %v101
    %8315 = vmatprep.subr.mxu0 0.0
    %8316 = vmatpush1.msra.mxu0 %v102
    %8317 = vmatprep.subr.mxu0 0.0
    %8318 = vmatpush1.msra.mxu0 0.0
    %8319 = vmatprep.subr.mxu0 0.0
    %8320 = vmatpush1.msra.mxu0 0.0
    %8321 = vmatprep.subr.mxu0 0.0
    %8322 = vmatpush1.msra.mxu0 0.0
    %8323 = vmatprep.subr.mxu0 0.0
    %8324 = vmatpush1.msra.mxu0 0.0
    %8325 = vmatprep.subr.mxu0 0.0
    %8326 = vmatpush1.msra.mxu0 0.0
    %8327 = vmatprep.subr.mxu0 0.0
    %8328 = vmatpush1.msra.mxu0 0.0
    %8329 = vmatprep.subr.mxu0 0.0
    %8330 = vmatpush1.msra.mxu0 0.0
    %8331 = vmatprep.subr.mxu0 0.0
    %8332 = vmatpush1.msra.mxu0 0.0
    %8333 = vmatprep.subr.mxu0 0.0
    %8334 = vmatpush1.msra.mxu0 0.0
    %8335 = vmatprep.subr.mxu0 0.0
    %8336 = vmatpush1.msra.mxu0 0.0
    %8337 = vmatprep.subr.mxu0 0.0
    %8338 = vmatpush1.msra.mxu0 0.0
    %8339 = vmatprep.subr.mxu0 0.0
    %8340 = vmatpush1.msra.mxu0 0.0
    %8341 = vmatprep.subr.mxu0 0.0
    %8342 = vmatpush1.msra.mxu0 0.0
    %8343 = vmatprep.subr.mxu0 0.0
    %8344 = vmatpush1.msra.mxu0 0.0
    %8345 = vmatprep.subr.mxu0 0.0
    %8346 = vmatpush1.msra.mxu0 0.0
    %8347 = vmatprep.subr.mxu0 0.0
    %8348 = vmatpush1.msra.mxu0 0.0
    %8349 = vmatprep.mubr.f32.mxu0 0.0
    %8350 = vmatmul.mubr.f32.gmra.mrb[0].mxu0 %v8284
    %v8351 = vpop.f32.mrb[0].mxu0
    %v8352 = vadd.f32 %v297, %v8351
    %v8353 = vpop.f32.mrb[0].mxu0
    %8354 = vdwg.mxu0
    %v8355 = vtanh.pop %v8352
    %8356 = vmatprep.subr.mxu0 0.0
    %8357 = vmatpush1.msra.mxu0 %v104
    %8358 = vmatprep.subr.mxu0 0.0
    %8359 = vmatpush1.msra.mxu0 %v105
    %8360 = vmatprep.subr.mxu0 0.0
    %8361 = vmatpush1.msra.mxu0 %v106
    %8362 = vmatprep.subr.mxu0 0.0
    %8363 = vmatpush1.msra.mxu0 %v107
    %8364 = vmatprep.subr.mxu0 0.0
    %8365 = vmatpush1.msra.mxu0 %v108
    %8366 = vmatprep.subr.mxu0 0.0
    %8367 = vmatpush1.msra.mxu0 %v109
    %8368 = vmatprep.subr.mxu0 0.0
    %8369 = vmatpush1.msra.mxu0 %v110
    %8370 = vmatprep.subr.mxu0 0.0
    %8371 = vmatpush1.msra.mxu0 %v111
    %8372 = vmatprep.subr.mxu0 0.0
    %8373 = vmatpush1.msra.mxu0 %v112
    %8374 = vmatprep.subr.mxu0 0.0
    %8375 = vmatpush1.msra.mxu0 %v113
    %8376 = vmatprep.subr.mxu0 0.0
    %8377 = vmatpush1.msra.mxu0 %v114
    %8378 = vmatprep.subr.mxu0 0.0
    %8379 = vmatpush1.msra.mxu0 %v115
    %8380 = vmatprep.subr.mxu0 0.0
    %8381 = vmatpush1.msra.mxu0 %v116
    %8382 = vmatprep.subr.mxu0 0.0
    %8383 = vmatpush1.msra.mxu0 %v117
    %8384 = vmatprep.subr.mxu0 0.0
    %8385 = vmatpush1.msra.mxu0 %v118
    %8386 = vmatprep.subr.mxu0 0.0
    %8387 = vmatpush1.msra.mxu0 %v119
    %8388 = vmatprep.subr.mxu0 0.0
    %8389 = vmatpush1.msra.mxu0 0.0
    %8390 = vmatprep.subr.mxu0 0.0
    %8391 = vmatpush1.msra.mxu0 0.0
    %8392 = vmatprep.subr.mxu0 0.0
    %8393 = vmatpush1.msra.mxu0 0.0
    %8394 = vmatprep.subr.mxu0 0.0
    %8395 = vmatpush1.msra.mxu0 0.0
    %8396 = vmatprep.subr.mxu0 0.0
    %8397 = vmatpush1.msra.mxu0 0.0
    %8398 = vmatprep.subr.mxu0 0.0
    %8399 = vmatpush1.msra.mxu0 0.0
    %8400 = vmatprep.subr.mxu0 0.0
    %8401 = vmatpush1.msra.mxu0 0.0
    %8402 = vmatprep.subr.mxu0 0.0
    %8403 = vmatpush1.msra.mxu0 0.0
    %8404 = vmatprep.subr.mxu0 0.0
    %8405 = vmatpush1.msra.mxu0 0.0
    %8406 = vmatprep.subr.mxu0 0.0
    %8407 = vmatpush1.msra.mxu0 0.0
    %8408 = vmatprep.subr.mxu0 0.0
    %8409 = vmatpush1.msra.mxu0 0.0
    %8410 = vmatprep.subr.mxu0 0.0
    %8411 = vmatpush1.msra.mxu0 0.0
    %8412 = vmatprep.subr.mxu0 0.0
    %8413 = vmatpush1.msra.mxu0 0.0
    %8414 = vmatprep.subr.mxu0 0.0
    %8415 = vmatpush1.msra.mxu0 0.0
    %8416 = vmatprep.subr.mxu0 0.0
    %8417 = vmatpush1.msra.mxu0 0.0
    %8418 = vmatprep.subr.mxu0 0.0
    %8419 = vmatpush1.msra.mxu0 0.0
    %8420 = vmatprep.mubr.f32.mxu0 0.0
    %8421 = vmatmul.mubr.f32.gmra.mrb[0].mxu0 %v8355
    %v8422 = vpop.f32.mrb[0].mxu0
    %v8423 = vadd.f32 %v374, %v8422
    %v8424 = vpop.f32.mrb[0].mxu0
    %8425 = vdwg.mxu0
    %v8426 = vmul.f32 %v8423, 2.0
    %v8427 = vadd.f32 %v8279, %v8426
    %v8428 = vmul.f32 %v8282, %v8423
    %v8429 = vadd.f32 %v7414, %v8428
    %8430 = vmatprep.subr.mxu0 0.0
    %8431 = vmatpush1.msra.mxu0 %v87
    %8432 = vmatprep.subr.mxu0 0.0
    %8433 = vmatpush1.msra.mxu0 %v88
    %8434 = vmatprep.subr.mxu0 0.0
    %8435 = vmatpush1.msra.mxu0 %v89
    %8436 = vmatprep.subr.mxu0 0.0
    %8437 = vmatpush1.msra.mxu0 %v90
    %8438 = vmatprep.subr.mxu0 0.0
    %8439 = vmatpush1.msra.mxu0 %v91
    %8440 = vmatprep.subr.mxu0 0.0
    %8441 = vmatpush1.msra.mxu0 %v92
    %8442 = vmatprep.subr.mxu0 0.0
    %8443 = vmatpush1.msra.mxu0 %v93
    %8444 = vmatprep.subr.mxu0 0.0
    %8445 = vmatpush1.msra.mxu0 %v94
    %8446 = vmatprep.subr.mxu0 0.0
    %8447 = vmatpush1.msra.mxu0 %v95
    %8448 = vmatprep.subr.mxu0 0.0
    %8449 = vmatpush1.msra.mxu0 %v96
    %8450 = vmatprep.subr.mxu0 0.0
    %8451 = vmatpush1.msra.mxu0 %v97
    %8452 = vmatprep.subr.mxu0 0.0
    %8453 = vmatpush1.msra.mxu0 %v98
    %8454 = vmatprep.subr.mxu0 0.0
    %8455 = vmatpush1.msra.mxu0 %v99
    %8456 = vmatprep.subr.mxu0 0.0
    %8457 = vmatpush1.msra.mxu0 %v100
    %8458 = vmatprep.subr.mxu0 0.0
    %8459 = vmatpush1.msra.mxu0 %v101
    %8460 = vmatprep.subr.mxu0 0.0
    %8461 = vmatpush1.msra.mxu0 %v102
    %8462 = vmatprep.subr.mxu0 0.0
    %8463 = vmatpush1.msra.mxu0 0.0
    %8464 = vmatprep.subr.mxu0 0.0
    %8465 = vmatpush1.msra.mxu0 0.0
    %8466 = vmatprep.subr.mxu0 0.0
    %8467 = vmatpush1.msra.mxu0 0.0
    %8468 = vmatprep.subr.mxu0 0.0
    %8469 = vmatpush1.msra.mxu0 0.0
    %8470 = vmatprep.subr.mxu0 0.0
    %8471 = vmatpush1.msra.mxu0 0.0
    %8472 = vmatprep.subr.mxu0 0.0
    %8473 = vmatpush1.msra.mxu0 0.0
    %8474 = vmatprep.subr.mxu0 0.0
    %8475 = vmatpush1.msra.mxu0 0.0
    %8476 = vmatprep.subr.mxu0 0.0
    %8477 = vmatpush1.msra.mxu0 0.0
    %8478 = vmatprep.subr.mxu0 0.0
    %8479 = vmatpush1.msra.mxu0 0.0
    %8480 = vmatprep.subr.mxu0 0.0
    %8481 = vmatpush1.msra.mxu0 0.0
    %8482 = vmatprep.subr.mxu0 0.0
    %8483 = vmatpush1.msra.mxu0 0.0
    %8484 = vmatprep.subr.mxu0 0.0
    %8485 = vmatpush1.msra.mxu0 0.0
    %8486 = vmatprep.subr.mxu0 0.0
    %8487 = vmatpush1.msra.mxu0 0.0
    %8488 = vmatprep.subr.mxu0 0.0
    %8489 = vmatpush1.msra.mxu0 0.0
    %8490 = vmatprep.subr.mxu0 0.0
    %8491 = vmatpush1.msra.mxu0 0.0
    %8492 = vmatprep.subr.mxu0 0.0
    %8493 = vmatpush1.msra.mxu0 0.0
    %8494 = vmatprep.mubr.f32.mxu0 0.0
    %8495 = vmatmul.mubr.f32.gmra.mrb[0].mxu0 %v8429
    %v8496 = vpop.f32.mrb[0].mxu0
    %v8497 = vadd.f32 %v297, %v8496
    %v8498 = vpop.f32.mrb[0].mxu0
    %8499 = vdwg.mxu0
    %v8500 = vtanh.pop %v8497
    %8501 = vmatprep.subr.mxu0 0.0
    %8502 = vmatpush1.msra.mxu0 %v104
    %8503 = vmatprep.subr.mxu0 0.0
    %8504 = vmatpush1.msra.mxu0 %v105
    %8505 = vmatprep.subr.mxu0 0.0
    %8506 = vmatpush1.msra.mxu0 %v106
    %8507 = vmatprep.subr.mxu0 0.0
    %8508 = vmatpush1.msra.mxu0 %v107
    %8509 = vmatprep.subr.mxu0 0.0
    %8510 = vmatpush1.msra.mxu0 %v108
    %8511 = vmatprep.subr.mxu0 0.0
    %8512 = vmatpush1.msra.mxu0 %v109
    %8513 = vmatprep.subr.mxu0 0.0
    %8514 = vmatpush1.msra.mxu0 %v110
    %8515 = vmatprep.subr.mxu0 0.0
    %8516 = vmatpush1.msra.mxu0 %v111
    %8517 = vmatprep.subr.mxu0 0.0
    %8518 = vmatpush1.msra.mxu0 %v112
    %8519 = vmatprep.subr.mxu0 0.0
    %8520 = vmatpush1.msra.mxu0 %v113
    %8521 = vmatprep.subr.mxu0 0.0
    %8522 = vmatpush1.msra.mxu0 %v114
    %8523 = vmatprep.subr.mxu0 0.0
    %8524 = vmatpush1.msra.mxu0 %v115
    %8525 = vmatprep.subr.mxu0 0.0
    %8526 = vmatpush1.msra.mxu0 %v116
    %8527 = vmatprep.subr.mxu0 0.0
    %8528 = vmatpush1.msra.mxu0 %v117
    %8529 = vmatprep.subr.mxu0 0.0
    %8530 = vmatpush1.msra.mxu0 %v118
    %8531 = vmatprep.subr.mxu0 0.0
    %8532 = vmatpush1.msra.mxu0 %v119
    %8533 = vmatprep.subr.mxu0 0.0
    %8534 = vmatpush1.msra.mxu0 0.0
    %8535 = vmatprep.subr.mxu0 0.0
    %8536 = vmatpush1.msra.mxu0 0.0
    %8537 = vmatprep.subr.mxu0 0.0
    %8538 = vmatpush1.msra.mxu0 0.0
    %8539 = vmatprep.subr.mxu0 0.0
    %8540 = vmatpush1.msra.mxu0 0.0
    %8541 = vmatprep.subr.mxu0 0.0
    %8542 = vmatpush1.msra.mxu0 0.0
    %8543 = vmatprep.subr.mxu0 0.0
    %8544 = vmatpush1.msra.mxu0 0.0
    %8545 = vmatprep.subr.mxu0 0.0
    %8546 = vmatpush1.msra.mxu0 0.0
    %8547 = vmatprep.subr.mxu0 0.0
    %8548 = vmatpush1.msra.mxu0 0.0
    %8549 = vmatprep.subr.mxu0 0.0
    %8550 = vmatpush1.msra.mxu0 0.0
    %8551 = vmatprep.subr.mxu0 0.0
    %8552 = vmatpush1.msra.mxu0 0.0
    %8553 = vmatprep.subr.mxu0 0.0
    %8554 = vmatpush1.msra.mxu0 0.0
    %8555 = vmatprep.subr.mxu0 0.0
    %8556 = vmatpush1.msra.mxu0 0.0
    %8557 = vmatprep.subr.mxu0 0.0
    %8558 = vmatpush1.msra.mxu0 0.0
    %8559 = vmatprep.subr.mxu0 0.0
    %8560 = vmatpush1.msra.mxu0 0.0
    %8561 = vmatprep.subr.mxu0 0.0
    %8562 = vmatpush1.msra.mxu0 0.0
    %8563 = vmatprep.subr.mxu0 0.0
    %8564 = vmatpush1.msra.mxu0 0.0
    %8565 = vmatprep.mubr.f32.mxu0 0.0
    %8566 = vmatmul.mubr.f32.gmra.mrb[0].mxu0 %v8500
    %v8567 = vpop.f32.mrb[0].mxu0
    %v8568 = vadd.f32 %v374, %v8567
    %v8569 = vpop.f32.mrb[0].mxu0
    %8570 = vdwg.mxu0
    %v8571 = vmul.f32 %v8568, 2.0
    %v8572 = vadd.f32 %v8427, %v8571
    %v8573 = vstv %s8136
    %v8574 = vmul.f32 %v8573, %v8568
    %v8575 = vadd.f32 %v7414, %v8574
    %8576 = vmatprep.subr.mxu0 0.0
    %8577 = vmatpush1.msra.mxu0 %v87
    %8578 = vmatprep.subr.mxu0 0.0
    %8579 = vmatpush1.msra.mxu0 %v88
    %8580 = vmatprep.subr.mxu0 0.0
    %8581 = vmatpush1.msra.mxu0 %v89
    %8582 = vmatprep.subr.mxu0 0.0
    %8583 = vmatpush1.msra.mxu0 %v90
    %8584 = vmatprep.subr.mxu0 0.0
    %8585 = vmatpush1.msra.mxu0 %v91
    %8586 = vmatprep.subr.mxu0 0.0
    %8587 = vmatpush1.msra.mxu0 %v92
    %8588 = vmatprep.subr.mxu0 0.0
    %8589 = vmatpush1.msra.mxu0 %v93
    %8590 = vmatprep.subr.mxu0 0.0
    %8591 = vmatpush1.msra.mxu0 %v94
    %8592 = vmatprep.subr.mxu0 0.0
    %8593 = vmatpush1.msra.mxu0 %v95
    %8594 = vmatprep.subr.mxu0 0.0
    %8595 = vmatpush1.msra.mxu0 %v96
    %8596 = vmatprep.subr.mxu0 0.0
    %8597 = vmatpush1.msra.mxu0 %v97
    %8598 = vmatprep.subr.mxu0 0.0
    %8599 = vmatpush1.msra.mxu0 %v98
    %8600 = vmatprep.subr.mxu0 0.0
    %8601 = vmatpush1.msra.mxu0 %v99
    %8602 = vmatprep.subr.mxu0 0.0
    %8603 = vmatpush1.msra.mxu0 %v100
    %8604 = vmatprep.subr.mxu0 0.0
    %8605 = vmatpush1.msra.mxu0 %v101
    %8606 = vmatprep.subr.mxu0 0.0
    %8607 = vmatpush1.msra.mxu0 %v102
    %8608 = vmatprep.subr.mxu0 0.0
    %8609 = vmatpush1.msra.mxu0 0.0
    %8610 = vmatprep.subr.mxu0 0.0
    %8611 = vmatpush1.msra.mxu0 0.0
    %8612 = vmatprep.subr.mxu0 0.0
    %8613 = vmatpush1.msra.mxu0 0.0
    %8614 = vmatprep.subr.mxu0 0.0
    %8615 = vmatpush1.msra.mxu0 0.0
    %8616 = vmatprep.subr.mxu0 0.0
    %8617 = vmatpush1.msra.mxu0 0.0
    %8618 = vmatprep.subr.mxu0 0.0
    %8619 = vmatpush1.msra.mxu0 0.0
    %8620 = vmatprep.subr.mxu0 0.0
    %8621 = vmatpush1.msra.mxu0 0.0
    %8622 = vmatprep.subr.mxu0 0.0
    %8623 = vmatpush1.msra.mxu0 0.0
    %8624 = vmatprep.subr.mxu0 0.0
    %8625 = vmatpush1.msra.mxu0 0.0
    %8626 = vmatprep.subr.mxu0 0.0
    %8627 = vmatpush1.msra.mxu0 0.0
    %8628 = vmatprep.subr.mxu0 0.0
    %8629 = vmatpush1.msra.mxu0 0.0
    %8630 = vmatprep.subr.mxu0 0.0
    %8631 = vmatpush1.msra.mxu0 0.0
    %8632 = vmatprep.subr.mxu0 0.0
    %8633 = vmatpush1.msra.mxu0 0.0
    %8634 = vmatprep.subr.mxu0 0.0
    %8635 = vmatpush1.msra.mxu0 0.0
    %8636 = vmatprep.subr.mxu0 0.0
    %8637 = vmatpush1.msra.mxu0 0.0
    %8638 = vmatprep.subr.mxu0 0.0
    %8639 = vmatpush1.msra.mxu0 0.0
    %8640 = vmatprep.mubr.f32.mxu0 0.0
    %8641 = vmatmul.mubr.f32.gmra.mrb[0].mxu0 %v8575
    %v8642 = vpop.f32.mrb[0].mxu0
    %v8643 = vadd.f32 %v297, %v8642
    %v8644 = vpop.f32.mrb[0].mxu0
    %8645 = vdwg.mxu0
    %v8646 = vtanh.pop %v8643
    %8647 = vmatprep.subr.mxu0 0.0
    %8648 = vmatpush1.msra.mxu0 %v104
    %8649 = vmatprep.subr.mxu0 0.0
    %8650 = vmatpush1.msra.mxu0 %v105
    %8651 = vmatprep.subr.mxu0 0.0
    %8652 = vmatpush1.msra.mxu0 %v106
    %8653 = vmatprep.subr.mxu0 0.0
    %8654 = vmatpush1.msra.mxu0 %v107
    %8655 = vmatprep.subr.mxu0 0.0
    %8656 = vmatpush1.msra.mxu0 %v108
    %8657 = vmatprep.subr.mxu0 0.0
    %8658 = vmatpush1.msra.mxu0 %v109
    %8659 = vmatprep.subr.mxu0 0.0
    %8660 = vmatpush1.msra.mxu0 %v110
    %8661 = vmatprep.subr.mxu0 0.0
    %8662 = vmatpush1.msra.mxu0 %v111
    %8663 = vmatprep.subr.mxu0 0.0
    %8664 = vmatpush1.msra.mxu0 %v112
    %8665 = vmatprep.subr.mxu0 0.0
    %8666 = vmatpush1.msra.mxu0 %v113
    %8667 = vmatprep.subr.mxu0 0.0
    %8668 = vmatpush1.msra.mxu0 %v114
    %8669 = vmatprep.subr.mxu0 0.0
    %8670 = vmatpush1.msra.mxu0 %v115
    %8671 = vmatprep.subr.mxu0 0.0
    %8672 = vmatpush1.msra.mxu0 %v116
    %8673 = vmatprep.subr.mxu0 0.0
    %8674 = vmatpush1.msra.mxu0 %v117
    %8675 = vmatprep.subr.mxu0 0.0
    %8676 = vmatpush1.msra.mxu0 %v118
    %8677 = vmatprep.subr.mxu0 0.0
    %8678 = vmatpush1.msra.mxu0 %v119
    %8679 = vmatprep.subr.mxu0 0.0
    %8680 = vmatpush1.msra.mxu0 0.0
    %8681 = vmatprep.subr.mxu0 0.0
    %8682 = vmatpush1.msra.mxu0 0.0
    %8683 = vmatprep.subr.mxu0 0.0
    %8684 = vmatpush1.msra.mxu0 0.0
    %8685 = vmatprep.subr.mxu0 0.0
    %8686 = vmatpush1.msra.mxu0 0.0
    %8687 = vmatprep.subr.mxu0 0.0
    %8688 = vmatpush1.msra.mxu0 0.0
    %8689 = vmatprep.subr.mxu0 0.0
    %8690 = vmatpush1.msra.mxu0 0.0
    %8691 = vmatprep.subr.mxu0 0.0
    %8692 = vmatpush1.msra.mxu0 0.0
    %8693 = vmatprep.subr.mxu0 0.0
    %8694 = vmatpush1.msra.mxu0 0.0
    %8695 = vmatprep.subr.mxu0 0.0
    %8696 = vmatpush1.msra.mxu0 0.0
    %8697 = vmatprep.subr.mxu0 0.0
    %8698 = vmatpush1.msra.mxu0 0.0
    %8699 = vmatprep.subr.mxu0 0.0
    %8700 = vmatpush1.msra.mxu0 0.0
    %8701 = vmatprep.subr.mxu0 0.0
    %8702 = vmatpush1.msra.mxu0 0.0
    %8703 = vmatprep.subr.mxu0 0.0
    %8704 = vmatpush1.msra.mxu0 0.0
    %8705 = vmatprep.subr.mxu0 0.0
    %8706 = vmatpush1.msra.mxu0 0.0
    %8707 = vmatprep.subr.mxu0 0.0
    %8708 = vmatpush1.msra.mxu0 0.0
    %8709 = vmatprep.subr.mxu0 0.0
    %8710 = vmatpush1.msra.mxu0 0.0
    %8711 = vmatprep.mubr.f32.mxu0 0.0
    %8712 = vmatmul.mubr.f32.gmra.mrb[0].mxu0 %v8646
    %v8713 = vpop.f32.mrb[0].mxu0
    %v8714 = vadd.f32 %v374, %v8713
    %v8715 = vpop.f32.mrb[0].mxu0
    %8716 = vdwg.mxu0
    %v8717 = vadd.f32 %v8572, %v8714
    %v8718 = vstv %s8140
    %v8719 = vmul.f32 %v8718, %v8717
    %v8720 = vadd.f32 %v7414, %v8719
    %8721 = vmatprep.subr.mxu0 0.0
    %8722 = vmatpush1.msra.mxu0 %v87
    %8723 = vmatprep.subr.mxu0 0.0
    %8724 = vmatpush1.msra.mxu0 %v88
    %8725 = vmatprep.subr.mxu0 0.0
    %8726 = vmatpush1.msra.mxu0 %v89
    %8727 = vmatprep.subr.mxu0 0.0
    %8728 = vmatpush1.msra.mxu0 %v90
    %8729 = vmatprep.subr.mxu0 0.0
    %8730 = vmatpush1.msra.mxu0 %v91
    %8731 = vmatprep.subr.mxu0 0.0
    %8732 = vmatpush1.msra.mxu0 %v92
    %8733 = vmatprep.subr.mxu0 0.0
    %8734 = vmatpush1.msra.mxu0 %v93
    %8735 = vmatprep.subr.mxu0 0.0
    %8736 = vmatpush1.msra.mxu0 %v94
    %8737 = vmatprep.subr.mxu0 0.0
    %8738 = vmatpush1.msra.mxu0 %v95
    %8739 = vmatprep.subr.mxu0 0.0
    %8740 = vmatpush1.msra.mxu0 %v96
    %8741 = vmatprep.subr.mxu0 0.0
    %8742 = vmatpush1.msra.mxu0 %v97
    %8743 = vmatprep.subr.mxu0 0.0
    %8744 = vmatpush1.msra.mxu0 %v98
    %8745 = vmatprep.subr.mxu0 0.0
    %8746 = vmatpush1.msra.mxu0 %v99
    %8747 = vmatprep.subr.mxu0 0.0
    %8748 = vmatpush1.msra.mxu0 %v100
    %8749 = vmatprep.subr.mxu0 0.0
    %8750 = vmatpush1.msra.mxu0 %v101
    %8751 = vmatprep.subr.mxu0 0.0
    %8752 = vmatpush1.msra.mxu0 %v102
    %8753 = vmatprep.subr.mxu0 0.0
    %8754 = vmatpush1.msra.mxu0 0.0
    %8755 = vmatprep.subr.mxu0 0.0
    %8756 = vmatpush1.msra.mxu0 0.0
    %8757 = vmatprep.subr.mxu0 0.0
    %8758 = vmatpush1.msra.mxu0 0.0
    %8759 = vmatprep.subr.mxu0 0.0
    %8760 = vmatpush1.msra.mxu0 0.0
    %8761 = vmatprep.subr.mxu0 0.0
    %8762 = vmatpush1.msra.mxu0 0.0
    %8763 = vmatprep.subr.mxu0 0.0
    %8764 = vmatpush1.msra.mxu0 0.0
    %8765 = vmatprep.subr.mxu0 0.0
    %8766 = vmatpush1.msra.mxu0 0.0
    %8767 = vmatprep.subr.mxu0 0.0
    %8768 = vmatpush1.msra.mxu0 0.0
    %8769 = vmatprep.subr.mxu0 0.0
    %8770 = vmatpush1.msra.mxu0 0.0
    %8771 = vmatprep.subr.mxu0 0.0
    %8772 = vmatpush1.msra.mxu0 0.0
    %8773 = vmatprep.subr.mxu0 0.0
    %8774 = vmatpush1.msra.mxu0 0.0
    %8775 = vmatprep.subr.mxu0 0.0
    %8776 = vmatpush1.msra.mxu0 0.0
    %8777 = vmatprep.subr.mxu0 0.0
    %8778 = vmatpush1.msra.mxu0 0.0
    %8779 = vmatprep.subr.mxu0 0.0
    %8780 = vmatpush1.msra.mxu0 0.0
    %8781 = vmatprep.subr.mxu0 0.0
    %8782 = vmatpush1.msra.mxu0 0.0
    %8783 = vmatprep.subr.mxu0 0.0
    %8784 = vmatpush1.msra.mxu0 0.0
    %8785 = vmatprep.mubr.f32.mxu0 0.0
    %8786 = vmatmul.mubr.f32.gmra.mrb[0].mxu0 %v7991
    %v8787 = vpop.f32.mrb[0].mxu0
    %v8788 = vadd.f32 %v297, %v8787
    %v8789 = vpop.f32.mrb[0].mxu0
    %8790 = vdwg.mxu0
    %v8791 = vtanh.pop %v8788
    %8792 = vmatprep.subr.mxu0 0.0
    %8793 = vmatpush1.msra.mxu0 %v104
    %8794 = vmatprep.subr.mxu0 0.0
    %8795 = vmatpush1.msra.mxu0 %v105
    %8796 = vmatprep.subr.mxu0 0.0
    %8797 = vmatpush1.msra.mxu0 %v106
    %8798 = vmatprep.subr.mxu0 0.0
    %8799 = vmatpush1.msra.mxu0 %v107
    %8800 = vmatprep.subr.mxu0 0.0
    %8801 = vmatpush1.msra.mxu0 %v108
    %8802 = vmatprep.subr.mxu0 0.0
    %8803 = vmatpush1.msra.mxu0 %v109
    %8804 = vmatprep.subr.mxu0 0.0
    %8805 = vmatpush1.msra.mxu0 %v110
    %8806 = vmatprep.subr.mxu0 0.0
    %8807 = vmatpush1.msra.mxu0 %v111
    %8808 = vmatprep.subr.mxu0 0.0
    %8809 = vmatpush1.msra.mxu0 %v112
    %8810 = vmatprep.subr.mxu0 0.0
    %8811 = vmatpush1.msra.mxu0 %v113
    %8812 = vmatprep.subr.mxu0 0.0
    %8813 = vmatpush1.msra.mxu0 %v114
    %8814 = vmatprep.subr.mxu0 0.0
    %8815 = vmatpush1.msra.mxu0 %v115
    %8816 = vmatprep.subr.mxu0 0.0
    %8817 = vmatpush1.msra.mxu0 %v116
    %8818 = vmatprep.subr.mxu0 0.0
    %8819 = vmatpush1.msra.mxu0 %v117
    %8820 = vmatprep.subr.mxu0 0.0
    %8821 = vmatpush1.msra.mxu0 %v118
    %8822 = vmatprep.subr.mxu0 0.0
    %8823 = vmatpush1.msra.mxu0 %v119
    %8824 = vmatprep.subr.mxu0 0.0
    %8825 = vmatpush1.msra.mxu0 0.0
    %8826 = vmatprep.subr.mxu0 0.0
    %8827 = vmatpush1.msra.mxu0 0.0
    %8828 = vmatprep.subr.mxu0 0.0
    %8829 = vmatpush1.msra.mxu0 0.0
    %8830 = vmatprep.subr.mxu0 0.0
    %8831 = vmatpush1.msra.mxu0 0.0
    %8832 = vmatprep.subr.mxu0 0.0
    %8833 = vmatpush1.msra.mxu0 0.0
    %8834 = vmatprep.subr.mxu0 0.0
    %8835 = vmatpush1.msra.mxu0 0.0
    %8836 = vmatprep.subr.mxu0 0.0
    %8837 = vmatpush1.msra.mxu0 0.0
    %8838 = vmatprep.subr.mxu0 0.0
    %8839 = vmatpush1.msra.mxu0 0.0
    %8840 = vmatprep.subr.mxu0 0.0
    %8841 = vmatpush1.msra.mxu0 0.0
    %8842 = vmatprep.subr.mxu0 0.0
    %8843 = vmatpush1.msra.mxu0 0.0
    %8844 = vmatprep.subr.mxu0 0.0
    %8845 = vmatpush1.msra.mxu0 0.0
    %8846 = vmatprep.subr.mxu0 0.0
    %8847 = vmatpush1.msra.mxu0 0.0
    %8848 = vmatprep.subr.mxu0 0.0
    %8849 = vmatpush1.msra.mxu0 0.0
    %8850 = vmatprep.subr.mxu0 0.0
    %8851 = vmatpush1.msra.mxu0 0.0
    %8852 = vmatprep.subr.mxu0 0.0
    %8853 = vmatpush1.msra.mxu0 0.0
    %8854 = vmatprep.subr.mxu0 0.0
    %8855 = vmatpush1.msra.mxu0 0.0
    %8856 = vmatprep.mubr.f32.mxu0 0.0
    %8857 = vmatmul.mubr.f32.gmra.mrb[0].mxu0 %v8791
    %v8858 = vpop.f32.mrb[0].mxu0
    %v8859 = vadd.f32 %v374, %v8858
    %v8860 = vpop.f32.mrb[0].mxu0
    %8861 = vdwg.mxu0
    %v8862 = vmul.f32 %v8282, %v8859
    %v8863 = vadd.f32 %v7991, %v8862
    %8864 = vmatprep.subr.mxu0 0.0
    %8865 = vmatpush1.msra.mxu0 %v87
    %8866 = vmatprep.subr.mxu0 0.0
    %8867 = vmatpush1.msra.mxu0 %v88
    %8868 = vmatprep.subr.mxu0 0.0
    %8869 = vmatpush1.msra.mxu0 %v89
    %8870 = vmatprep.subr.mxu0 0.0
    %8871 = vmatpush1.msra.mxu0 %v90
    %8872 = vmatprep.subr.mxu0 0.0
    %8873 = vmatpush1.msra.mxu0 %v91
    %8874 = vmatprep.subr.mxu0 0.0
    %8875 = vmatpush1.msra.mxu0 %v92
    %8876 = vmatprep.subr.mxu0 0.0
    %8877 = vmatpush1.msra.mxu0 %v93
    %8878 = vmatprep.subr.mxu0 0.0
    %8879 = vmatpush1.msra.mxu0 %v94
    %8880 = vmatprep.subr.mxu0 0.0
    %8881 = vmatpush1.msra.mxu0 %v95
    %8882 = vmatprep.subr.mxu0 0.0
    %8883 = vmatpush1.msra.mxu0 %v96
    %8884 = vmatprep.subr.mxu0 0.0
    %8885 = vmatpush1.msra.mxu0 %v97
    %8886 = vmatprep.subr.mxu0 0.0
    %8887 = vmatpush1.msra.mxu0 %v98
    %8888 = vmatprep.subr.mxu0 0.0
    %8889 = vmatpush1.msra.mxu0 %v99
    %8890 = vmatprep.subr.mxu0 0.0
    %8891 = vmatpush1.msra.mxu0 %v100
    %8892 = vmatprep.subr.mxu0 0.0
    %8893 = vmatpush1.msra.mxu0 %v101
    %8894 = vmatprep.subr.mxu0 0.0
    %8895 = vmatpush1.msra.mxu0 %v102
    %8896 = vmatprep.subr.mxu0 0.0
    %8897 = vmatpush1.msra.mxu0 0.0
    %8898 = vmatprep.subr.mxu0 0.0
    %8899 = vmatpush1.msra.mxu0 0.0
    %8900 = vmatprep.subr.mxu0 0.0
    %8901 = vmatpush1.msra.mxu0 0.0
    %8902 = vmatprep.subr.mxu0 0.0
    %8903 = vmatpush1.msra.mxu0 0.0
    %8904 = vmatprep.subr.mxu0 0.0
    %8905 = vmatpush1.msra.mxu0 0.0
    %8906 = vmatprep.subr.mxu0 0.0
    %8907 = vmatpush1.msra.mxu0 0.0
    %8908 = vmatprep.subr.mxu0 0.0
    %8909 = vmatpush1.msra.mxu0 0.0
    %8910 = vmatprep.subr.mxu0 0.0
    %8911 = vmatpush1.msra.mxu0 0.0
    %8912 = vmatprep.subr.mxu0 0.0
    %8913 = vmatpush1.msra.mxu0 0.0
    %8914 = vmatprep.subr.mxu0 0.0
    %8915 = vmatpush1.msra.mxu0 0.0
    %8916 = vmatprep.subr.mxu0 0.0
    %8917 = vmatpush1.msra.mxu0 0.0
    %8918 = vmatprep.subr.mxu0 0.0
    %8919 = vmatpush1.msra.mxu0 0.0
    %8920 = vmatprep.subr.mxu0 0.0
    %8921 = vmatpush1.msra.mxu0 0.0
    %8922 = vmatprep.subr.mxu0 0.0
    %8923 = vmatpush1.msra.mxu0 0.0
    %8924 = vmatprep.subr.mxu0 0.0
    %8925 = vmatpush1.msra.mxu0 0.0
    %8926 = vmatprep.subr.mxu0 0.0
    %8927 = vmatpush1.msra.mxu0 0.0
    %8928 = vmatprep.mubr.f32.mxu0 0.0
    %8929 = vmatmul.mubr.f32.gmra.mrb[0].mxu0 %v8863
    %v8930 = vpop.f32.mrb[0].mxu0
    %v8931 = vadd.f32 %v297, %v8930
    %v8932 = vpop.f32.mrb[0].mxu0
    %8933 = vdwg.mxu0
    %v8934 = vtanh.pop %v8931
    %8935 = vmatprep.subr.mxu0 0.0
    %8936 = vmatpush1.msra.mxu0 %v104
    %8937 = vmatprep.subr.mxu0 0.0
    %8938 = vmatpush1.msra.mxu0 %v105
    %8939 = vmatprep.subr.mxu0 0.0
    %8940 = vmatpush1.msra.mxu0 %v106
    %8941 = vmatprep.subr.mxu0 0.0
    %8942 = vmatpush1.msra.mxu0 %v107
    %8943 = vmatprep.subr.mxu0 0.0
    %8944 = vmatpush1.msra.mxu0 %v108
    %8945 = vmatprep.subr.mxu0 0.0
    %8946 = vmatpush1.msra.mxu0 %v109
    %8947 = vmatprep.subr.mxu0 0.0
    %8948 = vmatpush1.msra.mxu0 %v110
    %8949 = vmatprep.subr.mxu0 0.0
    %8950 = vmatpush1.msra.mxu0 %v111
    %8951 = vmatprep.subr.mxu0 0.0
    %8952 = vmatpush1.msra.mxu0 %v112
    %8953 = vmatprep.subr.mxu0 0.0
    %8954 = vmatpush1.msra.mxu0 %v113
    %8955 = vmatprep.subr.mxu0 0.0
    %8956 = vmatpush1.msra.mxu0 %v114
    %8957 = vmatprep.subr.mxu0 0.0
    %8958 = vmatpush1.msra.mxu0 %v115
    %8959 = vmatprep.subr.mxu0 0.0
    %8960 = vmatpush1.msra.mxu0 %v116
    %8961 = vmatprep.subr.mxu0 0.0
    %8962 = vmatpush1.msra.mxu0 %v117
    %8963 = vmatprep.subr.mxu0 0.0
    %8964 = vmatpush1.msra.mxu0 %v118
    %8965 = vmatprep.subr.mxu0 0.0
    %8966 = vmatpush1.msra.mxu0 %v119
    %8967 = vmatprep.subr.mxu0 0.0
    %8968 = vmatpush1.msra.mxu0 0.0
    %8969 = vmatprep.subr.mxu0 0.0
    %8970 = vmatpush1.msra.mxu0 0.0
    %8971 = vmatprep.subr.mxu0 0.0
    %8972 = vmatpush1.msra.mxu0 0.0
    %8973 = vmatprep.subr.mxu0 0.0
    %8974 = vmatpush1.msra.mxu0 0.0
    %8975 = vmatprep.subr.mxu0 0.0
    %8976 = vmatpush1.msra.mxu0 0.0
    %8977 = vmatprep.subr.mxu0 0.0
    %8978 = vmatpush1.msra.mxu0 0.0
    %8979 = vmatprep.subr.mxu0 0.0
    %8980 = vmatpush1.msra.mxu0 0.0
    %8981 = vmatprep.subr.mxu0 0.0
    %8982 = vmatpush1.msra.mxu0 0.0
    %8983 = vmatprep.subr.mxu0 0.0
    %8984 = vmatpush1.msra.mxu0 0.0
    %8985 = vmatprep.subr.mxu0 0.0
    %8986 = vmatpush1.msra.mxu0 0.0
    %8987 = vmatprep.subr.mxu0 0.0
    %8988 = vmatpush1.msra.mxu0 0.0
    %8989 = vmatprep.subr.mxu0 0.0
    %8990 = vmatpush1.msra.mxu0 0.0
    %8991 = vmatprep.subr.mxu0 0.0
    %8992 = vmatpush1.msra.mxu0 0.0
    %8993 = vmatprep.subr.mxu0 0.0
    %8994 = vmatpush1.msra.mxu0 0.0
    %8995 = vmatprep.subr.mxu0 0.0
    %8996 = vmatpush1.msra.mxu0 0.0
    %8997 = vmatprep.subr.mxu0 0.0
    %8998 = vmatpush1.msra.mxu0 0.0
    %8999 = vmatprep.mubr.f32.mxu0 0.0
    %9000 = vmatmul.mubr.f32.gmra.mrb[0].mxu0 %v8934
    %v9001 = vpop.f32.mrb[0].mxu0
    %v9002 = vadd.f32 %v374, %v9001
    %v9003 = vpop.f32.mrb[0].mxu0
    %9004 = vdwg.mxu0
    %v9005 = vmul.f32 %v9002, 2.0
    %v9006 = vadd.f32 %v8859, %v9005
    %v9007 = vmul.f32 %v8282, %v9002
    %v9008 = vadd.f32 %v7991, %v9007
    %9009 = vmatprep.subr.mxu0 0.0
    %9010 = vmatpush1.msra.mxu0 %v87
    %9011 = vmatprep.subr.mxu0 0.0
    %9012 = vmatpush1.msra.mxu0 %v88
    %9013 = vmatprep.subr.mxu0 0.0
    %9014 = vmatpush1.msra.mxu0 %v89
    %9015 = vmatprep.subr.mxu0 0.0
    %9016 = vmatpush1.msra.mxu0 %v90
    %9017 = vmatprep.subr.mxu0 0.0
    %9018 = vmatpush1.msra.mxu0 %v91
    %9019 = vmatprep.subr.mxu0 0.0
    %9020 = vmatpush1.msra.mxu0 %v92
    %9021 = vmatprep.subr.mxu0 0.0
    %9022 = vmatpush1.msra.mxu0 %v93
    %9023 = vmatprep.subr.mxu0 0.0
    %9024 = vmatpush1.msra.mxu0 %v94
    %9025 = vmatprep.subr.mxu0 0.0
    %9026 = vmatpush1.msra.mxu0 %v95
    %9027 = vmatprep.subr.mxu0 0.0
    %9028 = vmatpush1.msra.mxu0 %v96
    %9029 = vmatprep.subr.mxu0 0.0
    %9030 = vmatpush1.msra.mxu0 %v97
    %9031 = vmatprep.subr.mxu0 0.0
    %9032 = vmatpush1.msra.mxu0 %v98
    %9033 = vmatprep.subr.mxu0 0.0
    %9034 = vmatpush1.msra.mxu0 %v99
    %9035 = vmatprep.subr.mxu0 0.0
    %9036 = vmatpush1.msra.mxu0 %v100
    %9037 = vmatprep.subr.mxu0 0.0
    %9038 = vmatpush1.msra.mxu0 %v101
    %9039 = vmatprep.subr.mxu0 0.0
    %9040 = vmatpush1.msra.mxu0 %v102
    %9041 = vmatprep.subr.mxu0 0.0
    %9042 = vmatpush1.msra.mxu0 0.0
    %9043 = vmatprep.subr.mxu0 0.0
    %9044 = vmatpush1.msra.mxu0 0.0
    %9045 = vmatprep.subr.mxu0 0.0
    %9046 = vmatpush1.msra.mxu0 0.0
    %9047 = vmatprep.subr.mxu0 0.0
    %9048 = vmatpush1.msra.mxu0 0.0
    %9049 = vmatprep.subr.mxu0 0.0
    %9050 = vmatpush1.msra.mxu0 0.0
    %9051 = vmatprep.subr.mxu0 0.0
    %9052 = vmatpush1.msra.mxu0 0.0
    %9053 = vmatprep.subr.mxu0 0.0
    %9054 = vmatpush1.msra.mxu0 0.0
    %9055 = vmatprep.subr.mxu0 0.0
    %9056 = vmatpush1.msra.mxu0 0.0
    %9057 = vmatprep.subr.mxu0 0.0
    %9058 = vmatpush1.msra.mxu0 0.0
    %9059 = vmatprep.subr.mxu0 0.0
    %9060 = vmatpush1.msra.mxu0 0.0
    %9061 = vmatprep.subr.mxu0 0.0
    %9062 = vmatpush1.msra.mxu0 0.0
    %9063 = vmatprep.subr.mxu0 0.0
    %9064 = vmatpush1.msra.mxu0 0.0
    %9065 = vmatprep.subr.mxu0 0.0
    %9066 = vmatpush1.msra.mxu0 0.0
    %9067 = vmatprep.subr.mxu0 0.0
    %9068 = vmatpush1.msra.mxu0 0.0
    %9069 = vmatprep.subr.mxu0 0.0
    %9070 = vmatpush1.msra.mxu0 0.0
    %9071 = vmatprep.subr.mxu0 0.0
    %9072 = vmatpush1.msra.mxu0 0.0
    %9073 = vmatprep.mubr.f32.mxu0 0.0
    %9074 = vmatmul.mubr.f32.gmra.mrb[0].mxu0 %v9008
    %v9075 = vpop.f32.mrb[0].mxu0
    %v9076 = vadd.f32 %v297, %v9075
    %v9077 = vpop.f32.mrb[0].mxu0
    %9078 = vdwg.mxu0
    %v9079 = vtanh.pop %v9076
    %9080 = vmatprep.subr.mxu0 0.0
    %9081 = vmatpush1.msra.mxu0 %v104
    %9082 = vmatprep.subr.mxu0 0.0
    %9083 = vmatpush1.msra.mxu0 %v105
    %9084 = vmatprep.subr.mxu0 0.0
    %9085 = vmatpush1.msra.mxu0 %v106
    %9086 = vmatprep.subr.mxu0 0.0
    %9087 = vmatpush1.msra.mxu0 %v107
    %9088 = vmatprep.subr.mxu0 0.0
    %9089 = vmatpush1.msra.mxu0 %v108
    %9090 = vmatprep.subr.mxu0 0.0
    %9091 = vmatpush1.msra.mxu0 %v109
    %9092 = vmatprep.subr.mxu0 0.0
    %9093 = vmatpush1.msra.mxu0 %v110
    %9094 = vmatprep.subr.mxu0 0.0
    %9095 = vmatpush1.msra.mxu0 %v111
    %9096 = vmatprep.subr.mxu0 0.0
    %9097 = vmatpush1.msra.mxu0 %v112
    %9098 = vmatprep.subr.mxu0 0.0
    %9099 = vmatpush1.msra.mxu0 %v113
    %9100 = vmatprep.subr.mxu0 0.0
    %9101 = vmatpush1.msra.mxu0 %v114
    %9102 = vmatprep.subr.mxu0 0.0
    %9103 = vmatpush1.msra.mxu0 %v115
    %9104 = vmatprep.subr.mxu0 0.0
    %9105 = vmatpush1.msra.mxu0 %v116
    %9106 = vmatprep.subr.mxu0 0.0
    %9107 = vmatpush1.msra.mxu0 %v117
    %9108 = vmatprep.subr.mxu0 0.0
    %9109 = vmatpush1.msra.mxu0 %v118
    %9110 = vmatprep.subr.mxu0 0.0
    %9111 = vmatpush1.msra.mxu0 %v119
    %9112 = vmatprep.subr.mxu0 0.0
    %9113 = vmatpush1.msra.mxu0 0.0
    %9114 = vmatprep.subr.mxu0 0.0
    %9115 = vmatpush1.msra.mxu0 0.0
    %9116 = vmatprep.subr.mxu0 0.0
    %9117 = vmatpush1.msra.mxu0 0.0
    %9118 = vmatprep.subr.mxu0 0.0
    %9119 = vmatpush1.msra.mxu0 0.0
    %9120 = vmatprep.subr.mxu0 0.0
    %9121 = vmatpush1.msra.mxu0 0.0
    %9122 = vmatprep.subr.mxu0 0.0
    %9123 = vmatpush1.msra.mxu0 0.0
    %9124 = vmatprep.subr.mxu0 0.0
    %9125 = vmatpush1.msra.mxu0 0.0
    %9126 = vmatprep.subr.mxu0 0.0
    %9127 = vmatpush1.msra.mxu0 0.0
    %9128 = vmatprep.subr.mxu0 0.0
    %9129 = vmatpush1.msra.mxu0 0.0
    %9130 = vmatprep.subr.mxu0 0.0
    %9131 = vmatpush1.msra.mxu0 0.0
    %9132 = vmatprep.subr.mxu0 0.0
    %9133 = vmatpush1.msra.mxu0 0.0
    %9134 = vmatprep.subr.mxu0 0.0
    %9135 = vmatpush1.msra.mxu0 0.0
    %9136 = vmatprep.subr.mxu0 0.0
    %9137 = vmatpush1.msra.mxu0 0.0
    %9138 = vmatprep.subr.mxu0 0.0
    %9139 = vmatpush1.msra.mxu0 0.0
    %9140 = vmatprep.subr.mxu0 0.0
    %9141 = vmatpush1.msra.mxu0 0.0
    %9142 = vmatprep.subr.mxu0 0.0
    %9143 = vmatpush1.msra.mxu0 0.0
    %9144 = vmatprep.mubr.f32.mxu0 0.0
    %9145 = vmatmul.mubr.f32.gmra.mrb[0].mxu0 %v9079
    %v9146 = vpop.f32.mrb[0].mxu0
    %v9147 = vadd.f32 %v374, %v9146
    %v9148 = vpop.f32.mrb[0].mxu0
    %9149 = vdwg.mxu0
    %v9150 = vmul.f32 %v9147, 2.0
    %v9151 = vadd.f32 %v9006, %v9150
    %v9152 = vmul.f32 %v8573, %v9147
    %v9153 = vadd.f32 %v7991, %v9152
    %9154 = vmatprep.subr.mxu0 0.0
    %9155 = vmatpush1.msra.mxu0 %v87
    %9156 = vmatprep.subr.mxu0 0.0
    %9157 = vmatpush1.msra.mxu0 %v88
    %9158 = vmatprep.subr.mxu0 0.0
    %9159 = vmatpush1.msra.mxu0 %v89
    %9160 = vmatprep.subr.mxu0 0.0
    %9161 = vmatpush1.msra.mxu0 %v90
    %9162 = vmatprep.subr.mxu0 0.0
    %9163 = vmatpush1.msra.mxu0 %v91
    %9164 = vmatprep.subr.mxu0 0.0
    %9165 = vmatpush1.msra.mxu0 %v92
    %9166 = vmatprep.subr.mxu0 0.0
    %9167 = vmatpush1.msra.mxu0 %v93
    %9168 = vmatprep.subr.mxu0 0.0
    %9169 = vmatpush1.msra.mxu0 %v94
    %9170 = vmatprep.subr.mxu0 0.0
    %9171 = vmatpush1.msra.mxu0 %v95
    %9172 = vmatprep.subr.mxu0 0.0
    %9173 = vmatpush1.msra.mxu0 %v96
    %9174 = vmatprep.subr.mxu0 0.0
    %9175 = vmatpush1.msra.mxu0 %v97
    %9176 = vmatprep.subr.mxu0 0.0
    %9177 = vmatpush1.msra.mxu0 %v98
    %9178 = vmatprep.subr.mxu0 0.0
    %9179 = vmatpush1.msra.mxu0 %v99
    %9180 = vmatprep.subr.mxu0 0.0
    %9181 = vmatpush1.msra.mxu0 %v100
    %9182 = vmatprep.subr.mxu0 0.0
    %9183 = vmatpush1.msra.mxu0 %v101
    %9184 = vmatprep.subr.mxu0 0.0
    %9185 = vmatpush1.msra.mxu0 %v102
    %9186 = vmatprep.subr.mxu0 0.0
    %9187 = vmatpush1.msra.mxu0 0.0
    %9188 = vmatprep.subr.mxu0 0.0
    %9189 = vmatpush1.msra.mxu0 0.0
    %9190 = vmatprep.subr.mxu0 0.0
    %9191 = vmatpush1.msra.mxu0 0.0
    %9192 = vmatprep.subr.mxu0 0.0
    %9193 = vmatpush1.msra.mxu0 0.0
    %9194 = vmatprep.subr.mxu0 0.0
    %9195 = vmatpush1.msra.mxu0 0.0
    %9196 = vmatprep.subr.mxu0 0.0
    %9197 = vmatpush1.msra.mxu0 0.0
    %9198 = vmatprep.subr.mxu0 0.0
    %9199 = vmatpush1.msra.mxu0 0.0
    %9200 = vmatprep.subr.mxu0 0.0
    %9201 = vmatpush1.msra.mxu0 0.0
    %9202 = vmatprep.subr.mxu0 0.0
    %9203 = vmatpush1.msra.mxu0 0.0
    %9204 = vmatprep.subr.mxu0 0.0
    %9205 = vmatpush1.msra.mxu0 0.0
    %9206 = vmatprep.subr.mxu0 0.0
    %9207 = vmatpush1.msra.mxu0 0.0
    %9208 = vmatprep.subr.mxu0 0.0
    %9209 = vmatpush1.msra.mxu0 0.0
    %9210 = vmatprep.subr.mxu0 0.0
    %9211 = vmatpush1.msra.mxu0 0.0
    %9212 = vmatprep.subr.mxu0 0.0
    %9213 = vmatpush1.msra.mxu0 0.0
    %9214 = vmatprep.subr.mxu0 0.0
    %9215 = vmatpush1.msra.mxu0 0.0
    %9216 = vmatprep.subr.mxu0 0.0
    %9217 = vmatpush1.msra.mxu0 0.0
    %9218 = vmatprep.mubr.f32.mxu0 0.0
    %9219 = vmatmul.mubr.f32.gmra.mrb[0].mxu0 %v9153
    %v9220 = vpop.f32.mrb[0].mxu0
    %v9221 = vadd.f32 %v297, %v9220
    %v9222 = vpop.f32.mrb[0].mxu0
    %9223 = vdwg.mxu0
    %v9224 = vtanh.pop %v9221
    %9225 = vmatprep.subr.mxu0 0.0
    %9226 = vmatpush1.msra.mxu0 %v104
    %9227 = vmatprep.subr.mxu0 0.0
    %9228 = vmatpush1.msra.mxu0 %v105
    %9229 = vmatprep.subr.mxu0 0.0
    %9230 = vmatpush1.msra.mxu0 %v106
    %9231 = vmatprep.subr.mxu0 0.0
    %9232 = vmatpush1.msra.mxu0 %v107
    %9233 = vmatprep.subr.mxu0 0.0
    %9234 = vmatpush1.msra.mxu0 %v108
    %9235 = vmatprep.subr.mxu0 0.0
    %9236 = vmatpush1.msra.mxu0 %v109
    %9237 = vmatprep.subr.mxu0 0.0
    %9238 = vmatpush1.msra.mxu0 %v110
    %9239 = vmatprep.subr.mxu0 0.0
    %9240 = vmatpush1.msra.mxu0 %v111
    %9241 = vmatprep.subr.mxu0 0.0
    %9242 = vmatpush1.msra.mxu0 %v112
    %9243 = vmatprep.subr.mxu0 0.0
    %9244 = vmatpush1.msra.mxu0 %v113
    %9245 = vmatprep.subr.mxu0 0.0
    %9246 = vmatpush1.msra.mxu0 %v114
    %9247 = vmatprep.subr.mxu0 0.0
    %9248 = vmatpush1.msra.mxu0 %v115
    %9249 = vmatprep.subr.mxu0 0.0
    %9250 = vmatpush1.msra.mxu0 %v116
    %9251 = vmatprep.subr.mxu0 0.0
    %9252 = vmatpush1.msra.mxu0 %v117
    %9253 = vmatprep.subr.mxu0 0.0
    %9254 = vmatpush1.msra.mxu0 %v118
    %9255 = vmatprep.subr.mxu0 0.0
    %9256 = vmatpush1.msra.mxu0 %v119
    %9257 = vmatprep.subr.mxu0 0.0
    %9258 = vmatpush1.msra.mxu0 0.0
    %9259 = vmatprep.subr.mxu0 0.0
    %9260 = vmatpush1.msra.mxu0 0.0
    %9261 = vmatprep.subr.mxu0 0.0
    %9262 = vmatpush1.msra.mxu0 0.0
    %9263 = vmatprep.subr.mxu0 0.0
    %9264 = vmatpush1.msra.mxu0 0.0
    %9265 = vmatprep.subr.mxu0 0.0
    %9266 = vmatpush1.msra.mxu0 0.0
    %9267 = vmatprep.subr.mxu0 0.0
    %9268 = vmatpush1.msra.mxu0 0.0
    %9269 = vmatprep.subr.mxu0 0.0
    %9270 = vmatpush1.msra.mxu0 0.0
    %9271 = vmatprep.subr.mxu0 0.0
    %9272 = vmatpush1.msra.mxu0 0.0
    %9273 = vmatprep.subr.mxu0 0.0
    %9274 = vmatpush1.msra.mxu0 0.0
    %9275 = vmatprep.subr.mxu0 0.0
    %9276 = vmatpush1.msra.mxu0 0.0
    %9277 = vmatprep.subr.mxu0 0.0
    %9278 = vmatpush1.msra.mxu0 0.0
    %9279 = vmatprep.subr.mxu0 0.0
    %9280 = vmatpush1.msra.mxu0 0.0
    %9281 = vmatprep.subr.mxu0 0.0
    %9282 = vmatpush1.msra.mxu0 0.0
    %9283 = vmatprep.subr.mxu0 0.0
    %9284 = vmatpush1.msra.mxu0 0.0
    %9285 = vmatprep.subr.mxu0 0.0
    %9286 = vmatpush1.msra.mxu0 0.0
    %9287 = vmatprep.subr.mxu0 0.0
    %9288 = vmatpush1.msra.mxu0 0.0
    %9289 = vmatprep.mubr.f32.mxu0 0.0
    %9290 = vmatmul.mubr.f32.gmra.mrb[0].mxu0 %v9224
    %v9291 = vpop.f32.mrb[0].mxu0
    %v9292 = vadd.f32 %v374, %v9291
    %v9293 = vpop.f32.mrb[0].mxu0
    %9294 = vdwg.mxu0
    %v9295 = vadd.f32 %v9151, %v9292
    %v9296 = vmul.f32 %v8718, %v9295
    %v9297 = vadd.f32 %v7991, %v9296
    %9298 = vmatprep.subr.mxu0 0.0
    %9299 = vmatpush1.msra.mxu0 %v122
    %9300 = vmatprep.subr.mxu0 0.0
    %9301 = vmatpush1.msra.mxu0 %v123
    %9302 = vmatprep.subr.mxu0 0.0
    %9303 = vmatpush1.msra.mxu0 %v124
    %9304 = vmatprep.subr.mxu0 0.0
    %9305 = vmatpush1.msra.mxu0 %v125
    %9306 = vmatprep.subr.mxu0 0.0
    %9307 = vmatpush1.msra.mxu0 %v126
    %9308 = vmatprep.subr.mxu0 0.0
    %9309 = vmatpush1.msra.mxu0 %v127
    %9310 = vmatprep.subr.mxu0 0.0
    %9311 = vmatpush1.msra.mxu0 %v128
    %9312 = vmatprep.subr.mxu0 0.0
    %9313 = vmatpush1.msra.mxu0 %v129
    %9314 = vmatprep.subr.mxu0 0.0
    %9315 = vmatpush1.msra.mxu0 %v130
    %9316 = vmatprep.subr.mxu0 0.0
    %9317 = vmatpush1.msra.mxu0 %v131
    %9318 = vmatprep.subr.mxu0 0.0
    %9319 = vmatpush1.msra.mxu0 %v132
    %9320 = vmatprep.subr.mxu0 0.0
    %9321 = vmatpush1.msra.mxu0 %v133
    %9322 = vmatprep.subr.mxu0 0.0
    %9323 = vmatpush1.msra.mxu0 %v134
    %9324 = vmatprep.subr.mxu0 0.0
    %9325 = vmatpush1.msra.mxu0 %v135
    %9326 = vmatprep.subr.mxu0 0.0
    %9327 = vmatpush1.msra.mxu0 %v136
    %9328 = vmatprep.subr.mxu0 0.0
    %9329 = vmatpush1.msra.mxu0 %v137
    %9330 = vmatprep.subr.mxu0 0.0
    %9331 = vmatpush1.msra.mxu0 0.0
    %9332 = vmatprep.subr.mxu0 0.0
    %9333 = vmatpush1.msra.mxu0 0.0
    %9334 = vmatprep.subr.mxu0 0.0
    %9335 = vmatpush1.msra.mxu0 0.0
    %9336 = vmatprep.subr.mxu0 0.0
    %9337 = vmatpush1.msra.mxu0 0.0
    %9338 = vmatprep.subr.mxu0 0.0
    %9339 = vmatpush1.msra.mxu0 0.0
    %9340 = vmatprep.subr.mxu0 0.0
    %9341 = vmatpush1.msra.mxu0 0.0
    %9342 = vmatprep.subr.mxu0 0.0
    %9343 = vmatpush1.msra.mxu0 0.0
    %9344 = vmatprep.subr.mxu0 0.0
    %9345 = vmatpush1.msra.mxu0 0.0
    %9346 = vmatprep.subr.mxu0 0.0
    %9347 = vmatpush1.msra.mxu0 0.0
    %9348 = vmatprep.subr.mxu0 0.0
    %9349 = vmatpush1.msra.mxu0 0.0
    %9350 = vmatprep.subr.mxu0 0.0
    %9351 = vmatpush1.msra.mxu0 0.0
    %9352 = vmatprep.subr.mxu0 0.0
    %9353 = vmatpush1.msra.mxu0 0.0
    %9354 = vmatprep.subr.mxu0 0.0
    %9355 = vmatpush1.msra.mxu0 0.0
    %9356 = vmatprep.subr.mxu0 0.0
    %9357 = vmatpush1.msra.mxu0 0.0
    %9358 = vmatprep.subr.mxu0 0.0
    %9359 = vmatpush1.msra.mxu0 0.0
    %9360 = vmatprep.subr.mxu0 0.0
    %9361 = vmatpush1.msra.mxu0 0.0
    %9362 = vmatprep.mubr.f32.mxu0 0.0
    %9363 = vmatmul.mubr.f32.gmra.mrb[0].mxu0 %v8720
    %v9364 = vpop.f32.mrb[0].mxu0
    %v9365 = vadd.f32 %v143, %v9364
    %v9366 = vpop.f32.mrb[0].mxu0
    %9367 = vdwg.mxu0
    %s9368 = scalar_lea.vmem [#allocation12], 112
    %9369 = vst [vmem:[%s9368] sm:$0xff] %v9365
    %9370 = vmatprep.subr.mxu0 0.0
    %9371 = vmatpush1.msra.mxu0 %v122
    %9372 = vmatprep.subr.mxu0 0.0
    %9373 = vmatpush1.msra.mxu0 %v123
    %9374 = vmatprep.subr.mxu0 0.0
    %9375 = vmatpush1.msra.mxu0 %v124
    %9376 = vmatprep.subr.mxu0 0.0
    %9377 = vmatpush1.msra.mxu0 %v125
    %9378 = vmatprep.subr.mxu0 0.0
    %9379 = vmatpush1.msra.mxu0 %v126
    %9380 = vmatprep.subr.mxu0 0.0
    %9381 = vmatpush1.msra.mxu0 %v127
    %9382 = vmatprep.subr.mxu0 0.0
    %9383 = vmatpush1.msra.mxu0 %v128
    %9384 = vmatprep.subr.mxu0 0.0
    %9385 = vmatpush1.msra.mxu0 %v129
    %9386 = vmatprep.subr.mxu0 0.0
    %9387 = vmatpush1.msra.mxu0 %v130
    %9388 = vmatprep.subr.mxu0 0.0
    %9389 = vmatpush1.msra.mxu0 %v131
    %9390 = vmatprep.subr.mxu0 0.0
    %9391 = vmatpush1.msra.mxu0 %v132
    %9392 = vmatprep.subr.mxu0 0.0
    %9393 = vmatpush1.msra.mxu0 %v133
    %9394 = vmatprep.subr.mxu0 0.0
    %9395 = vmatpush1.msra.mxu0 %v134
    %9396 = vmatprep.subr.mxu0 0.0
    %9397 = vmatpush1.msra.mxu0 %v135
    %9398 = vmatprep.subr.mxu0 0.0
    %9399 = vmatpush1.msra.mxu0 %v136
    %9400 = vmatprep.subr.mxu0 0.0
    %9401 = vmatpush1.msra.mxu0 %v137
    %9402 = vmatprep.subr.mxu0 0.0
    %9403 = vmatpush1.msra.mxu0 0.0
    %9404 = vmatprep.subr.mxu0 0.0
    %9405 = vmatpush1.msra.mxu0 0.0
    %9406 = vmatprep.subr.mxu0 0.0
    %9407 = vmatpush1.msra.mxu0 0.0
    %9408 = vmatprep.subr.mxu0 0.0
    %9409 = vmatpush1.msra.mxu0 0.0
    %9410 = vmatprep.subr.mxu0 0.0
    %9411 = vmatpush1.msra.mxu0 0.0
    %9412 = vmatprep.subr.mxu0 0.0
    %9413 = vmatpush1.msra.mxu0 0.0
    %9414 = vmatprep.subr.mxu0 0.0
    %9415 = vmatpush1.msra.mxu0 0.0
    %9416 = vmatprep.subr.mxu0 0.0
    %9417 = vmatpush1.msra.mxu0 0.0
    %9418 = vmatprep.subr.mxu0 0.0
    %9419 = vmatpush1.msra.mxu0 0.0
    %9420 = vmatprep.subr.mxu0 0.0
    %9421 = vmatpush1.msra.mxu0 0.0
    %9422 = vmatprep.subr.mxu0 0.0
    %9423 = vmatpush1.msra.mxu0 0.0
    %9424 = vmatprep.subr.mxu0 0.0
    %9425 = vmatpush1.msra.mxu0 0.0
    %9426 = vmatprep.subr.mxu0 0.0
    %9427 = vmatpush1.msra.mxu0 0.0
    %9428 = vmatprep.subr.mxu0 0.0
    %9429 = vmatpush1.msra.mxu0 0.0
    %9430 = vmatprep.subr.mxu0 0.0
    %9431 = vmatpush1.msra.mxu0 0.0
    %9432 = vmatprep.subr.mxu0 0.0
    %9433 = vmatpush1.msra.mxu0 0.0
    %9434 = vmatprep.mubr.f32.mxu0 0.0
    %9435 = vmatmul.mubr.f32.gmra.mrb[0].mxu0 %v9297
    %v9436 = vpop.f32.mrb[0].mxu0
    %v9437 = vadd.f32 %v143, %v9436
    %v9438 = vpop.f32.mrb[0].mxu0
    %9439 = vdwg.mxu0
    %s9440 = scalar_lea.vmem [#allocation12], 120
    %9441 = vst [vmem:[%s9440] sm:$0xff] %v9437
    // Predicated region
    $region46: #{tpu_custom_call.1} parent=1 // pred_check
      _
    $region47: #{tpu_custom_call.1} parent=1 // pred_check_branch
      %9443 = sbr.rel (0) target = $region49
    $region48: #{tpu_custom_call.1} parent=1 // pred_region
      %s9445 = ssub.s32 2048, 2048
      %9446 = vsyncadd [#allocation6], %s9445
      %s9447 = sshll.u32 [#allocation12], 4
      %s9448 = int_to_ptr.vmem [resolvable:$true] %s9447
      %9453 = dma.vmem_to_hbm [thread:$0]  %s9448, 2048, %s8, [#allocation6], 128, 128, 8
    $region49: #{tpu_custom_call.1} parent=1 // pred_fallthru
      _
    // Predicated region
    $region50: #{tpu_custom_call.1} parent=1 // pred_check
      _
    $region51: #{tpu_custom_call.1} parent=1 // pred_check_branch
      %9455 = sbr.rel (0) target = $region53
    $region52: #{tpu_custom_call.1} parent=1 // pred_region
      %9456 = dma.done [#allocation6], 2048
    $region53: #{tpu_custom_call.1} parent=1 // pred_fallthru
      _
    %9457 = vsyncpa [#allocation5], 1
    %9458 = vsyncpa [#allocation8], 1
    %9459 = vsyncpa [#allocation11], 1
    %9460 = vsyncpa [#allocation6], 1

</llo_original>
